<compile_context>
chip_gen: v5e
topology: v5e:2x2
jax: 0.10.0
libtpu: 0.0.40
codegen_flags: <defaults>
</compile_context>

<pallas_src>
import math

import numpy as np

import jax
import jax.numpy as jnp
from jax.experimental import pallas as pl
from jax.experimental.pallas import tpu as pltpu

# ----------------------------- configuration (small) -----------------------------
B = 2                      # batch size
N = 2                      # number of text prompts (lang_output dim 1)
H_TOK = 4                  # image_seq_size
HH = H_TOK * H_TOK         # 16 patch tokens
S = HH + 1                 # 17 tokens (CLS + patches)
S_PAD = 24                 # padded token block (multiple of 8) -> aligned sublane slices
D_IMAGE = 128
D_TEXT = 128
D_REDUCE = 64
NHEAD = 4
HEAD_DIM = D_REDUCE // NHEAD
DFFN = 128
C2 = D_REDUCE // 2
LN_EPS = 1e-5

_BF16 = jnp.bfloat16
_SQRT_2_OVER_PI = 0.7978845608028654


# ----------------------------- in-kernel math helpers -----------------------------
def _dot(x, y):
    """bf16 MXU matmul with f32 accumulation (operands cast at the matmul boundary)."""
    return jnp.dot(x.astype(_BF16), y.astype(_BF16), preferred_element_type=jnp.float32)


def _gelu(x):
    # tanh-approximate GELU (EUP tanh instead of the VALU-heavy erf polynomial); the
    # deviation from exact erf-GELU is far inside the validation tolerance.
    return 0.5 * x * (1.0 + jnp.tanh(_SQRT_2_OVER_PI * (x + 0.044715 * x * x * x)))


def _layer_norm(x, g, b):
    mu = jnp.mean(x, axis=-1, keepdims=True)
    xc = x - mu
    var = jnp.mean(xc * xc, axis=-1, keepdims=True)
    return xc * jax.lax.rsqrt(var + LN_EPS) * g + b


# ----------------------------- fused decoder + mask-head kernel ------------------------------
def _make_clipseg_kernel(G):
    """Kernel processing G prompts per grid step (row layout: r = (g*B + b)*S_PAD + s)."""
    R2 = G * B * HH
    scale = 1.0 / math.sqrt(HEAD_DIM)

    def kernel(lang_ref, hs_ref, hmat_ref,
               wr_ref, br_ref, wmul_ref, bmul_ref, wadd_ref, badd_ref,
               win_ref, bin_ref, wo_ref, bo_ref,
               g1_ref, be1_ref, w1_ref, bf1_ref, w2_ref, bf2_ref, g2_ref, be2_ref,
               gat_ref, wc_ref, bc_ref, wd1_ref, bd1_ref, wd2_ref, bd2_ref,
               o_ref):
        # FiLM conditioning: lang_ref is already replicated over token rows on the host,
        # so two lane-dense matmuls give the per-row scale/shift directly.
        lang = lang_ref[...]                                               # (R, d_text) bf16
        mul_tile = _dot(lang, wmul_ref[...]) + bmul_ref[...]               # (R, D) f32
        add_tile = _dot(lang, wadd_ref[...]) + badd_ref[...]

        hmat = hmat_ref[...]                                               # (D, D) head pool/bcast

        a = None
        for l in range(3):
            # reduce(hs) (+ accumulate), then FiLM — batched over all prompts and batches.
            r = _dot(hs_ref[l], wr_ref[l]) + br_ref[l]                     # (R, D)
            a = r if a is None else a + r
            a = a * mul_tile + add_tile

            # fused QKV projection for the whole stacked state
            qkv = _dot(a, win_ref[l]) + bin_ref[l]                         # (R, 3D)
            q = qkv[:, :D_REDUCE]
            k = qkv[:, D_REDUCE:2 * D_REDUCE]
            v = qkv[:, 2 * D_REDUCE:]

            # Self-attention over the *batch* axis (module's batch_first quirk).
            # Heads are contiguous 16-lane blocks, so (q*k) @ hmat pools each head's
            # score and re-broadcasts it across the head's lanes.  All (prompt, b, c)
            # score matmuls are batched into ONE MXU op per layer.
            qk_blocks = []
            for gb in range(G * B):
                g0 = (gb // B) * B
                qb = q[gb * S_PAD:(gb + 1) * S_PAD, :]
                for c in range(B):
                    kc = k[(g0 + c) * S_PAD:(g0 + c + 1) * S_PAD, :]
                    qk_blocks.append(qb * kc)
            sc_all = _dot(jnp.concatenate(qk_blocks, axis=0), hmat) * scale   # (G*B*B*S_PAD, D)

            attn_blocks = []
            for gb in range(G * B):
                g0 = (gb // B) * B
                base = gb * B * S_PAD
                scs = [sc_all[base + c * S_PAD: base + (c + 1) * S_PAD, :] for c in range(B)]
                m = scs[0]
                for c in range(1, B):
                    m = jnp.maximum(m, scs[c])
                es = [jnp.exp(s_ - m) for s_ in scs]
                den = es[0]
                for c in range(1, B):
                    den = den + es[c]
                # deliberate approximation: denom >= 1 after max subtraction, error bounded
                inv = pl.reciprocal(den, approx=True)
                ob = (es[0] * inv) * v[g0 * S_PAD:(g0 + 1) * S_PAD, :]
                for c in range(1, B):
                    ob = ob + (es[c] * inv) * v[(g0 + c) * S_PAD:(g0 + c + 1) * S_PAD, :]
                attn_blocks.append(ob)
            attn = _dot(jnp.concatenate(attn_blocks, axis=0), wo_ref[l]) + bo_ref[l]   # (R, D)

            x = _layer_norm(a + attn, g1_ref[l], be1_ref[l])
            ff = _dot(_gelu(_dot(x, w1_ref[l]) + bf1_ref[l]), w2_ref[l]) + bf2_ref[l]
            a = _layer_norm(x + ff, g2_ref[l], be2_ref[l])

        # ---- mask head ----
        # Patch tokens occupy rows [gb*S_PAD, gb*S_PAD + HH) (CLS was moved to the end of
        # each block on the host), so every slice here is 8-sublane aligned.
        feats = jnp.concatenate(
            [a[gb * S_PAD: gb * S_PAD + HH, :] for gb in range(G * B)], axis=0)   # (R2, D)

        # 3x3 conv, replicate padding: one fat channel matmul + 9 *independent* gather
        # matmuls (replicate-pad shifts as 0/1 block-diag matrices) combined with a
        # log-depth tree sum (no 9-deep serial MRF-pop -> add chain).
        z = _dot(feats, wc_ref[...])                                       # (R2, 9*D)
        parts = [_dot(gat_ref[kk], z[:, kk * D_REDUCE:(kk + 1) * D_REDUCE]) for kk in range(9)]
        while len(parts) > 1:
            nxt = [parts[i] + parts[i + 1] for i in range(0, len(parts) - 1, 2)]
            if len(parts) % 2:
                nxt.append(parts[-1])
            parts = nxt
        y1 = _gelu(parts[0] + bc_ref[...])                                 # (R2, D)

        # deconv1 (4x4 / stride 4, D -> C2): all 16 offsets in one matmul, one GELU
        t = _gelu(_dot(y1, wd1_ref[...]) + bd1_ref[...])                   # (R2, 16*C2)

        # deconv2 (4x4 / stride 4, C2 -> 1) via a bf16 block-diagonal weight: a single
        # lane-dense (R2, 256) matmul; lane index = (ki*4+kj)*16 + (mi*4+mj).
        o_ref[...] = _dot(t, wd2_ref[...]) + bd2_ref[...]                  # (R2, 256)

    return kernel


# ----------------------------- parameters (deterministic, torch-convention shapes) ---------------
def init_params(key):
    keys = iter(jax.random.split(key, 32))

    def w(shape, scale=0.05):
        return scale * jax.random.normal(next(keys), shape, jnp.float32)

    p = {}
    p["reduce_w"] = w((3, D_REDUCE, D_IMAGE))          # Linear(d_image, d_reduce) x3
    p["reduce_b"] = w((3, D_REDUCE))
    p["film_mul_w"] = w((D_REDUCE, D_TEXT))
    p["film_mul_b"] = w((D_REDUCE,))
    p["film_add_w"] = w((D_REDUCE, D_TEXT))
    p["film_add_b"] = w((D_REDUCE,))
    p["in_proj_w"] = w((3, 3 * D_REDUCE, D_REDUCE))    # MHA in_proj per layer
    p["in_proj_b"] = w((3, 3 * D_REDUCE))
    p["out_proj_w"] = w((3, D_REDUCE, D_REDUCE))
    p["out_proj_b"] = w((3, D_REDUCE))
    p["ln1_g"] = jnp.ones((3, D_REDUCE), jnp.float32)
    p["ln1_b"] = jnp.zeros((3, D_REDUCE), jnp.float32)
    p["ln2_g"] = jnp.ones((3, D_REDUCE), jnp.float32)
    p["ln2_b"] = jnp.zeros((3, D_REDUCE), jnp.float32)
    p["ffn1_w"] = w((3, DFFN, D_REDUCE))
    p["ffn1_b"] = w((3, DFFN))
    p["ffn2_w"] = w((3, D_REDUCE, DFFN))
    p["ffn2_b"] = w((3, D_REDUCE))
    p["conv_w"] = w((D_REDUCE, D_REDUCE, 3, 3))        # Conv2d (O, I, kh, kw)
    p["conv_b"] = w((D_REDUCE,))
    p["deconv1_w"] = w((D_REDUCE, C2, 4, 4))           # ConvTranspose2d (I, O, kh, kw)
    p["deconv1_b"] = w((C2,))
    p["deconv2_w"] = w((C2, 1, 4, 4))
    p["deconv2_b"] = w((1,))
    return p


# ----------------------------- host-side constant builders -----------------------------
def _build_conv_gather(h, n_imgs):
    """(9, n_imgs*h*h, n_imgs*h*h) 0/1 matrices: replicate-padded 3x3 shifts, block-diag."""
    hh = h * h
    g = np.zeros((9, n_imgs * hh, n_imgs * hh), np.float32)
    for ky in range(3):
        for kx in range(3):
            kk = ky * 3 + kx
            for im in range(n_imgs):
                for i in range(h):
                    for j in range(h):
                        si = min(max(i + ky - 1, 0), h - 1)
                        sj = min(max(j + kx - 1, 0), h - 1)
                        g[kk, im * hh + i * h + j, im * hh + si * h + sj] = 1.0
    return g


def _default_prompts_per_step(n_prompts):
    """v7x has 2 TensorCores per chip: keep one prompt per grid step so the 'parallel'
    grid axis spreads prompts across cores.  Single-TC chips (v5e/v6e) fold all prompts
    into the row dimension (one grid step, 2x MXU row occupancy)."""
    try:
        kind = jax.devices()[0].device_kind.lower()
    except Exception:
        kind = ""
    if "v7" in kind:
        return 1
    return n_prompts


# ----------------------------- Pallas-backed forward -----------------------------
def clipseg_decoder_forward(lang_output, hidden_states, p, prompts_per_step=None):
    B_, N_, _ = lang_output.shape
    S_ = hidden_states[0].shape[1]
    h = int(math.sqrt(S_))                      # == int(np.sqrt(S)) in the torch code
    assert B_ == B and N_ == N and S_ == S and h == H_TOK and len(hidden_states) == 3

    G = _default_prompts_per_step(N_) if prompts_per_step is None else prompts_per_step
    assert N_ % G == 0
    n_steps = N_ // G
    R = G * B_ * S_PAD           # decoder state rows per grid step
    R2 = G * B_ * HH             # mask-head rows per grid step

    f32 = jnp.float32

    # -------- activations: token permutation (patches first, CLS last) + pad + G-tiling --------
    lang_t = jnp.transpose(lang_output, (1, 0, 2)).astype(f32)            # (N, B, d_text)
    lang_rows = jnp.broadcast_to(lang_t[:, :, None, :], (N_, B_, S_PAD, D_TEXT))
    lang_rows = lang_rows.reshape(n_steps, R, D_TEXT).astype(_BF16)       # (n_steps, R, d_text)

    hs = jnp.stack(hidden_states, 0).astype(f32)                          # (3, B, S, d_image)
    hs_perm = jnp.concatenate([hs[:, :, 1:, :], hs[:, :, :1, :]], axis=2)  # patches..., CLS
    hs_pad = jnp.pad(hs_perm, ((0, 0), (0, 0), (0, S_PAD - S_), (0, 0)))   # (3, B, S_PAD, d_image)
    hs_rows = jnp.broadcast_to(hs_pad[:, None], (3, G, B_, S_PAD, D_IMAGE))
    hs_rows = hs_rows.reshape(3, R, D_IMAGE).astype(_BF16)

    # -------- parameter re-layout (static glue) --------
    wr = jnp.transpose(p["reduce_w"], (0, 2, 1)).astype(_BF16)            # (3, d_image, D)
    br = p["reduce_b"][:, None, :]
    wmul = p["film_mul_w"].T.astype(_BF16)                                # (d_text, D)
    bmul = p["film_mul_b"][None, :]
    wadd = p["film_add_w"].T.astype(_BF16)
    badd = p["film_add_b"][None, :]
    win = jnp.transpose(p["in_proj_w"], (0, 2, 1)).astype(_BF16)          # (3, D, 3D) fused QKV
    bin_ = p["in_proj_b"][:, None, :]
    wo = jnp.transpose(p["out_proj_w"], (0, 2, 1)).astype(_BF16)
    bo = p["out_proj_b"][:, None, :]
    g1, be1 = p["ln1_g"][:, None, :], p["ln1_b"][:, None, :]
    g2, be2 = p["ln2_g"][:, None, :], p["ln2_b"][:, None, :]
    w1, bf1 = jnp.transpose(p["ffn1_w"], (0, 2, 1)).astype(_BF16), p["ffn1_b"][:, None, :]
    w2, bf2 = jnp.transpose(p["ffn2_w"], (0, 2, 1)).astype(_BF16), p["ffn2_b"][:, None, :]

    # per-head score pool+broadcast matrix (block-diag ones over the 4 head groups)
    hmat = jnp.asarray(np.kron(np.eye(NHEAD), np.ones((HEAD_DIM, HEAD_DIM))), _BF16)

    # conv / deconv weights in matmul form (bf16)
    C = D_REDUCE
    wc9 = jnp.transpose(p["conv_w"], (2, 3, 1, 0)).reshape(9, C, C)       # [k, ci, o]
    wc_all = jnp.transpose(wc9, (1, 0, 2)).reshape(C, 9 * C).astype(_BF16)  # [ci, k*C + o]
    bc = p["conv_b"][None, :]
    gat = jnp.asarray(_build_conv_gather(h, G * B_), np.float32).astype(_BF16)  # (9, R2, R2)

    wd1_16 = jnp.transpose(p["deconv1_w"], (2, 3, 0, 1)).reshape(16, C, C2)   # [kk, ci, co]
    wd1_all = jnp.transpose(wd1_16, (1, 0, 2)).reshape(C, 16 * C2).astype(_BF16)  # [ci, kk*C2+co]
    bd1_all = jnp.tile(p["deconv1_b"], 16)[None, :]                       # (1, 16*C2)
    wd2_mat = p["deconv2_w"].reshape(C2, 16)                              # [co, mi*4+mj]
    wd2_big = jnp.einsum("cm,kj->kcjm", wd2_mat,
                         jnp.eye(16, dtype=f32)).reshape(16 * C2, 256).astype(_BF16)
    bd2 = p["deconv2_b"].reshape(1, 1)

    args = (lang_rows, hs_rows, hmat,
            wr, br, wmul, bmul, wadd, badd,
            win, bin_, wo, bo,
            g1, be1, w1, bf1, w2, bf2, g2, be2,
            gat, wc_all, bc, wd1_all, bd1_all, wd2_big, bd2)

    def _full(x):   # whole-array block, grid rank 1
        nd = x.ndim
        return pl.BlockSpec(x.shape, lambda t, _nd=nd: (0,) * _nd)

    in_specs = [pl.BlockSpec((None, R, D_TEXT), lambda t: (t, 0, 0))]
    in_specs += [_full(x) for x in args[1:]]

    out = pl.pallas_call(
        _make_clipseg_kernel(G),
        grid=(n_steps,),
        in_specs=in_specs,
        out_specs=pl.BlockSpec((None, R2, 256), lambda t: (t, 0, 0)),
        out_shape=jax.ShapeDtypeStruct((n_steps, R2, 256), f32),
        compiler_params=pltpu.CompilerParams(dimension_semantics=("parallel",)),
    )(*args)                                                              # (n_steps, R2, 256)

    # glue: interleave (coarse pixel, 4x4 deconv1 offset, 4x4 deconv2 offset) into full res
    outk = out.reshape(n_steps, G, B_, h, h, 4, 4, 4, 4)     # (t, g, b, i, j, ki, kj, mi, mj)
    masks = jnp.transpose(outk, (2, 0, 1, 3, 5, 7, 4, 6, 8)).reshape(B_, N_, 16 * h, 16 * h)
    return masks, lang_output


# ----------------------------- plain-JAX reference (for validation) -----------------------------
def reference_forward(lang_output, hidden_states, p):
    gelu = lambda x: jax.nn.gelu(x, approximate=False)

    def layer_norm(x, g, b):
        mu = jnp.mean(x, axis=-1, keepdims=True)
        var = jnp.mean((x - mu) ** 2, axis=-1, keepdims=True)
        return (x - mu) / jnp.sqrt(var + LN_EPS) * g + b

    B_, N_, _ = lang_output.shape
    S_ = hidden_states[0].shape[1]
    h = int(math.sqrt(S_))
    lang_t = jnp.transpose(lang_output, (1, 0, 2))
    masks = []
    for n in range(N_):
        emb = lang_t[n]
        mul = emb @ p["film_mul_w"].T + p["film_mul_b"]
        add = emb @ p["film_add_w"].T + p["film_add_b"]
        a = None
        for l in range(3):
            hs = jnp.transpose(hidden_states[l], (1, 0, 2))          # (S, B, d_image)
            r = hs @ p["reduce_w"][l].T + p["reduce_b"][l]
            a = r if a is None else a + r
            a = a * mul + add
            x = a
            qkv = x @ p["in_proj_w"][l].T + p["in_proj_b"][l]
            q, k, v = jnp.split(qkv, 3, axis=-1)

            def to_heads(t):
                return jnp.transpose(t.reshape(S_, B_, NHEAD, HEAD_DIM), (0, 2, 1, 3))

            qh, kh, vh = to_heads(q), to_heads(k), to_heads(v)
            sc = jnp.einsum("shbd,shcd->shbc", qh, kh) / math.sqrt(HEAD_DIM)
            pa = jax.nn.softmax(sc, axis=-1)
            oh = jnp.einsum("shbc,shcd->shbd", pa, vh)
            oh = jnp.transpose(oh, (0, 2, 1, 3)).reshape(S_, B_, D_REDUCE)
            attn = oh @ p["out_proj_w"][l].T + p["out_proj_b"][l]
            x = layer_norm(x + attn, p["ln1_g"][l], p["ln1_b"][l])
            ff = gelu(x @ p["ffn1_w"][l].T + p["ffn1_b"][l]) @ p["ffn2_w"][l].T + p["ffn2_b"][l]
            x = layer_norm(x + ff, p["ln2_g"][l], p["ln2_b"][l])
            a = x
        feat = jnp.transpose(a[1:], (1, 2, 0)).reshape(B_, D_REDUCE, h, h)   # NCHW
        xpad = jnp.pad(feat, ((0, 0), (0, 0), (1, 1), (1, 1)), mode="edge")
        y = jnp.zeros((B_, D_REDUCE, h, h), jnp.float32)
        for ky in range(3):
            for kx in range(3):
                y = y + jnp.einsum("bcyx,oc->boyx",
                                   xpad[:, :, ky:ky + h, kx:kx + h],
                                   p["conv_w"][:, :, ky, kx])
        y = gelu(y + p["conv_b"][None, :, None, None])

        def deconv4(z, w, bias):
            Bb, _, hh, ww = z.shape
            Co = w.shape[1]
            t = jnp.einsum("bcij,cokl->boikjl", z, w).reshape(Bb, Co, hh * 4, ww * 4)
            return t + bias[None, :, None, None]

        y = gelu(deconv4(y, p["deconv1_w"], p["deconv1_b"]))
        y = deconv4(y, p["deconv2_w"], p["deconv2_b"])
        masks.append(y)
    return jnp.concatenate(masks, axis=1)


# ----------------------------- main -----------------------------
if __name__ == "__main__":
    key = jax.random.PRNGKey(0)
    k_lang, k_h0, k_h1, k_h2, k_params = jax.random.split(key, 5)
    lang_output = jax.random.normal(k_lang, (B, N, D_TEXT), jnp.float32)
    hidden_states = [jax.random.normal(k, (B, S, D_IMAGE), jnp.float32)
                     for k in (k_h0, k_h1, k_h2)]
    params = init_params(k_params)

    masks, lang_out = clipseg_decoder_forward(lang_output, hidden_states, params)
    masks = jax.block_until_ready(masks)

    assert masks.shape == (B, N, 16 * H_TOK, 16 * H_TOK), masks.shape
    assert bool(jnp.all(jnp.isfinite(masks)))

    with jax.default_matmul_precision("highest"):
        ref_masks = reference_forward(lang_output, hidden_states, params)
    ref_masks = jax.block_until_ready(ref_masks)

    err = float(jnp.max(jnp.abs(masks - ref_masks)))
    scale = float(jnp.max(jnp.abs(ref_masks)))
    assert err <= 5e-3 + 3e-2 * scale, f"kernel/reference mismatch: err={err}, ref scale={scale}"

    print("KERNEL_OK")
</pallas_src>

<mosaic_0001>
module attributes {stable_mosaic.version = 11 : i64} {
  func.func @kernel(%arg0: i32, %arg1: memref<1x96x128xbf16, #tpu.memory_space<vmem>>, %arg2: memref<3x96x128xbf16, #tpu.memory_space<vmem>>, %arg3: memref<64x64xbf16, #tpu.memory_space<vmem>>, %arg4: memref<3x128x64xbf16, #tpu.memory_space<vmem>>, %arg5: memref<3x1x64xf32, #tpu.memory_space<vmem>>, %arg6: memref<128x64xbf16, #tpu.memory_space<vmem>>, %arg7: memref<1x64xf32, #tpu.memory_space<vmem>>, %arg8: memref<128x64xbf16, #tpu.memory_space<vmem>>, %arg9: memref<1x64xf32, #tpu.memory_space<vmem>>, %arg10: memref<3x64x192xbf16, #tpu.memory_space<vmem>>, %arg11: memref<3x1x192xf32, #tpu.memory_space<vmem>>, %arg12: memref<3x64x64xbf16, #tpu.memory_space<vmem>>, %arg13: memref<3x1x64xf32, #tpu.memory_space<vmem>>, %arg14: memref<3x1x64xf32, #tpu.memory_space<vmem>>, %arg15: memref<3x1x64xf32, #tpu.memory_space<vmem>>, %arg16: memref<3x64x128xbf16, #tpu.memory_space<vmem>>, %arg17: memref<3x1x128xf32, #tpu.memory_space<vmem>>, %arg18: memref<3x128x64xbf16, #tpu.memory_space<vmem>>, %arg19: memref<3x1x64xf32, #tpu.memory_space<vmem>>, %arg20: memref<3x1x64xf32, #tpu.memory_space<vmem>>, %arg21: memref<3x1x64xf32, #tpu.memory_space<vmem>>, %arg22: memref<9x64x64xbf16, #tpu.memory_space<vmem>>, %arg23: memref<64x576xbf16, #tpu.memory_space<vmem>>, %arg24: memref<1x64xf32, #tpu.memory_space<vmem>>, %arg25: memref<64x512xbf16, #tpu.memory_space<vmem>>, %arg26: memref<1x512xf32, #tpu.memory_space<vmem>>, %arg27: memref<512x256xbf16, #tpu.memory_space<vmem>>, %arg28: memref<1x1xf32, #tpu.memory_space<vmem>>, %arg29: memref<1x64x256xf32, #tpu.memory_space<vmem>>) attributes {dimension_semantics = [#tpu.dimension_semantics<parallel>], iteration_bounds = array<i64: 1>, scalar_prefetch = 0 : i64, scratch_operands = 0 : i64, tpu.core_type = #tpu.core_type<tc>, window_params = [{transform_indices = @transform_0, window_bounds = array<i64: 1, 96, 128>}, {pipeline_mode = #tpu.pipeline_mode<synchronous>, transform_indices = @transform_1, window_bounds = array<i64: 3, 96, 128>}, {pipeline_mode = #tpu.pipeline_mode<synchronous>, transform_indices = @transform_2, window_bounds = array<i64: 64, 64>}, {pipeline_mode = #tpu.pipeline_mode<synchronous>, transform_indices = @transform_3, window_bounds = array<i64: 3, 128, 64>}, {pipeline_mode = #tpu.pipeline_mode<synchronous>, transform_indices = @transform_4, window_bounds = array<i64: 3, 1, 64>}, {pipeline_mode = #tpu.pipeline_mode<synchronous>, transform_indices = @transform_5, window_bounds = array<i64: 128, 64>}, {pipeline_mode = #tpu.pipeline_mode<synchronous>, transform_indices = @transform_6, window_bounds = array<i64: 1, 64>}, {pipeline_mode = #tpu.pipeline_mode<synchronous>, transform_indices = @transform_7, window_bounds = array<i64: 128, 64>}, {pipeline_mode = #tpu.pipeline_mode<synchronous>, transform_indices = @transform_8, window_bounds = array<i64: 1, 64>}, {pipeline_mode = #tpu.pipeline_mode<synchronous>, transform_indices = @transform_9, window_bounds = array<i64: 3, 64, 192>}, {pipeline_mode = #tpu.pipeline_mode<synchronous>, transform_indices = @transform_10, window_bounds = array<i64: 3, 1, 192>}, {pipeline_mode = #tpu.pipeline_mode<synchronous>, transform_indices = @transform_11, window_bounds = array<i64: 3, 64, 64>}, {pipeline_mode = #tpu.pipeline_mode<synchronous>, transform_indices = @transform_12, window_bounds = array<i64: 3, 1, 64>}, {pipeline_mode = #tpu.pipeline_mode<synchronous>, transform_indices = @transform_13, window_bounds = array<i64: 3, 1, 64>}, {pipeline_mode = #tpu.pipeline_mode<synchronous>, transform_indices = @transform_14, window_bounds = array<i64: 3, 1, 64>}, {pipeline_mode = #tpu.pipeline_mode<synchronous>, transform_indices = @transform_15, window_bounds = array<i64: 3, 64, 128>}, {pipeline_mode = #tpu.pipeline_mode<synchronous>, transform_indices = @transform_16, window_bounds = array<i64: 3, 1, 128>}, {pipeline_mode = #tpu.pipeline_mode<synchronous>, transform_indices = @transform_17, window_bounds = array<i64: 3, 128, 64>}, {pipeline_mode = #tpu.pipeline_mode<synchronous>, transform_indices = @transform_18, window_bounds = array<i64: 3, 1, 64>}, {pipeline_mode = #tpu.pipeline_mode<synchronous>, transform_indices = @transform_19, window_bounds = array<i64: 3, 1, 64>}, {pipeline_mode = #tpu.pipeline_mode<synchronous>, transform_indices = @transform_20, window_bounds = array<i64: 3, 1, 64>}, {pipeline_mode = #tpu.pipeline_mode<synchronous>, transform_indices = @transform_21, window_bounds = array<i64: 9, 64, 64>}, {pipeline_mode = #tpu.pipeline_mode<synchronous>, transform_indices = @transform_22, window_bounds = array<i64: 64, 576>}, {pipeline_mode = #tpu.pipeline_mode<synchronous>, transform_indices = @transform_23, window_bounds = array<i64: 1, 64>}, {pipeline_mode = #tpu.pipeline_mode<synchronous>, transform_indices = @transform_24, window_bounds = array<i64: 64, 512>}, {pipeline_mode = #tpu.pipeline_mode<synchronous>, transform_indices = @transform_25, window_bounds = array<i64: 1, 512>}, {pipeline_mode = #tpu.pipeline_mode<synchronous>, transform_indices = @transform_26, window_bounds = array<i64: 512, 256>}, {pipeline_mode = #tpu.pipeline_mode<synchronous>, transform_indices = @transform_27, window_bounds = array<i64: 1, 1>}, {transform_indices = @transform_28, window_bounds = array<i64: 1, 64, 256>}]} {
    %c0 = arith.constant 0 : index
    %c0_0 = arith.constant 0 : index
    %c0_1 = arith.constant 0 : index
    %0 = vector.load %arg1[%c0, %c0_0, %c0_1] : memref<1x96x128xbf16, #tpu.memory_space<vmem>>, vector<1x96x128xbf16>
    %1 = vector.shape_cast %0 : vector<1x96x128xbf16> to vector<96x128xbf16>
    %c0_2 = arith.constant 0 : index
    %c0_3 = arith.constant 0 : index
    %2 = vector.load %arg6[%c0_2, %c0_3] : memref<128x64xbf16, #tpu.memory_space<vmem>>, vector<128x64xbf16>
    %cst = arith.constant dense<0.000000e+00> : vector<96x64xf32>
    %3 = tpu.matmul %1, %2, %cst {dimension_numbers = #tpu.dot_dimension_numbers<[1], [0], [0], [1], [0, 0, 1, 1], [], []>} : vector<96x128xbf16>, vector<128x64xbf16>, vector<96x64xf32> -> vector<96x64xf32>
    %c0_4 = arith.constant 0 : index
    %c0_5 = arith.constant 0 : index
    %4 = vector.load %arg7[%c0_4, %c0_5] : memref<1x64xf32, #tpu.memory_space<vmem>>, vector<1x64xf32>
    %5 = vector.broadcast %4 : vector<1x64xf32> to vector<96x64xf32>
    %6 = arith.addf %3, %5 : vector<96x64xf32>
    %c0_6 = arith.constant 0 : index
    %c0_7 = arith.constant 0 : index
    %7 = vector.load %arg8[%c0_6, %c0_7] : memref<128x64xbf16, #tpu.memory_space<vmem>>, vector<128x64xbf16>
    %cst_8 = arith.constant dense<0.000000e+00> : vector<96x64xf32>
    %8 = tpu.matmul %1, %7, %cst_8 {dimension_numbers = #tpu.dot_dimension_numbers<[1], [0], [0], [1], [0, 0, 1, 1], [], []>} : vector<96x128xbf16>, vector<128x64xbf16>, vector<96x64xf32> -> vector<96x64xf32>
    %c0_9 = arith.constant 0 : index
    %c0_10 = arith.constant 0 : index
    %9 = vector.load %arg9[%c0_9, %c0_10] : memref<1x64xf32, #tpu.memory_space<vmem>>, vector<1x64xf32>
    %10 = vector.broadcast %9 : vector<1x64xf32> to vector<96x64xf32>
    %11 = arith.addf %8, %10 : vector<96x64xf32>
    %c0_11 = arith.constant 0 : index
    %c0_12 = arith.constant 0 : index
    %12 = vector.load %arg3[%c0_11, %c0_12] : memref<64x64xbf16, #tpu.memory_space<vmem>>, vector<64x64xbf16>
    %c0_13 = arith.constant 0 : index
    %c0_14 = arith.constant 0 : index
    %c0_15 = arith.constant 0 : index
    %13 = vector.load %arg2[%c0_13, %c0_14, %c0_15] : memref<3x96x128xbf16, #tpu.memory_space<vmem>>, vector<1x96x128xbf16>
    %14 = vector.shape_cast %13 : vector<1x96x128xbf16> to vector<96x128xbf16>
    %c0_16 = arith.constant 0 : index
    %c0_17 = arith.constant 0 : index
    %c0_18 = arith.constant 0 : index
    %15 = vector.load %arg4[%c0_16, %c0_17, %c0_18] : memref<3x128x64xbf16, #tpu.memory_space<vmem>>, vector<1x128x64xbf16>
    %16 = vector.shape_cast %15 : vector<1x128x64xbf16> to vector<128x64xbf16>
    %cst_19 = arith.constant dense<0.000000e+00> : vector<96x64xf32>
    %17 = tpu.matmul %14, %16, %cst_19 {dimension_numbers = #tpu.dot_dimension_numbers<[1], [0], [0], [1], [0, 0, 1, 1], [], []>} : vector<96x128xbf16>, vector<128x64xbf16>, vector<96x64xf32> -> vector<96x64xf32>
    %c0_20 = arith.constant 0 : index
    %c0_21 = arith.constant 0 : index
    %c0_22 = arith.constant 0 : index
    %18 = vector.load %arg5[%c0_20, %c0_21, %c0_22] : memref<3x1x64xf32, #tpu.memory_space<vmem>>, vector<1x1x64xf32>
    %19 = vector.shape_cast %18 : vector<1x1x64xf32> to vector<1x64xf32>
    %20 = vector.broadcast %19 : vector<1x64xf32> to vector<96x64xf32>
    %21 = arith.addf %17, %20 : vector<96x64xf32>
    %22 = arith.mulf %21, %6 : vector<96x64xf32>
    %23 = arith.addf %22, %11 : vector<96x64xf32>
    %c0_23 = arith.constant 0 : index
    %c0_24 = arith.constant 0 : index
    %c0_25 = arith.constant 0 : index
    %24 = vector.load %arg10[%c0_23, %c0_24, %c0_25] : memref<3x64x192xbf16, #tpu.memory_space<vmem>>, vector<1x64x192xbf16>
    %25 = vector.shape_cast %24 : vector<1x64x192xbf16> to vector<64x192xbf16>
    %26 = arith.truncf %23 : vector<96x64xf32> to vector<96x64xbf16>
    %cst_26 = arith.constant dense<0.000000e+00> : vector<96x192xf32>
    %27 = tpu.matmul %26, %25, %cst_26 {dimension_numbers = #tpu.dot_dimension_numbers<[1], [0], [0], [1], [0, 0, 1, 1], [], []>} : vector<96x64xbf16>, vector<64x192xbf16>, vector<96x192xf32> -> vector<96x192xf32>
    %c0_27 = arith.constant 0 : index
    %c0_28 = arith.constant 0 : index
    %c0_29 = arith.constant 0 : index
    %28 = vector.load %arg11[%c0_27, %c0_28, %c0_29] : memref<3x1x192xf32, #tpu.memory_space<vmem>>, vector<1x1x192xf32>
    %29 = vector.shape_cast %28 : vector<1x1x192xf32> to vector<1x192xf32>
    %30 = vector.broadcast %29 : vector<1x192xf32> to vector<96x192xf32>
    %31 = arith.addf %27, %30 : vector<96x192xf32>
    %32 = vector.extract_strided_slice %31 {offsets = [0, 0], sizes = [96, 64], strides = [1, 1]} : vector<96x192xf32> to vector<96x64xf32>
    %33 = vector.extract_strided_slice %31 {offsets = [0, 64], sizes = [96, 64], strides = [1, 1]} : vector<96x192xf32> to vector<96x64xf32>
    %34 = vector.extract_strided_slice %31 {offsets = [0, 128], sizes = [96, 64], strides = [1, 1]} : vector<96x192xf32> to vector<96x64xf32>
    %35 = vector.extract_strided_slice %32 {offsets = [0, 0], sizes = [24, 64], strides = [1, 1]} : vector<96x64xf32> to vector<24x64xf32>
    %36 = vector.extract_strided_slice %33 {offsets = [0, 0], sizes = [24, 64], strides = [1, 1]} : vector<96x64xf32> to vector<24x64xf32>
    %37 = arith.mulf %35, %36 : vector<24x64xf32>
    %38 = vector.extract_strided_slice %33 {offsets = [24, 0], sizes = [24, 64], strides = [1, 1]} : vector<96x64xf32> to vector<24x64xf32>
    %39 = arith.mulf %35, %38 : vector<24x64xf32>
    %40 = vector.extract_strided_slice %32 {offsets = [24, 0], sizes = [24, 64], strides = [1, 1]} : vector<96x64xf32> to vector<24x64xf32>
    %41 = vector.extract_strided_slice %33 {offsets = [0, 0], sizes = [24, 64], strides = [1, 1]} : vector<96x64xf32> to vector<24x64xf32>
    %42 = arith.mulf %40, %41 : vector<24x64xf32>
    %43 = vector.extract_strided_slice %33 {offsets = [24, 0], sizes = [24, 64], strides = [1, 1]} : vector<96x64xf32> to vector<24x64xf32>
    %44 = arith.mulf %40, %43 : vector<24x64xf32>
    %45 = vector.extract_strided_slice %32 {offsets = [48, 0], sizes = [24, 64], strides = [1, 1]} : vector<96x64xf32> to vector<24x64xf32>
    %46 = vector.extract_strided_slice %33 {offsets = [48, 0], sizes = [24, 64], strides = [1, 1]} : vector<96x64xf32> to vector<24x64xf32>
    %47 = arith.mulf %45, %46 : vector<24x64xf32>
    %48 = vector.extract_strided_slice %33 {offsets = [72, 0], sizes = [24, 64], strides = [1, 1]} : vector<96x64xf32> to vector<24x64xf32>
    %49 = arith.mulf %45, %48 : vector<24x64xf32>
    %50 = vector.extract_strided_slice %32 {offsets = [72, 0], sizes = [24, 64], strides = [1, 1]} : vector<96x64xf32> to vector<24x64xf32>
    %51 = vector.extract_strided_slice %33 {offsets = [48, 0], sizes = [24, 64], strides = [1, 1]} : vector<96x64xf32> to vector<24x64xf32>
    %52 = arith.mulf %50, %51 : vector<24x64xf32>
    %53 = vector.extract_strided_slice %33 {offsets = [72, 0], sizes = [24, 64], strides = [1, 1]} : vector<96x64xf32> to vector<24x64xf32>
    %54 = arith.mulf %50, %53 : vector<24x64xf32>
    %55 = tpu.concatenate %37, %39, %42, %44, %47, %49, %52, %54 in 0 : vector<24x64xf32>, vector<24x64xf32>, vector<24x64xf32>, vector<24x64xf32>, vector<24x64xf32>, vector<24x64xf32>, vector<24x64xf32>, vector<24x64xf32> -> vector<192x64xf32>
    %56 = arith.truncf %55 : vector<192x64xf32> to vector<192x64xbf16>
    %cst_30 = arith.constant dense<0.000000e+00> : vector<192x64xf32>
    %57 = tpu.matmul %56, %12, %cst_30 {dimension_numbers = #tpu.dot_dimension_numbers<[1], [0], [0], [1], [0, 0, 1, 1], [], []>} : vector<192x64xbf16>, vector<64x64xbf16>, vector<192x64xf32> -> vector<192x64xf32>
    %cst_31 = arith.constant 2.500000e-01 : f32
    %58 = vector.broadcast %cst_31 : f32 to vector<192x64xf32>
    %59 = arith.mulf %57, %58 : vector<192x64xf32>
    %60 = vector.extract_strided_slice %59 {offsets = [0, 0], sizes = [24, 64], strides = [1, 1]} : vector<192x64xf32> to vector<24x64xf32>
    %61 = vector.extract_strided_slice %59 {offsets = [24, 0], sizes = [24, 64], strides = [1, 1]} : vector<192x64xf32> to vector<24x64xf32>
    %62 = arith.maximumf %60, %61 : vector<24x64xf32>
    %63 = arith.subf %60, %62 : vector<24x64xf32>
    %64 = math.exp %63 : vector<24x64xf32>
    %65 = arith.subf %61, %62 : vector<24x64xf32>
    %66 = math.exp %65 : vector<24x64xf32>
    %67 = arith.addf %64, %66 : vector<24x64xf32>
    %68 = tpu.reciprocal %67 {approx = true} : vector<24x64xf32> -> vector<24x64xf32>
    %69 = arith.mulf %64, %68 : vector<24x64xf32>
    %70 = vector.extract_strided_slice %34 {offsets = [0, 0], sizes = [24, 64], strides = [1, 1]} : vector<96x64xf32> to vector<24x64xf32>
    %71 = arith.mulf %69, %70 : vector<24x64xf32>
    %72 = arith.mulf %66, %68 : vector<24x64xf32>
    %73 = vector.extract_strided_slice %34 {offsets = [24, 0], sizes = [24, 64], strides = [1, 1]} : vector<96x64xf32> to vector<24x64xf32>
    %74 = arith.mulf %72, %73 : vector<24x64xf32>
    %75 = arith.addf %71, %74 : vector<24x64xf32>
    %76 = vector.extract_strided_slice %59 {offsets = [48, 0], sizes = [24, 64], strides = [1, 1]} : vector<192x64xf32> to vector<24x64xf32>
    %77 = vector.extract_strided_slice %59 {offsets = [72, 0], sizes = [24, 64], strides = [1, 1]} : vector<192x64xf32> to vector<24x64xf32>
    %78 = arith.maximumf %76, %77 : vector<24x64xf32>
    %79 = arith.subf %76, %78 : vector<24x64xf32>
    %80 = math.exp %79 : vector<24x64xf32>
    %81 = arith.subf %77, %78 : vector<24x64xf32>
    %82 = math.exp %81 : vector<24x64xf32>
    %83 = arith.addf %80, %82 : vector<24x64xf32>
    %84 = tpu.reciprocal %83 {approx = true} : vector<24x64xf32> -> vector<24x64xf32>
    %85 = arith.mulf %80, %84 : vector<24x64xf32>
    %86 = vector.extract_strided_slice %34 {offsets = [0, 0], sizes = [24, 64], strides = [1, 1]} : vector<96x64xf32> to vector<24x64xf32>
    %87 = arith.mulf %85, %86 : vector<24x64xf32>
    %88 = arith.mulf %82, %84 : vector<24x64xf32>
    %89 = vector.extract_strided_slice %34 {offsets = [24, 0], sizes = [24, 64], strides = [1, 1]} : vector<96x64xf32> to vector<24x64xf32>
    %90 = arith.mulf %88, %89 : vector<24x64xf32>
    %91 = arith.addf %87, %90 : vector<24x64xf32>
    %92 = vector.extract_strided_slice %59 {offsets = [96, 0], sizes = [24, 64], strides = [1, 1]} : vector<192x64xf32> to vector<24x64xf32>
    %93 = vector.extract_strided_slice %59 {offsets = [120, 0], sizes = [24, 64], strides = [1, 1]} : vector<192x64xf32> to vector<24x64xf32>
    %94 = arith.maximumf %92, %93 : vector<24x64xf32>
    %95 = arith.subf %92, %94 : vector<24x64xf32>
    %96 = math.exp %95 : vector<24x64xf32>
    %97 = arith.subf %93, %94 : vector<24x64xf32>
    %98 = math.exp %97 : vector<24x64xf32>
    %99 = arith.addf %96, %98 : vector<24x64xf32>
    %100 = tpu.reciprocal %99 {approx = true} : vector<24x64xf32> -> vector<24x64xf32>
    %101 = arith.mulf %96, %100 : vector<24x64xf32>
    %102 = vector.extract_strided_slice %34 {offsets = [48, 0], sizes = [24, 64], strides = [1, 1]} : vector<96x64xf32> to vector<24x64xf32>
    %103 = arith.mulf %101, %102 : vector<24x64xf32>
    %104 = arith.mulf %98, %100 : vector<24x64xf32>
    %105 = vector.extract_strided_slice %34 {offsets = [72, 0], sizes = [24, 64], strides = [1, 1]} : vector<96x64xf32> to vector<24x64xf32>
    %106 = arith.mulf %104, %105 : vector<24x64xf32>
    %107 = arith.addf %103, %106 : vector<24x64xf32>
    %108 = vector.extract_strided_slice %59 {offsets = [144, 0], sizes = [24, 64], strides = [1, 1]} : vector<192x64xf32> to vector<24x64xf32>
    %109 = vector.extract_strided_slice %59 {offsets = [168, 0], sizes = [24, 64], strides = [1, 1]} : vector<192x64xf32> to vector<24x64xf32>
    %110 = arith.maximumf %108, %109 : vector<24x64xf32>
    %111 = arith.subf %108, %110 : vector<24x64xf32>
    %112 = math.exp %111 : vector<24x64xf32>
    %113 = arith.subf %109, %110 : vector<24x64xf32>
    %114 = math.exp %113 : vector<24x64xf32>
    %115 = arith.addf %112, %114 : vector<24x64xf32>
    %116 = tpu.reciprocal %115 {approx = true} : vector<24x64xf32> -> vector<24x64xf32>
    %117 = arith.mulf %112, %116 : vector<24x64xf32>
    %118 = vector.extract_strided_slice %34 {offsets = [48, 0], sizes = [24, 64], strides = [1, 1]} : vector<96x64xf32> to vector<24x64xf32>
    %119 = arith.mulf %117, %118 : vector<24x64xf32>
    %120 = arith.mulf %114, %116 : vector<24x64xf32>
    %121 = vector.extract_strided_slice %34 {offsets = [72, 0], sizes = [24, 64], strides = [1, 1]} : vector<96x64xf32> to vector<24x64xf32>
    %122 = arith.mulf %120, %121 : vector<24x64xf32>
    %123 = arith.addf %119, %122 : vector<24x64xf32>
    %124 = tpu.concatenate %75, %91, %107, %123 in 0 : vector<24x64xf32>, vector<24x64xf32>, vector<24x64xf32>, vector<24x64xf32> -> vector<96x64xf32>
    %c0_32 = arith.constant 0 : index
    %c0_33 = arith.constant 0 : index
    %c0_34 = arith.constant 0 : index
    %125 = vector.load %arg12[%c0_32, %c0_33, %c0_34] : memref<3x64x64xbf16, #tpu.memory_space<vmem>>, vector<1x64x64xbf16>
    %126 = vector.shape_cast %125 : vector<1x64x64xbf16> to vector<64x64xbf16>
    %127 = arith.truncf %124 : vector<96x64xf32> to vector<96x64xbf16>
    %cst_35 = arith.constant dense<0.000000e+00> : vector<96x64xf32>
    %128 = tpu.matmul %127, %126, %cst_35 {dimension_numbers = #tpu.dot_dimension_numbers<[1], [0], [0], [1], [0, 0, 1, 1], [], []>} : vector<96x64xbf16>, vector<64x64xbf16>, vector<96x64xf32> -> vector<96x64xf32>
    %c0_36 = arith.constant 0 : index
    %c0_37 = arith.constant 0 : index
    %c0_38 = arith.constant 0 : index
    %129 = vector.load %arg13[%c0_36, %c0_37, %c0_38] : memref<3x1x64xf32, #tpu.memory_space<vmem>>, vector<1x1x64xf32>
    %130 = vector.shape_cast %129 : vector<1x1x64xf32> to vector<1x64xf32>
    %131 = vector.broadcast %130 : vector<1x64xf32> to vector<96x64xf32>
    %132 = arith.addf %128, %131 : vector<96x64xf32>
    %133 = arith.addf %23, %132 : vector<96x64xf32>
    %c0_39 = arith.constant 0 : index
    %c0_40 = arith.constant 0 : index
    %c0_41 = arith.constant 0 : index
    %134 = vector.load %arg14[%c0_39, %c0_40, %c0_41] : memref<3x1x64xf32, #tpu.memory_space<vmem>>, vector<1x1x64xf32>
    %135 = vector.shape_cast %134 : vector<1x1x64xf32> to vector<1x64xf32>
    %c0_42 = arith.constant 0 : index
    %c0_43 = arith.constant 0 : index
    %c0_44 = arith.constant 0 : index
    %136 = vector.load %arg15[%c0_42, %c0_43, %c0_44] : memref<3x1x64xf32, #tpu.memory_space<vmem>>, vector<1x1x64xf32>
    %137 = vector.shape_cast %136 : vector<1x1x64xf32> to vector<1x64xf32>
    %cst_45 = arith.constant dense<0.000000e+00> : vector<96xf32>
    %138 = vector.multi_reduction <add>, %133, %cst_45 [1] : vector<96x64xf32> to vector<96xf32>
    %139 = vector.shape_cast %138 : vector<96xf32> to vector<96x1xf32>
    %cst_46 = arith.constant 6.400000e+01 : f32
    %140 = vector.broadcast %cst_46 : f32 to vector<96x1xf32>
    %141 = arith.divf %139, %140 : vector<96x1xf32>
    %142 = vector.broadcast %141 : vector<96x1xf32> to vector<96x64xf32>
    %143 = arith.subf %133, %142 : vector<96x64xf32>
    %144 = arith.mulf %143, %143 : vector<96x64xf32>
    %cst_47 = arith.constant dense<0.000000e+00> : vector<96xf32>
    %145 = vector.multi_reduction <add>, %144, %cst_47 [1] : vector<96x64xf32> to vector<96xf32>
    %146 = vector.shape_cast %145 : vector<96xf32> to vector<96x1xf32>
    %cst_48 = arith.constant 6.400000e+01 : f32
    %147 = vector.broadcast %cst_48 : f32 to vector<96x1xf32>
    %148 = arith.divf %146, %147 : vector<96x1xf32>
    %cst_49 = arith.constant 9.99999974E-6 : f32
    %149 = vector.broadcast %cst_49 : f32 to vector<96x1xf32>
    %150 = arith.addf %148, %149 : vector<96x1xf32>
    %151 = math.rsqrt %150 : vector<96x1xf32>
    %152 = vector.broadcast %151 : vector<96x1xf32> to vector<96x64xf32>
    %153 = arith.mulf %143, %152 : vector<96x64xf32>
    %154 = vector.broadcast %135 : vector<1x64xf32> to vector<96x64xf32>
    %155 = arith.mulf %153, %154 : vector<96x64xf32>
    %156 = vector.broadcast %137 : vector<1x64xf32> to vector<96x64xf32>
    %157 = arith.addf %155, %156 : vector<96x64xf32>
    %c0_50 = arith.constant 0 : index
    %c0_51 = arith.constant 0 : index
    %c0_52 = arith.constant 0 : index
    %158 = vector.load %arg16[%c0_50, %c0_51, %c0_52] : memref<3x64x128xbf16, #tpu.memory_space<vmem>>, vector<1x64x128xbf16>
    %159 = vector.shape_cast %158 : vector<1x64x128xbf16> to vector<64x128xbf16>
    %160 = arith.truncf %157 : vector<96x64xf32> to vector<96x64xbf16>
    %cst_53 = arith.constant dense<0.000000e+00> : vector<96x128xf32>
    %161 = tpu.matmul %160, %159, %cst_53 {dimension_numbers = #tpu.dot_dimension_numbers<[1], [0], [0], [1], [0, 0, 1, 1], [], []>} : vector<96x64xbf16>, vector<64x128xbf16>, vector<96x128xf32> -> vector<96x128xf32>
    %c0_54 = arith.constant 0 : index
    %c0_55 = arith.constant 0 : index
    %c0_56 = arith.constant 0 : index
    %162 = vector.load %arg17[%c0_54, %c0_55, %c0_56] : memref<3x1x128xf32, #tpu.memory_space<vmem>>, vector<1x1x128xf32>
    %163 = vector.shape_cast %162 : vector<1x1x128xf32> to vector<1x128xf32>
    %164 = vector.broadcast %163 : vector<1x128xf32> to vector<96x128xf32>
    %165 = arith.addf %161, %164 : vector<96x128xf32>
    %cst_57 = arith.constant 5.000000e-01 : f32
    %166 = vector.broadcast %cst_57 : f32 to vector<96x128xf32>
    %167 = arith.mulf %166, %165 : vector<96x128xf32>
    %cst_58 = arith.constant 4.471500e-02 : f32
    %168 = vector.broadcast %cst_58 : f32 to vector<96x128xf32>
    %169 = arith.mulf %168, %165 : vector<96x128xf32>
    %170 = arith.mulf %169, %165 : vector<96x128xf32>
    %171 = arith.mulf %170, %165 : vector<96x128xf32>
    %172 = arith.addf %165, %171 : vector<96x128xf32>
    %cst_59 = arith.constant 0.797884583 : f32
    %173 = vector.broadcast %cst_59 : f32 to vector<96x128xf32>
    %174 = arith.mulf %173, %172 : vector<96x128xf32>
    %175 = math.tanh %174 : vector<96x128xf32>
    %cst_60 = arith.constant 1.000000e+00 : f32
    %176 = vector.broadcast %cst_60 : f32 to vector<96x128xf32>
    %177 = arith.addf %176, %175 : vector<96x128xf32>
    %178 = arith.mulf %167, %177 : vector<96x128xf32>
    %c0_61 = arith.constant 0 : index
    %c0_62 = arith.constant 0 : index
    %c0_63 = arith.constant 0 : index
    %179 = vector.load %arg18[%c0_61, %c0_62, %c0_63] : memref<3x128x64xbf16, #tpu.memory_space<vmem>>, vector<1x128x64xbf16>
    %180 = vector.shape_cast %179 : vector<1x128x64xbf16> to vector<128x64xbf16>
    %181 = arith.truncf %178 : vector<96x128xf32> to vector<96x128xbf16>
    %cst_64 = arith.constant dense<0.000000e+00> : vector<96x64xf32>
    %182 = tpu.matmul %181, %180, %cst_64 {dimension_numbers = #tpu.dot_dimension_numbers<[1], [0], [0], [1], [0, 0, 1, 1], [], []>} : vector<96x128xbf16>, vector<128x64xbf16>, vector<96x64xf32> -> vector<96x64xf32>
    %c0_65 = arith.constant 0 : index
    %c0_66 = arith.constant 0 : index
    %c0_67 = arith.constant 0 : index
    %183 = vector.load %arg19[%c0_65, %c0_66, %c0_67] : memref<3x1x64xf32, #tpu.memory_space<vmem>>, vector<1x1x64xf32>
    %184 = vector.shape_cast %183 : vector<1x1x64xf32> to vector<1x64xf32>
    %185 = vector.broadcast %184 : vector<1x64xf32> to vector<96x64xf32>
    %186 = arith.addf %182, %185 : vector<96x64xf32>
    %187 = arith.addf %157, %186 : vector<96x64xf32>
    %c0_68 = arith.constant 0 : index
    %c0_69 = arith.constant 0 : index
    %c0_70 = arith.constant 0 : index
    %188 = vector.load %arg20[%c0_68, %c0_69, %c0_70] : memref<3x1x64xf32, #tpu.memory_space<vmem>>, vector<1x1x64xf32>
    %189 = vector.shape_cast %188 : vector<1x1x64xf32> to vector<1x64xf32>
    %c0_71 = arith.constant 0 : index
    %c0_72 = arith.constant 0 : index
    %c0_73 = arith.constant 0 : index
    %190 = vector.load %arg21[%c0_71, %c0_72, %c0_73] : memref<3x1x64xf32, #tpu.memory_space<vmem>>, vector<1x1x64xf32>
    %191 = vector.shape_cast %190 : vector<1x1x64xf32> to vector<1x64xf32>
    %cst_74 = arith.constant dense<0.000000e+00> : vector<96xf32>
    %192 = vector.multi_reduction <add>, %187, %cst_74 [1] : vector<96x64xf32> to vector<96xf32>
    %193 = vector.shape_cast %192 : vector<96xf32> to vector<96x1xf32>
    %cst_75 = arith.constant 6.400000e+01 : f32
    %194 = vector.broadcast %cst_75 : f32 to vector<96x1xf32>
    %195 = arith.divf %193, %194 : vector<96x1xf32>
    %196 = vector.broadcast %195 : vector<96x1xf32> to vector<96x64xf32>
    %197 = arith.subf %187, %196 : vector<96x64xf32>
    %198 = arith.mulf %197, %197 : vector<96x64xf32>
    %cst_76 = arith.constant dense<0.000000e+00> : vector<96xf32>
    %199 = vector.multi_reduction <add>, %198, %cst_76 [1] : vector<96x64xf32> to vector<96xf32>
    %200 = vector.shape_cast %199 : vector<96xf32> to vector<96x1xf32>
    %cst_77 = arith.constant 6.400000e+01 : f32
    %201 = vector.broadcast %cst_77 : f32 to vector<96x1xf32>
    %202 = arith.divf %200, %201 : vector<96x1xf32>
    %cst_78 = arith.constant 9.99999974E-6 : f32
    %203 = vector.broadcast %cst_78 : f32 to vector<96x1xf32>
    %204 = arith.addf %202, %203 : vector<96x1xf32>
    %205 = math.rsqrt %204 : vector<96x1xf32>
    %206 = vector.broadcast %205 : vector<96x1xf32> to vector<96x64xf32>
    %207 = arith.mulf %197, %206 : vector<96x64xf32>
    %208 = vector.broadcast %189 : vector<1x64xf32> to vector<96x64xf32>
    %209 = arith.mulf %207, %208 : vector<96x64xf32>
    %210 = vector.broadcast %191 : vector<1x64xf32> to vector<96x64xf32>
    %211 = arith.addf %209, %210 : vector<96x64xf32>
    %c1 = arith.constant 1 : index
    %c0_79 = arith.constant 0 : index
    %c0_80 = arith.constant 0 : index
    %212 = vector.load %arg2[%c1, %c0_79, %c0_80] : memref<3x96x128xbf16, #tpu.memory_space<vmem>>, vector<1x96x128xbf16>
    %213 = vector.shape_cast %212 : vector<1x96x128xbf16> to vector<96x128xbf16>
    %c1_81 = arith.constant 1 : index
    %c0_82 = arith.constant 0 : index
    %c0_83 = arith.constant 0 : index
    %214 = vector.load %arg4[%c1_81, %c0_82, %c0_83] : memref<3x128x64xbf16, #tpu.memory_space<vmem>>, vector<1x128x64xbf16>
    %215 = vector.shape_cast %214 : vector<1x128x64xbf16> to vector<128x64xbf16>
    %cst_84 = arith.constant dense<0.000000e+00> : vector<96x64xf32>
    %216 = tpu.matmul %213, %215, %cst_84 {dimension_numbers = #tpu.dot_dimension_numbers<[1], [0], [0], [1], [0, 0, 1, 1], [], []>} : vector<96x128xbf16>, vector<128x64xbf16>, vector<96x64xf32> -> vector<96x64xf32>
    %c1_85 = arith.constant 1 : index
    %c0_86 = arith.constant 0 : index
    %c0_87 = arith.constant 0 : index
    %217 = vector.load %arg5[%c1_85, %c0_86, %c0_87] : memref<3x1x64xf32, #tpu.memory_space<vmem>>, vector<1x1x64xf32>
    %218 = vector.shape_cast %217 : vector<1x1x64xf32> to vector<1x64xf32>
    %219 = vector.broadcast %218 : vector<1x64xf32> to vector<96x64xf32>
    %220 = arith.addf %216, %219 : vector<96x64xf32>
    %221 = arith.addf %211, %220 : vector<96x64xf32>
    %222 = arith.mulf %221, %6 : vector<96x64xf32>
    %223 = arith.addf %222, %11 : vector<96x64xf32>
    %c1_88 = arith.constant 1 : index
    %c0_89 = arith.constant 0 : index
    %c0_90 = arith.constant 0 : index
    %224 = vector.load %arg10[%c1_88, %c0_89, %c0_90] : memref<3x64x192xbf16, #tpu.memory_space<vmem>>, vector<1x64x192xbf16>
    %225 = vector.shape_cast %224 : vector<1x64x192xbf16> to vector<64x192xbf16>
    %226 = arith.truncf %223 : vector<96x64xf32> to vector<96x64xbf16>
    %cst_91 = arith.constant dense<0.000000e+00> : vector<96x192xf32>
    %227 = tpu.matmul %226, %225, %cst_91 {dimension_numbers = #tpu.dot_dimension_numbers<[1], [0], [0], [1], [0, 0, 1, 1], [], []>} : vector<96x64xbf16>, vector<64x192xbf16>, vector<96x192xf32> -> vector<96x192xf32>
    %c1_92 = arith.constant 1 : index
    %c0_93 = arith.constant 0 : index
    %c0_94 = arith.constant 0 : index
    %228 = vector.load %arg11[%c1_92, %c0_93, %c0_94] : memref<3x1x192xf32, #tpu.memory_space<vmem>>, vector<1x1x192xf32>
    %229 = vector.shape_cast %228 : vector<1x1x192xf32> to vector<1x192xf32>
    %230 = vector.broadcast %229 : vector<1x192xf32> to vector<96x192xf32>
    %231 = arith.addf %227, %230 : vector<96x192xf32>
    %232 = vector.extract_strided_slice %231 {offsets = [0, 0], sizes = [96, 64], strides = [1, 1]} : vector<96x192xf32> to vector<96x64xf32>
    %233 = vector.extract_strided_slice %231 {offsets = [0, 64], sizes = [96, 64], strides = [1, 1]} : vector<96x192xf32> to vector<96x64xf32>
    %234 = vector.extract_strided_slice %231 {offsets = [0, 128], sizes = [96, 64], strides = [1, 1]} : vector<96x192xf32> to vector<96x64xf32>
    %235 = vector.extract_strided_slice %232 {offsets = [0, 0], sizes = [24, 64], strides = [1, 1]} : vector<96x64xf32> to vector<24x64xf32>
    %236 = vector.extract_strided_slice %233 {offsets = [0, 0], sizes = [24, 64], strides = [1, 1]} : vector<96x64xf32> to vector<24x64xf32>
    %237 = arith.mulf %235, %236 : vector<24x64xf32>
    %238 = vector.extract_strided_slice %233 {offsets = [24, 0], sizes = [24, 64], strides = [1, 1]} : vector<96x64xf32> to vector<24x64xf32>
    %239 = arith.mulf %235, %238 : vector<24x64xf32>
    %240 = vector.extract_strided_slice %232 {offsets = [24, 0], sizes = [24, 64], strides = [1, 1]} : vector<96x64xf32> to vector<24x64xf32>
    %241 = vector.extract_strided_slice %233 {offsets = [0, 0], sizes = [24, 64], strides = [1, 1]} : vector<96x64xf32> to vector<24x64xf32>
    %242 = arith.mulf %240, %241 : vector<24x64xf32>
    %243 = vector.extract_strided_slice %233 {offsets = [24, 0], sizes = [24, 64], strides = [1, 1]} : vector<96x64xf32> to vector<24x64xf32>
    %244 = arith.mulf %240, %243 : vector<24x64xf32>
    %245 = vector.extract_strided_slice %232 {offsets = [48, 0], sizes = [24, 64], strides = [1, 1]} : vector<96x64xf32> to vector<24x64xf32>
    %246 = vector.extract_strided_slice %233 {offsets = [48, 0], sizes = [24, 64], strides = [1, 1]} : vector<96x64xf32> to vector<24x64xf32>
    %247 = arith.mulf %245, %246 : vector<24x64xf32>
    %248 = vector.extract_strided_slice %233 {offsets = [72, 0], sizes = [24, 64], strides = [1, 1]} : vector<96x64xf32> to vector<24x64xf32>
    %249 = arith.mulf %245, %248 : vector<24x64xf32>
    %250 = vector.extract_strided_slice %232 {offsets = [72, 0], sizes = [24, 64], strides = [1, 1]} : vector<96x64xf32> to vector<24x64xf32>
    %251 = vector.extract_strided_slice %233 {offsets = [48, 0], sizes = [24, 64], strides = [1, 1]} : vector<96x64xf32> to vector<24x64xf32>
    %252 = arith.mulf %250, %251 : vector<24x64xf32>
    %253 = vector.extract_strided_slice %233 {offsets = [72, 0], sizes = [24, 64], strides = [1, 1]} : vector<96x64xf32> to vector<24x64xf32>
    %254 = arith.mulf %250, %253 : vector<24x64xf32>
    %255 = tpu.concatenate %237, %239, %242, %244, %247, %249, %252, %254 in 0 : vector<24x64xf32>, vector<24x64xf32>, vector<24x64xf32>, vector<24x64xf32>, vector<24x64xf32>, vector<24x64xf32>, vector<24x64xf32>, vector<24x64xf32> -> vector<192x64xf32>
    %256 = arith.truncf %255 : vector<192x64xf32> to vector<192x64xbf16>
    %cst_95 = arith.constant dense<0.000000e+00> : vector<192x64xf32>
    %257 = tpu.matmul %256, %12, %cst_95 {dimension_numbers = #tpu.dot_dimension_numbers<[1], [0], [0], [1], [0, 0, 1, 1], [], []>} : vector<192x64xbf16>, vector<64x64xbf16>, vector<192x64xf32> -> vector<192x64xf32>
    %cst_96 = arith.constant 2.500000e-01 : f32
    %258 = vector.broadcast %cst_96 : f32 to vector<192x64xf32>
    %259 = arith.mulf %257, %258 : vector<192x64xf32>
    %260 = vector.extract_strided_slice %259 {offsets = [0, 0], sizes = [24, 64], strides = [1, 1]} : vector<192x64xf32> to vector<24x64xf32>
    %261 = vector.extract_strided_slice %259 {offsets = [24, 0], sizes = [24, 64], strides = [1, 1]} : vector<192x64xf32> to vector<24x64xf32>
    %262 = arith.maximumf %260, %261 : vector<24x64xf32>
    %263 = arith.subf %260, %262 : vector<24x64xf32>
    %264 = math.exp %263 : vector<24x64xf32>
    %265 = arith.subf %261, %262 : vector<24x64xf32>
    %266 = math.exp %265 : vector<24x64xf32>
    %267 = arith.addf %264, %266 : vector<24x64xf32>
    %268 = tpu.reciprocal %267 {approx = true} : vector<24x64xf32> -> vector<24x64xf32>
    %269 = arith.mulf %264, %268 : vector<24x64xf32>
    %270 = vector.extract_strided_slice %234 {offsets = [0, 0], sizes = [24, 64], strides = [1, 1]} : vector<96x64xf32> to vector<24x64xf32>
    %271 = arith.mulf %269, %270 : vector<24x64xf32>
    %272 = arith.mulf %266, %268 : vector<24x64xf32>
    %273 = vector.extract_strided_slice %234 {offsets = [24, 0], sizes = [24, 64], strides = [1, 1]} : vector<96x64xf32> to vector<24x64xf32>
    %274 = arith.mulf %272, %273 : vector<24x64xf32>
    %275 = arith.addf %271, %274 : vector<24x64xf32>
    %276 = vector.extract_strided_slice %259 {offsets = [48, 0], sizes = [24, 64], strides = [1, 1]} : vector<192x64xf32> to vector<24x64xf32>
    %277 = vector.extract_strided_slice %259 {offsets = [72, 0], sizes = [24, 64], strides = [1, 1]} : vector<192x64xf32> to vector<24x64xf32>
    %278 = arith.maximumf %276, %277 : vector<24x64xf32>
    %279 = arith.subf %276, %278 : vector<24x64xf32>
    %280 = math.exp %279 : vector<24x64xf32>
    %281 = arith.subf %277, %278 : vector<24x64xf32>
    %282 = math.exp %281 : vector<24x64xf32>
    %283 = arith.addf %280, %282 : vector<24x64xf32>
    %284 = tpu.reciprocal %283 {approx = true} : vector<24x64xf32> -> vector<24x64xf32>
    %285 = arith.mulf %280, %284 : vector<24x64xf32>
    %286 = vector.extract_strided_slice %234 {offsets = [0, 0], sizes = [24, 64], strides = [1, 1]} : vector<96x64xf32> to vector<24x64xf32>
    %287 = arith.mulf %285, %286 : vector<24x64xf32>
    %288 = arith.mulf %282, %284 : vector<24x64xf32>
    %289 = vector.extract_strided_slice %234 {offsets = [24, 0], sizes = [24, 64], strides = [1, 1]} : vector<96x64xf32> to vector<24x64xf32>
    %290 = arith.mulf %288, %289 : vector<24x64xf32>
    %291 = arith.addf %287, %290 : vector<24x64xf32>
    %292 = vector.extract_strided_slice %259 {offsets = [96, 0], sizes = [24, 64], strides = [1, 1]} : vector<192x64xf32> to vector<24x64xf32>
    %293 = vector.extract_strided_slice %259 {offsets = [120, 0], sizes = [24, 64], strides = [1, 1]} : vector<192x64xf32> to vector<24x64xf32>
    %294 = arith.maximumf %292, %293 : vector<24x64xf32>
    %295 = arith.subf %292, %294 : vector<24x64xf32>
    %296 = math.exp %295 : vector<24x64xf32>
    %297 = arith.subf %293, %294 : vector<24x64xf32>
    %298 = math.exp %297 : vector<24x64xf32>
    %299 = arith.addf %296, %298 : vector<24x64xf32>
    %300 = tpu.reciprocal %299 {approx = true} : vector<24x64xf32> -> vector<24x64xf32>
    %301 = arith.mulf %296, %300 : vector<24x64xf32>
    %302 = vector.extract_strided_slice %234 {offsets = [48, 0], sizes = [24, 64], strides = [1, 1]} : vector<96x64xf32> to vector<24x64xf32>
    %303 = arith.mulf %301, %302 : vector<24x64xf32>
    %304 = arith.mulf %298, %300 : vector<24x64xf32>
    %305 = vector.extract_strided_slice %234 {offsets = [72, 0], sizes = [24, 64], strides = [1, 1]} : vector<96x64xf32> to vector<24x64xf32>
    %306 = arith.mulf %304, %305 : vector<24x64xf32>
    %307 = arith.addf %303, %306 : vector<24x64xf32>
    %308 = vector.extract_strided_slice %259 {offsets = [144, 0], sizes = [24, 64], strides = [1, 1]} : vector<192x64xf32> to vector<24x64xf32>
    %309 = vector.extract_strided_slice %259 {offsets = [168, 0], sizes = [24, 64], strides = [1, 1]} : vector<192x64xf32> to vector<24x64xf32>
    %310 = arith.maximumf %308, %309 : vector<24x64xf32>
    %311 = arith.subf %308, %310 : vector<24x64xf32>
    %312 = math.exp %311 : vector<24x64xf32>
    %313 = arith.subf %309, %310 : vector<24x64xf32>
    %314 = math.exp %313 : vector<24x64xf32>
    %315 = arith.addf %312, %314 : vector<24x64xf32>
    %316 = tpu.reciprocal %315 {approx = true} : vector<24x64xf32> -> vector<24x64xf32>
    %317 = arith.mulf %312, %316 : vector<24x64xf32>
    %318 = vector.extract_strided_slice %234 {offsets = [48, 0], sizes = [24, 64], strides = [1, 1]} : vector<96x64xf32> to vector<24x64xf32>
    %319 = arith.mulf %317, %318 : vector<24x64xf32>
    %320 = arith.mulf %314, %316 : vector<24x64xf32>
    %321 = vector.extract_strided_slice %234 {offsets = [72, 0], sizes = [24, 64], strides = [1, 1]} : vector<96x64xf32> to vector<24x64xf32>
    %322 = arith.mulf %320, %321 : vector<24x64xf32>
    %323 = arith.addf %319, %322 : vector<24x64xf32>
    %324 = tpu.concatenate %275, %291, %307, %323 in 0 : vector<24x64xf32>, vector<24x64xf32>, vector<24x64xf32>, vector<24x64xf32> -> vector<96x64xf32>
    %c1_97 = arith.constant 1 : index
    %c0_98 = arith.constant 0 : index
    %c0_99 = arith.constant 0 : index
    %325 = vector.load %arg12[%c1_97, %c0_98, %c0_99] : memref<3x64x64xbf16, #tpu.memory_space<vmem>>, vector<1x64x64xbf16>
    %326 = vector.shape_cast %325 : vector<1x64x64xbf16> to vector<64x64xbf16>
    %327 = arith.truncf %324 : vector<96x64xf32> to vector<96x64xbf16>
    %cst_100 = arith.constant dense<0.000000e+00> : vector<96x64xf32>
    %328 = tpu.matmul %327, %326, %cst_100 {dimension_numbers = #tpu.dot_dimension_numbers<[1], [0], [0], [1], [0, 0, 1, 1], [], []>} : vector<96x64xbf16>, vector<64x64xbf16>, vector<96x64xf32> -> vector<96x64xf32>
    %c1_101 = arith.constant 1 : index
    %c0_102 = arith.constant 0 : index
    %c0_103 = arith.constant 0 : index
    %329 = vector.load %arg13[%c1_101, %c0_102, %c0_103] : memref<3x1x64xf32, #tpu.memory_space<vmem>>, vector<1x1x64xf32>
    %330 = vector.shape_cast %329 : vector<1x1x64xf32> to vector<1x64xf32>
    %331 = vector.broadcast %330 : vector<1x64xf32> to vector<96x64xf32>
    %332 = arith.addf %328, %331 : vector<96x64xf32>
    %333 = arith.addf %223, %332 : vector<96x64xf32>
    %c1_104 = arith.constant 1 : index
    %c0_105 = arith.constant 0 : index
    %c0_106 = arith.constant 0 : index
    %334 = vector.load %arg14[%c1_104, %c0_105, %c0_106] : memref<3x1x64xf32, #tpu.memory_space<vmem>>, vector<1x1x64xf32>
    %335 = vector.shape_cast %334 : vector<1x1x64xf32> to vector<1x64xf32>
    %c1_107 = arith.constant 1 : index
    %c0_108 = arith.constant 0 : index
    %c0_109 = arith.constant 0 : index
    %336 = vector.load %arg15[%c1_107, %c0_108, %c0_109] : memref<3x1x64xf32, #tpu.memory_space<vmem>>, vector<1x1x64xf32>
    %337 = vector.shape_cast %336 : vector<1x1x64xf32> to vector<1x64xf32>
    %cst_110 = arith.constant dense<0.000000e+00> : vector<96xf32>
    %338 = vector.multi_reduction <add>, %333, %cst_110 [1] : vector<96x64xf32> to vector<96xf32>
    %339 = vector.shape_cast %338 : vector<96xf32> to vector<96x1xf32>
    %cst_111 = arith.constant 6.400000e+01 : f32
    %340 = vector.broadcast %cst_111 : f32 to vector<96x1xf32>
    %341 = arith.divf %339, %340 : vector<96x1xf32>
    %342 = vector.broadcast %341 : vector<96x1xf32> to vector<96x64xf32>
    %343 = arith.subf %333, %342 : vector<96x64xf32>
    %344 = arith.mulf %343, %343 : vector<96x64xf32>
    %cst_112 = arith.constant dense<0.000000e+00> : vector<96xf32>
    %345 = vector.multi_reduction <add>, %344, %cst_112 [1] : vector<96x64xf32> to vector<96xf32>
    %346 = vector.shape_cast %345 : vector<96xf32> to vector<96x1xf32>
    %cst_113 = arith.constant 6.400000e+01 : f32
    %347 = vector.broadcast %cst_113 : f32 to vector<96x1xf32>
    %348 = arith.divf %346, %347 : vector<96x1xf32>
    %cst_114 = arith.constant 9.99999974E-6 : f32
    %349 = vector.broadcast %cst_114 : f32 to vector<96x1xf32>
    %350 = arith.addf %348, %349 : vector<96x1xf32>
    %351 = math.rsqrt %350 : vector<96x1xf32>
    %352 = vector.broadcast %351 : vector<96x1xf32> to vector<96x64xf32>
    %353 = arith.mulf %343, %352 : vector<96x64xf32>
    %354 = vector.broadcast %335 : vector<1x64xf32> to vector<96x64xf32>
    %355 = arith.mulf %353, %354 : vector<96x64xf32>
    %356 = vector.broadcast %337 : vector<1x64xf32> to vector<96x64xf32>
    %357 = arith.addf %355, %356 : vector<96x64xf32>
    %c1_115 = arith.constant 1 : index
    %c0_116 = arith.constant 0 : index
    %c0_117 = arith.constant 0 : index
    %358 = vector.load %arg16[%c1_115, %c0_116, %c0_117] : memref<3x64x128xbf16, #tpu.memory_space<vmem>>, vector<1x64x128xbf16>
    %359 = vector.shape_cast %358 : vector<1x64x128xbf16> to vector<64x128xbf16>
    %360 = arith.truncf %357 : vector<96x64xf32> to vector<96x64xbf16>
    %cst_118 = arith.constant dense<0.000000e+00> : vector<96x128xf32>
    %361 = tpu.matmul %360, %359, %cst_118 {dimension_numbers = #tpu.dot_dimension_numbers<[1], [0], [0], [1], [0, 0, 1, 1], [], []>} : vector<96x64xbf16>, vector<64x128xbf16>, vector<96x128xf32> -> vector<96x128xf32>
    %c1_119 = arith.constant 1 : index
    %c0_120 = arith.constant 0 : index
    %c0_121 = arith.constant 0 : index
    %362 = vector.load %arg17[%c1_119, %c0_120, %c0_121] : memref<3x1x128xf32, #tpu.memory_space<vmem>>, vector<1x1x128xf32>
    %363 = vector.shape_cast %362 : vector<1x1x128xf32> to vector<1x128xf32>
    %364 = vector.broadcast %363 : vector<1x128xf32> to vector<96x128xf32>
    %365 = arith.addf %361, %364 : vector<96x128xf32>
    %cst_122 = arith.constant 5.000000e-01 : f32
    %366 = vector.broadcast %cst_122 : f32 to vector<96x128xf32>
    %367 = arith.mulf %366, %365 : vector<96x128xf32>
    %cst_123 = arith.constant 4.471500e-02 : f32
    %368 = vector.broadcast %cst_123 : f32 to vector<96x128xf32>
    %369 = arith.mulf %368, %365 : vector<96x128xf32>
    %370 = arith.mulf %369, %365 : vector<96x128xf32>
    %371 = arith.mulf %370, %365 : vector<96x128xf32>
    %372 = arith.addf %365, %371 : vector<96x128xf32>
    %cst_124 = arith.constant 0.797884583 : f32
    %373 = vector.broadcast %cst_124 : f32 to vector<96x128xf32>
    %374 = arith.mulf %373, %372 : vector<96x128xf32>
    %375 = math.tanh %374 : vector<96x128xf32>
    %cst_125 = arith.constant 1.000000e+00 : f32
    %376 = vector.broadcast %cst_125 : f32 to vector<96x128xf32>
    %377 = arith.addf %376, %375 : vector<96x128xf32>
    %378 = arith.mulf %367, %377 : vector<96x128xf32>
    %c1_126 = arith.constant 1 : index
    %c0_127 = arith.constant 0 : index
    %c0_128 = arith.constant 0 : index
    %379 = vector.load %arg18[%c1_126, %c0_127, %c0_128] : memref<3x128x64xbf16, #tpu.memory_space<vmem>>, vector<1x128x64xbf16>
    %380 = vector.shape_cast %379 : vector<1x128x64xbf16> to vector<128x64xbf16>
    %381 = arith.truncf %378 : vector<96x128xf32> to vector<96x128xbf16>
    %cst_129 = arith.constant dense<0.000000e+00> : vector<96x64xf32>
    %382 = tpu.matmul %381, %380, %cst_129 {dimension_numbers = #tpu.dot_dimension_numbers<[1], [0], [0], [1], [0, 0, 1, 1], [], []>} : vector<96x128xbf16>, vector<128x64xbf16>, vector<96x64xf32> -> vector<96x64xf32>
    %c1_130 = arith.constant 1 : index
    %c0_131 = arith.constant 0 : index
    %c0_132 = arith.constant 0 : index
    %383 = vector.load %arg19[%c1_130, %c0_131, %c0_132] : memref<3x1x64xf32, #tpu.memory_space<vmem>>, vector<1x1x64xf32>
    %384 = vector.shape_cast %383 : vector<1x1x64xf32> to vector<1x64xf32>
    %385 = vector.broadcast %384 : vector<1x64xf32> to vector<96x64xf32>
    %386 = arith.addf %382, %385 : vector<96x64xf32>
    %387 = arith.addf %357, %386 : vector<96x64xf32>
    %c1_133 = arith.constant 1 : index
    %c0_134 = arith.constant 0 : index
    %c0_135 = arith.constant 0 : index
    %388 = vector.load %arg20[%c1_133, %c0_134, %c0_135] : memref<3x1x64xf32, #tpu.memory_space<vmem>>, vector<1x1x64xf32>
    %389 = vector.shape_cast %388 : vector<1x1x64xf32> to vector<1x64xf32>
    %c1_136 = arith.constant 1 : index
    %c0_137 = arith.constant 0 : index
    %c0_138 = arith.constant 0 : index
    %390 = vector.load %arg21[%c1_136, %c0_137, %c0_138] : memref<3x1x64xf32, #tpu.memory_space<vmem>>, vector<1x1x64xf32>
    %391 = vector.shape_cast %390 : vector<1x1x64xf32> to vector<1x64xf32>
    %cst_139 = arith.constant dense<0.000000e+00> : vector<96xf32>
    %392 = vector.multi_reduction <add>, %387, %cst_139 [1] : vector<96x64xf32> to vector<96xf32>
    %393 = vector.shape_cast %392 : vector<96xf32> to vector<96x1xf32>
    %cst_140 = arith.constant 6.400000e+01 : f32
    %394 = vector.broadcast %cst_140 : f32 to vector<96x1xf32>
    %395 = arith.divf %393, %394 : vector<96x1xf32>
    %396 = vector.broadcast %395 : vector<96x1xf32> to vector<96x64xf32>
    %397 = arith.subf %387, %396 : vector<96x64xf32>
    %398 = arith.mulf %397, %397 : vector<96x64xf32>
    %cst_141 = arith.constant dense<0.000000e+00> : vector<96xf32>
    %399 = vector.multi_reduction <add>, %398, %cst_141 [1] : vector<96x64xf32> to vector<96xf32>
    %400 = vector.shape_cast %399 : vector<96xf32> to vector<96x1xf32>
    %cst_142 = arith.constant 6.400000e+01 : f32
    %401 = vector.broadcast %cst_142 : f32 to vector<96x1xf32>
    %402 = arith.divf %400, %401 : vector<96x1xf32>
    %cst_143 = arith.constant 9.99999974E-6 : f32
    %403 = vector.broadcast %cst_143 : f32 to vector<96x1xf32>
    %404 = arith.addf %402, %403 : vector<96x1xf32>
    %405 = math.rsqrt %404 : vector<96x1xf32>
    %406 = vector.broadcast %405 : vector<96x1xf32> to vector<96x64xf32>
    %407 = arith.mulf %397, %406 : vector<96x64xf32>
    %408 = vector.broadcast %389 : vector<1x64xf32> to vector<96x64xf32>
    %409 = arith.mulf %407, %408 : vector<96x64xf32>
    %410 = vector.broadcast %391 : vector<1x64xf32> to vector<96x64xf32>
    %411 = arith.addf %409, %410 : vector<96x64xf32>
    %c2 = arith.constant 2 : index
    %c0_144 = arith.constant 0 : index
    %c0_145 = arith.constant 0 : index
    %412 = vector.load %arg2[%c2, %c0_144, %c0_145] : memref<3x96x128xbf16, #tpu.memory_space<vmem>>, vector<1x96x128xbf16>
    %413 = vector.shape_cast %412 : vector<1x96x128xbf16> to vector<96x128xbf16>
    %c2_146 = arith.constant 2 : index
    %c0_147 = arith.constant 0 : index
    %c0_148 = arith.constant 0 : index
    %414 = vector.load %arg4[%c2_146, %c0_147, %c0_148] : memref<3x128x64xbf16, #tpu.memory_space<vmem>>, vector<1x128x64xbf16>
    %415 = vector.shape_cast %414 : vector<1x128x64xbf16> to vector<128x64xbf16>
    %cst_149 = arith.constant dense<0.000000e+00> : vector<96x64xf32>
    %416 = tpu.matmul %413, %415, %cst_149 {dimension_numbers = #tpu.dot_dimension_numbers<[1], [0], [0], [1], [0, 0, 1, 1], [], []>} : vector<96x128xbf16>, vector<128x64xbf16>, vector<96x64xf32> -> vector<96x64xf32>
    %c2_150 = arith.constant 2 : index
    %c0_151 = arith.constant 0 : index
    %c0_152 = arith.constant 0 : index
    %417 = vector.load %arg5[%c2_150, %c0_151, %c0_152] : memref<3x1x64xf32, #tpu.memory_space<vmem>>, vector<1x1x64xf32>
    %418 = vector.shape_cast %417 : vector<1x1x64xf32> to vector<1x64xf32>
    %419 = vector.broadcast %418 : vector<1x64xf32> to vector<96x64xf32>
    %420 = arith.addf %416, %419 : vector<96x64xf32>
    %421 = arith.addf %411, %420 : vector<96x64xf32>
    %422 = arith.mulf %421, %6 : vector<96x64xf32>
    %423 = arith.addf %422, %11 : vector<96x64xf32>
    %c2_153 = arith.constant 2 : index
    %c0_154 = arith.constant 0 : index
    %c0_155 = arith.constant 0 : index
    %424 = vector.load %arg10[%c2_153, %c0_154, %c0_155] : memref<3x64x192xbf16, #tpu.memory_space<vmem>>, vector<1x64x192xbf16>
    %425 = vector.shape_cast %424 : vector<1x64x192xbf16> to vector<64x192xbf16>
    %426 = arith.truncf %423 : vector<96x64xf32> to vector<96x64xbf16>
    %cst_156 = arith.constant dense<0.000000e+00> : vector<96x192xf32>
    %427 = tpu.matmul %426, %425, %cst_156 {dimension_numbers = #tpu.dot_dimension_numbers<[1], [0], [0], [1], [0, 0, 1, 1], [], []>} : vector<96x64xbf16>, vector<64x192xbf16>, vector<96x192xf32> -> vector<96x192xf32>
    %c2_157 = arith.constant 2 : index
    %c0_158 = arith.constant 0 : index
    %c0_159 = arith.constant 0 : index
    %428 = vector.load %arg11[%c2_157, %c0_158, %c0_159] : memref<3x1x192xf32, #tpu.memory_space<vmem>>, vector<1x1x192xf32>
    %429 = vector.shape_cast %428 : vector<1x1x192xf32> to vector<1x192xf32>
    %430 = vector.broadcast %429 : vector<1x192xf32> to vector<96x192xf32>
    %431 = arith.addf %427, %430 : vector<96x192xf32>
    %432 = vector.extract_strided_slice %431 {offsets = [0, 0], sizes = [96, 64], strides = [1, 1]} : vector<96x192xf32> to vector<96x64xf32>
    %433 = vector.extract_strided_slice %431 {offsets = [0, 64], sizes = [96, 64], strides = [1, 1]} : vector<96x192xf32> to vector<96x64xf32>
    %434 = vector.extract_strided_slice %431 {offsets = [0, 128], sizes = [96, 64], strides = [1, 1]} : vector<96x192xf32> to vector<96x64xf32>
    %435 = vector.extract_strided_slice %432 {offsets = [0, 0], sizes = [24, 64], strides = [1, 1]} : vector<96x64xf32> to vector<24x64xf32>
    %436 = vector.extract_strided_slice %433 {offsets = [0, 0], sizes = [24, 64], strides = [1, 1]} : vector<96x64xf32> to vector<24x64xf32>
    %437 = arith.mulf %435, %436 : vector<24x64xf32>
    %438 = vector.extract_strided_slice %433 {offsets = [24, 0], sizes = [24, 64], strides = [1, 1]} : vector<96x64xf32> to vector<24x64xf32>
    %439 = arith.mulf %435, %438 : vector<24x64xf32>
    %440 = vector.extract_strided_slice %432 {offsets = [24, 0], sizes = [24, 64], strides = [1, 1]} : vector<96x64xf32> to vector<24x64xf32>
    %441 = vector.extract_strided_slice %433 {offsets = [0, 0], sizes = [24, 64], strides = [1, 1]} : vector<96x64xf32> to vector<24x64xf32>
    %442 = arith.mulf %440, %441 : vector<24x64xf32>
    %443 = vector.extract_strided_slice %433 {offsets = [24, 0], sizes = [24, 64], strides = [1, 1]} : vector<96x64xf32> to vector<24x64xf32>
    %444 = arith.mulf %440, %443 : vector<24x64xf32>
    %445 = vector.extract_strided_slice %432 {offsets = [48, 0], sizes = [24, 64], strides = [1, 1]} : vector<96x64xf32> to vector<24x64xf32>
    %446 = vector.extract_strided_slice %433 {offsets = [48, 0], sizes = [24, 64], strides = [1, 1]} : vector<96x64xf32> to vector<24x64xf32>
    %447 = arith.mulf %445, %446 : vector<24x64xf32>
    %448 = vector.extract_strided_slice %433 {offsets = [72, 0], sizes = [24, 64], strides = [1, 1]} : vector<96x64xf32> to vector<24x64xf32>
    %449 = arith.mulf %445, %448 : vector<24x64xf32>
    %450 = vector.extract_strided_slice %432 {offsets = [72, 0], sizes = [24, 64], strides = [1, 1]} : vector<96x64xf32> to vector<24x64xf32>
    %451 = vector.extract_strided_slice %433 {offsets = [48, 0], sizes = [24, 64], strides = [1, 1]} : vector<96x64xf32> to vector<24x64xf32>
    %452 = arith.mulf %450, %451 : vector<24x64xf32>
    %453 = vector.extract_strided_slice %433 {offsets = [72, 0], sizes = [24, 64], strides = [1, 1]} : vector<96x64xf32> to vector<24x64xf32>
    %454 = arith.mulf %450, %453 : vector<24x64xf32>
    %455 = tpu.concatenate %437, %439, %442, %444, %447, %449, %452, %454 in 0 : vector<24x64xf32>, vector<24x64xf32>, vector<24x64xf32>, vector<24x64xf32>, vector<24x64xf32>, vector<24x64xf32>, vector<24x64xf32>, vector<24x64xf32> -> vector<192x64xf32>
    %456 = arith.truncf %455 : vector<192x64xf32> to vector<192x64xbf16>
    %cst_160 = arith.constant dense<0.000000e+00> : vector<192x64xf32>
    %457 = tpu.matmul %456, %12, %cst_160 {dimension_numbers = #tpu.dot_dimension_numbers<[1], [0], [0], [1], [0, 0, 1, 1], [], []>} : vector<192x64xbf16>, vector<64x64xbf16>, vector<192x64xf32> -> vector<192x64xf32>
    %cst_161 = arith.constant 2.500000e-01 : f32
    %458 = vector.broadcast %cst_161 : f32 to vector<192x64xf32>
    %459 = arith.mulf %457, %458 : vector<192x64xf32>
    %460 = vector.extract_strided_slice %459 {offsets = [0, 0], sizes = [24, 64], strides = [1, 1]} : vector<192x64xf32> to vector<24x64xf32>
    %461 = vector.extract_strided_slice %459 {offsets = [24, 0], sizes = [24, 64], strides = [1, 1]} : vector<192x64xf32> to vector<24x64xf32>
    %462 = arith.maximumf %460, %461 : vector<24x64xf32>
    %463 = arith.subf %460, %462 : vector<24x64xf32>
    %464 = math.exp %463 : vector<24x64xf32>
    %465 = arith.subf %461, %462 : vector<24x64xf32>
    %466 = math.exp %465 : vector<24x64xf32>
    %467 = arith.addf %464, %466 : vector<24x64xf32>
    %468 = tpu.reciprocal %467 {approx = true} : vector<24x64xf32> -> vector<24x64xf32>
    %469 = arith.mulf %464, %468 : vector<24x64xf32>
    %470 = vector.extract_strided_slice %434 {offsets = [0, 0], sizes = [24, 64], strides = [1, 1]} : vector<96x64xf32> to vector<24x64xf32>
    %471 = arith.mulf %469, %470 : vector<24x64xf32>
    %472 = arith.mulf %466, %468 : vector<24x64xf32>
    %473 = vector.extract_strided_slice %434 {offsets = [24, 0], sizes = [24, 64], strides = [1, 1]} : vector<96x64xf32> to vector<24x64xf32>
    %474 = arith.mulf %472, %473 : vector<24x64xf32>
    %475 = arith.addf %471, %474 : vector<24x64xf32>
    %476 = vector.extract_strided_slice %459 {offsets = [48, 0], sizes = [24, 64], strides = [1, 1]} : vector<192x64xf32> to vector<24x64xf32>
    %477 = vector.extract_strided_slice %459 {offsets = [72, 0], sizes = [24, 64], strides = [1, 1]} : vector<192x64xf32> to vector<24x64xf32>
    %478 = arith.maximumf %476, %477 : vector<24x64xf32>
    %479 = arith.subf %476, %478 : vector<24x64xf32>
    %480 = math.exp %479 : vector<24x64xf32>
    %481 = arith.subf %477, %478 : vector<24x64xf32>
    %482 = math.exp %481 : vector<24x64xf32>
    %483 = arith.addf %480, %482 : vector<24x64xf32>
    %484 = tpu.reciprocal %483 {approx = true} : vector<24x64xf32> -> vector<24x64xf32>
    %485 = arith.mulf %480, %484 : vector<24x64xf32>
    %486 = vector.extract_strided_slice %434 {offsets = [0, 0], sizes = [24, 64], strides = [1, 1]} : vector<96x64xf32> to vector<24x64xf32>
    %487 = arith.mulf %485, %486 : vector<24x64xf32>
    %488 = arith.mulf %482, %484 : vector<24x64xf32>
    %489 = vector.extract_strided_slice %434 {offsets = [24, 0], sizes = [24, 64], strides = [1, 1]} : vector<96x64xf32> to vector<24x64xf32>
    %490 = arith.mulf %488, %489 : vector<24x64xf32>
    %491 = arith.addf %487, %490 : vector<24x64xf32>
    %492 = vector.extract_strided_slice %459 {offsets = [96, 0], sizes = [24, 64], strides = [1, 1]} : vector<192x64xf32> to vector<24x64xf32>
    %493 = vector.extract_strided_slice %459 {offsets = [120, 0], sizes = [24, 64], strides = [1, 1]} : vector<192x64xf32> to vector<24x64xf32>
    %494 = arith.maximumf %492, %493 : vector<24x64xf32>
    %495 = arith.subf %492, %494 : vector<24x64xf32>
    %496 = math.exp %495 : vector<24x64xf32>
    %497 = arith.subf %493, %494 : vector<24x64xf32>
    %498 = math.exp %497 : vector<24x64xf32>
    %499 = arith.addf %496, %498 : vector<24x64xf32>
    %500 = tpu.reciprocal %499 {approx = true} : vector<24x64xf32> -> vector<24x64xf32>
    %501 = arith.mulf %496, %500 : vector<24x64xf32>
    %502 = vector.extract_strided_slice %434 {offsets = [48, 0], sizes = [24, 64], strides = [1, 1]} : vector<96x64xf32> to vector<24x64xf32>
    %503 = arith.mulf %501, %502 : vector<24x64xf32>
    %504 = arith.mulf %498, %500 : vector<24x64xf32>
    %505 = vector.extract_strided_slice %434 {offsets = [72, 0], sizes = [24, 64], strides = [1, 1]} : vector<96x64xf32> to vector<24x64xf32>
    %506 = arith.mulf %504, %505 : vector<24x64xf32>
    %507 = arith.addf %503, %506 : vector<24x64xf32>
    %508 = vector.extract_strided_slice %459 {offsets = [144, 0], sizes = [24, 64], strides = [1, 1]} : vector<192x64xf32> to vector<24x64xf32>
    %509 = vector.extract_strided_slice %459 {offsets = [168, 0], sizes = [24, 64], strides = [1, 1]} : vector<192x64xf32> to vector<24x64xf32>
    %510 = arith.maximumf %508, %509 : vector<24x64xf32>
    %511 = arith.subf %508, %510 : vector<24x64xf32>
    %512 = math.exp %511 : vector<24x64xf32>
    %513 = arith.subf %509, %510 : vector<24x64xf32>
    %514 = math.exp %513 : vector<24x64xf32>
    %515 = arith.addf %512, %514 : vector<24x64xf32>
    %516 = tpu.reciprocal %515 {approx = true} : vector<24x64xf32> -> vector<24x64xf32>
    %517 = arith.mulf %512, %516 : vector<24x64xf32>
    %518 = vector.extract_strided_slice %434 {offsets = [48, 0], sizes = [24, 64], strides = [1, 1]} : vector<96x64xf32> to vector<24x64xf32>
    %519 = arith.mulf %517, %518 : vector<24x64xf32>
    %520 = arith.mulf %514, %516 : vector<24x64xf32>
    %521 = vector.extract_strided_slice %434 {offsets = [72, 0], sizes = [24, 64], strides = [1, 1]} : vector<96x64xf32> to vector<24x64xf32>
    %522 = arith.mulf %520, %521 : vector<24x64xf32>
    %523 = arith.addf %519, %522 : vector<24x64xf32>
    %524 = tpu.concatenate %475, %491, %507, %523 in 0 : vector<24x64xf32>, vector<24x64xf32>, vector<24x64xf32>, vector<24x64xf32> -> vector<96x64xf32>
    %c2_162 = arith.constant 2 : index
    %c0_163 = arith.constant 0 : index
    %c0_164 = arith.constant 0 : index
    %525 = vector.load %arg12[%c2_162, %c0_163, %c0_164] : memref<3x64x64xbf16, #tpu.memory_space<vmem>>, vector<1x64x64xbf16>
    %526 = vector.shape_cast %525 : vector<1x64x64xbf16> to vector<64x64xbf16>
    %527 = arith.truncf %524 : vector<96x64xf32> to vector<96x64xbf16>
    %cst_165 = arith.constant dense<0.000000e+00> : vector<96x64xf32>
    %528 = tpu.matmul %527, %526, %cst_165 {dimension_numbers = #tpu.dot_dimension_numbers<[1], [0], [0], [1], [0, 0, 1, 1], [], []>} : vector<96x64xbf16>, vector<64x64xbf16>, vector<96x64xf32> -> vector<96x64xf32>
    %c2_166 = arith.constant 2 : index
    %c0_167 = arith.constant 0 : index
    %c0_168 = arith.constant 0 : index
    %529 = vector.load %arg13[%c2_166, %c0_167, %c0_168] : memref<3x1x64xf32, #tpu.memory_space<vmem>>, vector<1x1x64xf32>
    %530 = vector.shape_cast %529 : vector<1x1x64xf32> to vector<1x64xf32>
    %531 = vector.broadcast %530 : vector<1x64xf32> to vector<96x64xf32>
    %532 = arith.addf %528, %531 : vector<96x64xf32>
    %533 = arith.addf %423, %532 : vector<96x64xf32>
    %c2_169 = arith.constant 2 : index
    %c0_170 = arith.constant 0 : index
    %c0_171 = arith.constant 0 : index
    %534 = vector.load %arg14[%c2_169, %c0_170, %c0_171] : memref<3x1x64xf32, #tpu.memory_space<vmem>>, vector<1x1x64xf32>
    %535 = vector.shape_cast %534 : vector<1x1x64xf32> to vector<1x64xf32>
    %c2_172 = arith.constant 2 : index
    %c0_173 = arith.constant 0 : index
    %c0_174 = arith.constant 0 : index
    %536 = vector.load %arg15[%c2_172, %c0_173, %c0_174] : memref<3x1x64xf32, #tpu.memory_space<vmem>>, vector<1x1x64xf32>
    %537 = vector.shape_cast %536 : vector<1x1x64xf32> to vector<1x64xf32>
    %cst_175 = arith.constant dense<0.000000e+00> : vector<96xf32>
    %538 = vector.multi_reduction <add>, %533, %cst_175 [1] : vector<96x64xf32> to vector<96xf32>
    %539 = vector.shape_cast %538 : vector<96xf32> to vector<96x1xf32>
    %cst_176 = arith.constant 6.400000e+01 : f32
    %540 = vector.broadcast %cst_176 : f32 to vector<96x1xf32>
    %541 = arith.divf %539, %540 : vector<96x1xf32>
    %542 = vector.broadcast %541 : vector<96x1xf32> to vector<96x64xf32>
    %543 = arith.subf %533, %542 : vector<96x64xf32>
    %544 = arith.mulf %543, %543 : vector<96x64xf32>
    %cst_177 = arith.constant dense<0.000000e+00> : vector<96xf32>
    %545 = vector.multi_reduction <add>, %544, %cst_177 [1] : vector<96x64xf32> to vector<96xf32>
    %546 = vector.shape_cast %545 : vector<96xf32> to vector<96x1xf32>
    %cst_178 = arith.constant 6.400000e+01 : f32
    %547 = vector.broadcast %cst_178 : f32 to vector<96x1xf32>
    %548 = arith.divf %546, %547 : vector<96x1xf32>
    %cst_179 = arith.constant 9.99999974E-6 : f32
    %549 = vector.broadcast %cst_179 : f32 to vector<96x1xf32>
    %550 = arith.addf %548, %549 : vector<96x1xf32>
    %551 = math.rsqrt %550 : vector<96x1xf32>
    %552 = vector.broadcast %551 : vector<96x1xf32> to vector<96x64xf32>
    %553 = arith.mulf %543, %552 : vector<96x64xf32>
    %554 = vector.broadcast %535 : vector<1x64xf32> to vector<96x64xf32>
    %555 = arith.mulf %553, %554 : vector<96x64xf32>
    %556 = vector.broadcast %537 : vector<1x64xf32> to vector<96x64xf32>
    %557 = arith.addf %555, %556 : vector<96x64xf32>
    %c2_180 = arith.constant 2 : index
    %c0_181 = arith.constant 0 : index
    %c0_182 = arith.constant 0 : index
    %558 = vector.load %arg16[%c2_180, %c0_181, %c0_182] : memref<3x64x128xbf16, #tpu.memory_space<vmem>>, vector<1x64x128xbf16>
    %559 = vector.shape_cast %558 : vector<1x64x128xbf16> to vector<64x128xbf16>
    %560 = arith.truncf %557 : vector<96x64xf32> to vector<96x64xbf16>
    %cst_183 = arith.constant dense<0.000000e+00> : vector<96x128xf32>
    %561 = tpu.matmul %560, %559, %cst_183 {dimension_numbers = #tpu.dot_dimension_numbers<[1], [0], [0], [1], [0, 0, 1, 1], [], []>} : vector<96x64xbf16>, vector<64x128xbf16>, vector<96x128xf32> -> vector<96x128xf32>
    %c2_184 = arith.constant 2 : index
    %c0_185 = arith.constant 0 : index
    %c0_186 = arith.constant 0 : index
    %562 = vector.load %arg17[%c2_184, %c0_185, %c0_186] : memref<3x1x128xf32, #tpu.memory_space<vmem>>, vector<1x1x128xf32>
    %563 = vector.shape_cast %562 : vector<1x1x128xf32> to vector<1x128xf32>
    %564 = vector.broadcast %563 : vector<1x128xf32> to vector<96x128xf32>
    %565 = arith.addf %561, %564 : vector<96x128xf32>
    %cst_187 = arith.constant 5.000000e-01 : f32
    %566 = vector.broadcast %cst_187 : f32 to vector<96x128xf32>
    %567 = arith.mulf %566, %565 : vector<96x128xf32>
    %cst_188 = arith.constant 4.471500e-02 : f32
    %568 = vector.broadcast %cst_188 : f32 to vector<96x128xf32>
    %569 = arith.mulf %568, %565 : vector<96x128xf32>
    %570 = arith.mulf %569, %565 : vector<96x128xf32>
    %571 = arith.mulf %570, %565 : vector<96x128xf32>
    %572 = arith.addf %565, %571 : vector<96x128xf32>
    %cst_189 = arith.constant 0.797884583 : f32
    %573 = vector.broadcast %cst_189 : f32 to vector<96x128xf32>
    %574 = arith.mulf %573, %572 : vector<96x128xf32>
    %575 = math.tanh %574 : vector<96x128xf32>
    %cst_190 = arith.constant 1.000000e+00 : f32
    %576 = vector.broadcast %cst_190 : f32 to vector<96x128xf32>
    %577 = arith.addf %576, %575 : vector<96x128xf32>
    %578 = arith.mulf %567, %577 : vector<96x128xf32>
    %c2_191 = arith.constant 2 : index
    %c0_192 = arith.constant 0 : index
    %c0_193 = arith.constant 0 : index
    %579 = vector.load %arg18[%c2_191, %c0_192, %c0_193] : memref<3x128x64xbf16, #tpu.memory_space<vmem>>, vector<1x128x64xbf16>
    %580 = vector.shape_cast %579 : vector<1x128x64xbf16> to vector<128x64xbf16>
    %581 = arith.truncf %578 : vector<96x128xf32> to vector<96x128xbf16>
    %cst_194 = arith.constant dense<0.000000e+00> : vector<96x64xf32>
    %582 = tpu.matmul %581, %580, %cst_194 {dimension_numbers = #tpu.dot_dimension_numbers<[1], [0], [0], [1], [0, 0, 1, 1], [], []>} : vector<96x128xbf16>, vector<128x64xbf16>, vector<96x64xf32> -> vector<96x64xf32>
    %c2_195 = arith.constant 2 : index
    %c0_196 = arith.constant 0 : index
    %c0_197 = arith.constant 0 : index
    %583 = vector.load %arg19[%c2_195, %c0_196, %c0_197] : memref<3x1x64xf32, #tpu.memory_space<vmem>>, vector<1x1x64xf32>
    %584 = vector.shape_cast %583 : vector<1x1x64xf32> to vector<1x64xf32>
    %585 = vector.broadcast %584 : vector<1x64xf32> to vector<96x64xf32>
    %586 = arith.addf %582, %585 : vector<96x64xf32>
    %587 = arith.addf %557, %586 : vector<96x64xf32>
    %c2_198 = arith.constant 2 : index
    %c0_199 = arith.constant 0 : index
    %c0_200 = arith.constant 0 : index
    %588 = vector.load %arg20[%c2_198, %c0_199, %c0_200] : memref<3x1x64xf32, #tpu.memory_space<vmem>>, vector<1x1x64xf32>
    %589 = vector.shape_cast %588 : vector<1x1x64xf32> to vector<1x64xf32>
    %c2_201 = arith.constant 2 : index
    %c0_202 = arith.constant 0 : index
    %c0_203 = arith.constant 0 : index
    %590 = vector.load %arg21[%c2_201, %c0_202, %c0_203] : memref<3x1x64xf32, #tpu.memory_space<vmem>>, vector<1x1x64xf32>
    %591 = vector.shape_cast %590 : vector<1x1x64xf32> to vector<1x64xf32>
    %cst_204 = arith.constant dense<0.000000e+00> : vector<96xf32>
    %592 = vector.multi_reduction <add>, %587, %cst_204 [1] : vector<96x64xf32> to vector<96xf32>
    %593 = vector.shape_cast %592 : vector<96xf32> to vector<96x1xf32>
    %cst_205 = arith.constant 6.400000e+01 : f32
    %594 = vector.broadcast %cst_205 : f32 to vector<96x1xf32>
    %595 = arith.divf %593, %594 : vector<96x1xf32>
    %596 = vector.broadcast %595 : vector<96x1xf32> to vector<96x64xf32>
    %597 = arith.subf %587, %596 : vector<96x64xf32>
    %598 = arith.mulf %597, %597 : vector<96x64xf32>
    %cst_206 = arith.constant dense<0.000000e+00> : vector<96xf32>
    %599 = vector.multi_reduction <add>, %598, %cst_206 [1] : vector<96x64xf32> to vector<96xf32>
    %600 = vector.shape_cast %599 : vector<96xf32> to vector<96x1xf32>
    %cst_207 = arith.constant 6.400000e+01 : f32
    %601 = vector.broadcast %cst_207 : f32 to vector<96x1xf32>
    %602 = arith.divf %600, %601 : vector<96x1xf32>
    %cst_208 = arith.constant 9.99999974E-6 : f32
    %603 = vector.broadcast %cst_208 : f32 to vector<96x1xf32>
    %604 = arith.addf %602, %603 : vector<96x1xf32>
    %605 = math.rsqrt %604 : vector<96x1xf32>
    %606 = vector.broadcast %605 : vector<96x1xf32> to vector<96x64xf32>
    %607 = arith.mulf %597, %606 : vector<96x64xf32>
    %608 = vector.broadcast %589 : vector<1x64xf32> to vector<96x64xf32>
    %609 = arith.mulf %607, %608 : vector<96x64xf32>
    %610 = vector.broadcast %591 : vector<1x64xf32> to vector<96x64xf32>
    %611 = arith.addf %609, %610 : vector<96x64xf32>
    %612 = vector.extract_strided_slice %611 {offsets = [0, 0], sizes = [16, 64], strides = [1, 1]} : vector<96x64xf32> to vector<16x64xf32>
    %613 = vector.extract_strided_slice %611 {offsets = [24, 0], sizes = [16, 64], strides = [1, 1]} : vector<96x64xf32> to vector<16x64xf32>
    %614 = vector.extract_strided_slice %611 {offsets = [48, 0], sizes = [16, 64], strides = [1, 1]} : vector<96x64xf32> to vector<16x64xf32>
    %615 = vector.extract_strided_slice %611 {offsets = [72, 0], sizes = [16, 64], strides = [1, 1]} : vector<96x64xf32> to vector<16x64xf32>
    %616 = tpu.concatenate %612, %613, %614, %615 in 0 : vector<16x64xf32>, vector<16x64xf32>, vector<16x64xf32>, vector<16x64xf32> -> vector<64x64xf32>
    %c0_209 = arith.constant 0 : index
    %c0_210 = arith.constant 0 : index
    %617 = vector.load %arg23[%c0_209, %c0_210] : memref<64x576xbf16, #tpu.memory_space<vmem>>, vector<64x576xbf16>
    %618 = arith.truncf %616 : vector<64x64xf32> to vector<64x64xbf16>
    %cst_211 = arith.constant dense<0.000000e+00> : vector<64x576xf32>
    %619 = tpu.matmul %618, %617, %cst_211 {dimension_numbers = #tpu.dot_dimension_numbers<[1], [0], [0], [1], [0, 0, 1, 1], [], []>} : vector<64x64xbf16>, vector<64x576xbf16>, vector<64x576xf32> -> vector<64x576xf32>
    %c0_212 = arith.constant 0 : index
    %c0_213 = arith.constant 0 : index
    %c0_214 = arith.constant 0 : index
    %620 = vector.load %arg22[%c0_212, %c0_213, %c0_214] : memref<9x64x64xbf16, #tpu.memory_space<vmem>>, vector<1x64x64xbf16>
    %621 = vector.shape_cast %620 : vector<1x64x64xbf16> to vector<64x64xbf16>
    %622 = vector.extract_strided_slice %619 {offsets = [0, 0], sizes = [64, 64], strides = [1, 1]} : vector<64x576xf32> to vector<64x64xf32>
    %623 = arith.truncf %622 : vector<64x64xf32> to vector<64x64xbf16>
    %cst_215 = arith.constant dense<0.000000e+00> : vector<64x64xf32>
    %624 = tpu.matmul %621, %623, %cst_215 {dimension_numbers = #tpu.dot_dimension_numbers<[1], [0], [0], [1], [0, 0, 1, 1], [], []>} : vector<64x64xbf16>, vector<64x64xbf16>, vector<64x64xf32> -> vector<64x64xf32>
    %c1_216 = arith.constant 1 : index
    %c0_217 = arith.constant 0 : index
    %c0_218 = arith.constant 0 : index
    %625 = vector.load %arg22[%c1_216, %c0_217, %c0_218] : memref<9x64x64xbf16, #tpu.memory_space<vmem>>, vector<1x64x64xbf16>
    %626 = vector.shape_cast %625 : vector<1x64x64xbf16> to vector<64x64xbf16>
    %627 = vector.extract_strided_slice %619 {offsets = [0, 64], sizes = [64, 64], strides = [1, 1]} : vector<64x576xf32> to vector<64x64xf32>
    %628 = arith.truncf %627 : vector<64x64xf32> to vector<64x64xbf16>
    %cst_219 = arith.constant dense<0.000000e+00> : vector<64x64xf32>
    %629 = tpu.matmul %626, %628, %cst_219 {dimension_numbers = #tpu.dot_dimension_numbers<[1], [0], [0], [1], [0, 0, 1, 1], [], []>} : vector<64x64xbf16>, vector<64x64xbf16>, vector<64x64xf32> -> vector<64x64xf32>
    %c2_220 = arith.constant 2 : index
    %c0_221 = arith.constant 0 : index
    %c0_222 = arith.constant 0 : index
    %630 = vector.load %arg22[%c2_220, %c0_221, %c0_222] : memref<9x64x64xbf16, #tpu.memory_space<vmem>>, vector<1x64x64xbf16>
    %631 = vector.shape_cast %630 : vector<1x64x64xbf16> to vector<64x64xbf16>
    %632 = vector.extract_strided_slice %619 {offsets = [0, 128], sizes = [64, 64], strides = [1, 1]} : vector<64x576xf32> to vector<64x64xf32>
    %633 = arith.truncf %632 : vector<64x64xf32> to vector<64x64xbf16>
    %cst_223 = arith.constant dense<0.000000e+00> : vector<64x64xf32>
    %634 = tpu.matmul %631, %633, %cst_223 {dimension_numbers = #tpu.dot_dimension_numbers<[1], [0], [0], [1], [0, 0, 1, 1], [], []>} : vector<64x64xbf16>, vector<64x64xbf16>, vector<64x64xf32> -> vector<64x64xf32>
    %c3 = arith.constant 3 : index
    %c0_224 = arith.constant 0 : index
    %c0_225 = arith.constant 0 : index
    %635 = vector.load %arg22[%c3, %c0_224, %c0_225] : memref<9x64x64xbf16, #tpu.memory_space<vmem>>, vector<1x64x64xbf16>
    %636 = vector.shape_cast %635 : vector<1x64x64xbf16> to vector<64x64xbf16>
    %637 = vector.extract_strided_slice %619 {offsets = [0, 192], sizes = [64, 64], strides = [1, 1]} : vector<64x576xf32> to vector<64x64xf32>
    %638 = arith.truncf %637 : vector<64x64xf32> to vector<64x64xbf16>
    %cst_226 = arith.constant dense<0.000000e+00> : vector<64x64xf32>
    %639 = tpu.matmul %636, %638, %cst_226 {dimension_numbers = #tpu.dot_dimension_numbers<[1], [0], [0], [1], [0, 0, 1, 1], [], []>} : vector<64x64xbf16>, vector<64x64xbf16>, vector<64x64xf32> -> vector<64x64xf32>
    %c4 = arith.constant 4 : index
    %c0_227 = arith.constant 0 : index
    %c0_228 = arith.constant 0 : index
    %640 = vector.load %arg22[%c4, %c0_227, %c0_228] : memref<9x64x64xbf16, #tpu.memory_space<vmem>>, vector<1x64x64xbf16>
    %641 = vector.shape_cast %640 : vector<1x64x64xbf16> to vector<64x64xbf16>
    %642 = vector.extract_strided_slice %619 {offsets = [0, 256], sizes = [64, 64], strides = [1, 1]} : vector<64x576xf32> to vector<64x64xf32>
    %643 = arith.truncf %642 : vector<64x64xf32> to vector<64x64xbf16>
    %cst_229 = arith.constant dense<0.000000e+00> : vector<64x64xf32>
    %644 = tpu.matmul %641, %643, %cst_229 {dimension_numbers = #tpu.dot_dimension_numbers<[1], [0], [0], [1], [0, 0, 1, 1], [], []>} : vector<64x64xbf16>, vector<64x64xbf16>, vector<64x64xf32> -> vector<64x64xf32>
    %c5 = arith.constant 5 : index
    %c0_230 = arith.constant 0 : index
    %c0_231 = arith.constant 0 : index
    %645 = vector.load %arg22[%c5, %c0_230, %c0_231] : memref<9x64x64xbf16, #tpu.memory_space<vmem>>, vector<1x64x64xbf16>
    %646 = vector.shape_cast %645 : vector<1x64x64xbf16> to vector<64x64xbf16>
    %647 = vector.extract_strided_slice %619 {offsets = [0, 320], sizes = [64, 64], strides = [1, 1]} : vector<64x576xf32> to vector<64x64xf32>
    %648 = arith.truncf %647 : vector<64x64xf32> to vector<64x64xbf16>
    %cst_232 = arith.constant dense<0.000000e+00> : vector<64x64xf32>
    %649 = tpu.matmul %646, %648, %cst_232 {dimension_numbers = #tpu.dot_dimension_numbers<[1], [0], [0], [1], [0, 0, 1, 1], [], []>} : vector<64x64xbf16>, vector<64x64xbf16>, vector<64x64xf32> -> vector<64x64xf32>
    %c6 = arith.constant 6 : index
    %c0_233 = arith.constant 0 : index
    %c0_234 = arith.constant 0 : index
    %650 = vector.load %arg22[%c6, %c0_233, %c0_234] : memref<9x64x64xbf16, #tpu.memory_space<vmem>>, vector<1x64x64xbf16>
    %651 = vector.shape_cast %650 : vector<1x64x64xbf16> to vector<64x64xbf16>
    %652 = vector.extract_strided_slice %619 {offsets = [0, 384], sizes = [64, 64], strides = [1, 1]} : vector<64x576xf32> to vector<64x64xf32>
    %653 = arith.truncf %652 : vector<64x64xf32> to vector<64x64xbf16>
    %cst_235 = arith.constant dense<0.000000e+00> : vector<64x64xf32>
    %654 = tpu.matmul %651, %653, %cst_235 {dimension_numbers = #tpu.dot_dimension_numbers<[1], [0], [0], [1], [0, 0, 1, 1], [], []>} : vector<64x64xbf16>, vector<64x64xbf16>, vector<64x64xf32> -> vector<64x64xf32>
    %c7 = arith.constant 7 : index
    %c0_236 = arith.constant 0 : index
    %c0_237 = arith.constant 0 : index
    %655 = vector.load %arg22[%c7, %c0_236, %c0_237] : memref<9x64x64xbf16, #tpu.memory_space<vmem>>, vector<1x64x64xbf16>
    %656 = vector.shape_cast %655 : vector<1x64x64xbf16> to vector<64x64xbf16>
    %657 = vector.extract_strided_slice %619 {offsets = [0, 448], sizes = [64, 64], strides = [1, 1]} : vector<64x576xf32> to vector<64x64xf32>
    %658 = arith.truncf %657 : vector<64x64xf32> to vector<64x64xbf16>
    %cst_238 = arith.constant dense<0.000000e+00> : vector<64x64xf32>
    %659 = tpu.matmul %656, %658, %cst_238 {dimension_numbers = #tpu.dot_dimension_numbers<[1], [0], [0], [1], [0, 0, 1, 1], [], []>} : vector<64x64xbf16>, vector<64x64xbf16>, vector<64x64xf32> -> vector<64x64xf32>
    %c8 = arith.constant 8 : index
    %c0_239 = arith.constant 0 : index
    %c0_240 = arith.constant 0 : index
    %660 = vector.load %arg22[%c8, %c0_239, %c0_240] : memref<9x64x64xbf16, #tpu.memory_space<vmem>>, vector<1x64x64xbf16>
    %661 = vector.shape_cast %660 : vector<1x64x64xbf16> to vector<64x64xbf16>
    %662 = vector.extract_strided_slice %619 {offsets = [0, 512], sizes = [64, 64], strides = [1, 1]} : vector<64x576xf32> to vector<64x64xf32>
    %663 = arith.truncf %662 : vector<64x64xf32> to vector<64x64xbf16>
    %cst_241 = arith.constant dense<0.000000e+00> : vector<64x64xf32>
    %664 = tpu.matmul %661, %663, %cst_241 {dimension_numbers = #tpu.dot_dimension_numbers<[1], [0], [0], [1], [0, 0, 1, 1], [], []>} : vector<64x64xbf16>, vector<64x64xbf16>, vector<64x64xf32> -> vector<64x64xf32>
    %665 = arith.addf %624, %629 : vector<64x64xf32>
    %666 = arith.addf %634, %639 : vector<64x64xf32>
    %667 = arith.addf %644, %649 : vector<64x64xf32>
    %668 = arith.addf %654, %659 : vector<64x64xf32>
    %669 = arith.addf %665, %666 : vector<64x64xf32>
    %670 = arith.addf %667, %668 : vector<64x64xf32>
    %671 = arith.addf %669, %670 : vector<64x64xf32>
    %672 = arith.addf %671, %664 : vector<64x64xf32>
    %c0_242 = arith.constant 0 : index
    %c0_243 = arith.constant 0 : index
    %673 = vector.load %arg24[%c0_242, %c0_243] : memref<1x64xf32, #tpu.memory_space<vmem>>, vector<1x64xf32>
    %674 = vector.broadcast %673 : vector<1x64xf32> to vector<64x64xf32>
    %675 = arith.addf %672, %674 : vector<64x64xf32>
    %cst_244 = arith.constant 5.000000e-01 : f32
    %676 = vector.broadcast %cst_244 : f32 to vector<64x64xf32>
    %677 = arith.mulf %676, %675 : vector<64x64xf32>
    %cst_245 = arith.constant 4.471500e-02 : f32
    %678 = vector.broadcast %cst_245 : f32 to vector<64x64xf32>
    %679 = arith.mulf %678, %675 : vector<64x64xf32>
    %680 = arith.mulf %679, %675 : vector<64x64xf32>
    %681 = arith.mulf %680, %675 : vector<64x64xf32>
    %682 = arith.addf %675, %681 : vector<64x64xf32>
    %cst_246 = arith.constant 0.797884583 : f32
    %683 = vector.broadcast %cst_246 : f32 to vector<64x64xf32>
    %684 = arith.mulf %683, %682 : vector<64x64xf32>
    %685 = math.tanh %684 : vector<64x64xf32>
    %cst_247 = arith.constant 1.000000e+00 : f32
    %686 = vector.broadcast %cst_247 : f32 to vector<64x64xf32>
    %687 = arith.addf %686, %685 : vector<64x64xf32>
    %688 = arith.mulf %677, %687 : vector<64x64xf32>
    %c0_248 = arith.constant 0 : index
    %c0_249 = arith.constant 0 : index
    %689 = vector.load %arg25[%c0_248, %c0_249] : memref<64x512xbf16, #tpu.memory_space<vmem>>, vector<64x512xbf16>
    %690 = arith.truncf %688 : vector<64x64xf32> to vector<64x64xbf16>
    %cst_250 = arith.constant dense<0.000000e+00> : vector<64x512xf32>
    %691 = tpu.matmul %690, %689, %cst_250 {dimension_numbers = #tpu.dot_dimension_numbers<[1], [0], [0], [1], [0, 0, 1, 1], [], []>} : vector<64x64xbf16>, vector<64x512xbf16>, vector<64x512xf32> -> vector<64x512xf32>
    %c0_251 = arith.constant 0 : index
    %c0_252 = arith.constant 0 : index
    %692 = vector.load %arg26[%c0_251, %c0_252] : memref<1x512xf32, #tpu.memory_space<vmem>>, vector<1x512xf32>
    %693 = vector.broadcast %692 : vector<1x512xf32> to vector<64x512xf32>
    %694 = arith.addf %691, %693 : vector<64x512xf32>
    %cst_253 = arith.constant 5.000000e-01 : f32
    %695 = vector.broadcast %cst_253 : f32 to vector<64x512xf32>
    %696 = arith.mulf %695, %694 : vector<64x512xf32>
    %cst_254 = arith.constant 4.471500e-02 : f32
    %697 = vector.broadcast %cst_254 : f32 to vector<64x512xf32>
    %698 = arith.mulf %697, %694 : vector<64x512xf32>
    %699 = arith.mulf %698, %694 : vector<64x512xf32>
    %700 = arith.mulf %699, %694 : vector<64x512xf32>
    %701 = arith.addf %694, %700 : vector<64x512xf32>
    %cst_255 = arith.constant 0.797884583 : f32
    %702 = vector.broadcast %cst_255 : f32 to vector<64x512xf32>
    %703 = arith.mulf %702, %701 : vector<64x512xf32>
    %704 = math.tanh %703 : vector<64x512xf32>
    %cst_256 = arith.constant 1.000000e+00 : f32
    %705 = vector.broadcast %cst_256 : f32 to vector<64x512xf32>
    %706 = arith.addf %705, %704 : vector<64x512xf32>
    %707 = arith.mulf %696, %706 : vector<64x512xf32>
    %c0_257 = arith.constant 0 : index
    %c0_258 = arith.constant 0 : index
    %708 = vector.load %arg27[%c0_257, %c0_258] : memref<512x256xbf16, #tpu.memory_space<vmem>>, vector<512x256xbf16>
    %709 = arith.truncf %707 : vector<64x512xf32> to vector<64x512xbf16>
    %cst_259 = arith.constant dense<0.000000e+00> : vector<64x256xf32>
    %710 = tpu.matmul %709, %708, %cst_259 {dimension_numbers = #tpu.dot_dimension_numbers<[1], [0], [0], [1], [0, 0, 1, 1], [], []>} : vector<64x512xbf16>, vector<512x256xbf16>, vector<64x256xf32> -> vector<64x256xf32>
    %c0_260 = arith.constant 0 : index
    %c0_261 = arith.constant 0 : index
    %711 = vector.load %arg28[%c0_260, %c0_261] : memref<1x1xf32, #tpu.memory_space<vmem>>, vector<1x1xf32>
    %712 = vector.broadcast %711 : vector<1x1xf32> to vector<64x256xf32>
    %713 = arith.addf %710, %712 : vector<64x256xf32>
    %c0_262 = arith.constant 0 : index
    %c0_263 = arith.constant 0 : index
    %c0_264 = arith.constant 0 : index
    %714 = vector.load %arg29[%c0_262, %c0_263, %c0_264] : memref<1x64x256xf32, #tpu.memory_space<vmem>>, vector<1x64x256xf32>
    %715 = vector.shape_cast %714 : vector<1x64x256xf32> to vector<64x256xf32>
    %716 = vector.shape_cast %713 : vector<64x256xf32> to vector<1x64x256xf32>
    tpu.vector_store %arg29[%c0_262, %c0_263, %c0_264], %716 {strides = array<i32>} : memref<1x64x256xf32, #tpu.memory_space<vmem>>, vector<1x64x256xf32>,
    return
  }
  func.func @transform_0(%arg0: i32) -> (i32, i32, i32) {
    %c0_i32 = arith.constant 0 : i32
    %c0_i32_0 = arith.constant 0 : i32
    %c0_i32_1 = arith.constant 0 : i32
    return %arg0, %c0_i32, %c0_i32_0 : i32, i32, i32
  }
  func.func @transform_1(%arg0: i32) -> (i32, i32, i32) {
    %c0_i32 = arith.constant 0 : i32
    %c0_i32_0 = arith.constant 0 : i32
    %c0_i32_1 = arith.constant 0 : i32
    %c0_i32_2 = arith.constant 0 : i32
    return %c0_i32, %c0_i32_0, %c0_i32_1 : i32, i32, i32
  }
  func.func @transform_2(%arg0: i32) -> (i32, i32) {
    %c0_i32 = arith.constant 0 : i32
    %c0_i32_0 = arith.constant 0 : i32
    %c0_i32_1 = arith.constant 0 : i32
    return %c0_i32, %c0_i32_0 : i32, i32
  }
  func.func @transform_3(%arg0: i32) -> (i32, i32, i32) {
    %c0_i32 = arith.constant 0 : i32
    %c0_i32_0 = arith.constant 0 : i32
    %c0_i32_1 = arith.constant 0 : i32
    %c0_i32_2 = arith.constant 0 : i32
    return %c0_i32, %c0_i32_0, %c0_i32_1 : i32, i32, i32
  }
  func.func @transform_4(%arg0: i32) -> (i32, i32, i32) {
    %c0_i32 = arith.constant 0 : i32
    %c0_i32_0 = arith.constant 0 : i32
    %c0_i32_1 = arith.constant 0 : i32
    %c0_i32_2 = arith.constant 0 : i32
    return %c0_i32, %c0_i32_0, %c0_i32_1 : i32, i32, i32
  }
  func.func @transform_5(%arg0: i32) -> (i32, i32) {
    %c0_i32 = arith.constant 0 : i32
    %c0_i32_0 = arith.constant 0 : i32
    %c0_i32_1 = arith.constant 0 : i32
    return %c0_i32, %c0_i32_0 : i32, i32
  }
  func.func @transform_6(%arg0: i32) -> (i32, i32) {
    %c0_i32 = arith.constant 0 : i32
    %c0_i32_0 = arith.constant 0 : i32
    %c0_i32_1 = arith.constant 0 : i32
    return %c0_i32, %c0_i32_0 : i32, i32
  }
  func.func @transform_7(%arg0: i32) -> (i32, i32) {
    %c0_i32 = arith.constant 0 : i32
    %c0_i32_0 = arith.constant 0 : i32
    %c0_i32_1 = arith.constant 0 : i32
    return %c0_i32, %c0_i32_0 : i32, i32
  }
  func.func @transform_8(%arg0: i32) -> (i32, i32) {
    %c0_i32 = arith.constant 0 : i32
    %c0_i32_0 = arith.constant 0 : i32
    %c0_i32_1 = arith.constant 0 : i32
    return %c0_i32, %c0_i32_0 : i32, i32
  }
  func.func @transform_9(%arg0: i32) -> (i32, i32, i32) {
    %c0_i32 = arith.constant 0 : i32
    %c0_i32_0 = arith.constant 0 : i32
    %c0_i32_1 = arith.constant 0 : i32
    %c0_i32_2 = arith.constant 0 : i32
    return %c0_i32, %c0_i32_0, %c0_i32_1 : i32, i32, i32
  }
  func.func @transform_10(%arg0: i32) -> (i32, i32, i32) {
    %c0_i32 = arith.constant 0 : i32
    %c0_i32_0 = arith.constant 0 : i32
    %c0_i32_1 = arith.constant 0 : i32
    %c0_i32_2 = arith.constant 0 : i32
    return %c0_i32, %c0_i32_0, %c0_i32_1 : i32, i32, i32
  }
  func.func @transform_11(%arg0: i32) -> (i32, i32, i32) {
    %c0_i32 = arith.constant 0 : i32
    %c0_i32_0 = arith.constant 0 : i32
    %c0_i32_1 = arith.constant 0 : i32
    %c0_i32_2 = arith.constant 0 : i32
    return %c0_i32, %c0_i32_0, %c0_i32_1 : i32, i32, i32
  }
  func.func @transform_12(%arg0: i32) -> (i32, i32, i32) {
    %c0_i32 = arith.constant 0 : i32
    %c0_i32_0 = arith.constant 0 : i32
    %c0_i32_1 = arith.constant 0 : i32
    %c0_i32_2 = arith.constant 0 : i32
    return %c0_i32, %c0_i32_0, %c0_i32_1 : i32, i32, i32
  }
  func.func @transform_13(%arg0: i32) -> (i32, i32, i32) {
    %c0_i32 = arith.constant 0 : i32
    %c0_i32_0 = arith.constant 0 : i32
    %c0_i32_1 = arith.constant 0 : i32
    %c0_i32_2 = arith.constant 0 : i32
    return %c0_i32, %c0_i32_0, %c0_i32_1 : i32, i32, i32
  }
  func.func @transform_14(%arg0: i32) -> (i32, i32, i32) {
    %c0_i32 = arith.constant 0 : i32
    %c0_i32_0 = arith.constant 0 : i32
    %c0_i32_1 = arith.constant 0 : i32
    %c0_i32_2 = arith.constant 0 : i32
    return %c0_i32, %c0_i32_0, %c0_i32_1 : i32, i32, i32
  }
  func.func @transform_15(%arg0: i32) -> (i32, i32, i32) {
    %c0_i32 = arith.constant 0 : i32
    %c0_i32_0 = arith.constant 0 : i32
    %c0_i32_1 = arith.constant 0 : i32
    %c0_i32_2 = arith.constant 0 : i32
    return %c0_i32, %c0_i32_0, %c0_i32_1 : i32, i32, i32
  }
  func.func @transform_16(%arg0: i32) -> (i32, i32, i32) {
    %c0_i32 = arith.constant 0 : i32
    %c0_i32_0 = arith.constant 0 : i32
    %c0_i32_1 = arith.constant 0 : i32
    %c0_i32_2 = arith.constant 0 : i32
    return %c0_i32, %c0_i32_0, %c0_i32_1 : i32, i32, i32
  }
  func.func @transform_17(%arg0: i32) -> (i32, i32, i32) {
    %c0_i32 = arith.constant 0 : i32
    %c0_i32_0 = arith.constant 0 : i32
    %c0_i32_1 = arith.constant 0 : i32
    %c0_i32_2 = arith.constant 0 : i32
    return %c0_i32, %c0_i32_0, %c0_i32_1 : i32, i32, i32
  }
  func.func @transform_18(%arg0: i32) -> (i32, i32, i32) {
    %c0_i32 = arith.constant 0 : i32
    %c0_i32_0 = arith.constant 0 : i32
    %c0_i32_1 = arith.constant 0 : i32
    %c0_i32_2 = arith.constant 0 : i32
    return %c0_i32, %c0_i32_0, %c0_i32_1 : i32, i32, i32
  }
  func.func @transform_19(%arg0: i32) -> (i32, i32, i32) {
    %c0_i32 = arith.constant 0 : i32
    %c0_i32_0 = arith.constant 0 : i32
    %c0_i32_1 = arith.constant 0 : i32
    %c0_i32_2 = arith.constant 0 : i32
    return %c0_i32, %c0_i32_0, %c0_i32_1 : i32, i32, i32
  }
  func.func @transform_20(%arg0: i32) -> (i32, i32, i32) {
    %c0_i32 = arith.constant 0 : i32
    %c0_i32_0 = arith.constant 0 : i32
    %c0_i32_1 = arith.constant 0 : i32
    %c0_i32_2 = arith.constant 0 : i32
    return %c0_i32, %c0_i32_0, %c0_i32_1 : i32, i32, i32
  }
  func.func @transform_21(%arg0: i32) -> (i32, i32, i32) {
    %c0_i32 = arith.constant 0 : i32
    %c0_i32_0 = arith.constant 0 : i32
    %c0_i32_1 = arith.constant 0 : i32
    %c0_i32_2 = arith.constant 0 : i32
    return %c0_i32, %c0_i32_0, %c0_i32_1 : i32, i32, i32
  }
  func.func @transform_22(%arg0: i32) -> (i32, i32) {
    %c0_i32 = arith.constant 0 : i32
    %c0_i32_0 = arith.constant 0 : i32
    %c0_i32_1 = arith.constant 0 : i32
    return %c0_i32, %c0_i32_0 : i32, i32
  }
  func.func @transform_23(%arg0: i32) -> (i32, i32) {
    %c0_i32 = arith.constant 0 : i32
    %c0_i32_0 = arith.constant 0 : i32
    %c0_i32_1 = arith.constant 0 : i32
    return %c0_i32, %c0_i32_0 : i32, i32
  }
  func.func @transform_24(%arg0: i32) -> (i32, i32) {
    %c0_i32 = arith.constant 0 : i32
    %c0_i32_0 = arith.constant 0 : i32
    %c0_i32_1 = arith.constant 0 : i32
    return %c0_i32, %c0_i32_0 : i32, i32
  }
  func.func @transform_25(%arg0: i32) -> (i32, i32) {
    %c0_i32 = arith.constant 0 : i32
    %c0_i32_0 = arith.constant 0 : i32
    %c0_i32_1 = arith.constant 0 : i32
    return %c0_i32, %c0_i32_0 : i32, i32
  }
  func.func @transform_26(%arg0: i32) -> (i32, i32) {
    %c0_i32 = arith.constant 0 : i32
    %c0_i32_0 = arith.constant 0 : i32
    %c0_i32_1 = arith.constant 0 : i32
    return %c0_i32, %c0_i32_0 : i32, i32
  }
  func.func @transform_27(%arg0: i32) -> (i32, i32) {
    %c0_i32 = arith.constant 0 : i32
    %c0_i32_0 = arith.constant 0 : i32
    %c0_i32_1 = arith.constant 0 : i32
    return %c0_i32, %c0_i32_0 : i32, i32
  }
  func.func @transform_28(%arg0: i32) -> (i32, i32, i32) {
    %c0_i32 = arith.constant 0 : i32
    %c0_i32_0 = arith.constant 0 : i32
    %c0_i32_1 = arith.constant 0 : i32
    return %arg0, %c0_i32, %c0_i32_0 : i32, i32, i32
  }
}

</mosaic_0001>

<llo_original>
// kernel: tpu_custom_call.1
$region0: #{tpu_custom_call.1}
  #allocation0 [shape = 'u32[]', space=smem, size = 0x4, offset = 0x4, fixed_abs, tag = 'smem constant byte address 0x4 - core index']
  #allocation1 [shape = 'u32[72,128]{1,0:T(1,128)}', space=vmem, size = 0x9000, scoped, tag = 'internal scratch']
  #allocation2 [shape = 'f32[1,1]{1,0:T(1,128)S(1)}', space=vmem, size = 0x200, scoped, tag = 'scoped memory for tpu_custom_call.1']
  %s0 = inlined_call_operand.vmem [shape: bf16[1,96,128], index: 0, kind: input, shape index: {}]
  %s1 = inlined_call_operand.hbm [shape: bf16[3,96,128], index: 1, kind: input, shape index: {}]
  %s2 = inlined_call_operand.hbm [shape: bf16[64,64], index: 2, kind: input, shape index: {}]
  %s3 = inlined_call_operand.vmem [shape: bf16[3,128,64], index: 3, kind: input, shape index: {}]
  %s4 = inlined_call_operand.vmem [shape: f32[3,1,64], index: 4, kind: input, shape index: {}]
  %s5 = inlined_call_operand.vmem [shape: bf16[128,64], index: 5, kind: input, shape index: {}]
  %s6 = inlined_call_operand.vmem [shape: f32[1,64], index: 6, kind: input, shape index: {}]
  %s7 = inlined_call_operand.vmem [shape: bf16[128,64], index: 7, kind: input, shape index: {}]
  %s8 = inlined_call_operand.vmem [shape: f32[1,64], index: 8, kind: input, shape index: {}]
  %s9 = inlined_call_operand.vmem [shape: bf16[3,64,192], index: 9, kind: input, shape index: {}]
  %s10 = inlined_call_operand.vmem [shape: f32[3,1,192], index: 10, kind: input, shape index: {}]
  %s11 = inlined_call_operand.hbm [shape: bf16[3,64,64], index: 11, kind: input, shape index: {}]
  %s12 = inlined_call_operand.vmem [shape: f32[3,1,64], index: 12, kind: input, shape index: {}]
  %s13 = inlined_call_operand.vmem [shape: f32[3,1,64], index: 13, kind: input, shape index: {}]
  %s14 = inlined_call_operand.vmem [shape: f32[3,1,64], index: 14, kind: input, shape index: {}]
  %s15 = inlined_call_operand.hbm [shape: bf16[3,64,128], index: 15, kind: input, shape index: {}]
  %s16 = inlined_call_operand.vmem [shape: f32[3,1,128], index: 16, kind: input, shape index: {}]
  %s17 = inlined_call_operand.vmem [shape: bf16[3,128,64], index: 17, kind: input, shape index: {}]
  %s18 = inlined_call_operand.vmem [shape: f32[3,1,64], index: 18, kind: input, shape index: {}]
  %s19 = inlined_call_operand.vmem [shape: f32[3,1,64], index: 19, kind: input, shape index: {}]
  %s20 = inlined_call_operand.hbm [shape: f32[3,1,64], index: 20, kind: input, shape index: {}]
  %s21 = inlined_call_operand.vmem [shape: bf16[9,64,64], index: 21, kind: input, shape index: {}]
  %s22 = inlined_call_operand.hbm [shape: bf16[64,576], index: 22, kind: input, shape index: {}]
  %s23 = inlined_call_operand.hbm [shape: f32[1,64], index: 23, kind: input, shape index: {}]
  %s24 = inlined_call_operand.hbm [shape: bf16[64,512], index: 24, kind: input, shape index: {}]
  %s25 = inlined_call_operand.vmem [shape: f32[1,512], index: 25, kind: input, shape index: {}]
  %s26 = inlined_call_operand.hbm [shape: bf16[512,256], index: 26, kind: input, shape index: {}]
  %s27 = inlined_call_operand.<no memory space> [shape: f32[1,1], index: 27, kind: input, shape index: {}]
  %s28 = inlined_call_operand.hbm [shape: f32[1,64,256], index: 28, kind: output, shape index: {}]
  %s29 = sld [smem:[#allocation0]]
  $region158: #{tpu_custom_call.1} parent=0
    _
  %s31 = ssub.s32 1, %s29
  %s32 = scalar_select 0, %s31, %s29
  %v33 = vstv %s27
  %34 = vst [vmem:[#allocation2] sm:$0x1] %v33
  $region1: #{tpu_custom_call.1} parent=0
    #allocation3 [shape = 'u8[73728]{0}', space=vmem, size = 0x12000, scoped, tag = 'input window, operand 1, single buffered']
    #allocation4 [shape = 's32[1]{0}', space=sflag, size = 0x4, scoped, tag = 'scoped memory for tpu_custom_call.1']
    #allocation5 [shape = 's32[1]{0}', space=sflag, size = 0x4, scoped, tag = 'scoped memory for tpu_custom_call.1']
    #allocation6 [shape = 'u8[16384]{0}', space=vmem, size = 0x4000, scoped, tag = 'input window, operand 2, single buffered']
    #allocation7 [shape = 's32[1]{0}', space=sflag, size = 0x4, scoped, tag = 'scoped memory for tpu_custom_call.1']
    #allocation8 [shape = 'u8[49152]{0}', space=vmem, size = 0xc000, scoped, tag = 'input window, operand 11, single buffered']
    #allocation9 [shape = 'u8[49152]{0}', space=vmem, size = 0xc000, scoped, tag = 'input window, operand 15, single buffered']
    #allocation10 [shape = 's32[1]{0}', space=sflag, size = 0x4, scoped, tag = 'scoped memory for tpu_custom_call.1']
    #allocation11 [shape = 'u8[1536]{0}', space=vmem, size = 0x800, scoped, tag = 'input window, operand 20, single buffered']
    #allocation12 [shape = 'u8[81920]{0}', space=vmem, size = 0x14000, scoped, tag = 'input window, operand 22, single buffered']
    #allocation13 [shape = 's32[1]{0}', space=sflag, size = 0x4, scoped, tag = 'scoped memory for tpu_custom_call.1']
    #allocation14 [shape = 'u8[512]{0}', space=vmem, size = 0x400, scoped, tag = 'input window, operand 23, single buffered']
    #allocation15 [shape = 'u8[65536]{0}', space=vmem, size = 0x10000, scoped, tag = 'input window, operand 24, single buffered']
    #allocation16 [shape = 's32[1]{0}', space=sflag, size = 0x4, scoped, tag = 'scoped memory for tpu_custom_call.1']
    #allocation17 [shape = 'u8[262144]{0}', space=vmem, size = 0x40000, scoped, tag = 'input window, operand 26, single buffered']
    #allocation18 [shape = 'u8[65536]{0}', space=vmem, size = 0x10000, scoped, tag = 'output window, operand 0, single buffered']
    %35 = vsyncpa [#allocation4], 0
    %36 = vsyncpa [#allocation7], 0
    %37 = vsyncpa [#allocation10], 0
    %38 = vsyncpa [#allocation13], 0
    %39 = vsyncpa [#allocation16], 0
    %40 = vsyncpa [#allocation5], 0
    // Predicated region
    $region2: #{tpu_custom_call.1} parent=1 // pred_check
      _
    $region3: #{tpu_custom_call.1} parent=1 // pred_check_branch
      %42 = sbr.rel (0) target = $region5
    $region4: #{tpu_custom_call.1} parent=1 // pred_region
      _
    $region5: #{tpu_custom_call.1} parent=1 // pred_fallthru
      _
    // Predicated region
    $region6: #{tpu_custom_call.1} parent=1 // pred_check
      _
    $region7: #{tpu_custom_call.1} parent=1 // pred_check_branch
      %44 = sbr.rel (0) target = $region9
    $region8: #{tpu_custom_call.1} parent=1 // pred_region
      %46 = vsyncadd [#allocation4], 0
      %s47 = sshll.u32 %s1, 4
      %s48 = int_to_ptr.hbm [resolvable:$true] %s47
      %s49 = sshll.u32 [#allocation3], 4
      %s50 = int_to_ptr.vmem [resolvable:$true] %s49
      %55 = dma.hbm_to_vmem [thread:$0]  %s48, 2304, %s50, [#allocation4], 64, 64, 4
    $region9: #{tpu_custom_call.1} parent=1 // pred_fallthru
      _
    // Predicated region
    $region10: #{tpu_custom_call.1} parent=1 // pred_check
      _
    $region11: #{tpu_custom_call.1} parent=1 // pred_check_branch
      %57 = sbr.rel (0) target = $region13
    $region12: #{tpu_custom_call.1} parent=1 // pred_region
      %59 = vsyncadd [#allocation7], 0
      %s60 = sshll.u32 %s2, 4
      %s61 = int_to_ptr.hbm [resolvable:$true] %s60
      %s62 = sshll.u32 [#allocation6], 4
      %s63 = int_to_ptr.vmem [resolvable:$true] %s62
      %68 = dma.hbm_to_vmem [thread:$0]  %s61, 512, %s63, [#allocation7], 64, 64, 4
    $region13: #{tpu_custom_call.1} parent=1 // pred_fallthru
      _
    // Predicated region
    $region14: #{tpu_custom_call.1} parent=1 // pred_check
      _
    $region15: #{tpu_custom_call.1} parent=1 // pred_check_branch
      %70 = sbr.rel (0) target = $region17
    $region16: #{tpu_custom_call.1} parent=1 // pred_region
      _
    $region17: #{tpu_custom_call.1} parent=1 // pred_fallthru
      _
    // Predicated region
    $region18: #{tpu_custom_call.1} parent=1 // pred_check
      _
    $region19: #{tpu_custom_call.1} parent=1 // pred_check_branch
      %72 = sbr.rel (0) target = $region21
    $region20: #{tpu_custom_call.1} parent=1 // pred_region
      _
    $region21: #{tpu_custom_call.1} parent=1 // pred_fallthru
      _
    // Predicated region
    $region22: #{tpu_custom_call.1} parent=1 // pred_check
      _
    $region23: #{tpu_custom_call.1} parent=1 // pred_check_branch
      %74 = sbr.rel (0) target = $region25
    $region24: #{tpu_custom_call.1} parent=1 // pred_region
      _
    $region25: #{tpu_custom_call.1} parent=1 // pred_fallthru
      _
    // Predicated region
    $region26: #{tpu_custom_call.1} parent=1 // pred_check
      _
    $region27: #{tpu_custom_call.1} parent=1 // pred_check_branch
      %76 = sbr.rel (0) target = $region29
    $region28: #{tpu_custom_call.1} parent=1 // pred_region
      _
    $region29: #{tpu_custom_call.1} parent=1 // pred_fallthru
      _
    // Predicated region
    $region30: #{tpu_custom_call.1} parent=1 // pred_check
      _
    $region31: #{tpu_custom_call.1} parent=1 // pred_check_branch
      %78 = sbr.rel (0) target = $region33
    $region32: #{tpu_custom_call.1} parent=1 // pred_region
      _
    $region33: #{tpu_custom_call.1} parent=1 // pred_fallthru
      _
    // Predicated region
    $region34: #{tpu_custom_call.1} parent=1 // pred_check
      _
    $region35: #{tpu_custom_call.1} parent=1 // pred_check_branch
      %80 = sbr.rel (0) target = $region37
    $region36: #{tpu_custom_call.1} parent=1 // pred_region
      _
    $region37: #{tpu_custom_call.1} parent=1 // pred_fallthru
      _
    // Predicated region
    $region38: #{tpu_custom_call.1} parent=1 // pred_check
      _
    $region39: #{tpu_custom_call.1} parent=1 // pred_check_branch
      %82 = sbr.rel (0) target = $region41
    $region40: #{tpu_custom_call.1} parent=1 // pred_region
      _
    $region41: #{tpu_custom_call.1} parent=1 // pred_fallthru
      _
    // Predicated region
    $region42: #{tpu_custom_call.1} parent=1 // pred_check
      _
    $region43: #{tpu_custom_call.1} parent=1 // pred_check_branch
      %84 = sbr.rel (0) target = $region45
    $region44: #{tpu_custom_call.1} parent=1 // pred_region
      _
    $region45: #{tpu_custom_call.1} parent=1 // pred_fallthru
      _
    // Predicated region
    $region46: #{tpu_custom_call.1} parent=1 // pred_check
      _
    $region47: #{tpu_custom_call.1} parent=1 // pred_check_branch
      %86 = sbr.rel (0) target = $region49
    $region48: #{tpu_custom_call.1} parent=1 // pred_region
      %88 = vsyncadd [#allocation7], 0
      %s89 = sshll.u32 %s11, 4
      %s90 = int_to_ptr.hbm [resolvable:$true] %s89
      %s91 = sshll.u32 [#allocation8], 4
      %s92 = int_to_ptr.vmem [resolvable:$true] %s91
      %97 = dma.hbm_to_vmem [thread:$0]  %s90, 1536, %s92, [#allocation7], 64, 64, 4
    $region49: #{tpu_custom_call.1} parent=1 // pred_fallthru
      _
    // Predicated region
    $region50: #{tpu_custom_call.1} parent=1 // pred_check
      _
    $region51: #{tpu_custom_call.1} parent=1 // pred_check_branch
      %99 = sbr.rel (0) target = $region53
    $region52: #{tpu_custom_call.1} parent=1 // pred_region
      _
    $region53: #{tpu_custom_call.1} parent=1 // pred_fallthru
      _
    // Predicated region
    $region54: #{tpu_custom_call.1} parent=1 // pred_check
      _
    $region55: #{tpu_custom_call.1} parent=1 // pred_check_branch
      %101 = sbr.rel (0) target = $region57
    $region56: #{tpu_custom_call.1} parent=1 // pred_region
      _
    $region57: #{tpu_custom_call.1} parent=1 // pred_fallthru
      _
    // Predicated region
    $region58: #{tpu_custom_call.1} parent=1 // pred_check
      _
    $region59: #{tpu_custom_call.1} parent=1 // pred_check_branch
      %103 = sbr.rel (0) target = $region61
    $region60: #{tpu_custom_call.1} parent=1 // pred_region
      _
    $region61: #{tpu_custom_call.1} parent=1 // pred_fallthru
      _
    // Predicated region
    $region62: #{tpu_custom_call.1} parent=1 // pred_check
      _
    $region63: #{tpu_custom_call.1} parent=1 // pred_check_branch
      %105 = sbr.rel (0) target = $region65
    $region64: #{tpu_custom_call.1} parent=1 // pred_region
      %107 = vsyncadd [#allocation10], 0
      %s108 = sshll.u32 %s15, 4
      %s109 = int_to_ptr.hbm [resolvable:$true] %s108
      %s110 = sshll.u32 [#allocation9], 4
      %s111 = int_to_ptr.vmem [resolvable:$true] %s110
      %116 = dma.hbm_to_vmem [thread:$0]  %s109, 1536, %s111, [#allocation10], 64, 64, 4
    $region65: #{tpu_custom_call.1} parent=1 // pred_fallthru
      _
    // Predicated region
    $region66: #{tpu_custom_call.1} parent=1 // pred_check
      _
    $region67: #{tpu_custom_call.1} parent=1 // pred_check_branch
      %118 = sbr.rel (0) target = $region69
    $region68: #{tpu_custom_call.1} parent=1 // pred_region
      _
    $region69: #{tpu_custom_call.1} parent=1 // pred_fallthru
      _
    // Predicated region
    $region70: #{tpu_custom_call.1} parent=1 // pred_check
      _
    $region71: #{tpu_custom_call.1} parent=1 // pred_check_branch
      %120 = sbr.rel (0) target = $region73
    $region72: #{tpu_custom_call.1} parent=1 // pred_region
      _
    $region73: #{tpu_custom_call.1} parent=1 // pred_fallthru
      _
    // Predicated region
    $region74: #{tpu_custom_call.1} parent=1 // pred_check
      _
    $region75: #{tpu_custom_call.1} parent=1 // pred_check_branch
      %122 = sbr.rel (0) target = $region77
    $region76: #{tpu_custom_call.1} parent=1 // pred_region
      _
    $region77: #{tpu_custom_call.1} parent=1 // pred_fallthru
      _
    // Predicated region
    $region78: #{tpu_custom_call.1} parent=1 // pred_check
      _
    $region79: #{tpu_custom_call.1} parent=1 // pred_check_branch
      %124 = sbr.rel (0) target = $region81
    $region80: #{tpu_custom_call.1} parent=1 // pred_region
      _
    $region81: #{tpu_custom_call.1} parent=1 // pred_fallthru
      _
    // Predicated region
    $region82: #{tpu_custom_call.1} parent=1 // pred_check
      _
    $region83: #{tpu_custom_call.1} parent=1 // pred_check_branch
      %126 = sbr.rel (0) target = $region85
    $region84: #{tpu_custom_call.1} parent=1 // pred_region
      %128 = vsyncadd [#allocation10], 0
      %s129 = sshll.u32 %s20, 4
      %s130 = int_to_ptr.hbm [resolvable:$true] %s129
      %s131 = sshll.u32 [#allocation11], 4
      %s132 = int_to_ptr.vmem [resolvable:$true] %s131
      %137 = dma.hbm_to_vmem [thread:$0]  %s130, 48, %s132, [#allocation10], 16, 16, 1
    $region85: #{tpu_custom_call.1} parent=1 // pred_fallthru
      _
    // Predicated region
    $region86: #{tpu_custom_call.1} parent=1 // pred_check
      _
    $region87: #{tpu_custom_call.1} parent=1 // pred_check_branch
      %139 = sbr.rel (0) target = $region89
    $region88: #{tpu_custom_call.1} parent=1 // pred_region
      _
    $region89: #{tpu_custom_call.1} parent=1 // pred_fallthru
      _
    // Predicated region
    $region90: #{tpu_custom_call.1} parent=1 // pred_check
      _
    $region91: #{tpu_custom_call.1} parent=1 // pred_check_branch
      %141 = sbr.rel (0) target = $region93
    $region92: #{tpu_custom_call.1} parent=1 // pred_region
      %143 = vsyncadd [#allocation13], 0
      %s144 = sshll.u32 %s22, 4
      %s145 = int_to_ptr.hbm [resolvable:$true] %s144
      %s146 = sshll.u32 [#allocation12], 4
      %s147 = int_to_ptr.vmem [resolvable:$true] %s146
      %152 = dma.hbm_to_vmem [thread:$0]  %s145, 2560, %s147, [#allocation13], 320, 320, 20
    $region93: #{tpu_custom_call.1} parent=1 // pred_fallthru
      _
    // Predicated region
    $region94: #{tpu_custom_call.1} parent=1 // pred_check
      _
    $region95: #{tpu_custom_call.1} parent=1 // pred_check_branch
      %154 = sbr.rel (0) target = $region97
    $region96: #{tpu_custom_call.1} parent=1 // pred_region
      %156 = vsyncadd [#allocation13], 0
      %s158 = sshll.u32 %s23, 4
      %s159 = int_to_ptr.hbm [resolvable:$true] %s158
      %s160 = sshll.u32 [#allocation14], 4
      %s161 = int_to_ptr.vmem [resolvable:$true] %s160
      %163 = dma.hbm_to_vmem [thread:$0]  %s159, 16, %s161, [#allocation13]
    $region97: #{tpu_custom_call.1} parent=1 // pred_fallthru
      _
    // Predicated region
    $region98: #{tpu_custom_call.1} parent=1 // pred_check
      _
    $region99: #{tpu_custom_call.1} parent=1 // pred_check_branch
      %165 = sbr.rel (0) target = $region101
    $region100: #{tpu_custom_call.1} parent=1 // pred_region
      %167 = vsyncadd [#allocation16], 0
      %s168 = sshll.u32 %s24, 4
      %s169 = int_to_ptr.hbm [resolvable:$true] %s168
      %s170 = sshll.u32 [#allocation15], 4
      %s171 = int_to_ptr.vmem [resolvable:$true] %s170
      %176 = dma.hbm_to_vmem [thread:$0]  %s169, 2048, %s171, [#allocation16], 256, 256, 16
    $region101: #{tpu_custom_call.1} parent=1 // pred_fallthru
      _
    // Predicated region
    $region102: #{tpu_custom_call.1} parent=1 // pred_check
      _
    $region103: #{tpu_custom_call.1} parent=1 // pred_check_branch
      %178 = sbr.rel (0) target = $region105
    $region104: #{tpu_custom_call.1} parent=1 // pred_region
      _
    $region105: #{tpu_custom_call.1} parent=1 // pred_fallthru
      _
    // Predicated region
    $region106: #{tpu_custom_call.1} parent=1 // pred_check
      _
    $region107: #{tpu_custom_call.1} parent=1 // pred_check_branch
      %180 = sbr.rel (0) target = $region109
    $region108: #{tpu_custom_call.1} parent=1 // pred_region
      %182 = vsyncadd [#allocation16], 0
      %s183 = sshll.u32 %s26, 4
      %s184 = int_to_ptr.hbm [resolvable:$true] %s183
      %s185 = sshll.u32 [#allocation17], 4
      %s186 = int_to_ptr.vmem [resolvable:$true] %s185
      %191 = dma.hbm_to_vmem [thread:$0]  %s184, 8192, %s186, [#allocation16], 128, 128, 8
    $region109: #{tpu_custom_call.1} parent=1 // pred_fallthru
      _
    // Predicated region
    $region110: #{tpu_custom_call.1} parent=1 // pred_check
      _
    $region111: #{tpu_custom_call.1} parent=1 // pred_check_branch
      %193 = sbr.rel (0) target = $region113
    $region112: #{tpu_custom_call.1} parent=1 // pred_region
      _
    $region113: #{tpu_custom_call.1} parent=1 // pred_fallthru
      _
    // Predicated region
    $region114: #{tpu_custom_call.1} parent=1 // pred_check
      _
    $region115: #{tpu_custom_call.1} parent=1 // pred_check_branch
      %195 = sbr.rel (0) target = $region117
    $region116: #{tpu_custom_call.1} parent=1 // pred_region
      %197 = dma.done [#allocation4], 2304
    $region117: #{tpu_custom_call.1} parent=1 // pred_fallthru
      _
    // Predicated region
    $region118: #{tpu_custom_call.1} parent=1 // pred_check
      _
    $region119: #{tpu_custom_call.1} parent=1 // pred_check_branch
      %199 = sbr.rel (0) target = $region121
    $region120: #{tpu_custom_call.1} parent=1 // pred_region
      %201 = dma.done [#allocation7], 512
    $region121: #{tpu_custom_call.1} parent=1 // pred_fallthru
      _
    // Predicated region
    $region122: #{tpu_custom_call.1} parent=1 // pred_check
      _
    $region123: #{tpu_custom_call.1} parent=1 // pred_check_branch
      %203 = sbr.rel (0) target = $region125
    $region124: #{tpu_custom_call.1} parent=1 // pred_region
      %205 = dma.done [#allocation7], 1536
    $region125: #{tpu_custom_call.1} parent=1 // pred_fallthru
      _
    // Predicated region
    $region126: #{tpu_custom_call.1} parent=1 // pred_check
      _
    $region127: #{tpu_custom_call.1} parent=1 // pred_check_branch
      %207 = sbr.rel (0) target = $region129
    $region128: #{tpu_custom_call.1} parent=1 // pred_region
      %209 = dma.done [#allocation10], 1536
    $region129: #{tpu_custom_call.1} parent=1 // pred_fallthru
      _
    // Predicated region
    $region130: #{tpu_custom_call.1} parent=1 // pred_check
      _
    $region131: #{tpu_custom_call.1} parent=1 // pred_check_branch
      %211 = sbr.rel (0) target = $region133
    $region132: #{tpu_custom_call.1} parent=1 // pred_region
      %213 = dma.done [#allocation10], 48
    $region133: #{tpu_custom_call.1} parent=1 // pred_fallthru
      _
    // Predicated region
    $region134: #{tpu_custom_call.1} parent=1 // pred_check
      _
    $region135: #{tpu_custom_call.1} parent=1 // pred_check_branch
      %215 = sbr.rel (0) target = $region137
    $region136: #{tpu_custom_call.1} parent=1 // pred_region
      %217 = dma.done [#allocation13], 2560
    $region137: #{tpu_custom_call.1} parent=1 // pred_fallthru
      _
    // Predicated region
    $region138: #{tpu_custom_call.1} parent=1 // pred_check
      _
    $region139: #{tpu_custom_call.1} parent=1 // pred_check_branch
      %219 = sbr.rel (0) target = $region141
    $region140: #{tpu_custom_call.1} parent=1 // pred_region
      %221 = dma.done [#allocation13], 16
    $region141: #{tpu_custom_call.1} parent=1 // pred_fallthru
      _
    // Predicated region
    $region142: #{tpu_custom_call.1} parent=1 // pred_check
      _
    $region143: #{tpu_custom_call.1} parent=1 // pred_check_branch
      %223 = sbr.rel (0) target = $region145
    $region144: #{tpu_custom_call.1} parent=1 // pred_region
      %225 = dma.done [#allocation16], 2048
    $region145: #{tpu_custom_call.1} parent=1 // pred_fallthru
      _
    // Predicated region
    $region146: #{tpu_custom_call.1} parent=1 // pred_check
      _
    $region147: #{tpu_custom_call.1} parent=1 // pred_check_branch
      %227 = sbr.rel (0) target = $region149
    $region148: #{tpu_custom_call.1} parent=1 // pred_region
      %229 = dma.done [#allocation16], 8192
    $region149: #{tpu_custom_call.1} parent=1 // pred_fallthru
      _
    %v231 = vld [vmem:[%s0] sm:$0xf]
    %v232 = vld [vmem:[%s0 + $0x4] sm:$0xf]
    %v233 = vld [vmem:[%s0 + $0x8] sm:$0xf]
    %v234 = vld [vmem:[%s0 + $0xc] sm:$0xf]
    %v235 = vld [vmem:[%s0 + $0x10] sm:$0xf]
    %v236 = vld [vmem:[%s0 + $0x14] sm:$0xf]
    %v237 = vld [vmem:[%s0 + $0x18] sm:$0xf]
    %v238 = vld [vmem:[%s0 + $0x1c] sm:$0xf]
    %v239 = vld [vmem:[%s0 + $0x20] sm:$0xf]
    %v240 = vld [vmem:[%s0 + $0x24] sm:$0xf]
    %v241 = vld [vmem:[%s0 + $0x28] sm:$0xf]
    %v242 = vld [vmem:[%s0 + $0x2c] sm:$0xf]
    %v243 = vld [vmem:[%s5] sm:$0xf]
    %v244 = vld [vmem:[%s5 + $0x4] sm:$0xf]
    %v245 = vld [vmem:[%s5 + $0x8] sm:$0xf]
    %v246 = vld [vmem:[%s5 + $0xc] sm:$0xf]
    %v247 = vld [vmem:[%s5 + $0x10] sm:$0xf]
    %v248 = vld [vmem:[%s5 + $0x14] sm:$0xf]
    %v249 = vld [vmem:[%s5 + $0x18] sm:$0xf]
    %v250 = vld [vmem:[%s5 + $0x1c] sm:$0xf]
    %v251 = vld [vmem:[%s5 + $0x20] sm:$0xf]
    %v252 = vld [vmem:[%s5 + $0x24] sm:$0xf]
    %v253 = vld [vmem:[%s5 + $0x28] sm:$0xf]
    %v254 = vld [vmem:[%s5 + $0x2c] sm:$0xf]
    %v255 = vld [vmem:[%s5 + $0x30] sm:$0xf]
    %v256 = vld [vmem:[%s5 + $0x34] sm:$0xf]
    %v257 = vld [vmem:[%s5 + $0x38] sm:$0xf]
    %v258 = vld [vmem:[%s5 + $0x3c] sm:$0xf]
    %v259 = vld [vmem:[%s6] sm:$0x1]
    %v261 = vperm.slane %v259, 0
    %v275 = vunpack.c.l.b16 %v231
    %v276 = vunpack.c.l.b16 %v232
    %v277 = vunpack.c.l.b16 %v233
    %v278 = vunpack.c.l.b16 %v234
    %v279 = vunpack.c.l.b16 %v235
    %v280 = vunpack.c.l.b16 %v236
    %v281 = vunpack.c.l.b16 %v237
    %v282 = vunpack.c.l.b16 %v238
    %v283 = vunpack.c.l.b16 %v239
    %v284 = vunpack.c.l.b16 %v240
    %v285 = vunpack.c.l.b16 %v241
    %v286 = vunpack.c.l.b16 %v242
    %v287 = vpack.c.b16 %v276, %v275
    %v288 = vpack.c.b16 %v278, %v277
    %v289 = vpack.c.b16 %v280, %v279
    %v290 = vpack.c.b16 %v282, %v281
    %v291 = vpack.c.b16 %v284, %v283
    %v292 = vpack.c.b16 %v286, %v285
    %v315 = vunpack.c.l.b16 %v243
    %v316 = vunpack.c.l.b16 %v244
    %v317 = vunpack.c.l.b16 %v245
    %v318 = vunpack.c.l.b16 %v246
    %v319 = vunpack.c.l.b16 %v247
    %v320 = vunpack.c.l.b16 %v248
    %v321 = vunpack.c.l.b16 %v249
    %v322 = vunpack.c.l.b16 %v250
    %v323 = vunpack.c.l.b16 %v251
    %v324 = vunpack.c.l.b16 %v252
    %v325 = vunpack.c.l.b16 %v253
    %v326 = vunpack.c.l.b16 %v254
    %v327 = vunpack.c.l.b16 %v255
    %v328 = vunpack.c.l.b16 %v256
    %v329 = vunpack.c.l.b16 %v257
    %v330 = vunpack.c.l.b16 %v258
    %v331 = vpack.c.b16 %v316, %v315
    %v332 = vpack.c.b16 %v318, %v317
    %v333 = vpack.c.b16 %v320, %v319
    %v334 = vpack.c.b16 %v322, %v321
    %v335 = vpack.c.b16 %v324, %v323
    %v336 = vpack.c.b16 %v326, %v325
    %v337 = vpack.c.b16 %v328, %v327
    %v338 = vpack.c.b16 %v330, %v329
    %347 = vmatpush.bf16.msra.mxu0 %v338
    %348 = vmatpush.bf16.msra.mxu0 %v337
    %349 = vmatpush.bf16.msra.mxu0 %v336
    %350 = vmatpush.bf16.msra.mxu0 %v335
    %351 = vmatpush.bf16.msra.mxu0 %v334
    %352 = vmatpush.bf16.msra.mxu0 %v333
    %353 = vmatpush.bf16.msra.mxu0 %v332
    %354 = vmatpush.bf16.msra.mxu0 %v331
    %355 = vmatmul.bf16.gmra.mxu0 %v287
    %v356 = vpop.f32.mrf.mxu0
    %v357 = vadd.f32 %v261, %v356
    %v358 = vpop.f32.mrf.mxu0
    %v359 = vadd.f32 %v261, %v358
    %360 = vmatmul.bf16.gmra.mxu0 %v288
    %v361 = vpop.f32.mrf.mxu0
    %v362 = vadd.f32 %v261, %v361
    %v363 = vpop.f32.mrf.mxu0
    %v364 = vadd.f32 %v261, %v363
    %365 = vmatmul.bf16.gmra.mxu0 %v289
    %v366 = vpop.f32.mrf.mxu0
    %v367 = vadd.f32 %v261, %v366
    %v368 = vpop.f32.mrf.mxu0
    %v369 = vadd.f32 %v261, %v368
    %370 = vmatmul.bf16.gmra.mxu0 %v290
    %v371 = vpop.f32.mrf.mxu0
    %v372 = vadd.f32 %v261, %v371
    %v373 = vpop.f32.mrf.mxu0
    %v374 = vadd.f32 %v261, %v373
    %375 = vmatmul.bf16.gmra.mxu0 %v291
    %v376 = vpop.f32.mrf.mxu0
    %v377 = vadd.f32 %v261, %v376
    %v378 = vpop.f32.mrf.mxu0
    %v379 = vadd.f32 %v261, %v378
    %380 = vmatmul.bf16.gmra.mxu0 %v292
    %v381 = vpop.f32.mrf.mxu0
    %v382 = vadd.f32 %v261, %v381
    %v383 = vpop.f32.mrf.mxu0
    %v384 = vadd.f32 %v261, %v383
    %385 = vdwg.mxu0
    %v386 = vld [vmem:[%s7] sm:$0xf]
    %v387 = vld [vmem:[%s7 + $0x4] sm:$0xf]
    %v388 = vld [vmem:[%s7 + $0x8] sm:$0xf]
    %v389 = vld [vmem:[%s7 + $0xc] sm:$0xf]
    %v390 = vld [vmem:[%s7 + $0x10] sm:$0xf]
    %v391 = vld [vmem:[%s7 + $0x14] sm:$0xf]
    %v392 = vld [vmem:[%s7 + $0x18] sm:$0xf]
    %v393 = vld [vmem:[%s7 + $0x1c] sm:$0xf]
    %v394 = vld [vmem:[%s7 + $0x20] sm:$0xf]
    %v395 = vld [vmem:[%s7 + $0x24] sm:$0xf]
    %v396 = vld [vmem:[%s7 + $0x28] sm:$0xf]
    %v397 = vld [vmem:[%s7 + $0x2c] sm:$0xf]
    %v398 = vld [vmem:[%s7 + $0x30] sm:$0xf]
    %v399 = vld [vmem:[%s7 + $0x34] sm:$0xf]
    %v400 = vld [vmem:[%s7 + $0x38] sm:$0xf]
    %v401 = vld [vmem:[%s7 + $0x3c] sm:$0xf]
    %v402 = vld [vmem:[%s8] sm:$0x1]
    %v404 = vperm.slane %v402, 0
    %v422 = vunpack.c.l.b16 %v386
    %v423 = vunpack.c.l.b16 %v387
    %v424 = vunpack.c.l.b16 %v388
    %v425 = vunpack.c.l.b16 %v389
    %v426 = vunpack.c.l.b16 %v390
    %v427 = vunpack.c.l.b16 %v391
    %v428 = vunpack.c.l.b16 %v392
    %v429 = vunpack.c.l.b16 %v393
    %v430 = vunpack.c.l.b16 %v394
    %v431 = vunpack.c.l.b16 %v395
    %v432 = vunpack.c.l.b16 %v396
    %v433 = vunpack.c.l.b16 %v397
    %v434 = vunpack.c.l.b16 %v398
    %v435 = vunpack.c.l.b16 %v399
    %v436 = vunpack.c.l.b16 %v400
    %v437 = vunpack.c.l.b16 %v401
    %v438 = vpack.c.b16 %v423, %v422
    %v439 = vpack.c.b16 %v425, %v424
    %v440 = vpack.c.b16 %v427, %v426
    %v441 = vpack.c.b16 %v429, %v428
    %v442 = vpack.c.b16 %v431, %v430
    %v443 = vpack.c.b16 %v433, %v432
    %v444 = vpack.c.b16 %v435, %v434
    %v445 = vpack.c.b16 %v437, %v436
    %454 = vmatpush.bf16.msra.mxu0 %v445
    %455 = vmatpush.bf16.msra.mxu0 %v444
    %456 = vmatpush.bf16.msra.mxu0 %v443
    %457 = vmatpush.bf16.msra.mxu0 %v442
    %458 = vmatpush.bf16.msra.mxu0 %v441
    %459 = vmatpush.bf16.msra.mxu0 %v440
    %460 = vmatpush.bf16.msra.mxu0 %v439
    %461 = vmatpush.bf16.msra.mxu0 %v438
    %462 = vmatmul.bf16.gmra.mxu0 %v287
    %v463 = vpop.f32.mrf.mxu0
    %v464 = vadd.f32 %v404, %v463
    %v465 = vpop.f32.mrf.mxu0
    %v466 = vadd.f32 %v404, %v465
    %467 = vmatmul.bf16.gmra.mxu0 %v288
    %v468 = vpop.f32.mrf.mxu0
    %v469 = vadd.f32 %v404, %v468
    %v470 = vpop.f32.mrf.mxu0
    %v471 = vadd.f32 %v404, %v470
    %472 = vmatmul.bf16.gmra.mxu0 %v289
    %v473 = vpop.f32.mrf.mxu0
    %v474 = vadd.f32 %v404, %v473
    %v475 = vpop.f32.mrf.mxu0
    %v476 = vadd.f32 %v404, %v475
    %477 = vmatmul.bf16.gmra.mxu0 %v290
    %v478 = vpop.f32.mrf.mxu0
    %v479 = vadd.f32 %v404, %v478
    %v480 = vpop.f32.mrf.mxu0
    %v481 = vadd.f32 %v404, %v480
    %482 = vmatmul.bf16.gmra.mxu0 %v291
    %v483 = vpop.f32.mrf.mxu0
    %v484 = vadd.f32 %v404, %v483
    %v485 = vpop.f32.mrf.mxu0
    %v486 = vadd.f32 %v404, %v485
    %487 = vmatmul.bf16.gmra.mxu0 %v292
    %v488 = vpop.f32.mrf.mxu0
    %v489 = vadd.f32 %v404, %v488
    %v490 = vpop.f32.mrf.mxu0
    %v491 = vadd.f32 %v404, %v490
    %492 = vdwg.mxu0
    %v493 = vld [vmem:[#allocation6] sm:$0xf]
    %v494 = vld [vmem:[#allocation6 + $0x4] sm:$0xf]
    %v495 = vld [vmem:[#allocation6 + $0x8] sm:$0xf]
    %v496 = vld [vmem:[#allocation6 + $0xc] sm:$0xf]
    %v497 = vld [vmem:[#allocation6 + $0x10] sm:$0xf]
    %v498 = vld [vmem:[#allocation6 + $0x14] sm:$0xf]
    %v499 = vld [vmem:[#allocation6 + $0x18] sm:$0xf]
    %v500 = vld [vmem:[#allocation6 + $0x1c] sm:$0xf]
    %v501 = vld [vmem:[#allocation3] sm:$0xf]
    %v502 = vld [vmem:[#allocation3 + $0x4] sm:$0xf]
    %v503 = vld [vmem:[#allocation3 + $0x8] sm:$0xf]
    %v504 = vld [vmem:[#allocation3 + $0xc] sm:$0xf]
    %v505 = vld [vmem:[#allocation3 + $0x10] sm:$0xf]
    %v506 = vld [vmem:[#allocation3 + $0x14] sm:$0xf]
    %v507 = vld [vmem:[#allocation3 + $0x18] sm:$0xf]
    %v508 = vld [vmem:[#allocation3 + $0x1c] sm:$0xf]
    %v509 = vld [vmem:[#allocation3 + $0x20] sm:$0xf]
    %v510 = vld [vmem:[#allocation3 + $0x24] sm:$0xf]
    %v511 = vld [vmem:[#allocation3 + $0x28] sm:$0xf]
    %v512 = vld [vmem:[#allocation3 + $0x2c] sm:$0xf]
    %v513 = vld [vmem:[%s3] sm:$0xf]
    %v514 = vld [vmem:[%s3 + $0x4] sm:$0xf]
    %v515 = vld [vmem:[%s3 + $0x8] sm:$0xf]
    %v516 = vld [vmem:[%s3 + $0xc] sm:$0xf]
    %v517 = vld [vmem:[%s3 + $0x10] sm:$0xf]
    %v518 = vld [vmem:[%s3 + $0x14] sm:$0xf]
    %v519 = vld [vmem:[%s3 + $0x18] sm:$0xf]
    %v520 = vld [vmem:[%s3 + $0x1c] sm:$0xf]
    %v521 = vld [vmem:[%s3 + $0x20] sm:$0xf]
    %v522 = vld [vmem:[%s3 + $0x24] sm:$0xf]
    %v523 = vld [vmem:[%s3 + $0x28] sm:$0xf]
    %v524 = vld [vmem:[%s3 + $0x2c] sm:$0xf]
    %v525 = vld [vmem:[%s3 + $0x30] sm:$0xf]
    %v526 = vld [vmem:[%s3 + $0x34] sm:$0xf]
    %v527 = vld [vmem:[%s3 + $0x38] sm:$0xf]
    %v528 = vld [vmem:[%s3 + $0x3c] sm:$0xf]
    %v529 = vld [vmem:[%s4] sm:$0x1]
    %v531 = vperm.slane %v529, 0
    %v545 = vunpack.c.l.b16 %v501
    %v546 = vunpack.c.l.b16 %v502
    %v547 = vunpack.c.l.b16 %v503
    %v548 = vunpack.c.l.b16 %v504
    %v549 = vunpack.c.l.b16 %v505
    %v550 = vunpack.c.l.b16 %v506
    %v551 = vunpack.c.l.b16 %v507
    %v552 = vunpack.c.l.b16 %v508
    %v553 = vunpack.c.l.b16 %v509
    %v554 = vunpack.c.l.b16 %v510
    %v555 = vunpack.c.l.b16 %v511
    %v556 = vunpack.c.l.b16 %v512
    %v557 = vpack.c.b16 %v546, %v545
    %v558 = vpack.c.b16 %v548, %v547
    %v559 = vpack.c.b16 %v550, %v549
    %v560 = vpack.c.b16 %v552, %v551
    %v561 = vpack.c.b16 %v554, %v553
    %v562 = vpack.c.b16 %v556, %v555
    %v585 = vunpack.c.l.b16 %v513
    %v586 = vunpack.c.l.b16 %v514
    %v587 = vunpack.c.l.b16 %v515
    %v588 = vunpack.c.l.b16 %v516
    %v589 = vunpack.c.l.b16 %v517
    %v590 = vunpack.c.l.b16 %v518
    %v591 = vunpack.c.l.b16 %v519
    %v592 = vunpack.c.l.b16 %v520
    %v593 = vunpack.c.l.b16 %v521
    %v594 = vunpack.c.l.b16 %v522
    %v595 = vunpack.c.l.b16 %v523
    %v596 = vunpack.c.l.b16 %v524
    %v597 = vunpack.c.l.b16 %v525
    %v598 = vunpack.c.l.b16 %v526
    %v599 = vunpack.c.l.b16 %v527
    %v600 = vunpack.c.l.b16 %v528
    %v601 = vpack.c.b16 %v586, %v585
    %v602 = vpack.c.b16 %v588, %v587
    %v603 = vpack.c.b16 %v590, %v589
    %v604 = vpack.c.b16 %v592, %v591
    %v605 = vpack.c.b16 %v594, %v593
    %v606 = vpack.c.b16 %v596, %v595
    %v607 = vpack.c.b16 %v598, %v597
    %v608 = vpack.c.b16 %v600, %v599
    %617 = vmatpush.bf16.msra.mxu0 %v608
    %618 = vmatpush.bf16.msra.mxu0 %v607
    %619 = vmatpush.bf16.msra.mxu0 %v606
    %620 = vmatpush.bf16.msra.mxu0 %v605
    %621 = vmatpush.bf16.msra.mxu0 %v604
    %622 = vmatpush.bf16.msra.mxu0 %v603
    %623 = vmatpush.bf16.msra.mxu0 %v602
    %624 = vmatpush.bf16.msra.mxu0 %v601
    %625 = vmatmul.bf16.gmra.mxu0 %v557
    %v626 = vpop.f32.mrf.mxu0
    %v627 = vadd.f32 %v531, %v626
    %v628 = vpop.f32.mrf.mxu0
    %v629 = vadd.f32 %v531, %v628
    %630 = vmatmul.bf16.gmra.mxu0 %v558
    %v631 = vpop.f32.mrf.mxu0
    %v632 = vadd.f32 %v531, %v631
    %v633 = vpop.f32.mrf.mxu0
    %v634 = vadd.f32 %v531, %v633
    %635 = vmatmul.bf16.gmra.mxu0 %v559
    %v636 = vpop.f32.mrf.mxu0
    %v637 = vadd.f32 %v531, %v636
    %v638 = vpop.f32.mrf.mxu0
    %v639 = vadd.f32 %v531, %v638
    %640 = vmatmul.bf16.gmra.mxu0 %v560
    %v641 = vpop.f32.mrf.mxu0
    %v642 = vadd.f32 %v531, %v641
    %v643 = vpop.f32.mrf.mxu0
    %v644 = vadd.f32 %v531, %v643
    %645 = vmatmul.bf16.gmra.mxu0 %v561
    %v646 = vpop.f32.mrf.mxu0
    %v647 = vadd.f32 %v531, %v646
    %v648 = vpop.f32.mrf.mxu0
    %v649 = vadd.f32 %v531, %v648
    %650 = vmatmul.bf16.gmra.mxu0 %v562
    %v651 = vpop.f32.mrf.mxu0
    %v652 = vadd.f32 %v531, %v651
    %v653 = vpop.f32.mrf.mxu0
    %v654 = vadd.f32 %v531, %v653
    %655 = vdwg.mxu0
    %v656 = vmul.f32 %v627, %v357
    %v657 = vmul.f32 %v629, %v359
    %v658 = vmul.f32 %v632, %v362
    %v659 = vmul.f32 %v634, %v364
    %v660 = vmul.f32 %v637, %v367
    %v661 = vmul.f32 %v639, %v369
    %v662 = vmul.f32 %v642, %v372
    %v663 = vmul.f32 %v644, %v374
    %v664 = vmul.f32 %v647, %v377
    %v665 = vmul.f32 %v649, %v379
    %v666 = vmul.f32 %v652, %v382
    %v667 = vmul.f32 %v654, %v384
    %v668 = vadd.f32 %v656, %v464
    %v669 = vadd.f32 %v657, %v466
    %v670 = vadd.f32 %v658, %v469
    %v671 = vadd.f32 %v659, %v471
    %v672 = vadd.f32 %v660, %v474
    %v673 = vadd.f32 %v661, %v476
    %v674 = vadd.f32 %v662, %v479
    %v675 = vadd.f32 %v663, %v481
    %v676 = vadd.f32 %v664, %v484
    %v677 = vadd.f32 %v665, %v486
    %v678 = vadd.f32 %v666, %v489
    %v679 = vadd.f32 %v667, %v491
    %v680 = vld [vmem:[%s9] sm:$0xff]
    %v681 = vld [vmem:[%s9 + $0x8] sm:$0xff]
    %v682 = vld [vmem:[%s9 + $0x10] sm:$0xff]
    %v683 = vld [vmem:[%s9 + $0x18] sm:$0xff]
    %v684 = vld [vmem:[%s9 + $0x20] sm:$0xff]
    %v685 = vld [vmem:[%s9 + $0x28] sm:$0xff]
    %v686 = vld [vmem:[%s9 + $0x30] sm:$0xff]
    %v687 = vld [vmem:[%s9 + $0x38] sm:$0xff]
    %v688 = vpack.c.bf16 %v669, %v668
    %v689 = vpack.c.bf16 %v671, %v670
    %v690 = vpack.c.bf16 %v673, %v672
    %v691 = vpack.c.bf16 %v675, %v674
    %v692 = vpack.c.bf16 %v677, %v676
    %v693 = vpack.c.bf16 %v679, %v678
    %v694 = vld [vmem:[%s10] sm:$0x3]
    %v696 = vperm.slane %v694, 0
    %v697 = vperm.slane %v694, 1
    %v708 = vunpack.c.l.b16 %v680
    %v709 = vunpack.c.h.b16 %v680
    %v710 = vunpack.c.l.b16 %v681
    %v711 = vunpack.c.h.b16 %v681
    %v712 = vunpack.c.l.b16 %v682
    %v713 = vunpack.c.h.b16 %v682
    %v714 = vunpack.c.l.b16 %v683
    %v715 = vunpack.c.h.b16 %v683
    %v716 = vunpack.c.l.b16 %v684
    %v717 = vunpack.c.h.b16 %v684
    %v718 = vunpack.c.l.b16 %v685
    %v719 = vunpack.c.h.b16 %v685
    %v720 = vunpack.c.l.b16 %v686
    %v721 = vunpack.c.h.b16 %v686
    %v722 = vunpack.c.l.b16 %v687
    %v723 = vunpack.c.h.b16 %v687
    %v724 = vpack.c.b16 %v710, %v708
    %v725 = vpack.c.b16 %v711, %v709
    %v726 = vpack.c.b16 %v714, %v712
    %v727 = vpack.c.b16 %v715, %v713
    %v728 = vpack.c.b16 %v718, %v716
    %v729 = vpack.c.b16 %v719, %v717
    %v730 = vpack.c.b16 %v722, %v720
    %v731 = vpack.c.b16 %v723, %v721
    %vm740 = vcmask 523264
    %v742 = vsel %vm740, %v688, 0
    %v745 = vsel %vm740, %v689, 0
    %v748 = vsel %vm740, %v690, 0
    %v751 = vsel %vm740, %v691, 0
    %v754 = vsel %vm740, %v692, 0
    %v757 = vsel %vm740, %v693, 0
    %759 = vmatpush.bf16.msra.mxu0 0
    %760 = vmatpush.bf16.msra.mxu0 0
    %761 = vmatpush.bf16.msra.mxu0 0
    %762 = vmatpush.bf16.msra.mxu0 0
    %763 = vmatpush.bf16.msra.mxu0 %v730
    %764 = vmatpush.bf16.msra.mxu0 %v728
    %765 = vmatpush.bf16.msra.mxu0 %v726
    %766 = vmatpush.bf16.msra.mxu0 %v724
    %767 = vmatmul.bf16.gmra.mxu0 %v742
    %v768 = vpop.f32.mrf.mxu0
    %v769 = vadd.f32 %v696, %v768
    %v770 = vpop.f32.mrf.mxu0
    %v771 = vadd.f32 %v696, %v770
    %772 = vmatmul.bf16.gmra.mxu0 %v745
    %v773 = vpop.f32.mrf.mxu0
    %v774 = vadd.f32 %v696, %v773
    %v775 = vpop.f32.mrf.mxu0
    %v776 = vadd.f32 %v696, %v775
    %777 = vmatmul.bf16.gmra.mxu0 %v748
    %v778 = vpop.f32.mrf.mxu0
    %v779 = vadd.f32 %v696, %v778
    %v780 = vpop.f32.mrf.mxu0
    %v781 = vadd.f32 %v696, %v780
    %782 = vmatmul.bf16.gmra.mxu0 %v751
    %v783 = vpop.f32.mrf.mxu0
    %v784 = vadd.f32 %v696, %v783
    %v785 = vpop.f32.mrf.mxu0
    %v786 = vadd.f32 %v696, %v785
    %787 = vmatmul.bf16.gmra.mxu0 %v754
    %v788 = vpop.f32.mrf.mxu0
    %v789 = vadd.f32 %v696, %v788
    %v790 = vpop.f32.mrf.mxu0
    %v791 = vadd.f32 %v696, %v790
    %792 = vmatmul.bf16.gmra.mxu0 %v757
    %v793 = vpop.f32.mrf.mxu0
    %v794 = vadd.f32 %v696, %v793
    %v795 = vpop.f32.mrf.mxu0
    %v796 = vadd.f32 %v696, %v795
    %797 = vdwg.mxu0
    %798 = vmatpush.bf16.msra.mxu0 0
    %799 = vmatpush.bf16.msra.mxu0 0
    %800 = vmatpush.bf16.msra.mxu0 0
    %801 = vmatpush.bf16.msra.mxu0 0
    %802 = vmatpush.bf16.msra.mxu0 %v731
    %803 = vmatpush.bf16.msra.mxu0 %v729
    %804 = vmatpush.bf16.msra.mxu0 %v727
    %805 = vmatpush.bf16.msra.mxu0 %v725
    %806 = vmatmul.bf16.gmra.mxu0 %v742
    %v807 = vpop.f32.mrf.mxu0
    %v808 = vadd.f32 %v697, %v807
    %v809 = vpop.f32.mrf.mxu0
    %v810 = vadd.f32 %v697, %v809
    %811 = vmatmul.bf16.gmra.mxu0 %v745
    %v812 = vpop.f32.mrf.mxu0
    %v813 = vadd.f32 %v697, %v812
    %v814 = vpop.f32.mrf.mxu0
    %v815 = vadd.f32 %v697, %v814
    %816 = vmatmul.bf16.gmra.mxu0 %v748
    %v817 = vpop.f32.mrf.mxu0
    %v818 = vadd.f32 %v697, %v817
    %v819 = vpop.f32.mrf.mxu0
    %v820 = vadd.f32 %v697, %v819
    %821 = vmatmul.bf16.gmra.mxu0 %v751
    %v822 = vpop.f32.mrf.mxu0
    %v823 = vadd.f32 %v697, %v822
    %v824 = vpop.f32.mrf.mxu0
    %v825 = vadd.f32 %v697, %v824
    %826 = vmatmul.bf16.gmra.mxu0 %v754
    %v827 = vpop.f32.mrf.mxu0
    %v828 = vadd.f32 %v697, %v827
    %v829 = vpop.f32.mrf.mxu0
    %v830 = vadd.f32 %v697, %v829
    %831 = vmatmul.bf16.gmra.mxu0 %v757
    %v832 = vpop.f32.mrf.mxu0
    %v833 = vadd.f32 %v697, %v832
    %v834 = vpop.f32.mrf.mxu0
    %v835 = vadd.f32 %v697, %v834
    %836 = vdwg.mxu0
    %840 = vrot.lane.b32.xlu0 %v769, 64
    %v841 = vpop.permute.xlu0 %840
    %842 = vrot.lane.b32.xlu0 %v771, 64
    %v843 = vpop.permute.xlu0 %842
    %844 = vrot.lane.b32.xlu0 %v774, 64
    %v845 = vpop.permute.xlu0 %844
    %v849 = vmul.f32 %v769, %v841
    %v850 = vmul.f32 %v771, %v843
    %v851 = vmul.f32 %v774, %v845
    %855 = vrot.lane.b32.xlu0 %v776, 64
    %v856 = vpop.permute.xlu0 %855
    %857 = vrot.lane.b32.xlu0 %v779, 64
    %v858 = vpop.permute.xlu0 %857
    %859 = vrot.lane.b32.xlu0 %v781, 64
    %v860 = vpop.permute.xlu0 %859
    %v864 = vmul.f32 %v769, %v856
    %v865 = vmul.f32 %v771, %v858
    %v866 = vmul.f32 %v774, %v860
    %v867 = vmul.f32 %v776, %v841
    %v868 = vmul.f32 %v779, %v843
    %v869 = vmul.f32 %v781, %v845
    %v870 = vmul.f32 %v776, %v856
    %v871 = vmul.f32 %v779, %v858
    %v872 = vmul.f32 %v781, %v860
    %876 = vrot.lane.b32.xlu0 %v784, 64
    %v877 = vpop.permute.xlu0 %876
    %878 = vrot.lane.b32.xlu0 %v786, 64
    %v879 = vpop.permute.xlu0 %878
    %880 = vrot.lane.b32.xlu0 %v789, 64
    %v881 = vpop.permute.xlu0 %880
    %v885 = vmul.f32 %v784, %v877
    %v886 = vmul.f32 %v786, %v879
    %v887 = vmul.f32 %v789, %v881
    %891 = vrot.lane.b32.xlu0 %v791, 64
    %v892 = vpop.permute.xlu0 %891
    %893 = vrot.lane.b32.xlu0 %v794, 64
    %v894 = vpop.permute.xlu0 %893
    %895 = vrot.lane.b32.xlu0 %v796, 64
    %v896 = vpop.permute.xlu0 %895
    %v900 = vmul.f32 %v784, %v892
    %v901 = vmul.f32 %v786, %v894
    %v902 = vmul.f32 %v789, %v896
    %v903 = vmul.f32 %v791, %v877
    %v904 = vmul.f32 %v794, %v879
    %v905 = vmul.f32 %v796, %v881
    %v906 = vmul.f32 %v791, %v892
    %v907 = vmul.f32 %v794, %v894
    %v908 = vmul.f32 %v796, %v896
    %v909 = vpack.c.bf16 %v850, %v849
    %v910 = vpack.c.bf16 %v864, %v851
    %v911 = vpack.c.bf16 %v866, %v865
    %v912 = vpack.c.bf16 %v868, %v867
    %v913 = vpack.c.bf16 %v870, %v869
    %v914 = vpack.c.bf16 %v872, %v871
    %v915 = vpack.c.bf16 %v886, %v885
    %v916 = vpack.c.bf16 %v900, %v887
    %v917 = vpack.c.bf16 %v902, %v901
    %v918 = vpack.c.bf16 %v904, %v903
    %v919 = vpack.c.bf16 %v906, %v905
    %v920 = vpack.c.bf16 %v908, %v907
    %v929 = vunpack.c.l.b16 %v493
    %v930 = vunpack.c.l.b16 %v494
    %v931 = vunpack.c.l.b16 %v495
    %v932 = vunpack.c.l.b16 %v496
    %v933 = vunpack.c.l.b16 %v497
    %v934 = vunpack.c.l.b16 %v498
    %v935 = vunpack.c.l.b16 %v499
    %v936 = vunpack.c.l.b16 %v500
    %v937 = vpack.c.b16 %v930, %v929
    %v938 = vpack.c.b16 %v932, %v931
    %v939 = vpack.c.b16 %v934, %v933
    %v940 = vpack.c.b16 %v936, %v935
    %v946 = vsel %vm740, %v909, 0
    %v949 = vsel %vm740, %v910, 0
    %v952 = vsel %vm740, %v911, 0
    %v955 = vsel %vm740, %v912, 0
    %v958 = vsel %vm740, %v913, 0
    %v961 = vsel %vm740, %v914, 0
    %v964 = vsel %vm740, %v915, 0
    %v967 = vsel %vm740, %v916, 0
    %v970 = vsel %vm740, %v917, 0
    %v973 = vsel %vm740, %v918, 0
    %v976 = vsel %vm740, %v919, 0
    %v979 = vsel %vm740, %v920, 0
    %981 = vmatpush.bf16.msra.mxu0 0
    %982 = vmatpush.bf16.msra.mxu0 0
    %983 = vmatpush.bf16.msra.mxu0 0
    %984 = vmatpush.bf16.msra.mxu0 0
    %985 = vmatpush.bf16.msra.mxu0 %v940
    %986 = vmatpush.bf16.msra.mxu0 %v939
    %987 = vmatpush.bf16.msra.mxu0 %v938
    %988 = vmatpush.bf16.msra.mxu0 %v937
    %989 = vmatmul.bf16.gmra.mxu0 %v946
    %v990 = vpop.f32.mrf.mxu0
    %v991 = vadd.f32 0.0, %v990
    %v992 = vpop.f32.mrf.mxu0
    %v993 = vadd.f32 0.0, %v992
    %994 = vmatmul.bf16.gmra.mxu0 %v949
    %v995 = vpop.f32.mrf.mxu0
    %v996 = vadd.f32 0.0, %v995
    %v997 = vpop.f32.mrf.mxu0
    %v998 = vadd.f32 0.0, %v997
    %999 = vmatmul.bf16.gmra.mxu0 %v952
    %v1000 = vpop.f32.mrf.mxu0
    %v1001 = vadd.f32 0.0, %v1000
    %v1002 = vpop.f32.mrf.mxu0
    %v1003 = vadd.f32 0.0, %v1002
    %1004 = vmatmul.bf16.gmra.mxu0 %v955
    %v1005 = vpop.f32.mrf.mxu0
    %v1006 = vadd.f32 0.0, %v1005
    %v1007 = vpop.f32.mrf.mxu0
    %v1008 = vadd.f32 0.0, %v1007
    %1009 = vmatmul.bf16.gmra.mxu0 %v958
    %v1010 = vpop.f32.mrf.mxu0
    %v1011 = vadd.f32 0.0, %v1010
    %v1012 = vpop.f32.mrf.mxu0
    %v1013 = vadd.f32 0.0, %v1012
    %1014 = vmatmul.bf16.gmra.mxu0 %v961
    %v1015 = vpop.f32.mrf.mxu0
    %v1016 = vadd.f32 0.0, %v1015
    %v1017 = vpop.f32.mrf.mxu0
    %v1018 = vadd.f32 0.0, %v1017
    %1019 = vmatmul.bf16.gmra.mxu0 %v964
    %v1020 = vpop.f32.mrf.mxu0
    %v1021 = vadd.f32 0.0, %v1020
    %v1022 = vpop.f32.mrf.mxu0
    %v1023 = vadd.f32 0.0, %v1022
    %1024 = vmatmul.bf16.gmra.mxu0 %v967
    %v1025 = vpop.f32.mrf.mxu0
    %v1026 = vadd.f32 0.0, %v1025
    %v1027 = vpop.f32.mrf.mxu0
    %v1028 = vadd.f32 0.0, %v1027
    %1029 = vmatmul.bf16.gmra.mxu0 %v970
    %v1030 = vpop.f32.mrf.mxu0
    %v1031 = vadd.f32 0.0, %v1030
    %v1032 = vpop.f32.mrf.mxu0
    %v1033 = vadd.f32 0.0, %v1032
    %1034 = vmatmul.bf16.gmra.mxu0 %v973
    %v1035 = vpop.f32.mrf.mxu0
    %v1036 = vadd.f32 0.0, %v1035
    %v1037 = vpop.f32.mrf.mxu0
    %v1038 = vadd.f32 0.0, %v1037
    %1039 = vmatmul.bf16.gmra.mxu0 %v976
    %v1040 = vpop.f32.mrf.mxu0
    %v1041 = vadd.f32 0.0, %v1040
    %v1042 = vpop.f32.mrf.mxu0
    %v1043 = vadd.f32 0.0, %v1042
    %1044 = vmatmul.bf16.gmra.mxu0 %v979
    %v1045 = vpop.f32.mrf.mxu0
    %v1046 = vadd.f32 0.0, %v1045
    %v1047 = vpop.f32.mrf.mxu0
    %v1048 = vadd.f32 0.0, %v1047
    %1049 = vdwg.mxu0
    %v1050 = vmul.f32 %v991, 0.25
    %v1051 = vmul.f32 %v993, 0.25
    %v1052 = vmul.f32 %v996, 0.25
    %v1053 = vmul.f32 %v998, 0.25
    %v1054 = vmul.f32 %v1001, 0.25
    %v1055 = vmul.f32 %v1003, 0.25
    %v1056 = vmul.f32 %v1006, 0.25
    %v1057 = vmul.f32 %v1008, 0.25
    %v1058 = vmul.f32 %v1011, 0.25
    %v1059 = vmul.f32 %v1013, 0.25
    %v1060 = vmul.f32 %v1016, 0.25
    %v1061 = vmul.f32 %v1018, 0.25
    %v1062 = vmul.f32 %v1021, 0.25
    %v1063 = vmul.f32 %v1023, 0.25
    %v1064 = vmul.f32 %v1026, 0.25
    %v1065 = vmul.f32 %v1028, 0.25
    %v1066 = vmul.f32 %v1031, 0.25
    %v1067 = vmul.f32 %v1033, 0.25
    %v1068 = vmul.f32 %v1036, 0.25
    %v1069 = vmul.f32 %v1038, 0.25
    %v1070 = vmul.f32 %v1041, 0.25
    %v1071 = vmul.f32 %v1043, 0.25
    %v1072 = vmul.f32 %v1046, 0.25
    %v1073 = vmul.f32 %v1048, 0.25
    %v1074 = vmax.f32 %v1050, %v1053
    %v1075 = vmax.f32 %v1051, %v1054
    %v1076 = vmax.f32 %v1052, %v1055
    %v1077 = vsub.f32 %v1050, %v1074
    %v1078 = vsub.f32 %v1051, %v1075
    %v1079 = vsub.f32 %v1052, %v1076
    %v1080 = vmul.f32 %v1077, 1.442695
    %v1081 = vpow.pop %v1080
    %v1082 = vmul.f32 %v1078, 1.442695
    %v1083 = vpow.pop %v1082
    %v1084 = vmul.f32 %v1079, 1.442695
    %v1085 = vpow.pop %v1084
    %v1086 = vsub.f32 %v1053, %v1074
    %v1087 = vsub.f32 %v1054, %v1075
    %v1088 = vsub.f32 %v1055, %v1076
    %v1089 = vmul.f32 %v1086, 1.442695
    %v1090 = vpow.pop %v1089
    %v1091 = vmul.f32 %v1087, 1.442695
    %v1092 = vpow.pop %v1091
    %v1093 = vmul.f32 %v1088, 1.442695
    %v1094 = vpow.pop %v1093
    %v1095 = vadd.f32 %v1081, %v1090
    %v1096 = vadd.f32 %v1083, %v1092
    %v1097 = vadd.f32 %v1085, %v1094
    %v1098 = vrcp.pop %v1095
    %v1099 = vrcp.pop %v1096
    %v1100 = vrcp.pop %v1097
    %v1101 = vmul.f32 %v1081, %v1098
    %v1102 = vmul.f32 %v1083, %v1099
    %v1103 = vmul.f32 %v1085, %v1100
    %v1104 = vmul.f32 %v1101, %v808
    %v1105 = vmul.f32 %v1102, %v810
    %v1106 = vmul.f32 %v1103, %v813
    %v1107 = vmul.f32 %v1090, %v1098
    %v1108 = vmul.f32 %v1092, %v1099
    %v1109 = vmul.f32 %v1094, %v1100
    %v1110 = vmul.f32 %v1107, %v815
    %v1111 = vmul.f32 %v1108, %v818
    %v1112 = vmul.f32 %v1109, %v820
    %v1113 = vadd.f32 %v1104, %v1110
    %v1114 = vadd.f32 %v1105, %v1111
    %v1115 = vadd.f32 %v1106, %v1112
    %v1116 = vmax.f32 %v1056, %v1059
    %v1117 = vmax.f32 %v1057, %v1060
    %v1118 = vmax.f32 %v1058, %v1061
    %v1119 = vsub.f32 %v1056, %v1116
    %v1120 = vsub.f32 %v1057, %v1117
    %v1121 = vsub.f32 %v1058, %v1118
    %v1122 = vmul.f32 %v1119, 1.442695
    %v1123 = vpow.pop %v1122
    %v1124 = vmul.f32 %v1120, 1.442695
    %v1125 = vpow.pop %v1124
    %v1126 = vmul.f32 %v1121, 1.442695
    %v1127 = vpow.pop %v1126
    %v1128 = vsub.f32 %v1059, %v1116
    %v1129 = vsub.f32 %v1060, %v1117
    %v1130 = vsub.f32 %v1061, %v1118
    %v1131 = vmul.f32 %v1128, 1.442695
    %v1132 = vpow.pop %v1131
    %v1133 = vmul.f32 %v1129, 1.442695
    %v1134 = vpow.pop %v1133
    %v1135 = vmul.f32 %v1130, 1.442695
    %v1136 = vpow.pop %v1135
    %v1137 = vadd.f32 %v1123, %v1132
    %v1138 = vadd.f32 %v1125, %v1134
    %v1139 = vadd.f32 %v1127, %v1136
    %v1140 = vrcp.pop %v1137
    %v1141 = vrcp.pop %v1138
    %v1142 = vrcp.pop %v1139
    %v1143 = vmul.f32 %v1123, %v1140
    %v1144 = vmul.f32 %v1125, %v1141
    %v1145 = vmul.f32 %v1127, %v1142
    %v1146 = vmul.f32 %v1143, %v808
    %v1147 = vmul.f32 %v1144, %v810
    %v1148 = vmul.f32 %v1145, %v813
    %v1149 = vmul.f32 %v1132, %v1140
    %v1150 = vmul.f32 %v1134, %v1141
    %v1151 = vmul.f32 %v1136, %v1142
    %v1152 = vmul.f32 %v1149, %v815
    %v1153 = vmul.f32 %v1150, %v818
    %v1154 = vmul.f32 %v1151, %v820
    %v1155 = vadd.f32 %v1146, %v1152
    %v1156 = vadd.f32 %v1147, %v1153
    %v1157 = vadd.f32 %v1148, %v1154
    %v1158 = vmax.f32 %v1062, %v1065
    %v1159 = vmax.f32 %v1063, %v1066
    %v1160 = vmax.f32 %v1064, %v1067
    %v1161 = vsub.f32 %v1062, %v1158
    %v1162 = vsub.f32 %v1063, %v1159
    %v1163 = vsub.f32 %v1064, %v1160
    %v1164 = vmul.f32 %v1161, 1.442695
    %v1165 = vpow.pop %v1164
    %v1166 = vmul.f32 %v1162, 1.442695
    %v1167 = vpow.pop %v1166
    %v1168 = vmul.f32 %v1163, 1.442695
    %v1169 = vpow.pop %v1168
    %v1170 = vsub.f32 %v1065, %v1158
    %v1171 = vsub.f32 %v1066, %v1159
    %v1172 = vsub.f32 %v1067, %v1160
    %v1173 = vmul.f32 %v1170, 1.442695
    %v1174 = vpow.pop %v1173
    %v1175 = vmul.f32 %v1171, 1.442695
    %v1176 = vpow.pop %v1175
    %v1177 = vmul.f32 %v1172, 1.442695
    %v1178 = vpow.pop %v1177
    %v1179 = vadd.f32 %v1165, %v1174
    %v1180 = vadd.f32 %v1167, %v1176
    %v1181 = vadd.f32 %v1169, %v1178
    %v1182 = vrcp.pop %v1179
    %v1183 = vrcp.pop %v1180
    %v1184 = vrcp.pop %v1181
    %v1185 = vmul.f32 %v1165, %v1182
    %v1186 = vmul.f32 %v1167, %v1183
    %v1187 = vmul.f32 %v1169, %v1184
    %v1188 = vmul.f32 %v1185, %v823
    %v1189 = vmul.f32 %v1186, %v825
    %v1190 = vmul.f32 %v1187, %v828
    %v1191 = vmul.f32 %v1174, %v1182
    %v1192 = vmul.f32 %v1176, %v1183
    %v1193 = vmul.f32 %v1178, %v1184
    %v1194 = vmul.f32 %v1191, %v830
    %v1195 = vmul.f32 %v1192, %v833
    %v1196 = vmul.f32 %v1193, %v835
    %v1197 = vadd.f32 %v1188, %v1194
    %v1198 = vadd.f32 %v1189, %v1195
    %v1199 = vadd.f32 %v1190, %v1196
    %v1200 = vmax.f32 %v1068, %v1071
    %v1201 = vmax.f32 %v1069, %v1072
    %v1202 = vmax.f32 %v1070, %v1073
    %v1203 = vsub.f32 %v1068, %v1200
    %v1204 = vsub.f32 %v1069, %v1201
    %v1205 = vsub.f32 %v1070, %v1202
    %v1206 = vmul.f32 %v1203, 1.442695
    %v1207 = vpow.pop %v1206
    %v1208 = vmul.f32 %v1204, 1.442695
    %v1209 = vpow.pop %v1208
    %v1210 = vmul.f32 %v1205, 1.442695
    %v1211 = vpow.pop %v1210
    %v1212 = vsub.f32 %v1071, %v1200
    %v1213 = vsub.f32 %v1072, %v1201
    %v1214 = vsub.f32 %v1073, %v1202
    %v1215 = vmul.f32 %v1212, 1.442695
    %v1216 = vpow.pop %v1215
    %v1217 = vmul.f32 %v1213, 1.442695
    %v1218 = vpow.pop %v1217
    %v1219 = vmul.f32 %v1214, 1.442695
    %v1220 = vpow.pop %v1219
    %v1221 = vadd.f32 %v1207, %v1216
    %v1222 = vadd.f32 %v1209, %v1218
    %v1223 = vadd.f32 %v1211, %v1220
    %v1224 = vrcp.pop %v1221
    %v1225 = vrcp.pop %v1222
    %v1226 = vrcp.pop %v1223
    %v1227 = vmul.f32 %v1207, %v1224
    %v1228 = vmul.f32 %v1209, %v1225
    %v1229 = vmul.f32 %v1211, %v1226
    %v1230 = vmul.f32 %v1227, %v823
    %v1231 = vmul.f32 %v1228, %v825
    %v1232 = vmul.f32 %v1229, %v828
    %v1233 = vmul.f32 %v1216, %v1224
    %v1234 = vmul.f32 %v1218, %v1225
    %v1235 = vmul.f32 %v1220, %v1226
    %v1236 = vmul.f32 %v1233, %v830
    %v1237 = vmul.f32 %v1234, %v833
    %v1238 = vmul.f32 %v1235, %v835
    %v1239 = vadd.f32 %v1230, %v1236
    %v1240 = vadd.f32 %v1231, %v1237
    %v1241 = vadd.f32 %v1232, %v1238
    %v1242 = vld [vmem:[#allocation8] sm:$0xf]
    %v1243 = vld [vmem:[#allocation8 + $0x4] sm:$0xf]
    %v1244 = vld [vmem:[#allocation8 + $0x8] sm:$0xf]
    %v1245 = vld [vmem:[#allocation8 + $0xc] sm:$0xf]
    %v1246 = vld [vmem:[#allocation8 + $0x10] sm:$0xf]
    %v1247 = vld [vmem:[#allocation8 + $0x14] sm:$0xf]
    %v1248 = vld [vmem:[#allocation8 + $0x18] sm:$0xf]
    %v1249 = vld [vmem:[#allocation8 + $0x1c] sm:$0xf]
    %v1250 = vpack.c.bf16 %v1114, %v1113
    %v1251 = vpack.c.bf16 %v1155, %v1115
    %v1252 = vpack.c.bf16 %v1157, %v1156
    %v1253 = vpack.c.bf16 %v1198, %v1197
    %v1254 = vpack.c.bf16 %v1239, %v1199
    %v1255 = vpack.c.bf16 %v1241, %v1240
    %v1256 = vld [vmem:[%s12] sm:$0x1]
    %v1258 = vperm.slane %v1256, 0
    %v1268 = vunpack.c.l.b16 %v1242
    %v1269 = vunpack.c.l.b16 %v1243
    %v1270 = vunpack.c.l.b16 %v1244
    %v1271 = vunpack.c.l.b16 %v1245
    %v1272 = vunpack.c.l.b16 %v1246
    %v1273 = vunpack.c.l.b16 %v1247
    %v1274 = vunpack.c.l.b16 %v1248
    %v1275 = vunpack.c.l.b16 %v1249
    %v1276 = vpack.c.b16 %v1269, %v1268
    %v1277 = vpack.c.b16 %v1271, %v1270
    %v1278 = vpack.c.b16 %v1273, %v1272
    %v1279 = vpack.c.b16 %v1275, %v1274
    %v1285 = vsel %vm740, %v1250, 0
    %v1288 = vsel %vm740, %v1251, 0
    %v1291 = vsel %vm740, %v1252, 0
    %v1294 = vsel %vm740, %v1253, 0
    %v1297 = vsel %vm740, %v1254, 0
    %v1300 = vsel %vm740, %v1255, 0
    %1302 = vmatpush.bf16.msra.mxu0 0
    %1303 = vmatpush.bf16.msra.mxu0 0
    %1304 = vmatpush.bf16.msra.mxu0 0
    %1305 = vmatpush.bf16.msra.mxu0 0
    %1306 = vmatpush.bf16.msra.mxu0 %v1279
    %1307 = vmatpush.bf16.msra.mxu0 %v1278
    %1308 = vmatpush.bf16.msra.mxu0 %v1277
    %1309 = vmatpush.bf16.msra.mxu0 %v1276
    %1310 = vmatmul.bf16.gmra.mxu0 %v1285
    %v1311 = vpop.f32.mrf.mxu0
    %v1312 = vadd.f32 %v1258, %v1311
    %v1313 = vpop.f32.mrf.mxu0
    %v1314 = vadd.f32 %v1258, %v1313
    %1315 = vmatmul.bf16.gmra.mxu0 %v1288
    %v1316 = vpop.f32.mrf.mxu0
    %v1317 = vadd.f32 %v1258, %v1316
    %v1318 = vpop.f32.mrf.mxu0
    %v1319 = vadd.f32 %v1258, %v1318
    %1320 = vmatmul.bf16.gmra.mxu0 %v1291
    %v1321 = vpop.f32.mrf.mxu0
    %v1322 = vadd.f32 %v1258, %v1321
    %v1323 = vpop.f32.mrf.mxu0
    %v1324 = vadd.f32 %v1258, %v1323
    %1325 = vmatmul.bf16.gmra.mxu0 %v1294
    %v1326 = vpop.f32.mrf.mxu0
    %v1327 = vadd.f32 %v1258, %v1326
    %v1328 = vpop.f32.mrf.mxu0
    %v1329 = vadd.f32 %v1258, %v1328
    %1330 = vmatmul.bf16.gmra.mxu0 %v1297
    %v1331 = vpop.f32.mrf.mxu0
    %v1332 = vadd.f32 %v1258, %v1331
    %v1333 = vpop.f32.mrf.mxu0
    %v1334 = vadd.f32 %v1258, %v1333
    %1335 = vmatmul.bf16.gmra.mxu0 %v1300
    %v1336 = vpop.f32.mrf.mxu0
    %v1337 = vadd.f32 %v1258, %v1336
    %v1338 = vpop.f32.mrf.mxu0
    %v1339 = vadd.f32 %v1258, %v1338
    %1340 = vdwg.mxu0
    %v1341 = vadd.f32 %v668, %v1312
    %v1342 = vadd.f32 %v669, %v1314
    %v1343 = vadd.f32 %v670, %v1317
    %v1344 = vadd.f32 %v671, %v1319
    %v1345 = vadd.f32 %v672, %v1322
    %v1346 = vadd.f32 %v673, %v1324
    %v1347 = vadd.f32 %v674, %v1327
    %v1348 = vadd.f32 %v675, %v1329
    %v1349 = vadd.f32 %v676, %v1332
    %v1350 = vadd.f32 %v677, %v1334
    %v1351 = vadd.f32 %v678, %v1337
    %v1352 = vadd.f32 %v679, %v1339
    %v1353 = vld [vmem:[%s13] sm:$0x1]
    %v1354 = vld [vmem:[%s14] sm:$0x1]
    %v1355 = vsel %vm740, %v1341, 0.0
    %1356 = vadd.xlane.f32.xlu0 %v1355
    %v1357 = vpop.xlane.xlu0 %1356
    %v1358 = vsel %vm740, %v1342, 0.0
    %1359 = vadd.xlane.f32.xlu0 %v1358
    %v1360 = vpop.xlane.xlu0 %1359
    %v1361 = vsel %vm740, %v1343, 0.0
    %1362 = vadd.xlane.f32.xlu0 %v1361
    %v1363 = vpop.xlane.xlu0 %1362
    %v1364 = vsel %vm740, %v1344, 0.0
    %1365 = vadd.xlane.f32.xlu0 %v1364
    %v1366 = vpop.xlane.xlu0 %1365
    %v1367 = vsel %vm740, %v1345, 0.0
    %1368 = vadd.xlane.f32.xlu0 %v1367
    %v1369 = vpop.xlane.xlu0 %1368
    %v1370 = vsel %vm740, %v1346, 0.0
    %1371 = vadd.xlane.f32.xlu0 %v1370
    %v1372 = vpop.xlane.xlu0 %1371
    %v1373 = vsel %vm740, %v1347, 0.0
    %1374 = vadd.xlane.f32.xlu0 %v1373
    %v1375 = vpop.xlane.xlu0 %1374
    %v1376 = vsel %vm740, %v1348, 0.0
    %1377 = vadd.xlane.f32.xlu0 %v1376
    %v1378 = vpop.xlane.xlu0 %1377
    %v1379 = vsel %vm740, %v1349, 0.0
    %1380 = vadd.xlane.f32.xlu0 %v1379
    %v1381 = vpop.xlane.xlu0 %1380
    %v1382 = vsel %vm740, %v1350, 0.0
    %1383 = vadd.xlane.f32.xlu0 %v1382
    %v1384 = vpop.xlane.xlu0 %1383
    %v1385 = vsel %vm740, %v1351, 0.0
    %1386 = vadd.xlane.f32.xlu0 %v1385
    %v1387 = vpop.xlane.xlu0 %1386
    %v1388 = vsel %vm740, %v1352, 0.0
    %1389 = vadd.xlane.f32.xlu0 %v1388
    %v1390 = vpop.xlane.xlu0 %1389
    %v1391 = vrcp.pop 64.0
    %v1392 = vmul.f32 64.0, %v1391
    %v1393 = vsub.f32 1.0, %v1392
    %v1394 = vmul.f32 %v1391, %v1393
    %v1395 = vadd.f32 %v1391, %v1394
    %vm1396 = vweird.f32 %v1391
    %v1397 = vsel %vm1396, %v1391, %v1395
    %v1398 = vmul.f32 %v1357, %v1397
    %v1399 = vmul.f32 %v1360, %v1397
    %v1400 = vmul.f32 %v1363, %v1397
    %v1401 = vmul.f32 %v1366, %v1397
    %v1402 = vmul.f32 %v1369, %v1397
    %v1403 = vmul.f32 %v1372, %v1397
    %v1404 = vmul.f32 %v1375, %v1397
    %v1405 = vmul.f32 %v1378, %v1397
    %v1406 = vmul.f32 %v1381, %v1397
    %v1407 = vmul.f32 %v1384, %v1397
    %v1408 = vmul.f32 %v1387, %v1397
    %v1409 = vmul.f32 %v1390, %v1397
    %v1410 = vsub.f32 %v1341, %v1398
    %v1411 = vsub.f32 %v1342, %v1399
    %v1412 = vsub.f32 %v1343, %v1400
    %v1413 = vsub.f32 %v1344, %v1401
    %v1414 = vsub.f32 %v1345, %v1402
    %v1415 = vsub.f32 %v1346, %v1403
    %v1416 = vsub.f32 %v1347, %v1404
    %v1417 = vsub.f32 %v1348, %v1405
    %v1418 = vsub.f32 %v1349, %v1406
    %v1419 = vsub.f32 %v1350, %v1407
    %v1420 = vsub.f32 %v1351, %v1408
    %v1421 = vsub.f32 %v1352, %v1409
    %v1422 = vmul.f32 %v1410, %v1410
    %v1423 = vmul.f32 %v1411, %v1411
    %v1424 = vmul.f32 %v1412, %v1412
    %v1425 = vmul.f32 %v1413, %v1413
    %v1426 = vmul.f32 %v1414, %v1414
    %v1427 = vmul.f32 %v1415, %v1415
    %v1428 = vmul.f32 %v1416, %v1416
    %v1429 = vmul.f32 %v1417, %v1417
    %v1430 = vmul.f32 %v1418, %v1418
    %v1431 = vmul.f32 %v1419, %v1419
    %v1432 = vmul.f32 %v1420, %v1420
    %v1433 = vmul.f32 %v1421, %v1421
    %v1434 = vsel %vm740, %v1422, 0.0
    %1435 = vadd.xlane.f32.xlu0 %v1434
    %v1436 = vpop.xlane.xlu0 %1435
    %v1437 = vsel %vm740, %v1423, 0.0
    %1438 = vadd.xlane.f32.xlu0 %v1437
    %v1439 = vpop.xlane.xlu0 %1438
    %v1440 = vsel %vm740, %v1424, 0.0
    %1441 = vadd.xlane.f32.xlu0 %v1440
    %v1442 = vpop.xlane.xlu0 %1441
    %v1443 = vsel %vm740, %v1425, 0.0
    %1444 = vadd.xlane.f32.xlu0 %v1443
    %v1445 = vpop.xlane.xlu0 %1444
    %v1446 = vsel %vm740, %v1426, 0.0
    %1447 = vadd.xlane.f32.xlu0 %v1446
    %v1448 = vpop.xlane.xlu0 %1447
    %v1449 = vsel %vm740, %v1427, 0.0
    %1450 = vadd.xlane.f32.xlu0 %v1449
    %v1451 = vpop.xlane.xlu0 %1450
    %v1452 = vsel %vm740, %v1428, 0.0
    %1453 = vadd.xlane.f32.xlu0 %v1452
    %v1454 = vpop.xlane.xlu0 %1453
    %v1455 = vsel %vm740, %v1429, 0.0
    %1456 = vadd.xlane.f32.xlu0 %v1455
    %v1457 = vpop.xlane.xlu0 %1456
    %v1458 = vsel %vm740, %v1430, 0.0
    %1459 = vadd.xlane.f32.xlu0 %v1458
    %v1460 = vpop.xlane.xlu0 %1459
    %v1461 = vsel %vm740, %v1431, 0.0
    %1462 = vadd.xlane.f32.xlu0 %v1461
    %v1463 = vpop.xlane.xlu0 %1462
    %v1464 = vsel %vm740, %v1432, 0.0
    %1465 = vadd.xlane.f32.xlu0 %v1464
    %v1466 = vpop.xlane.xlu0 %1465
    %v1467 = vsel %vm740, %v1433, 0.0
    %1468 = vadd.xlane.f32.xlu0 %v1467
    %v1469 = vpop.xlane.xlu0 %1468
    %v1470 = vmul.f32 %v1436, %v1397
    %v1471 = vmul.f32 %v1439, %v1397
    %v1472 = vmul.f32 %v1442, %v1397
    %v1473 = vmul.f32 %v1445, %v1397
    %v1474 = vmul.f32 %v1448, %v1397
    %v1475 = vmul.f32 %v1451, %v1397
    %v1476 = vmul.f32 %v1454, %v1397
    %v1477 = vmul.f32 %v1457, %v1397
    %v1478 = vmul.f32 %v1460, %v1397
    %v1479 = vmul.f32 %v1463, %v1397
    %v1480 = vmul.f32 %v1466, %v1397
    %v1481 = vmul.f32 %v1469, %v1397
    %v1482 = vadd.f32 %v1470, 1e-05
    %v1483 = vadd.f32 %v1471, 1e-05
    %v1484 = vadd.f32 %v1472, 1e-05
    %v1485 = vadd.f32 %v1473, 1e-05
    %v1486 = vadd.f32 %v1474, 1e-05
    %v1487 = vadd.f32 %v1475, 1e-05
    %v1488 = vadd.f32 %v1476, 1e-05
    %v1489 = vadd.f32 %v1477, 1e-05
    %v1490 = vadd.f32 %v1478, 1e-05
    %v1491 = vadd.f32 %v1479, 1e-05
    %v1492 = vadd.f32 %v1480, 1e-05
    %v1493 = vadd.f32 %v1481, 1e-05
    %v1494 = vrsqrt.pop %v1482
    %v1495 = vmul.f32 %v1494, %v1482
    %v1496 = vmul.f32 %v1495, %v1494
    %v1497 = vmul.f32 0.5, %v1496
    %v1498 = vsub.f32 1.5, %v1497
    %v1499 = vmul.f32 %v1494, %v1498
    %vm1500 = vweird.f32 %v1482
    %vm1501 = vweird.f32 %v1494
    %vm1502 = vmor %vm1500, %vm1501
    %v1503 = vsel %vm1502, %v1494, %v1499
    %v1504 = vrsqrt.pop %v1483
    %v1505 = vmul.f32 %v1504, %v1483
    %v1506 = vmul.f32 %v1505, %v1504
    %v1507 = vmul.f32 0.5, %v1506
    %v1508 = vsub.f32 1.5, %v1507
    %v1509 = vmul.f32 %v1504, %v1508
    %vm1510 = vweird.f32 %v1483
    %vm1511 = vweird.f32 %v1504
    %vm1512 = vmor %vm1510, %vm1511
    %v1513 = vsel %vm1512, %v1504, %v1509
    %v1514 = vrsqrt.pop %v1484
    %v1515 = vmul.f32 %v1514, %v1484
    %v1516 = vmul.f32 %v1515, %v1514
    %v1517 = vmul.f32 0.5, %v1516
    %v1518 = vsub.f32 1.5, %v1517
    %v1519 = vmul.f32 %v1514, %v1518
    %vm1520 = vweird.f32 %v1484
    %vm1521 = vweird.f32 %v1514
    %vm1522 = vmor %vm1520, %vm1521
    %v1523 = vsel %vm1522, %v1514, %v1519
    %v1524 = vrsqrt.pop %v1485
    %v1525 = vmul.f32 %v1524, %v1485
    %v1526 = vmul.f32 %v1525, %v1524
    %v1527 = vmul.f32 0.5, %v1526
    %v1528 = vsub.f32 1.5, %v1527
    %v1529 = vmul.f32 %v1524, %v1528
    %vm1530 = vweird.f32 %v1485
    %vm1531 = vweird.f32 %v1524
    %vm1532 = vmor %vm1530, %vm1531
    %v1533 = vsel %vm1532, %v1524, %v1529
    %v1534 = vrsqrt.pop %v1486
    %v1535 = vmul.f32 %v1534, %v1486
    %v1536 = vmul.f32 %v1535, %v1534
    %v1537 = vmul.f32 0.5, %v1536
    %v1538 = vsub.f32 1.5, %v1537
    %v1539 = vmul.f32 %v1534, %v1538
    %vm1540 = vweird.f32 %v1486
    %vm1541 = vweird.f32 %v1534
    %vm1542 = vmor %vm1540, %vm1541
    %v1543 = vsel %vm1542, %v1534, %v1539
    %v1544 = vrsqrt.pop %v1487
    %v1545 = vmul.f32 %v1544, %v1487
    %v1546 = vmul.f32 %v1545, %v1544
    %v1547 = vmul.f32 0.5, %v1546
    %v1548 = vsub.f32 1.5, %v1547
    %v1549 = vmul.f32 %v1544, %v1548
    %vm1550 = vweird.f32 %v1487
    %vm1551 = vweird.f32 %v1544
    %vm1552 = vmor %vm1550, %vm1551
    %v1553 = vsel %vm1552, %v1544, %v1549
    %v1554 = vrsqrt.pop %v1488
    %v1555 = vmul.f32 %v1554, %v1488
    %v1556 = vmul.f32 %v1555, %v1554
    %v1557 = vmul.f32 0.5, %v1556
    %v1558 = vsub.f32 1.5, %v1557
    %v1559 = vmul.f32 %v1554, %v1558
    %vm1560 = vweird.f32 %v1488
    %vm1561 = vweird.f32 %v1554
    %vm1562 = vmor %vm1560, %vm1561
    %v1563 = vsel %vm1562, %v1554, %v1559
    %v1564 = vrsqrt.pop %v1489
    %v1565 = vmul.f32 %v1564, %v1489
    %v1566 = vmul.f32 %v1565, %v1564
    %v1567 = vmul.f32 0.5, %v1566
    %v1568 = vsub.f32 1.5, %v1567
    %v1569 = vmul.f32 %v1564, %v1568
    %vm1570 = vweird.f32 %v1489
    %vm1571 = vweird.f32 %v1564
    %vm1572 = vmor %vm1570, %vm1571
    %v1573 = vsel %vm1572, %v1564, %v1569
    %v1574 = vrsqrt.pop %v1490
    %v1575 = vmul.f32 %v1574, %v1490
    %v1576 = vmul.f32 %v1575, %v1574
    %v1577 = vmul.f32 0.5, %v1576
    %v1578 = vsub.f32 1.5, %v1577
    %v1579 = vmul.f32 %v1574, %v1578
    %vm1580 = vweird.f32 %v1490
    %vm1581 = vweird.f32 %v1574
    %vm1582 = vmor %vm1580, %vm1581
    %v1583 = vsel %vm1582, %v1574, %v1579
    %v1584 = vrsqrt.pop %v1491
    %v1585 = vmul.f32 %v1584, %v1491
    %v1586 = vmul.f32 %v1585, %v1584
    %v1587 = vmul.f32 0.5, %v1586
    %v1588 = vsub.f32 1.5, %v1587
    %v1589 = vmul.f32 %v1584, %v1588
    %vm1590 = vweird.f32 %v1491
    %vm1591 = vweird.f32 %v1584
    %vm1592 = vmor %vm1590, %vm1591
    %v1593 = vsel %vm1592, %v1584, %v1589
    %v1594 = vrsqrt.pop %v1492
    %v1595 = vmul.f32 %v1594, %v1492
    %v1596 = vmul.f32 %v1595, %v1594
    %v1597 = vmul.f32 0.5, %v1596
    %v1598 = vsub.f32 1.5, %v1597
    %v1599 = vmul.f32 %v1594, %v1598
    %vm1600 = vweird.f32 %v1492
    %vm1601 = vweird.f32 %v1594
    %vm1602 = vmor %vm1600, %vm1601
    %v1603 = vsel %vm1602, %v1594, %v1599
    %v1604 = vrsqrt.pop %v1493
    %v1605 = vmul.f32 %v1604, %v1493
    %v1606 = vmul.f32 %v1605, %v1604
    %v1607 = vmul.f32 0.5, %v1606
    %v1608 = vsub.f32 1.5, %v1607
    %v1609 = vmul.f32 %v1604, %v1608
    %vm1610 = vweird.f32 %v1493
    %vm1611 = vweird.f32 %v1604
    %vm1612 = vmor %vm1610, %vm1611
    %v1613 = vsel %vm1612, %v1604, %v1609
    %v1614 = vmul.f32 %v1410, %v1503
    %v1615 = vmul.f32 %v1411, %v1513
    %v1616 = vmul.f32 %v1412, %v1523
    %v1617 = vmul.f32 %v1413, %v1533
    %v1618 = vmul.f32 %v1414, %v1543
    %v1619 = vmul.f32 %v1415, %v1553
    %v1620 = vmul.f32 %v1416, %v1563
    %v1621 = vmul.f32 %v1417, %v1573
    %v1622 = vmul.f32 %v1418, %v1583
    %v1623 = vmul.f32 %v1419, %v1593
    %v1624 = vmul.f32 %v1420, %v1603
    %v1625 = vmul.f32 %v1421, %v1613
    %v1627 = vperm.slane %v1353, 0
    %v1629 = vmul.f32 %v1614, %v1627
    %v1630 = vmul.f32 %v1615, %v1627
    %v1631 = vmul.f32 %v1616, %v1627
    %v1632 = vmul.f32 %v1617, %v1627
    %v1633 = vmul.f32 %v1618, %v1627
    %v1634 = vmul.f32 %v1619, %v1627
    %v1635 = vmul.f32 %v1620, %v1627
    %v1636 = vmul.f32 %v1621, %v1627
    %v1637 = vmul.f32 %v1622, %v1627
    %v1638 = vmul.f32 %v1623, %v1627
    %v1639 = vmul.f32 %v1624, %v1627
    %v1640 = vmul.f32 %v1625, %v1627
    %v1642 = vperm.slane %v1354, 0
    %v1644 = vadd.f32 %v1629, %v1642
    %v1645 = vadd.f32 %v1630, %v1642
    %v1646 = vadd.f32 %v1631, %v1642
    %v1647 = vadd.f32 %v1632, %v1642
    %v1648 = vadd.f32 %v1633, %v1642
    %v1649 = vadd.f32 %v1634, %v1642
    %v1650 = vadd.f32 %v1635, %v1642
    %v1651 = vadd.f32 %v1636, %v1642
    %v1652 = vadd.f32 %v1637, %v1642
    %v1653 = vadd.f32 %v1638, %v1642
    %v1654 = vadd.f32 %v1639, %v1642
    %v1655 = vadd.f32 %v1640, %v1642
    %v1656 = vld [vmem:[#allocation9] sm:$0xf]
    %v1657 = vld [vmem:[#allocation9 + $0x4] sm:$0xf]
    %v1658 = vld [vmem:[#allocation9 + $0x8] sm:$0xf]
    %v1659 = vld [vmem:[#allocation9 + $0xc] sm:$0xf]
    %v1660 = vld [vmem:[#allocation9 + $0x10] sm:$0xf]
    %v1661 = vld [vmem:[#allocation9 + $0x14] sm:$0xf]
    %v1662 = vld [vmem:[#allocation9 + $0x18] sm:$0xf]
    %v1663 = vld [vmem:[#allocation9 + $0x1c] sm:$0xf]
    %v1664 = vpack.c.bf16 %v1645, %v1644
    %v1665 = vpack.c.bf16 %v1647, %v1646
    %v1666 = vpack.c.bf16 %v1649, %v1648
    %v1667 = vpack.c.bf16 %v1651, %v1650
    %v1668 = vpack.c.bf16 %v1653, %v1652
    %v1669 = vpack.c.bf16 %v1655, %v1654
    %v1670 = vld [vmem:[%s16] sm:$0x1]
    %v1672 = vperm.slane %v1670, 0
    %v1682 = vunpack.c.l.b16 %v1656
    %v1683 = vunpack.c.l.b16 %v1657
    %v1684 = vunpack.c.l.b16 %v1658
    %v1685 = vunpack.c.l.b16 %v1659
    %v1686 = vunpack.c.l.b16 %v1660
    %v1687 = vunpack.c.l.b16 %v1661
    %v1688 = vunpack.c.l.b16 %v1662
    %v1689 = vunpack.c.l.b16 %v1663
    %v1690 = vpack.c.b16 %v1683, %v1682
    %v1691 = vpack.c.b16 %v1685, %v1684
    %v1692 = vpack.c.b16 %v1687, %v1686
    %v1693 = vpack.c.b16 %v1689, %v1688
    %v1699 = vsel %vm740, %v1664, 0
    %v1702 = vsel %vm740, %v1665, 0
    %v1705 = vsel %vm740, %v1666, 0
    %v1708 = vsel %vm740, %v1667, 0
    %v1711 = vsel %vm740, %v1668, 0
    %v1714 = vsel %vm740, %v1669, 0
    %1716 = vmatpush.bf16.msra.mxu0 0
    %1717 = vmatpush.bf16.msra.mxu0 0
    %1718 = vmatpush.bf16.msra.mxu0 0
    %1719 = vmatpush.bf16.msra.mxu0 0
    %1720 = vmatpush.bf16.msra.mxu0 %v1693
    %1721 = vmatpush.bf16.msra.mxu0 %v1692
    %1722 = vmatpush.bf16.msra.mxu0 %v1691
    %1723 = vmatpush.bf16.msra.mxu0 %v1690
    %1724 = vmatmul.bf16.gmra.mxu0 %v1699
    %v1725 = vpop.f32.mrf.mxu0
    %v1726 = vadd.f32 %v1672, %v1725
    %v1727 = vpop.f32.mrf.mxu0
    %v1728 = vadd.f32 %v1672, %v1727
    %1729 = vmatmul.bf16.gmra.mxu0 %v1702
    %v1730 = vpop.f32.mrf.mxu0
    %v1731 = vadd.f32 %v1672, %v1730
    %v1732 = vpop.f32.mrf.mxu0
    %v1733 = vadd.f32 %v1672, %v1732
    %1734 = vmatmul.bf16.gmra.mxu0 %v1705
    %v1735 = vpop.f32.mrf.mxu0
    %v1736 = vadd.f32 %v1672, %v1735
    %v1737 = vpop.f32.mrf.mxu0
    %v1738 = vadd.f32 %v1672, %v1737
    %1739 = vmatmul.bf16.gmra.mxu0 %v1708
    %v1740 = vpop.f32.mrf.mxu0
    %v1741 = vadd.f32 %v1672, %v1740
    %v1742 = vpop.f32.mrf.mxu0
    %v1743 = vadd.f32 %v1672, %v1742
    %1744 = vmatmul.bf16.gmra.mxu0 %v1711
    %v1745 = vpop.f32.mrf.mxu0
    %v1746 = vadd.f32 %v1672, %v1745
    %v1747 = vpop.f32.mrf.mxu0
    %v1748 = vadd.f32 %v1672, %v1747
    %1749 = vmatmul.bf16.gmra.mxu0 %v1714
    %v1750 = vpop.f32.mrf.mxu0
    %v1751 = vadd.f32 %v1672, %v1750
    %v1752 = vpop.f32.mrf.mxu0
    %v1753 = vadd.f32 %v1672, %v1752
    %1754 = vdwg.mxu0
    %v1755 = vmul.f32 %v1726, 0.5
    %v1756 = vmul.f32 %v1728, 0.5
    %v1757 = vmul.f32 %v1731, 0.5
    %v1758 = vmul.f32 %v1733, 0.5
    %v1759 = vmul.f32 %v1736, 0.5
    %v1760 = vmul.f32 %v1738, 0.5
    %v1761 = vmul.f32 %v1741, 0.5
    %v1762 = vmul.f32 %v1743, 0.5
    %v1763 = vmul.f32 %v1746, 0.5
    %v1764 = vmul.f32 %v1748, 0.5
    %v1765 = vmul.f32 %v1751, 0.5
    %v1766 = vmul.f32 %v1753, 0.5
    %v1767 = vmul.f32 %v1726, 0.044715
    %v1768 = vmul.f32 %v1728, 0.044715
    %v1769 = vmul.f32 %v1731, 0.044715
    %v1770 = vmul.f32 %v1733, 0.044715
    %v1771 = vmul.f32 %v1736, 0.044715
    %v1772 = vmul.f32 %v1738, 0.044715
    %v1773 = vmul.f32 %v1741, 0.044715
    %v1774 = vmul.f32 %v1743, 0.044715
    %v1775 = vmul.f32 %v1746, 0.044715
    %v1776 = vmul.f32 %v1748, 0.044715
    %v1777 = vmul.f32 %v1751, 0.044715
    %v1778 = vmul.f32 %v1753, 0.044715
    %v1779 = vmul.f32 %v1767, %v1726
    %v1780 = vmul.f32 %v1768, %v1728
    %v1781 = vmul.f32 %v1769, %v1731
    %v1782 = vmul.f32 %v1770, %v1733
    %v1783 = vmul.f32 %v1771, %v1736
    %v1784 = vmul.f32 %v1772, %v1738
    %v1785 = vmul.f32 %v1773, %v1741
    %v1786 = vmul.f32 %v1774, %v1743
    %v1787 = vmul.f32 %v1775, %v1746
    %v1788 = vmul.f32 %v1776, %v1748
    %v1789 = vmul.f32 %v1777, %v1751
    %v1790 = vmul.f32 %v1778, %v1753
    %v1791 = vmul.f32 %v1779, %v1726
    %v1792 = vmul.f32 %v1780, %v1728
    %v1793 = vmul.f32 %v1781, %v1731
    %v1794 = vmul.f32 %v1782, %v1733
    %v1795 = vmul.f32 %v1783, %v1736
    %v1796 = vmul.f32 %v1784, %v1738
    %v1797 = vmul.f32 %v1785, %v1741
    %v1798 = vmul.f32 %v1786, %v1743
    %v1799 = vmul.f32 %v1787, %v1746
    %v1800 = vmul.f32 %v1788, %v1748
    %v1801 = vmul.f32 %v1789, %v1751
    %v1802 = vmul.f32 %v1790, %v1753
    %v1803 = vadd.f32 %v1726, %v1791
    %v1804 = vadd.f32 %v1728, %v1792
    %v1805 = vadd.f32 %v1731, %v1793
    %v1806 = vadd.f32 %v1733, %v1794
    %v1807 = vadd.f32 %v1736, %v1795
    %v1808 = vadd.f32 %v1738, %v1796
    %v1809 = vadd.f32 %v1741, %v1797
    %v1810 = vadd.f32 %v1743, %v1798
    %v1811 = vadd.f32 %v1746, %v1799
    %v1812 = vadd.f32 %v1748, %v1800
    %v1813 = vadd.f32 %v1751, %v1801
    %v1814 = vadd.f32 %v1753, %v1802
    %v1815 = vmul.f32 %v1803, 0.7978846
    %v1816 = vmul.f32 %v1804, 0.7978846
    %v1817 = vmul.f32 %v1805, 0.7978846
    %v1818 = vmul.f32 %v1806, 0.7978846
    %v1819 = vmul.f32 %v1807, 0.7978846
    %v1820 = vmul.f32 %v1808, 0.7978846
    %v1821 = vmul.f32 %v1809, 0.7978846
    %v1822 = vmul.f32 %v1810, 0.7978846
    %v1823 = vmul.f32 %v1811, 0.7978846
    %v1824 = vmul.f32 %v1812, 0.7978846
    %v1825 = vmul.f32 %v1813, 0.7978846
    %v1826 = vmul.f32 %v1814, 0.7978846
    %v1827 = vtanh.pop %v1815
    %v1828 = vtanh.pop %v1816
    %v1829 = vtanh.pop %v1817
    %v1830 = vtanh.pop %v1818
    %v1831 = vtanh.pop %v1819
    %v1832 = vtanh.pop %v1820
    %v1833 = vtanh.pop %v1821
    %v1834 = vtanh.pop %v1822
    %v1835 = vtanh.pop %v1823
    %v1836 = vtanh.pop %v1824
    %v1837 = vtanh.pop %v1825
    %v1838 = vtanh.pop %v1826
    %v1839 = vadd.f32 %v1827, 1.0
    %v1840 = vadd.f32 %v1828, 1.0
    %v1841 = vadd.f32 %v1829, 1.0
    %v1842 = vadd.f32 %v1830, 1.0
    %v1843 = vadd.f32 %v1831, 1.0
    %v1844 = vadd.f32 %v1832, 1.0
    %v1845 = vadd.f32 %v1833, 1.0
    %v1846 = vadd.f32 %v1834, 1.0
    %v1847 = vadd.f32 %v1835, 1.0
    %v1848 = vadd.f32 %v1836, 1.0
    %v1849 = vadd.f32 %v1837, 1.0
    %v1850 = vadd.f32 %v1838, 1.0
    %v1851 = vmul.f32 %v1755, %v1839
    %v1852 = vmul.f32 %v1756, %v1840
    %v1853 = vmul.f32 %v1757, %v1841
    %v1854 = vmul.f32 %v1758, %v1842
    %v1855 = vmul.f32 %v1759, %v1843
    %v1856 = vmul.f32 %v1760, %v1844
    %v1857 = vmul.f32 %v1761, %v1845
    %v1858 = vmul.f32 %v1762, %v1846
    %v1859 = vmul.f32 %v1763, %v1847
    %v1860 = vmul.f32 %v1764, %v1848
    %v1861 = vmul.f32 %v1765, %v1849
    %v1862 = vmul.f32 %v1766, %v1850
    %v1863 = vld [vmem:[%s17] sm:$0xf]
    %v1864 = vld [vmem:[%s17 + $0x4] sm:$0xf]
    %v1865 = vld [vmem:[%s17 + $0x8] sm:$0xf]
    %v1866 = vld [vmem:[%s17 + $0xc] sm:$0xf]
    %v1867 = vld [vmem:[%s17 + $0x10] sm:$0xf]
    %v1868 = vld [vmem:[%s17 + $0x14] sm:$0xf]
    %v1869 = vld [vmem:[%s17 + $0x18] sm:$0xf]
    %v1870 = vld [vmem:[%s17 + $0x1c] sm:$0xf]
    %v1871 = vld [vmem:[%s17 + $0x20] sm:$0xf]
    %v1872 = vld [vmem:[%s17 + $0x24] sm:$0xf]
    %v1873 = vld [vmem:[%s17 + $0x28] sm:$0xf]
    %v1874 = vld [vmem:[%s17 + $0x2c] sm:$0xf]
    %v1875 = vld [vmem:[%s17 + $0x30] sm:$0xf]
    %v1876 = vld [vmem:[%s17 + $0x34] sm:$0xf]
    %v1877 = vld [vmem:[%s17 + $0x38] sm:$0xf]
    %v1878 = vld [vmem:[%s17 + $0x3c] sm:$0xf]
    %v1879 = vpack.c.bf16 %v1852, %v1851
    %v1880 = vpack.c.bf16 %v1854, %v1853
    %v1881 = vpack.c.bf16 %v1856, %v1855
    %v1882 = vpack.c.bf16 %v1858, %v1857
    %v1883 = vpack.c.bf16 %v1860, %v1859
    %v1884 = vpack.c.bf16 %v1862, %v1861
    %v1885 = vld [vmem:[%s18] sm:$0x1]
    %v1887 = vperm.slane %v1885, 0
    %v1905 = vunpack.c.l.b16 %v1863
    %v1906 = vunpack.c.l.b16 %v1864
    %v1907 = vunpack.c.l.b16 %v1865
    %v1908 = vunpack.c.l.b16 %v1866
    %v1909 = vunpack.c.l.b16 %v1867
    %v1910 = vunpack.c.l.b16 %v1868
    %v1911 = vunpack.c.l.b16 %v1869
    %v1912 = vunpack.c.l.b16 %v1870
    %v1913 = vunpack.c.l.b16 %v1871
    %v1914 = vunpack.c.l.b16 %v1872
    %v1915 = vunpack.c.l.b16 %v1873
    %v1916 = vunpack.c.l.b16 %v1874
    %v1917 = vunpack.c.l.b16 %v1875
    %v1918 = vunpack.c.l.b16 %v1876
    %v1919 = vunpack.c.l.b16 %v1877
    %v1920 = vunpack.c.l.b16 %v1878
    %v1921 = vpack.c.b16 %v1906, %v1905
    %v1922 = vpack.c.b16 %v1908, %v1907
    %v1923 = vpack.c.b16 %v1910, %v1909
    %v1924 = vpack.c.b16 %v1912, %v1911
    %v1925 = vpack.c.b16 %v1914, %v1913
    %v1926 = vpack.c.b16 %v1916, %v1915
    %v1927 = vpack.c.b16 %v1918, %v1917
    %v1928 = vpack.c.b16 %v1920, %v1919
    %1937 = vmatpush.bf16.msra.mxu0 %v1928
    %1938 = vmatpush.bf16.msra.mxu0 %v1927
    %1939 = vmatpush.bf16.msra.mxu0 %v1926
    %1940 = vmatpush.bf16.msra.mxu0 %v1925
    %1941 = vmatpush.bf16.msra.mxu0 %v1924
    %1942 = vmatpush.bf16.msra.mxu0 %v1923
    %1943 = vmatpush.bf16.msra.mxu0 %v1922
    %1944 = vmatpush.bf16.msra.mxu0 %v1921
    %1945 = vmatmul.bf16.gmra.mxu0 %v1879
    %v1946 = vpop.f32.mrf.mxu0
    %v1947 = vadd.f32 %v1887, %v1946
    %v1948 = vpop.f32.mrf.mxu0
    %v1949 = vadd.f32 %v1887, %v1948
    %1950 = vmatmul.bf16.gmra.mxu0 %v1880
    %v1951 = vpop.f32.mrf.mxu0
    %v1952 = vadd.f32 %v1887, %v1951
    %v1953 = vpop.f32.mrf.mxu0
    %v1954 = vadd.f32 %v1887, %v1953
    %1955 = vmatmul.bf16.gmra.mxu0 %v1881
    %v1956 = vpop.f32.mrf.mxu0
    %v1957 = vadd.f32 %v1887, %v1956
    %v1958 = vpop.f32.mrf.mxu0
    %v1959 = vadd.f32 %v1887, %v1958
    %1960 = vmatmul.bf16.gmra.mxu0 %v1882
    %v1961 = vpop.f32.mrf.mxu0
    %v1962 = vadd.f32 %v1887, %v1961
    %v1963 = vpop.f32.mrf.mxu0
    %v1964 = vadd.f32 %v1887, %v1963
    %1965 = vmatmul.bf16.gmra.mxu0 %v1883
    %v1966 = vpop.f32.mrf.mxu0
    %v1967 = vadd.f32 %v1887, %v1966
    %v1968 = vpop.f32.mrf.mxu0
    %v1969 = vadd.f32 %v1887, %v1968
    %1970 = vmatmul.bf16.gmra.mxu0 %v1884
    %v1971 = vpop.f32.mrf.mxu0
    %v1972 = vadd.f32 %v1887, %v1971
    %v1973 = vpop.f32.mrf.mxu0
    %v1974 = vadd.f32 %v1887, %v1973
    %1975 = vdwg.mxu0
    %v1976 = vadd.f32 %v1644, %v1947
    %v1977 = vadd.f32 %v1645, %v1949
    %v1978 = vadd.f32 %v1646, %v1952
    %v1979 = vadd.f32 %v1647, %v1954
    %v1980 = vadd.f32 %v1648, %v1957
    %v1981 = vadd.f32 %v1649, %v1959
    %v1982 = vadd.f32 %v1650, %v1962
    %v1983 = vadd.f32 %v1651, %v1964
    %v1984 = vadd.f32 %v1652, %v1967
    %v1985 = vadd.f32 %v1653, %v1969
    %v1986 = vadd.f32 %v1654, %v1972
    %v1987 = vadd.f32 %v1655, %v1974
    %v1988 = vld [vmem:[%s19] sm:$0x1]
    %v1989 = vld [vmem:[#allocation11] sm:$0x1]
    %v1990 = vsel %vm740, %v1976, 0.0
    %1991 = vadd.xlane.f32.xlu0 %v1990
    %v1992 = vpop.xlane.xlu0 %1991
    %v1993 = vsel %vm740, %v1977, 0.0
    %1994 = vadd.xlane.f32.xlu0 %v1993
    %v1995 = vpop.xlane.xlu0 %1994
    %v1996 = vsel %vm740, %v1978, 0.0
    %1997 = vadd.xlane.f32.xlu0 %v1996
    %v1998 = vpop.xlane.xlu0 %1997
    %v1999 = vsel %vm740, %v1979, 0.0
    %2000 = vadd.xlane.f32.xlu0 %v1999
    %v2001 = vpop.xlane.xlu0 %2000
    %v2002 = vsel %vm740, %v1980, 0.0
    %2003 = vadd.xlane.f32.xlu0 %v2002
    %v2004 = vpop.xlane.xlu0 %2003
    %v2005 = vsel %vm740, %v1981, 0.0
    %2006 = vadd.xlane.f32.xlu0 %v2005
    %v2007 = vpop.xlane.xlu0 %2006
    %v2008 = vsel %vm740, %v1982, 0.0
    %2009 = vadd.xlane.f32.xlu0 %v2008
    %v2010 = vpop.xlane.xlu0 %2009
    %v2011 = vsel %vm740, %v1983, 0.0
    %2012 = vadd.xlane.f32.xlu0 %v2011
    %v2013 = vpop.xlane.xlu0 %2012
    %v2014 = vsel %vm740, %v1984, 0.0
    %2015 = vadd.xlane.f32.xlu0 %v2014
    %v2016 = vpop.xlane.xlu0 %2015
    %v2017 = vsel %vm740, %v1985, 0.0
    %2018 = vadd.xlane.f32.xlu0 %v2017
    %v2019 = vpop.xlane.xlu0 %2018
    %v2020 = vsel %vm740, %v1986, 0.0
    %2021 = vadd.xlane.f32.xlu0 %v2020
    %v2022 = vpop.xlane.xlu0 %2021
    %v2023 = vsel %vm740, %v1987, 0.0
    %2024 = vadd.xlane.f32.xlu0 %v2023
    %v2025 = vpop.xlane.xlu0 %2024
    %v2026 = vmul.f32 %v1992, %v1397
    %v2027 = vmul.f32 %v1995, %v1397
    %v2028 = vmul.f32 %v1998, %v1397
    %v2029 = vmul.f32 %v2001, %v1397
    %v2030 = vmul.f32 %v2004, %v1397
    %v2031 = vmul.f32 %v2007, %v1397
    %v2032 = vmul.f32 %v2010, %v1397
    %v2033 = vmul.f32 %v2013, %v1397
    %v2034 = vmul.f32 %v2016, %v1397
    %v2035 = vmul.f32 %v2019, %v1397
    %v2036 = vmul.f32 %v2022, %v1397
    %v2037 = vmul.f32 %v2025, %v1397
    %v2038 = vsub.f32 %v1976, %v2026
    %v2039 = vsub.f32 %v1977, %v2027
    %v2040 = vsub.f32 %v1978, %v2028
    %v2041 = vsub.f32 %v1979, %v2029
    %v2042 = vsub.f32 %v1980, %v2030
    %v2043 = vsub.f32 %v1981, %v2031
    %v2044 = vsub.f32 %v1982, %v2032
    %v2045 = vsub.f32 %v1983, %v2033
    %v2046 = vsub.f32 %v1984, %v2034
    %v2047 = vsub.f32 %v1985, %v2035
    %v2048 = vsub.f32 %v1986, %v2036
    %v2049 = vsub.f32 %v1987, %v2037
    %v2050 = vmul.f32 %v2038, %v2038
    %v2051 = vmul.f32 %v2039, %v2039
    %v2052 = vmul.f32 %v2040, %v2040
    %v2053 = vmul.f32 %v2041, %v2041
    %v2054 = vmul.f32 %v2042, %v2042
    %v2055 = vmul.f32 %v2043, %v2043
    %v2056 = vmul.f32 %v2044, %v2044
    %v2057 = vmul.f32 %v2045, %v2045
    %v2058 = vmul.f32 %v2046, %v2046
    %v2059 = vmul.f32 %v2047, %v2047
    %v2060 = vmul.f32 %v2048, %v2048
    %v2061 = vmul.f32 %v2049, %v2049
    %v2062 = vsel %vm740, %v2050, 0.0
    %2063 = vadd.xlane.f32.xlu0 %v2062
    %v2064 = vpop.xlane.xlu0 %2063
    %v2065 = vsel %vm740, %v2051, 0.0
    %2066 = vadd.xlane.f32.xlu0 %v2065
    %v2067 = vpop.xlane.xlu0 %2066
    %v2068 = vsel %vm740, %v2052, 0.0
    %2069 = vadd.xlane.f32.xlu0 %v2068
    %v2070 = vpop.xlane.xlu0 %2069
    %v2071 = vsel %vm740, %v2053, 0.0
    %2072 = vadd.xlane.f32.xlu0 %v2071
    %v2073 = vpop.xlane.xlu0 %2072
    %v2074 = vsel %vm740, %v2054, 0.0
    %2075 = vadd.xlane.f32.xlu0 %v2074
    %v2076 = vpop.xlane.xlu0 %2075
    %v2077 = vsel %vm740, %v2055, 0.0
    %2078 = vadd.xlane.f32.xlu0 %v2077
    %v2079 = vpop.xlane.xlu0 %2078
    %v2080 = vsel %vm740, %v2056, 0.0
    %2081 = vadd.xlane.f32.xlu0 %v2080
    %v2082 = vpop.xlane.xlu0 %2081
    %v2083 = vsel %vm740, %v2057, 0.0
    %2084 = vadd.xlane.f32.xlu0 %v2083
    %v2085 = vpop.xlane.xlu0 %2084
    %v2086 = vsel %vm740, %v2058, 0.0
    %2087 = vadd.xlane.f32.xlu0 %v2086
    %v2088 = vpop.xlane.xlu0 %2087
    %v2089 = vsel %vm740, %v2059, 0.0
    %2090 = vadd.xlane.f32.xlu0 %v2089
    %v2091 = vpop.xlane.xlu0 %2090
    %v2092 = vsel %vm740, %v2060, 0.0
    %2093 = vadd.xlane.f32.xlu0 %v2092
    %v2094 = vpop.xlane.xlu0 %2093
    %v2095 = vsel %vm740, %v2061, 0.0
    %2096 = vadd.xlane.f32.xlu0 %v2095
    %v2097 = vpop.xlane.xlu0 %2096
    %v2098 = vmul.f32 %v2064, %v1397
    %v2099 = vmul.f32 %v2067, %v1397
    %v2100 = vmul.f32 %v2070, %v1397
    %v2101 = vmul.f32 %v2073, %v1397
    %v2102 = vmul.f32 %v2076, %v1397
    %v2103 = vmul.f32 %v2079, %v1397
    %v2104 = vmul.f32 %v2082, %v1397
    %v2105 = vmul.f32 %v2085, %v1397
    %v2106 = vmul.f32 %v2088, %v1397
    %v2107 = vmul.f32 %v2091, %v1397
    %v2108 = vmul.f32 %v2094, %v1397
    %v2109 = vmul.f32 %v2097, %v1397
    %v2110 = vadd.f32 %v2098, 1e-05
    %v2111 = vadd.f32 %v2099, 1e-05
    %v2112 = vadd.f32 %v2100, 1e-05
    %v2113 = vadd.f32 %v2101, 1e-05
    %v2114 = vadd.f32 %v2102, 1e-05
    %v2115 = vadd.f32 %v2103, 1e-05
    %v2116 = vadd.f32 %v2104, 1e-05
    %v2117 = vadd.f32 %v2105, 1e-05
    %v2118 = vadd.f32 %v2106, 1e-05
    %v2119 = vadd.f32 %v2107, 1e-05
    %v2120 = vadd.f32 %v2108, 1e-05
    %v2121 = vadd.f32 %v2109, 1e-05
    %v2122 = vrsqrt.pop %v2110
    %v2123 = vmul.f32 %v2122, %v2110
    %v2124 = vmul.f32 %v2123, %v2122
    %v2125 = vmul.f32 0.5, %v2124
    %v2126 = vsub.f32 1.5, %v2125
    %v2127 = vmul.f32 %v2122, %v2126
    %vm2128 = vweird.f32 %v2110
    %vm2129 = vweird.f32 %v2122
    %vm2130 = vmor %vm2128, %vm2129
    %v2131 = vsel %vm2130, %v2122, %v2127
    %v2132 = vrsqrt.pop %v2111
    %v2133 = vmul.f32 %v2132, %v2111
    %v2134 = vmul.f32 %v2133, %v2132
    %v2135 = vmul.f32 0.5, %v2134
    %v2136 = vsub.f32 1.5, %v2135
    %v2137 = vmul.f32 %v2132, %v2136
    %vm2138 = vweird.f32 %v2111
    %vm2139 = vweird.f32 %v2132
    %vm2140 = vmor %vm2138, %vm2139
    %v2141 = vsel %vm2140, %v2132, %v2137
    %v2142 = vrsqrt.pop %v2112
    %v2143 = vmul.f32 %v2142, %v2112
    %v2144 = vmul.f32 %v2143, %v2142
    %v2145 = vmul.f32 0.5, %v2144
    %v2146 = vsub.f32 1.5, %v2145
    %v2147 = vmul.f32 %v2142, %v2146
    %vm2148 = vweird.f32 %v2112
    %vm2149 = vweird.f32 %v2142
    %vm2150 = vmor %vm2148, %vm2149
    %v2151 = vsel %vm2150, %v2142, %v2147
    %v2152 = vrsqrt.pop %v2113
    %v2153 = vmul.f32 %v2152, %v2113
    %v2154 = vmul.f32 %v2153, %v2152
    %v2155 = vmul.f32 0.5, %v2154
    %v2156 = vsub.f32 1.5, %v2155
    %v2157 = vmul.f32 %v2152, %v2156
    %vm2158 = vweird.f32 %v2113
    %vm2159 = vweird.f32 %v2152
    %vm2160 = vmor %vm2158, %vm2159
    %v2161 = vsel %vm2160, %v2152, %v2157
    %v2162 = vrsqrt.pop %v2114
    %v2163 = vmul.f32 %v2162, %v2114
    %v2164 = vmul.f32 %v2163, %v2162
    %v2165 = vmul.f32 0.5, %v2164
    %v2166 = vsub.f32 1.5, %v2165
    %v2167 = vmul.f32 %v2162, %v2166
    %vm2168 = vweird.f32 %v2114
    %vm2169 = vweird.f32 %v2162
    %vm2170 = vmor %vm2168, %vm2169
    %v2171 = vsel %vm2170, %v2162, %v2167
    %v2172 = vrsqrt.pop %v2115
    %v2173 = vmul.f32 %v2172, %v2115
    %v2174 = vmul.f32 %v2173, %v2172
    %v2175 = vmul.f32 0.5, %v2174
    %v2176 = vsub.f32 1.5, %v2175
    %v2177 = vmul.f32 %v2172, %v2176
    %vm2178 = vweird.f32 %v2115
    %vm2179 = vweird.f32 %v2172
    %vm2180 = vmor %vm2178, %vm2179
    %v2181 = vsel %vm2180, %v2172, %v2177
    %v2182 = vrsqrt.pop %v2116
    %v2183 = vmul.f32 %v2182, %v2116
    %v2184 = vmul.f32 %v2183, %v2182
    %v2185 = vmul.f32 0.5, %v2184
    %v2186 = vsub.f32 1.5, %v2185
    %v2187 = vmul.f32 %v2182, %v2186
    %vm2188 = vweird.f32 %v2116
    %vm2189 = vweird.f32 %v2182
    %vm2190 = vmor %vm2188, %vm2189
    %v2191 = vsel %vm2190, %v2182, %v2187
    %v2192 = vrsqrt.pop %v2117
    %v2193 = vmul.f32 %v2192, %v2117
    %v2194 = vmul.f32 %v2193, %v2192
    %v2195 = vmul.f32 0.5, %v2194
    %v2196 = vsub.f32 1.5, %v2195
    %v2197 = vmul.f32 %v2192, %v2196
    %vm2198 = vweird.f32 %v2117
    %vm2199 = vweird.f32 %v2192
    %vm2200 = vmor %vm2198, %vm2199
    %v2201 = vsel %vm2200, %v2192, %v2197
    %v2202 = vrsqrt.pop %v2118
    %v2203 = vmul.f32 %v2202, %v2118
    %v2204 = vmul.f32 %v2203, %v2202
    %v2205 = vmul.f32 0.5, %v2204
    %v2206 = vsub.f32 1.5, %v2205
    %v2207 = vmul.f32 %v2202, %v2206
    %vm2208 = vweird.f32 %v2118
    %vm2209 = vweird.f32 %v2202
    %vm2210 = vmor %vm2208, %vm2209
    %v2211 = vsel %vm2210, %v2202, %v2207
    %v2212 = vrsqrt.pop %v2119
    %v2213 = vmul.f32 %v2212, %v2119
    %v2214 = vmul.f32 %v2213, %v2212
    %v2215 = vmul.f32 0.5, %v2214
    %v2216 = vsub.f32 1.5, %v2215
    %v2217 = vmul.f32 %v2212, %v2216
    %vm2218 = vweird.f32 %v2119
    %vm2219 = vweird.f32 %v2212
    %vm2220 = vmor %vm2218, %vm2219
    %v2221 = vsel %vm2220, %v2212, %v2217
    %v2222 = vrsqrt.pop %v2120
    %v2223 = vmul.f32 %v2222, %v2120
    %v2224 = vmul.f32 %v2223, %v2222
    %v2225 = vmul.f32 0.5, %v2224
    %v2226 = vsub.f32 1.5, %v2225
    %v2227 = vmul.f32 %v2222, %v2226
    %vm2228 = vweird.f32 %v2120
    %vm2229 = vweird.f32 %v2222
    %vm2230 = vmor %vm2228, %vm2229
    %v2231 = vsel %vm2230, %v2222, %v2227
    %v2232 = vrsqrt.pop %v2121
    %v2233 = vmul.f32 %v2232, %v2121
    %v2234 = vmul.f32 %v2233, %v2232
    %v2235 = vmul.f32 0.5, %v2234
    %v2236 = vsub.f32 1.5, %v2235
    %v2237 = vmul.f32 %v2232, %v2236
    %vm2238 = vweird.f32 %v2121
    %vm2239 = vweird.f32 %v2232
    %vm2240 = vmor %vm2238, %vm2239
    %v2241 = vsel %vm2240, %v2232, %v2237
    %v2242 = vmul.f32 %v2038, %v2131
    %v2243 = vmul.f32 %v2039, %v2141
    %v2244 = vmul.f32 %v2040, %v2151
    %v2245 = vmul.f32 %v2041, %v2161
    %v2246 = vmul.f32 %v2042, %v2171
    %v2247 = vmul.f32 %v2043, %v2181
    %v2248 = vmul.f32 %v2044, %v2191
    %v2249 = vmul.f32 %v2045, %v2201
    %v2250 = vmul.f32 %v2046, %v2211
    %v2251 = vmul.f32 %v2047, %v2221
    %v2252 = vmul.f32 %v2048, %v2231
    %v2253 = vmul.f32 %v2049, %v2241
    %v2255 = vperm.slane %v1988, 0
    %v2257 = vmul.f32 %v2242, %v2255
    %v2258 = vmul.f32 %v2243, %v2255
    %v2259 = vmul.f32 %v2244, %v2255
    %v2260 = vmul.f32 %v2245, %v2255
    %v2261 = vmul.f32 %v2246, %v2255
    %v2262 = vmul.f32 %v2247, %v2255
    %v2263 = vmul.f32 %v2248, %v2255
    %v2264 = vmul.f32 %v2249, %v2255
    %v2265 = vmul.f32 %v2250, %v2255
    %v2266 = vmul.f32 %v2251, %v2255
    %v2267 = vmul.f32 %v2252, %v2255
    %v2268 = vmul.f32 %v2253, %v2255
    %v2270 = vperm.slane %v1989, 0
    %v2272 = vadd.f32 %v2257, %v2270
    %v2273 = vadd.f32 %v2258, %v2270
    %v2274 = vadd.f32 %v2259, %v2270
    %v2275 = vadd.f32 %v2260, %v2270
    %v2276 = vadd.f32 %v2261, %v2270
    %v2277 = vadd.f32 %v2262, %v2270
    %v2278 = vadd.f32 %v2263, %v2270
    %v2279 = vadd.f32 %v2264, %v2270
    %v2280 = vadd.f32 %v2265, %v2270
    %v2281 = vadd.f32 %v2266, %v2270
    %v2282 = vadd.f32 %v2267, %v2270
    %v2283 = vadd.f32 %v2268, %v2270
    %s2284 = scalar_lea.vmem [#allocation3], 48
    %v2285 = vld [vmem:[%s2284] sm:$0xf]
    %v2286 = vld [vmem:[%s2284 + $0x4] sm:$0xf]
    %v2287 = vld [vmem:[%s2284 + $0x8] sm:$0xf]
    %v2288 = vld [vmem:[%s2284 + $0xc] sm:$0xf]
    %v2289 = vld [vmem:[%s2284 + $0x10] sm:$0xf]
    %v2290 = vld [vmem:[%s2284 + $0x14] sm:$0xf]
    %v2291 = vld [vmem:[%s2284 + $0x18] sm:$0xf]
    %v2292 = vld [vmem:[%s2284 + $0x1c] sm:$0xf]
    %v2293 = vld [vmem:[%s2284 + $0x20] sm:$0xf]
    %v2294 = vld [vmem:[%s2284 + $0x24] sm:$0xf]
    %v2295 = vld [vmem:[%s2284 + $0x28] sm:$0xf]
    %v2296 = vld [vmem:[%s2284 + $0x2c] sm:$0xf]
    %s2297 = scalar_lea.vmem %s3, 64
    %v2298 = vld [vmem:[%s2297] sm:$0xf]
    %v2299 = vld [vmem:[%s2297 + $0x4] sm:$0xf]
    %v2300 = vld [vmem:[%s2297 + $0x8] sm:$0xf]
    %v2301 = vld [vmem:[%s2297 + $0xc] sm:$0xf]
    %v2302 = vld [vmem:[%s2297 + $0x10] sm:$0xf]
    %v2303 = vld [vmem:[%s2297 + $0x14] sm:$0xf]
    %v2304 = vld [vmem:[%s2297 + $0x18] sm:$0xf]
    %v2305 = vld [vmem:[%s2297 + $0x1c] sm:$0xf]
    %v2306 = vld [vmem:[%s2297 + $0x20] sm:$0xf]
    %v2307 = vld [vmem:[%s2297 + $0x24] sm:$0xf]
    %v2308 = vld [vmem:[%s2297 + $0x28] sm:$0xf]
    %v2309 = vld [vmem:[%s2297 + $0x2c] sm:$0xf]
    %v2310 = vld [vmem:[%s2297 + $0x30] sm:$0xf]
    %v2311 = vld [vmem:[%s2297 + $0x34] sm:$0xf]
    %v2312 = vld [vmem:[%s2297 + $0x38] sm:$0xf]
    %v2313 = vld [vmem:[%s2297 + $0x3c] sm:$0xf]
    %s2314 = scalar_lea.vmem %s4, 1
    %v2315 = vld [vmem:[%s2314] sm:$0x1]
    %v2317 = vperm.slane %v2315, 0
    %v2331 = vunpack.c.l.b16 %v2285
    %v2332 = vunpack.c.l.b16 %v2286
    %v2333 = vunpack.c.l.b16 %v2287
    %v2334 = vunpack.c.l.b16 %v2288
    %v2335 = vunpack.c.l.b16 %v2289
    %v2336 = vunpack.c.l.b16 %v2290
    %v2337 = vunpack.c.l.b16 %v2291
    %v2338 = vunpack.c.l.b16 %v2292
    %v2339 = vunpack.c.l.b16 %v2293
    %v2340 = vunpack.c.l.b16 %v2294
    %v2341 = vunpack.c.l.b16 %v2295
    %v2342 = vunpack.c.l.b16 %v2296
    %v2343 = vpack.c.b16 %v2332, %v2331
    %v2344 = vpack.c.b16 %v2334, %v2333
    %v2345 = vpack.c.b16 %v2336, %v2335
    %v2346 = vpack.c.b16 %v2338, %v2337
    %v2347 = vpack.c.b16 %v2340, %v2339
    %v2348 = vpack.c.b16 %v2342, %v2341
    %v2371 = vunpack.c.l.b16 %v2298
    %v2372 = vunpack.c.l.b16 %v2299
    %v2373 = vunpack.c.l.b16 %v2300
    %v2374 = vunpack.c.l.b16 %v2301
    %v2375 = vunpack.c.l.b16 %v2302
    %v2376 = vunpack.c.l.b16 %v2303
    %v2377 = vunpack.c.l.b16 %v2304
    %v2378 = vunpack.c.l.b16 %v2305
    %v2379 = vunpack.c.l.b16 %v2306
    %v2380 = vunpack.c.l.b16 %v2307
    %v2381 = vunpack.c.l.b16 %v2308
    %v2382 = vunpack.c.l.b16 %v2309
    %v2383 = vunpack.c.l.b16 %v2310
    %v2384 = vunpack.c.l.b16 %v2311
    %v2385 = vunpack.c.l.b16 %v2312
    %v2386 = vunpack.c.l.b16 %v2313
    %v2387 = vpack.c.b16 %v2372, %v2371
    %v2388 = vpack.c.b16 %v2374, %v2373
    %v2389 = vpack.c.b16 %v2376, %v2375
    %v2390 = vpack.c.b16 %v2378, %v2377
    %v2391 = vpack.c.b16 %v2380, %v2379
    %v2392 = vpack.c.b16 %v2382, %v2381
    %v2393 = vpack.c.b16 %v2384, %v2383
    %v2394 = vpack.c.b16 %v2386, %v2385
    %2403 = vmatpush.bf16.msra.mxu0 %v2394
    %2404 = vmatpush.bf16.msra.mxu0 %v2393
    %2405 = vmatpush.bf16.msra.mxu0 %v2392
    %2406 = vmatpush.bf16.msra.mxu0 %v2391
    %2407 = vmatpush.bf16.msra.mxu0 %v2390
    %2408 = vmatpush.bf16.msra.mxu0 %v2389
    %2409 = vmatpush.bf16.msra.mxu0 %v2388
    %2410 = vmatpush.bf16.msra.mxu0 %v2387
    %2411 = vmatmul.bf16.gmra.mxu0 %v2343
    %v2412 = vpop.f32.mrf.mxu0
    %v2413 = vadd.f32 %v2317, %v2412
    %v2414 = vpop.f32.mrf.mxu0
    %v2415 = vadd.f32 %v2317, %v2414
    %2416 = vmatmul.bf16.gmra.mxu0 %v2344
    %v2417 = vpop.f32.mrf.mxu0
    %v2418 = vadd.f32 %v2317, %v2417
    %v2419 = vpop.f32.mrf.mxu0
    %v2420 = vadd.f32 %v2317, %v2419
    %2421 = vmatmul.bf16.gmra.mxu0 %v2345
    %v2422 = vpop.f32.mrf.mxu0
    %v2423 = vadd.f32 %v2317, %v2422
    %v2424 = vpop.f32.mrf.mxu0
    %v2425 = vadd.f32 %v2317, %v2424
    %2426 = vmatmul.bf16.gmra.mxu0 %v2346
    %v2427 = vpop.f32.mrf.mxu0
    %v2428 = vadd.f32 %v2317, %v2427
    %v2429 = vpop.f32.mrf.mxu0
    %v2430 = vadd.f32 %v2317, %v2429
    %2431 = vmatmul.bf16.gmra.mxu0 %v2347
    %v2432 = vpop.f32.mrf.mxu0
    %v2433 = vadd.f32 %v2317, %v2432
    %v2434 = vpop.f32.mrf.mxu0
    %v2435 = vadd.f32 %v2317, %v2434
    %2436 = vmatmul.bf16.gmra.mxu0 %v2348
    %v2437 = vpop.f32.mrf.mxu0
    %v2438 = vadd.f32 %v2317, %v2437
    %v2439 = vpop.f32.mrf.mxu0
    %v2440 = vadd.f32 %v2317, %v2439
    %2441 = vdwg.mxu0
    %v2442 = vadd.f32 %v2272, %v2413
    %v2443 = vadd.f32 %v2273, %v2415
    %v2444 = vadd.f32 %v2274, %v2418
    %v2445 = vadd.f32 %v2275, %v2420
    %v2446 = vadd.f32 %v2276, %v2423
    %v2447 = vadd.f32 %v2277, %v2425
    %v2448 = vadd.f32 %v2278, %v2428
    %v2449 = vadd.f32 %v2279, %v2430
    %v2450 = vadd.f32 %v2280, %v2433
    %v2451 = vadd.f32 %v2281, %v2435
    %v2452 = vadd.f32 %v2282, %v2438
    %v2453 = vadd.f32 %v2283, %v2440
    %v2454 = vmul.f32 %v2442, %v357
    %v2455 = vmul.f32 %v2443, %v359
    %v2456 = vmul.f32 %v2444, %v362
    %v2457 = vmul.f32 %v2445, %v364
    %v2458 = vmul.f32 %v2446, %v367
    %v2459 = vmul.f32 %v2447, %v369
    %v2460 = vmul.f32 %v2448, %v372
    %v2461 = vmul.f32 %v2449, %v374
    %v2462 = vmul.f32 %v2450, %v377
    %v2463 = vmul.f32 %v2451, %v379
    %v2464 = vmul.f32 %v2452, %v382
    %v2465 = vmul.f32 %v2453, %v384
    %v2466 = vadd.f32 %v2454, %v464
    %v2467 = vadd.f32 %v2455, %v466
    %v2468 = vadd.f32 %v2456, %v469
    %v2469 = vadd.f32 %v2457, %v471
    %v2470 = vadd.f32 %v2458, %v474
    %v2471 = vadd.f32 %v2459, %v476
    %v2472 = vadd.f32 %v2460, %v479
    %v2473 = vadd.f32 %v2461, %v481
    %v2474 = vadd.f32 %v2462, %v484
    %v2475 = vadd.f32 %v2463, %v486
    %v2476 = vadd.f32 %v2464, %v489
    %v2477 = vadd.f32 %v2465, %v491
    %s2478 = scalar_lea.vmem %s9, 64
    %v2479 = vld [vmem:[%s2478] sm:$0xff]
    %v2480 = vld [vmem:[%s2478 + $0x8] sm:$0xff]
    %v2481 = vld [vmem:[%s2478 + $0x10] sm:$0xff]
    %v2482 = vld [vmem:[%s2478 + $0x18] sm:$0xff]
    %v2483 = vld [vmem:[%s2478 + $0x20] sm:$0xff]
    %v2484 = vld [vmem:[%s2478 + $0x28] sm:$0xff]
    %v2485 = vld [vmem:[%s2478 + $0x30] sm:$0xff]
    %v2486 = vld [vmem:[%s2478 + $0x38] sm:$0xff]
    %v2487 = vpack.c.bf16 %v2467, %v2466
    %v2488 = vpack.c.bf16 %v2469, %v2468
    %v2489 = vpack.c.bf16 %v2471, %v2470
    %v2490 = vpack.c.bf16 %v2473, %v2472
    %v2491 = vpack.c.bf16 %v2475, %v2474
    %v2492 = vpack.c.bf16 %v2477, %v2476
    %s2493 = scalar_lea.vmem %s10, 2
    %v2494 = vld [vmem:[%s2493] sm:$0x3]
    %v2496 = vperm.slane %v2494, 0
    %v2497 = vperm.slane %v2494, 1
    %v2508 = vunpack.c.l.b16 %v2479
    %v2509 = vunpack.c.h.b16 %v2479
    %v2510 = vunpack.c.l.b16 %v2480
    %v2511 = vunpack.c.h.b16 %v2480
    %v2512 = vunpack.c.l.b16 %v2481
    %v2513 = vunpack.c.h.b16 %v2481
    %v2514 = vunpack.c.l.b16 %v2482
    %v2515 = vunpack.c.h.b16 %v2482
    %v2516 = vunpack.c.l.b16 %v2483
    %v2517 = vunpack.c.h.b16 %v2483
    %v2518 = vunpack.c.l.b16 %v2484
    %v2519 = vunpack.c.h.b16 %v2484
    %v2520 = vunpack.c.l.b16 %v2485
    %v2521 = vunpack.c.h.b16 %v2485
    %v2522 = vunpack.c.l.b16 %v2486
    %v2523 = vunpack.c.h.b16 %v2486
    %v2524 = vpack.c.b16 %v2510, %v2508
    %v2525 = vpack.c.b16 %v2511, %v2509
    %v2526 = vpack.c.b16 %v2514, %v2512
    %v2527 = vpack.c.b16 %v2515, %v2513
    %v2528 = vpack.c.b16 %v2518, %v2516
    %v2529 = vpack.c.b16 %v2519, %v2517
    %v2530 = vpack.c.b16 %v2522, %v2520
    %v2531 = vpack.c.b16 %v2523, %v2521
    %v2541 = vsel %vm740, %v2487, 0
    %v2544 = vsel %vm740, %v2488, 0
    %v2547 = vsel %vm740, %v2489, 0
    %v2550 = vsel %vm740, %v2490, 0
    %v2553 = vsel %vm740, %v2491, 0
    %v2556 = vsel %vm740, %v2492, 0
    %2558 = vmatpush.bf16.msra.mxu0 0
    %2559 = vmatpush.bf16.msra.mxu0 0
    %2560 = vmatpush.bf16.msra.mxu0 0
    %2561 = vmatpush.bf16.msra.mxu0 0
    %2562 = vmatpush.bf16.msra.mxu0 %v2530
    %2563 = vmatpush.bf16.msra.mxu0 %v2528
    %2564 = vmatpush.bf16.msra.mxu0 %v2526
    %2565 = vmatpush.bf16.msra.mxu0 %v2524
    %2566 = vmatmul.bf16.gmra.mxu0 %v2541
    %v2567 = vpop.f32.mrf.mxu0
    %v2568 = vadd.f32 %v2496, %v2567
    %v2569 = vpop.f32.mrf.mxu0
    %v2570 = vadd.f32 %v2496, %v2569
    %2571 = vmatmul.bf16.gmra.mxu0 %v2544
    %v2572 = vpop.f32.mrf.mxu0
    %v2573 = vadd.f32 %v2496, %v2572
    %v2574 = vpop.f32.mrf.mxu0
    %v2575 = vadd.f32 %v2496, %v2574
    %2576 = vmatmul.bf16.gmra.mxu0 %v2547
    %v2577 = vpop.f32.mrf.mxu0
    %v2578 = vadd.f32 %v2496, %v2577
    %v2579 = vpop.f32.mrf.mxu0
    %v2580 = vadd.f32 %v2496, %v2579
    %2581 = vmatmul.bf16.gmra.mxu0 %v2550
    %v2582 = vpop.f32.mrf.mxu0
    %v2583 = vadd.f32 %v2496, %v2582
    %v2584 = vpop.f32.mrf.mxu0
    %v2585 = vadd.f32 %v2496, %v2584
    %2586 = vmatmul.bf16.gmra.mxu0 %v2553
    %v2587 = vpop.f32.mrf.mxu0
    %v2588 = vadd.f32 %v2496, %v2587
    %v2589 = vpop.f32.mrf.mxu0
    %v2590 = vadd.f32 %v2496, %v2589
    %2591 = vmatmul.bf16.gmra.mxu0 %v2556
    %v2592 = vpop.f32.mrf.mxu0
    %v2593 = vadd.f32 %v2496, %v2592
    %v2594 = vpop.f32.mrf.mxu0
    %v2595 = vadd.f32 %v2496, %v2594
    %2596 = vdwg.mxu0
    %2597 = vmatpush.bf16.msra.mxu0 0
    %2598 = vmatpush.bf16.msra.mxu0 0
    %2599 = vmatpush.bf16.msra.mxu0 0
    %2600 = vmatpush.bf16.msra.mxu0 0
    %2601 = vmatpush.bf16.msra.mxu0 %v2531
    %2602 = vmatpush.bf16.msra.mxu0 %v2529
    %2603 = vmatpush.bf16.msra.mxu0 %v2527
    %2604 = vmatpush.bf16.msra.mxu0 %v2525
    %2605 = vmatmul.bf16.gmra.mxu0 %v2541
    %v2606 = vpop.f32.mrf.mxu0
    %v2607 = vadd.f32 %v2497, %v2606
    %v2608 = vpop.f32.mrf.mxu0
    %v2609 = vadd.f32 %v2497, %v2608
    %2610 = vmatmul.bf16.gmra.mxu0 %v2544
    %v2611 = vpop.f32.mrf.mxu0
    %v2612 = vadd.f32 %v2497, %v2611
    %v2613 = vpop.f32.mrf.mxu0
    %v2614 = vadd.f32 %v2497, %v2613
    %2615 = vmatmul.bf16.gmra.mxu0 %v2547
    %v2616 = vpop.f32.mrf.mxu0
    %v2617 = vadd.f32 %v2497, %v2616
    %v2618 = vpop.f32.mrf.mxu0
    %v2619 = vadd.f32 %v2497, %v2618
    %2620 = vmatmul.bf16.gmra.mxu0 %v2550
    %v2621 = vpop.f32.mrf.mxu0
    %v2622 = vadd.f32 %v2497, %v2621
    %v2623 = vpop.f32.mrf.mxu0
    %v2624 = vadd.f32 %v2497, %v2623
    %2625 = vmatmul.bf16.gmra.mxu0 %v2553
    %v2626 = vpop.f32.mrf.mxu0
    %v2627 = vadd.f32 %v2497, %v2626
    %v2628 = vpop.f32.mrf.mxu0
    %v2629 = vadd.f32 %v2497, %v2628
    %2630 = vmatmul.bf16.gmra.mxu0 %v2556
    %v2631 = vpop.f32.mrf.mxu0
    %v2632 = vadd.f32 %v2497, %v2631
    %v2633 = vpop.f32.mrf.mxu0
    %v2634 = vadd.f32 %v2497, %v2633
    %2635 = vdwg.mxu0
    %2639 = vrot.lane.b32.xlu0 %v2568, 64
    %v2640 = vpop.permute.xlu0 %2639
    %2641 = vrot.lane.b32.xlu0 %v2570, 64
    %v2642 = vpop.permute.xlu0 %2641
    %2643 = vrot.lane.b32.xlu0 %v2573, 64
    %v2644 = vpop.permute.xlu0 %2643
    %v2648 = vmul.f32 %v2568, %v2640
    %v2649 = vmul.f32 %v2570, %v2642
    %v2650 = vmul.f32 %v2573, %v2644
    %2654 = vrot.lane.b32.xlu0 %v2575, 64
    %v2655 = vpop.permute.xlu0 %2654
    %2656 = vrot.lane.b32.xlu0 %v2578, 64
    %v2657 = vpop.permute.xlu0 %2656
    %2658 = vrot.lane.b32.xlu0 %v2580, 64
    %v2659 = vpop.permute.xlu0 %2658
    %v2663 = vmul.f32 %v2568, %v2655
    %v2664 = vmul.f32 %v2570, %v2657
    %v2665 = vmul.f32 %v2573, %v2659
    %v2666 = vmul.f32 %v2575, %v2640
    %v2667 = vmul.f32 %v2578, %v2642
    %v2668 = vmul.f32 %v2580, %v2644
    %v2669 = vmul.f32 %v2575, %v2655
    %v2670 = vmul.f32 %v2578, %v2657
    %v2671 = vmul.f32 %v2580, %v2659
    %2675 = vrot.lane.b32.xlu0 %v2583, 64
    %v2676 = vpop.permute.xlu0 %2675
    %2677 = vrot.lane.b32.xlu0 %v2585, 64
    %v2678 = vpop.permute.xlu0 %2677
    %2679 = vrot.lane.b32.xlu0 %v2588, 64
    %v2680 = vpop.permute.xlu0 %2679
    %v2684 = vmul.f32 %v2583, %v2676
    %v2685 = vmul.f32 %v2585, %v2678
    %v2686 = vmul.f32 %v2588, %v2680
    %2690 = vrot.lane.b32.xlu0 %v2590, 64
    %v2691 = vpop.permute.xlu0 %2690
    %2692 = vrot.lane.b32.xlu0 %v2593, 64
    %v2693 = vpop.permute.xlu0 %2692
    %2694 = vrot.lane.b32.xlu0 %v2595, 64
    %v2695 = vpop.permute.xlu0 %2694
    %v2699 = vmul.f32 %v2583, %v2691
    %v2700 = vmul.f32 %v2585, %v2693
    %v2701 = vmul.f32 %v2588, %v2695
    %v2702 = vmul.f32 %v2590, %v2676
    %v2703 = vmul.f32 %v2593, %v2678
    %v2704 = vmul.f32 %v2595, %v2680
    %v2705 = vmul.f32 %v2590, %v2691
    %v2706 = vmul.f32 %v2593, %v2693
    %v2707 = vmul.f32 %v2595, %v2695
    %v2708 = vpack.c.bf16 %v2649, %v2648
    %v2709 = vpack.c.bf16 %v2663, %v2650
    %v2710 = vpack.c.bf16 %v2665, %v2664
    %v2711 = vpack.c.bf16 %v2667, %v2666
    %v2712 = vpack.c.bf16 %v2669, %v2668
    %v2713 = vpack.c.bf16 %v2671, %v2670
    %v2714 = vpack.c.bf16 %v2685, %v2684
    %v2715 = vpack.c.bf16 %v2699, %v2686
    %v2716 = vpack.c.bf16 %v2701, %v2700
    %v2717 = vpack.c.bf16 %v2703, %v2702
    %v2718 = vpack.c.bf16 %v2705, %v2704
    %v2719 = vpack.c.bf16 %v2707, %v2706
    %v2721 = vsel %vm740, %v2708, 0
    %v2724 = vsel %vm740, %v2709, 0
    %v2727 = vsel %vm740, %v2710, 0
    %v2730 = vsel %vm740, %v2711, 0
    %v2733 = vsel %vm740, %v2712, 0
    %v2736 = vsel %vm740, %v2713, 0
    %v2739 = vsel %vm740, %v2714, 0
    %v2742 = vsel %vm740, %v2715, 0
    %v2745 = vsel %vm740, %v2716, 0
    %v2748 = vsel %vm740, %v2717, 0
    %v2751 = vsel %vm740, %v2718, 0
    %v2754 = vsel %vm740, %v2719, 0
    %2756 = vmatpush.bf16.msra.mxu0 0
    %2757 = vmatpush.bf16.msra.mxu0 0
    %2758 = vmatpush.bf16.msra.mxu0 0
    %2759 = vmatpush.bf16.msra.mxu0 0
    %2760 = vmatpush.bf16.msra.mxu0 %v940
    %2761 = vmatpush.bf16.msra.mxu0 %v939
    %2762 = vmatpush.bf16.msra.mxu0 %v938
    %2763 = vmatpush.bf16.msra.mxu0 %v937
    %2764 = vmatmul.bf16.gmra.mxu0 %v2721
    %v2765 = vpop.f32.mrf.mxu0
    %v2766 = vadd.f32 0.0, %v2765
    %v2767 = vpop.f32.mrf.mxu0
    %v2768 = vadd.f32 0.0, %v2767
    %2769 = vmatmul.bf16.gmra.mxu0 %v2724
    %v2770 = vpop.f32.mrf.mxu0
    %v2771 = vadd.f32 0.0, %v2770
    %v2772 = vpop.f32.mrf.mxu0
    %v2773 = vadd.f32 0.0, %v2772
    %2774 = vmatmul.bf16.gmra.mxu0 %v2727
    %v2775 = vpop.f32.mrf.mxu0
    %v2776 = vadd.f32 0.0, %v2775
    %v2777 = vpop.f32.mrf.mxu0
    %v2778 = vadd.f32 0.0, %v2777
    %2779 = vmatmul.bf16.gmra.mxu0 %v2730
    %v2780 = vpop.f32.mrf.mxu0
    %v2781 = vadd.f32 0.0, %v2780
    %v2782 = vpop.f32.mrf.mxu0
    %v2783 = vadd.f32 0.0, %v2782
    %2784 = vmatmul.bf16.gmra.mxu0 %v2733
    %v2785 = vpop.f32.mrf.mxu0
    %v2786 = vadd.f32 0.0, %v2785
    %v2787 = vpop.f32.mrf.mxu0
    %v2788 = vadd.f32 0.0, %v2787
    %2789 = vmatmul.bf16.gmra.mxu0 %v2736
    %v2790 = vpop.f32.mrf.mxu0
    %v2791 = vadd.f32 0.0, %v2790
    %v2792 = vpop.f32.mrf.mxu0
    %v2793 = vadd.f32 0.0, %v2792
    %2794 = vmatmul.bf16.gmra.mxu0 %v2739
    %v2795 = vpop.f32.mrf.mxu0
    %v2796 = vadd.f32 0.0, %v2795
    %v2797 = vpop.f32.mrf.mxu0
    %v2798 = vadd.f32 0.0, %v2797
    %2799 = vmatmul.bf16.gmra.mxu0 %v2742
    %v2800 = vpop.f32.mrf.mxu0
    %v2801 = vadd.f32 0.0, %v2800
    %v2802 = vpop.f32.mrf.mxu0
    %v2803 = vadd.f32 0.0, %v2802
    %2804 = vmatmul.bf16.gmra.mxu0 %v2745
    %v2805 = vpop.f32.mrf.mxu0
    %v2806 = vadd.f32 0.0, %v2805
    %v2807 = vpop.f32.mrf.mxu0
    %v2808 = vadd.f32 0.0, %v2807
    %2809 = vmatmul.bf16.gmra.mxu0 %v2748
    %v2810 = vpop.f32.mrf.mxu0
    %v2811 = vadd.f32 0.0, %v2810
    %v2812 = vpop.f32.mrf.mxu0
    %v2813 = vadd.f32 0.0, %v2812
    %2814 = vmatmul.bf16.gmra.mxu0 %v2751
    %v2815 = vpop.f32.mrf.mxu0
    %v2816 = vadd.f32 0.0, %v2815
    %v2817 = vpop.f32.mrf.mxu0
    %v2818 = vadd.f32 0.0, %v2817
    %2819 = vmatmul.bf16.gmra.mxu0 %v2754
    %v2820 = vpop.f32.mrf.mxu0
    %v2821 = vadd.f32 0.0, %v2820
    %v2822 = vpop.f32.mrf.mxu0
    %v2823 = vadd.f32 0.0, %v2822
    %2824 = vdwg.mxu0
    %v2825 = vmul.f32 %v2766, 0.25
    %v2826 = vmul.f32 %v2768, 0.25
    %v2827 = vmul.f32 %v2771, 0.25
    %v2828 = vmul.f32 %v2773, 0.25
    %v2829 = vmul.f32 %v2776, 0.25
    %v2830 = vmul.f32 %v2778, 0.25
    %v2831 = vmul.f32 %v2781, 0.25
    %v2832 = vmul.f32 %v2783, 0.25
    %v2833 = vmul.f32 %v2786, 0.25
    %v2834 = vmul.f32 %v2788, 0.25
    %v2835 = vmul.f32 %v2791, 0.25
    %v2836 = vmul.f32 %v2793, 0.25
    %v2837 = vmul.f32 %v2796, 0.25
    %v2838 = vmul.f32 %v2798, 0.25
    %v2839 = vmul.f32 %v2801, 0.25
    %v2840 = vmul.f32 %v2803, 0.25
    %v2841 = vmul.f32 %v2806, 0.25
    %v2842 = vmul.f32 %v2808, 0.25
    %v2843 = vmul.f32 %v2811, 0.25
    %v2844 = vmul.f32 %v2813, 0.25
    %v2845 = vmul.f32 %v2816, 0.25
    %v2846 = vmul.f32 %v2818, 0.25
    %v2847 = vmul.f32 %v2821, 0.25
    %v2848 = vmul.f32 %v2823, 0.25
    %v2849 = vmax.f32 %v2825, %v2828
    %v2850 = vmax.f32 %v2826, %v2829
    %v2851 = vmax.f32 %v2827, %v2830
    %v2852 = vsub.f32 %v2825, %v2849
    %v2853 = vsub.f32 %v2826, %v2850
    %v2854 = vsub.f32 %v2827, %v2851
    %v2855 = vmul.f32 %v2852, 1.442695
    %v2856 = vpow.pop %v2855
    %v2857 = vmul.f32 %v2853, 1.442695
    %v2858 = vpow.pop %v2857
    %v2859 = vmul.f32 %v2854, 1.442695
    %v2860 = vpow.pop %v2859
    %v2861 = vsub.f32 %v2828, %v2849
    %v2862 = vsub.f32 %v2829, %v2850
    %v2863 = vsub.f32 %v2830, %v2851
    %v2864 = vmul.f32 %v2861, 1.442695
    %v2865 = vpow.pop %v2864
    %v2866 = vmul.f32 %v2862, 1.442695
    %v2867 = vpow.pop %v2866
    %v2868 = vmul.f32 %v2863, 1.442695
    %v2869 = vpow.pop %v2868
    %v2870 = vadd.f32 %v2856, %v2865
    %v2871 = vadd.f32 %v2858, %v2867
    %v2872 = vadd.f32 %v2860, %v2869
    %v2873 = vrcp.pop %v2870
    %v2874 = vrcp.pop %v2871
    %v2875 = vrcp.pop %v2872
    %v2876 = vmul.f32 %v2856, %v2873
    %v2877 = vmul.f32 %v2858, %v2874
    %v2878 = vmul.f32 %v2860, %v2875
    %v2879 = vmul.f32 %v2876, %v2607
    %v2880 = vmul.f32 %v2877, %v2609
    %v2881 = vmul.f32 %v2878, %v2612
    %v2882 = vmul.f32 %v2865, %v2873
    %v2883 = vmul.f32 %v2867, %v2874
    %v2884 = vmul.f32 %v2869, %v2875
    %v2885 = vmul.f32 %v2882, %v2614
    %v2886 = vmul.f32 %v2883, %v2617
    %v2887 = vmul.f32 %v2884, %v2619
    %v2888 = vadd.f32 %v2879, %v2885
    %v2889 = vadd.f32 %v2880, %v2886
    %v2890 = vadd.f32 %v2881, %v2887
    %v2891 = vmax.f32 %v2831, %v2834
    %v2892 = vmax.f32 %v2832, %v2835
    %v2893 = vmax.f32 %v2833, %v2836
    %v2894 = vsub.f32 %v2831, %v2891
    %v2895 = vsub.f32 %v2832, %v2892
    %v2896 = vsub.f32 %v2833, %v2893
    %v2897 = vmul.f32 %v2894, 1.442695
    %v2898 = vpow.pop %v2897
    %v2899 = vmul.f32 %v2895, 1.442695
    %v2900 = vpow.pop %v2899
    %v2901 = vmul.f32 %v2896, 1.442695
    %v2902 = vpow.pop %v2901
    %v2903 = vsub.f32 %v2834, %v2891
    %v2904 = vsub.f32 %v2835, %v2892
    %v2905 = vsub.f32 %v2836, %v2893
    %v2906 = vmul.f32 %v2903, 1.442695
    %v2907 = vpow.pop %v2906
    %v2908 = vmul.f32 %v2904, 1.442695
    %v2909 = vpow.pop %v2908
    %v2910 = vmul.f32 %v2905, 1.442695
    %v2911 = vpow.pop %v2910
    %v2912 = vadd.f32 %v2898, %v2907
    %v2913 = vadd.f32 %v2900, %v2909
    %v2914 = vadd.f32 %v2902, %v2911
    %v2915 = vrcp.pop %v2912
    %v2916 = vrcp.pop %v2913
    %v2917 = vrcp.pop %v2914
    %v2918 = vmul.f32 %v2898, %v2915
    %v2919 = vmul.f32 %v2900, %v2916
    %v2920 = vmul.f32 %v2902, %v2917
    %v2921 = vmul.f32 %v2918, %v2607
    %v2922 = vmul.f32 %v2919, %v2609
    %v2923 = vmul.f32 %v2920, %v2612
    %v2924 = vmul.f32 %v2907, %v2915
    %v2925 = vmul.f32 %v2909, %v2916
    %v2926 = vmul.f32 %v2911, %v2917
    %v2927 = vmul.f32 %v2924, %v2614
    %v2928 = vmul.f32 %v2925, %v2617
    %v2929 = vmul.f32 %v2926, %v2619
    %v2930 = vadd.f32 %v2921, %v2927
    %v2931 = vadd.f32 %v2922, %v2928
    %v2932 = vadd.f32 %v2923, %v2929
    %v2933 = vmax.f32 %v2837, %v2840
    %v2934 = vmax.f32 %v2838, %v2841
    %v2935 = vmax.f32 %v2839, %v2842
    %v2936 = vsub.f32 %v2837, %v2933
    %v2937 = vsub.f32 %v2838, %v2934
    %v2938 = vsub.f32 %v2839, %v2935
    %v2939 = vmul.f32 %v2936, 1.442695
    %v2940 = vpow.pop %v2939
    %v2941 = vmul.f32 %v2937, 1.442695
    %v2942 = vpow.pop %v2941
    %v2943 = vmul.f32 %v2938, 1.442695
    %v2944 = vpow.pop %v2943
    %v2945 = vsub.f32 %v2840, %v2933
    %v2946 = vsub.f32 %v2841, %v2934
    %v2947 = vsub.f32 %v2842, %v2935
    %v2948 = vmul.f32 %v2945, 1.442695
    %v2949 = vpow.pop %v2948
    %v2950 = vmul.f32 %v2946, 1.442695
    %v2951 = vpow.pop %v2950
    %v2952 = vmul.f32 %v2947, 1.442695
    %v2953 = vpow.pop %v2952
    %v2954 = vadd.f32 %v2940, %v2949
    %v2955 = vadd.f32 %v2942, %v2951
    %v2956 = vadd.f32 %v2944, %v2953
    %v2957 = vrcp.pop %v2954
    %v2958 = vrcp.pop %v2955
    %v2959 = vrcp.pop %v2956
    %v2960 = vmul.f32 %v2940, %v2957
    %v2961 = vmul.f32 %v2942, %v2958
    %v2962 = vmul.f32 %v2944, %v2959
    %v2963 = vmul.f32 %v2960, %v2622
    %v2964 = vmul.f32 %v2961, %v2624
    %v2965 = vmul.f32 %v2962, %v2627
    %v2966 = vmul.f32 %v2949, %v2957
    %v2967 = vmul.f32 %v2951, %v2958
    %v2968 = vmul.f32 %v2953, %v2959
    %v2969 = vmul.f32 %v2966, %v2629
    %v2970 = vmul.f32 %v2967, %v2632
    %v2971 = vmul.f32 %v2968, %v2634
    %v2972 = vadd.f32 %v2963, %v2969
    %v2973 = vadd.f32 %v2964, %v2970
    %v2974 = vadd.f32 %v2965, %v2971
    %v2975 = vmax.f32 %v2843, %v2846
    %v2976 = vmax.f32 %v2844, %v2847
    %v2977 = vmax.f32 %v2845, %v2848
    %v2978 = vsub.f32 %v2843, %v2975
    %v2979 = vsub.f32 %v2844, %v2976
    %v2980 = vsub.f32 %v2845, %v2977
    %v2981 = vmul.f32 %v2978, 1.442695
    %v2982 = vpow.pop %v2981
    %v2983 = vmul.f32 %v2979, 1.442695
    %v2984 = vpow.pop %v2983
    %v2985 = vmul.f32 %v2980, 1.442695
    %v2986 = vpow.pop %v2985
    %v2987 = vsub.f32 %v2846, %v2975
    %v2988 = vsub.f32 %v2847, %v2976
    %v2989 = vsub.f32 %v2848, %v2977
    %v2990 = vmul.f32 %v2987, 1.442695
    %v2991 = vpow.pop %v2990
    %v2992 = vmul.f32 %v2988, 1.442695
    %v2993 = vpow.pop %v2992
    %v2994 = vmul.f32 %v2989, 1.442695
    %v2995 = vpow.pop %v2994
    %v2996 = vadd.f32 %v2982, %v2991
    %v2997 = vadd.f32 %v2984, %v2993
    %v2998 = vadd.f32 %v2986, %v2995
    %v2999 = vrcp.pop %v2996
    %v3000 = vrcp.pop %v2997
    %v3001 = vrcp.pop %v2998
    %v3002 = vmul.f32 %v2982, %v2999
    %v3003 = vmul.f32 %v2984, %v3000
    %v3004 = vmul.f32 %v2986, %v3001
    %v3005 = vmul.f32 %v3002, %v2622
    %v3006 = vmul.f32 %v3003, %v2624
    %v3007 = vmul.f32 %v3004, %v2627
    %v3008 = vmul.f32 %v2991, %v2999
    %v3009 = vmul.f32 %v2993, %v3000
    %v3010 = vmul.f32 %v2995, %v3001
    %v3011 = vmul.f32 %v3008, %v2629
    %v3012 = vmul.f32 %v3009, %v2632
    %v3013 = vmul.f32 %v3010, %v2634
    %v3014 = vadd.f32 %v3005, %v3011
    %v3015 = vadd.f32 %v3006, %v3012
    %v3016 = vadd.f32 %v3007, %v3013
    %s3017 = scalar_lea.vmem [#allocation8], 32
    %v3018 = vld [vmem:[%s3017] sm:$0xf]
    %v3019 = vld [vmem:[%s3017 + $0x4] sm:$0xf]
    %v3020 = vld [vmem:[%s3017 + $0x8] sm:$0xf]
    %v3021 = vld [vmem:[%s3017 + $0xc] sm:$0xf]
    %v3022 = vld [vmem:[%s3017 + $0x10] sm:$0xf]
    %v3023 = vld [vmem:[%s3017 + $0x14] sm:$0xf]
    %v3024 = vld [vmem:[%s3017 + $0x18] sm:$0xf]
    %v3025 = vld [vmem:[%s3017 + $0x1c] sm:$0xf]
    %v3026 = vpack.c.bf16 %v2889, %v2888
    %v3027 = vpack.c.bf16 %v2930, %v2890
    %v3028 = vpack.c.bf16 %v2932, %v2931
    %v3029 = vpack.c.bf16 %v2973, %v2972
    %v3030 = vpack.c.bf16 %v3014, %v2974
    %v3031 = vpack.c.bf16 %v3016, %v3015
    %s3032 = scalar_lea.vmem %s12, 1
    %v3033 = vld [vmem:[%s3032] sm:$0x1]
    %v3035 = vperm.slane %v3033, 0
    %v3045 = vunpack.c.l.b16 %v3018
    %v3046 = vunpack.c.l.b16 %v3019
    %v3047 = vunpack.c.l.b16 %v3020
    %v3048 = vunpack.c.l.b16 %v3021
    %v3049 = vunpack.c.l.b16 %v3022
    %v3050 = vunpack.c.l.b16 %v3023
    %v3051 = vunpack.c.l.b16 %v3024
    %v3052 = vunpack.c.l.b16 %v3025
    %v3053 = vpack.c.b16 %v3046, %v3045
    %v3054 = vpack.c.b16 %v3048, %v3047
    %v3055 = vpack.c.b16 %v3050, %v3049
    %v3056 = vpack.c.b16 %v3052, %v3051
    %v3062 = vsel %vm740, %v3026, 0
    %v3065 = vsel %vm740, %v3027, 0
    %v3068 = vsel %vm740, %v3028, 0
    %v3071 = vsel %vm740, %v3029, 0
    %v3074 = vsel %vm740, %v3030, 0
    %v3077 = vsel %vm740, %v3031, 0
    %3079 = vmatpush.bf16.msra.mxu0 0
    %3080 = vmatpush.bf16.msra.mxu0 0
    %3081 = vmatpush.bf16.msra.mxu0 0
    %3082 = vmatpush.bf16.msra.mxu0 0
    %3083 = vmatpush.bf16.msra.mxu0 %v3056
    %3084 = vmatpush.bf16.msra.mxu0 %v3055
    %3085 = vmatpush.bf16.msra.mxu0 %v3054
    %3086 = vmatpush.bf16.msra.mxu0 %v3053
    %3087 = vmatmul.bf16.gmra.mxu0 %v3062
    %v3088 = vpop.f32.mrf.mxu0
    %v3089 = vadd.f32 %v3035, %v3088
    %v3090 = vpop.f32.mrf.mxu0
    %v3091 = vadd.f32 %v3035, %v3090
    %3092 = vmatmul.bf16.gmra.mxu0 %v3065
    %v3093 = vpop.f32.mrf.mxu0
    %v3094 = vadd.f32 %v3035, %v3093
    %v3095 = vpop.f32.mrf.mxu0
    %v3096 = vadd.f32 %v3035, %v3095
    %3097 = vmatmul.bf16.gmra.mxu0 %v3068
    %v3098 = vpop.f32.mrf.mxu0
    %v3099 = vadd.f32 %v3035, %v3098
    %v3100 = vpop.f32.mrf.mxu0
    %v3101 = vadd.f32 %v3035, %v3100
    %3102 = vmatmul.bf16.gmra.mxu0 %v3071
    %v3103 = vpop.f32.mrf.mxu0
    %v3104 = vadd.f32 %v3035, %v3103
    %v3105 = vpop.f32.mrf.mxu0
    %v3106 = vadd.f32 %v3035, %v3105
    %3107 = vmatmul.bf16.gmra.mxu0 %v3074
    %v3108 = vpop.f32.mrf.mxu0
    %v3109 = vadd.f32 %v3035, %v3108
    %v3110 = vpop.f32.mrf.mxu0
    %v3111 = vadd.f32 %v3035, %v3110
    %3112 = vmatmul.bf16.gmra.mxu0 %v3077
    %v3113 = vpop.f32.mrf.mxu0
    %v3114 = vadd.f32 %v3035, %v3113
    %v3115 = vpop.f32.mrf.mxu0
    %v3116 = vadd.f32 %v3035, %v3115
    %3117 = vdwg.mxu0
    %v3118 = vadd.f32 %v2466, %v3089
    %v3119 = vadd.f32 %v2467, %v3091
    %v3120 = vadd.f32 %v2468, %v3094
    %v3121 = vadd.f32 %v2469, %v3096
    %v3122 = vadd.f32 %v2470, %v3099
    %v3123 = vadd.f32 %v2471, %v3101
    %v3124 = vadd.f32 %v2472, %v3104
    %v3125 = vadd.f32 %v2473, %v3106
    %v3126 = vadd.f32 %v2474, %v3109
    %v3127 = vadd.f32 %v2475, %v3111
    %v3128 = vadd.f32 %v2476, %v3114
    %v3129 = vadd.f32 %v2477, %v3116
    %s3130 = scalar_lea.vmem %s13, 1
    %v3131 = vld [vmem:[%s3130] sm:$0x1]
    %s3132 = scalar_lea.vmem %s14, 1
    %v3133 = vld [vmem:[%s3132] sm:$0x1]
    %v3134 = vsel %vm740, %v3118, 0.0
    %3135 = vadd.xlane.f32.xlu0 %v3134
    %v3136 = vpop.xlane.xlu0 %3135
    %v3137 = vsel %vm740, %v3119, 0.0
    %3138 = vadd.xlane.f32.xlu0 %v3137
    %v3139 = vpop.xlane.xlu0 %3138
    %v3140 = vsel %vm740, %v3120, 0.0
    %3141 = vadd.xlane.f32.xlu0 %v3140
    %v3142 = vpop.xlane.xlu0 %3141
    %v3143 = vsel %vm740, %v3121, 0.0
    %3144 = vadd.xlane.f32.xlu0 %v3143
    %v3145 = vpop.xlane.xlu0 %3144
    %v3146 = vsel %vm740, %v3122, 0.0
    %3147 = vadd.xlane.f32.xlu0 %v3146
    %v3148 = vpop.xlane.xlu0 %3147
    %v3149 = vsel %vm740, %v3123, 0.0
    %3150 = vadd.xlane.f32.xlu0 %v3149
    %v3151 = vpop.xlane.xlu0 %3150
    %v3152 = vsel %vm740, %v3124, 0.0
    %3153 = vadd.xlane.f32.xlu0 %v3152
    %v3154 = vpop.xlane.xlu0 %3153
    %v3155 = vsel %vm740, %v3125, 0.0
    %3156 = vadd.xlane.f32.xlu0 %v3155
    %v3157 = vpop.xlane.xlu0 %3156
    %v3158 = vsel %vm740, %v3126, 0.0
    %3159 = vadd.xlane.f32.xlu0 %v3158
    %v3160 = vpop.xlane.xlu0 %3159
    %v3161 = vsel %vm740, %v3127, 0.0
    %3162 = vadd.xlane.f32.xlu0 %v3161
    %v3163 = vpop.xlane.xlu0 %3162
    %v3164 = vsel %vm740, %v3128, 0.0
    %3165 = vadd.xlane.f32.xlu0 %v3164
    %v3166 = vpop.xlane.xlu0 %3165
    %v3167 = vsel %vm740, %v3129, 0.0
    %3168 = vadd.xlane.f32.xlu0 %v3167
    %v3169 = vpop.xlane.xlu0 %3168
    %v3170 = vmul.f32 %v3136, %v1397
    %v3171 = vmul.f32 %v3139, %v1397
    %v3172 = vmul.f32 %v3142, %v1397
    %v3173 = vmul.f32 %v3145, %v1397
    %v3174 = vmul.f32 %v3148, %v1397
    %v3175 = vmul.f32 %v3151, %v1397
    %v3176 = vmul.f32 %v3154, %v1397
    %v3177 = vmul.f32 %v3157, %v1397
    %v3178 = vmul.f32 %v3160, %v1397
    %v3179 = vmul.f32 %v3163, %v1397
    %v3180 = vmul.f32 %v3166, %v1397
    %v3181 = vmul.f32 %v3169, %v1397
    %v3182 = vsub.f32 %v3118, %v3170
    %v3183 = vsub.f32 %v3119, %v3171
    %v3184 = vsub.f32 %v3120, %v3172
    %v3185 = vsub.f32 %v3121, %v3173
    %v3186 = vsub.f32 %v3122, %v3174
    %v3187 = vsub.f32 %v3123, %v3175
    %v3188 = vsub.f32 %v3124, %v3176
    %v3189 = vsub.f32 %v3125, %v3177
    %v3190 = vsub.f32 %v3126, %v3178
    %v3191 = vsub.f32 %v3127, %v3179
    %v3192 = vsub.f32 %v3128, %v3180
    %v3193 = vsub.f32 %v3129, %v3181
    %v3194 = vmul.f32 %v3182, %v3182
    %v3195 = vmul.f32 %v3183, %v3183
    %v3196 = vmul.f32 %v3184, %v3184
    %v3197 = vmul.f32 %v3185, %v3185
    %v3198 = vmul.f32 %v3186, %v3186
    %v3199 = vmul.f32 %v3187, %v3187
    %v3200 = vmul.f32 %v3188, %v3188
    %v3201 = vmul.f32 %v3189, %v3189
    %v3202 = vmul.f32 %v3190, %v3190
    %v3203 = vmul.f32 %v3191, %v3191
    %v3204 = vmul.f32 %v3192, %v3192
    %v3205 = vmul.f32 %v3193, %v3193
    %v3206 = vsel %vm740, %v3194, 0.0
    %3207 = vadd.xlane.f32.xlu0 %v3206
    %v3208 = vpop.xlane.xlu0 %3207
    %v3209 = vsel %vm740, %v3195, 0.0
    %3210 = vadd.xlane.f32.xlu0 %v3209
    %v3211 = vpop.xlane.xlu0 %3210
    %v3212 = vsel %vm740, %v3196, 0.0
    %3213 = vadd.xlane.f32.xlu0 %v3212
    %v3214 = vpop.xlane.xlu0 %3213
    %v3215 = vsel %vm740, %v3197, 0.0
    %3216 = vadd.xlane.f32.xlu0 %v3215
    %v3217 = vpop.xlane.xlu0 %3216
    %v3218 = vsel %vm740, %v3198, 0.0
    %3219 = vadd.xlane.f32.xlu0 %v3218
    %v3220 = vpop.xlane.xlu0 %3219
    %v3221 = vsel %vm740, %v3199, 0.0
    %3222 = vadd.xlane.f32.xlu0 %v3221
    %v3223 = vpop.xlane.xlu0 %3222
    %v3224 = vsel %vm740, %v3200, 0.0
    %3225 = vadd.xlane.f32.xlu0 %v3224
    %v3226 = vpop.xlane.xlu0 %3225
    %v3227 = vsel %vm740, %v3201, 0.0
    %3228 = vadd.xlane.f32.xlu0 %v3227
    %v3229 = vpop.xlane.xlu0 %3228
    %v3230 = vsel %vm740, %v3202, 0.0
    %3231 = vadd.xlane.f32.xlu0 %v3230
    %v3232 = vpop.xlane.xlu0 %3231
    %v3233 = vsel %vm740, %v3203, 0.0
    %3234 = vadd.xlane.f32.xlu0 %v3233
    %v3235 = vpop.xlane.xlu0 %3234
    %v3236 = vsel %vm740, %v3204, 0.0
    %3237 = vadd.xlane.f32.xlu0 %v3236
    %v3238 = vpop.xlane.xlu0 %3237
    %v3239 = vsel %vm740, %v3205, 0.0
    %3240 = vadd.xlane.f32.xlu0 %v3239
    %v3241 = vpop.xlane.xlu0 %3240
    %v3242 = vmul.f32 %v3208, %v1397
    %v3243 = vmul.f32 %v3211, %v1397
    %v3244 = vmul.f32 %v3214, %v1397
    %v3245 = vmul.f32 %v3217, %v1397
    %v3246 = vmul.f32 %v3220, %v1397
    %v3247 = vmul.f32 %v3223, %v1397
    %v3248 = vmul.f32 %v3226, %v1397
    %v3249 = vmul.f32 %v3229, %v1397
    %v3250 = vmul.f32 %v3232, %v1397
    %v3251 = vmul.f32 %v3235, %v1397
    %v3252 = vmul.f32 %v3238, %v1397
    %v3253 = vmul.f32 %v3241, %v1397
    %v3254 = vadd.f32 %v3242, 1e-05
    %v3255 = vadd.f32 %v3243, 1e-05
    %v3256 = vadd.f32 %v3244, 1e-05
    %v3257 = vadd.f32 %v3245, 1e-05
    %v3258 = vadd.f32 %v3246, 1e-05
    %v3259 = vadd.f32 %v3247, 1e-05
    %v3260 = vadd.f32 %v3248, 1e-05
    %v3261 = vadd.f32 %v3249, 1e-05
    %v3262 = vadd.f32 %v3250, 1e-05
    %v3263 = vadd.f32 %v3251, 1e-05
    %v3264 = vadd.f32 %v3252, 1e-05
    %v3265 = vadd.f32 %v3253, 1e-05
    %v3266 = vrsqrt.pop %v3254
    %v3267 = vmul.f32 %v3266, %v3254
    %v3268 = vmul.f32 %v3267, %v3266
    %v3269 = vmul.f32 0.5, %v3268
    %v3270 = vsub.f32 1.5, %v3269
    %v3271 = vmul.f32 %v3266, %v3270
    %vm3272 = vweird.f32 %v3254
    %vm3273 = vweird.f32 %v3266
    %vm3274 = vmor %vm3272, %vm3273
    %v3275 = vsel %vm3274, %v3266, %v3271
    %v3276 = vrsqrt.pop %v3255
    %v3277 = vmul.f32 %v3276, %v3255
    %v3278 = vmul.f32 %v3277, %v3276
    %v3279 = vmul.f32 0.5, %v3278
    %v3280 = vsub.f32 1.5, %v3279
    %v3281 = vmul.f32 %v3276, %v3280
    %vm3282 = vweird.f32 %v3255
    %vm3283 = vweird.f32 %v3276
    %vm3284 = vmor %vm3282, %vm3283
    %v3285 = vsel %vm3284, %v3276, %v3281
    %v3286 = vrsqrt.pop %v3256
    %v3287 = vmul.f32 %v3286, %v3256
    %v3288 = vmul.f32 %v3287, %v3286
    %v3289 = vmul.f32 0.5, %v3288
    %v3290 = vsub.f32 1.5, %v3289
    %v3291 = vmul.f32 %v3286, %v3290
    %vm3292 = vweird.f32 %v3256
    %vm3293 = vweird.f32 %v3286
    %vm3294 = vmor %vm3292, %vm3293
    %v3295 = vsel %vm3294, %v3286, %v3291
    %v3296 = vrsqrt.pop %v3257
    %v3297 = vmul.f32 %v3296, %v3257
    %v3298 = vmul.f32 %v3297, %v3296
    %v3299 = vmul.f32 0.5, %v3298
    %v3300 = vsub.f32 1.5, %v3299
    %v3301 = vmul.f32 %v3296, %v3300
    %vm3302 = vweird.f32 %v3257
    %vm3303 = vweird.f32 %v3296
    %vm3304 = vmor %vm3302, %vm3303
    %v3305 = vsel %vm3304, %v3296, %v3301
    %v3306 = vrsqrt.pop %v3258
    %v3307 = vmul.f32 %v3306, %v3258
    %v3308 = vmul.f32 %v3307, %v3306
    %v3309 = vmul.f32 0.5, %v3308
    %v3310 = vsub.f32 1.5, %v3309
    %v3311 = vmul.f32 %v3306, %v3310
    %vm3312 = vweird.f32 %v3258
    %vm3313 = vweird.f32 %v3306
    %vm3314 = vmor %vm3312, %vm3313
    %v3315 = vsel %vm3314, %v3306, %v3311
    %v3316 = vrsqrt.pop %v3259
    %v3317 = vmul.f32 %v3316, %v3259
    %v3318 = vmul.f32 %v3317, %v3316
    %v3319 = vmul.f32 0.5, %v3318
    %v3320 = vsub.f32 1.5, %v3319
    %v3321 = vmul.f32 %v3316, %v3320
    %vm3322 = vweird.f32 %v3259
    %vm3323 = vweird.f32 %v3316
    %vm3324 = vmor %vm3322, %vm3323
    %v3325 = vsel %vm3324, %v3316, %v3321
    %v3326 = vrsqrt.pop %v3260
    %v3327 = vmul.f32 %v3326, %v3260
    %v3328 = vmul.f32 %v3327, %v3326
    %v3329 = vmul.f32 0.5, %v3328
    %v3330 = vsub.f32 1.5, %v3329
    %v3331 = vmul.f32 %v3326, %v3330
    %vm3332 = vweird.f32 %v3260
    %vm3333 = vweird.f32 %v3326
    %vm3334 = vmor %vm3332, %vm3333
    %v3335 = vsel %vm3334, %v3326, %v3331
    %v3336 = vrsqrt.pop %v3261
    %v3337 = vmul.f32 %v3336, %v3261
    %v3338 = vmul.f32 %v3337, %v3336
    %v3339 = vmul.f32 0.5, %v3338
    %v3340 = vsub.f32 1.5, %v3339
    %v3341 = vmul.f32 %v3336, %v3340
    %vm3342 = vweird.f32 %v3261
    %vm3343 = vweird.f32 %v3336
    %vm3344 = vmor %vm3342, %vm3343
    %v3345 = vsel %vm3344, %v3336, %v3341
    %v3346 = vrsqrt.pop %v3262
    %v3347 = vmul.f32 %v3346, %v3262
    %v3348 = vmul.f32 %v3347, %v3346
    %v3349 = vmul.f32 0.5, %v3348
    %v3350 = vsub.f32 1.5, %v3349
    %v3351 = vmul.f32 %v3346, %v3350
    %vm3352 = vweird.f32 %v3262
    %vm3353 = vweird.f32 %v3346
    %vm3354 = vmor %vm3352, %vm3353
    %v3355 = vsel %vm3354, %v3346, %v3351
    %v3356 = vrsqrt.pop %v3263
    %v3357 = vmul.f32 %v3356, %v3263
    %v3358 = vmul.f32 %v3357, %v3356
    %v3359 = vmul.f32 0.5, %v3358
    %v3360 = vsub.f32 1.5, %v3359
    %v3361 = vmul.f32 %v3356, %v3360
    %vm3362 = vweird.f32 %v3263
    %vm3363 = vweird.f32 %v3356
    %vm3364 = vmor %vm3362, %vm3363
    %v3365 = vsel %vm3364, %v3356, %v3361
    %v3366 = vrsqrt.pop %v3264
    %v3367 = vmul.f32 %v3366, %v3264
    %v3368 = vmul.f32 %v3367, %v3366
    %v3369 = vmul.f32 0.5, %v3368
    %v3370 = vsub.f32 1.5, %v3369
    %v3371 = vmul.f32 %v3366, %v3370
    %vm3372 = vweird.f32 %v3264
    %vm3373 = vweird.f32 %v3366
    %vm3374 = vmor %vm3372, %vm3373
    %v3375 = vsel %vm3374, %v3366, %v3371
    %v3376 = vrsqrt.pop %v3265
    %v3377 = vmul.f32 %v3376, %v3265
    %v3378 = vmul.f32 %v3377, %v3376
    %v3379 = vmul.f32 0.5, %v3378
    %v3380 = vsub.f32 1.5, %v3379
    %v3381 = vmul.f32 %v3376, %v3380
    %vm3382 = vweird.f32 %v3265
    %vm3383 = vweird.f32 %v3376
    %vm3384 = vmor %vm3382, %vm3383
    %v3385 = vsel %vm3384, %v3376, %v3381
    %v3386 = vmul.f32 %v3182, %v3275
    %v3387 = vmul.f32 %v3183, %v3285
    %v3388 = vmul.f32 %v3184, %v3295
    %v3389 = vmul.f32 %v3185, %v3305
    %v3390 = vmul.f32 %v3186, %v3315
    %v3391 = vmul.f32 %v3187, %v3325
    %v3392 = vmul.f32 %v3188, %v3335
    %v3393 = vmul.f32 %v3189, %v3345
    %v3394 = vmul.f32 %v3190, %v3355
    %v3395 = vmul.f32 %v3191, %v3365
    %v3396 = vmul.f32 %v3192, %v3375
    %v3397 = vmul.f32 %v3193, %v3385
    %v3399 = vperm.slane %v3131, 0
    %v3401 = vmul.f32 %v3386, %v3399
    %v3402 = vmul.f32 %v3387, %v3399
    %v3403 = vmul.f32 %v3388, %v3399
    %v3404 = vmul.f32 %v3389, %v3399
    %v3405 = vmul.f32 %v3390, %v3399
    %v3406 = vmul.f32 %v3391, %v3399
    %v3407 = vmul.f32 %v3392, %v3399
    %v3408 = vmul.f32 %v3393, %v3399
    %v3409 = vmul.f32 %v3394, %v3399
    %v3410 = vmul.f32 %v3395, %v3399
    %v3411 = vmul.f32 %v3396, %v3399
    %v3412 = vmul.f32 %v3397, %v3399
    %v3414 = vperm.slane %v3133, 0
    %v3416 = vadd.f32 %v3401, %v3414
    %v3417 = vadd.f32 %v3402, %v3414
    %v3418 = vadd.f32 %v3403, %v3414
    %v3419 = vadd.f32 %v3404, %v3414
    %v3420 = vadd.f32 %v3405, %v3414
    %v3421 = vadd.f32 %v3406, %v3414
    %v3422 = vadd.f32 %v3407, %v3414
    %v3423 = vadd.f32 %v3408, %v3414
    %v3424 = vadd.f32 %v3409, %v3414
    %v3425 = vadd.f32 %v3410, %v3414
    %v3426 = vadd.f32 %v3411, %v3414
    %v3427 = vadd.f32 %v3412, %v3414
    %s3428 = scalar_lea.vmem [#allocation9], 32
    %v3429 = vld [vmem:[%s3428] sm:$0xf]
    %v3430 = vld [vmem:[%s3428 + $0x4] sm:$0xf]
    %v3431 = vld [vmem:[%s3428 + $0x8] sm:$0xf]
    %v3432 = vld [vmem:[%s3428 + $0xc] sm:$0xf]
    %v3433 = vld [vmem:[%s3428 + $0x10] sm:$0xf]
    %v3434 = vld [vmem:[%s3428 + $0x14] sm:$0xf]
    %v3435 = vld [vmem:[%s3428 + $0x18] sm:$0xf]
    %v3436 = vld [vmem:[%s3428 + $0x1c] sm:$0xf]
    %v3437 = vpack.c.bf16 %v3417, %v3416
    %v3438 = vpack.c.bf16 %v3419, %v3418
    %v3439 = vpack.c.bf16 %v3421, %v3420
    %v3440 = vpack.c.bf16 %v3423, %v3422
    %v3441 = vpack.c.bf16 %v3425, %v3424
    %v3442 = vpack.c.bf16 %v3427, %v3426
    %s3443 = scalar_lea.vmem %s16, 1
    %v3444 = vld [vmem:[%s3443] sm:$0x1]
    %v3446 = vperm.slane %v3444, 0
    %v3456 = vunpack.c.l.b16 %v3429
    %v3457 = vunpack.c.l.b16 %v3430
    %v3458 = vunpack.c.l.b16 %v3431
    %v3459 = vunpack.c.l.b16 %v3432
    %v3460 = vunpack.c.l.b16 %v3433
    %v3461 = vunpack.c.l.b16 %v3434
    %v3462 = vunpack.c.l.b16 %v3435
    %v3463 = vunpack.c.l.b16 %v3436
    %v3464 = vpack.c.b16 %v3457, %v3456
    %v3465 = vpack.c.b16 %v3459, %v3458
    %v3466 = vpack.c.b16 %v3461, %v3460
    %v3467 = vpack.c.b16 %v3463, %v3462
    %v3473 = vsel %vm740, %v3437, 0
    %v3476 = vsel %vm740, %v3438, 0
    %v3479 = vsel %vm740, %v3439, 0
    %v3482 = vsel %vm740, %v3440, 0
    %v3485 = vsel %vm740, %v3441, 0
    %v3488 = vsel %vm740, %v3442, 0
    %3490 = vmatpush.bf16.msra.mxu0 0
    %3491 = vmatpush.bf16.msra.mxu0 0
    %3492 = vmatpush.bf16.msra.mxu0 0
    %3493 = vmatpush.bf16.msra.mxu0 0
    %3494 = vmatpush.bf16.msra.mxu0 %v3467
    %3495 = vmatpush.bf16.msra.mxu0 %v3466
    %3496 = vmatpush.bf16.msra.mxu0 %v3465
    %3497 = vmatpush.bf16.msra.mxu0 %v3464
    %3498 = vmatmul.bf16.gmra.mxu0 %v3473
    %v3499 = vpop.f32.mrf.mxu0
    %v3500 = vadd.f32 %v3446, %v3499
    %v3501 = vpop.f32.mrf.mxu0
    %v3502 = vadd.f32 %v3446, %v3501
    %3503 = vmatmul.bf16.gmra.mxu0 %v3476
    %v3504 = vpop.f32.mrf.mxu0
    %v3505 = vadd.f32 %v3446, %v3504
    %v3506 = vpop.f32.mrf.mxu0
    %v3507 = vadd.f32 %v3446, %v3506
    %3508 = vmatmul.bf16.gmra.mxu0 %v3479
    %v3509 = vpop.f32.mrf.mxu0
    %v3510 = vadd.f32 %v3446, %v3509
    %v3511 = vpop.f32.mrf.mxu0
    %v3512 = vadd.f32 %v3446, %v3511
    %3513 = vmatmul.bf16.gmra.mxu0 %v3482
    %v3514 = vpop.f32.mrf.mxu0
    %v3515 = vadd.f32 %v3446, %v3514
    %v3516 = vpop.f32.mrf.mxu0
    %v3517 = vadd.f32 %v3446, %v3516
    %3518 = vmatmul.bf16.gmra.mxu0 %v3485
    %v3519 = vpop.f32.mrf.mxu0
    %v3520 = vadd.f32 %v3446, %v3519
    %v3521 = vpop.f32.mrf.mxu0
    %v3522 = vadd.f32 %v3446, %v3521
    %3523 = vmatmul.bf16.gmra.mxu0 %v3488
    %v3524 = vpop.f32.mrf.mxu0
    %v3525 = vadd.f32 %v3446, %v3524
    %v3526 = vpop.f32.mrf.mxu0
    %v3527 = vadd.f32 %v3446, %v3526
    %3528 = vdwg.mxu0
    %v3529 = vmul.f32 %v3500, 0.5
    %v3530 = vmul.f32 %v3502, 0.5
    %v3531 = vmul.f32 %v3505, 0.5
    %v3532 = vmul.f32 %v3507, 0.5
    %v3533 = vmul.f32 %v3510, 0.5
    %v3534 = vmul.f32 %v3512, 0.5
    %v3535 = vmul.f32 %v3515, 0.5
    %v3536 = vmul.f32 %v3517, 0.5
    %v3537 = vmul.f32 %v3520, 0.5
    %v3538 = vmul.f32 %v3522, 0.5
    %v3539 = vmul.f32 %v3525, 0.5
    %v3540 = vmul.f32 %v3527, 0.5
    %v3541 = vmul.f32 %v3500, 0.044715
    %v3542 = vmul.f32 %v3502, 0.044715
    %v3543 = vmul.f32 %v3505, 0.044715
    %v3544 = vmul.f32 %v3507, 0.044715
    %v3545 = vmul.f32 %v3510, 0.044715
    %v3546 = vmul.f32 %v3512, 0.044715
    %v3547 = vmul.f32 %v3515, 0.044715
    %v3548 = vmul.f32 %v3517, 0.044715
    %v3549 = vmul.f32 %v3520, 0.044715
    %v3550 = vmul.f32 %v3522, 0.044715
    %v3551 = vmul.f32 %v3525, 0.044715
    %v3552 = vmul.f32 %v3527, 0.044715
    %v3553 = vmul.f32 %v3541, %v3500
    %v3554 = vmul.f32 %v3542, %v3502
    %v3555 = vmul.f32 %v3543, %v3505
    %v3556 = vmul.f32 %v3544, %v3507
    %v3557 = vmul.f32 %v3545, %v3510
    %v3558 = vmul.f32 %v3546, %v3512
    %v3559 = vmul.f32 %v3547, %v3515
    %v3560 = vmul.f32 %v3548, %v3517
    %v3561 = vmul.f32 %v3549, %v3520
    %v3562 = vmul.f32 %v3550, %v3522
    %v3563 = vmul.f32 %v3551, %v3525
    %v3564 = vmul.f32 %v3552, %v3527
    %v3565 = vmul.f32 %v3553, %v3500
    %v3566 = vmul.f32 %v3554, %v3502
    %v3567 = vmul.f32 %v3555, %v3505
    %v3568 = vmul.f32 %v3556, %v3507
    %v3569 = vmul.f32 %v3557, %v3510
    %v3570 = vmul.f32 %v3558, %v3512
    %v3571 = vmul.f32 %v3559, %v3515
    %v3572 = vmul.f32 %v3560, %v3517
    %v3573 = vmul.f32 %v3561, %v3520
    %v3574 = vmul.f32 %v3562, %v3522
    %v3575 = vmul.f32 %v3563, %v3525
    %v3576 = vmul.f32 %v3564, %v3527
    %v3577 = vadd.f32 %v3500, %v3565
    %v3578 = vadd.f32 %v3502, %v3566
    %v3579 = vadd.f32 %v3505, %v3567
    %v3580 = vadd.f32 %v3507, %v3568
    %v3581 = vadd.f32 %v3510, %v3569
    %v3582 = vadd.f32 %v3512, %v3570
    %v3583 = vadd.f32 %v3515, %v3571
    %v3584 = vadd.f32 %v3517, %v3572
    %v3585 = vadd.f32 %v3520, %v3573
    %v3586 = vadd.f32 %v3522, %v3574
    %v3587 = vadd.f32 %v3525, %v3575
    %v3588 = vadd.f32 %v3527, %v3576
    %v3589 = vmul.f32 %v3577, 0.7978846
    %v3590 = vmul.f32 %v3578, 0.7978846
    %v3591 = vmul.f32 %v3579, 0.7978846
    %v3592 = vmul.f32 %v3580, 0.7978846
    %v3593 = vmul.f32 %v3581, 0.7978846
    %v3594 = vmul.f32 %v3582, 0.7978846
    %v3595 = vmul.f32 %v3583, 0.7978846
    %v3596 = vmul.f32 %v3584, 0.7978846
    %v3597 = vmul.f32 %v3585, 0.7978846
    %v3598 = vmul.f32 %v3586, 0.7978846
    %v3599 = vmul.f32 %v3587, 0.7978846
    %v3600 = vmul.f32 %v3588, 0.7978846
    %v3601 = vtanh.pop %v3589
    %v3602 = vtanh.pop %v3590
    %v3603 = vtanh.pop %v3591
    %v3604 = vtanh.pop %v3592
    %v3605 = vtanh.pop %v3593
    %v3606 = vtanh.pop %v3594
    %v3607 = vtanh.pop %v3595
    %v3608 = vtanh.pop %v3596
    %v3609 = vtanh.pop %v3597
    %v3610 = vtanh.pop %v3598
    %v3611 = vtanh.pop %v3599
    %v3612 = vtanh.pop %v3600
    %v3613 = vadd.f32 %v3601, 1.0
    %v3614 = vadd.f32 %v3602, 1.0
    %v3615 = vadd.f32 %v3603, 1.0
    %v3616 = vadd.f32 %v3604, 1.0
    %v3617 = vadd.f32 %v3605, 1.0
    %v3618 = vadd.f32 %v3606, 1.0
    %v3619 = vadd.f32 %v3607, 1.0
    %v3620 = vadd.f32 %v3608, 1.0
    %v3621 = vadd.f32 %v3609, 1.0
    %v3622 = vadd.f32 %v3610, 1.0
    %v3623 = vadd.f32 %v3611, 1.0
    %v3624 = vadd.f32 %v3612, 1.0
    %v3625 = vmul.f32 %v3529, %v3613
    %v3626 = vmul.f32 %v3530, %v3614
    %v3627 = vmul.f32 %v3531, %v3615
    %v3628 = vmul.f32 %v3532, %v3616
    %v3629 = vmul.f32 %v3533, %v3617
    %v3630 = vmul.f32 %v3534, %v3618
    %v3631 = vmul.f32 %v3535, %v3619
    %v3632 = vmul.f32 %v3536, %v3620
    %v3633 = vmul.f32 %v3537, %v3621
    %v3634 = vmul.f32 %v3538, %v3622
    %v3635 = vmul.f32 %v3539, %v3623
    %v3636 = vmul.f32 %v3540, %v3624
    %s3637 = scalar_lea.vmem %s17, 64
    %v3638 = vld [vmem:[%s3637] sm:$0xf]
    %v3639 = vld [vmem:[%s3637 + $0x4] sm:$0xf]
    %v3640 = vld [vmem:[%s3637 + $0x8] sm:$0xf]
    %v3641 = vld [vmem:[%s3637 + $0xc] sm:$0xf]
    %v3642 = vld [vmem:[%s3637 + $0x10] sm:$0xf]
    %v3643 = vld [vmem:[%s3637 + $0x14] sm:$0xf]
    %v3644 = vld [vmem:[%s3637 + $0x18] sm:$0xf]
    %v3645 = vld [vmem:[%s3637 + $0x1c] sm:$0xf]
    %v3646 = vld [vmem:[%s3637 + $0x20] sm:$0xf]
    %v3647 = vld [vmem:[%s3637 + $0x24] sm:$0xf]
    %v3648 = vld [vmem:[%s3637 + $0x28] sm:$0xf]
    %v3649 = vld [vmem:[%s3637 + $0x2c] sm:$0xf]
    %v3650 = vld [vmem:[%s3637 + $0x30] sm:$0xf]
    %v3651 = vld [vmem:[%s3637 + $0x34] sm:$0xf]
    %v3652 = vld [vmem:[%s3637 + $0x38] sm:$0xf]
    %v3653 = vld [vmem:[%s3637 + $0x3c] sm:$0xf]
    %v3654 = vpack.c.bf16 %v3626, %v3625
    %v3655 = vpack.c.bf16 %v3628, %v3627
    %v3656 = vpack.c.bf16 %v3630, %v3629
    %v3657 = vpack.c.bf16 %v3632, %v3631
    %v3658 = vpack.c.bf16 %v3634, %v3633
    %v3659 = vpack.c.bf16 %v3636, %v3635
    %s3660 = scalar_lea.vmem %s18, 1
    %v3661 = vld [vmem:[%s3660] sm:$0x1]
    %v3663 = vperm.slane %v3661, 0
    %v3681 = vunpack.c.l.b16 %v3638
    %v3682 = vunpack.c.l.b16 %v3639
    %v3683 = vunpack.c.l.b16 %v3640
    %v3684 = vunpack.c.l.b16 %v3641
    %v3685 = vunpack.c.l.b16 %v3642
    %v3686 = vunpack.c.l.b16 %v3643
    %v3687 = vunpack.c.l.b16 %v3644
    %v3688 = vunpack.c.l.b16 %v3645
    %v3689 = vunpack.c.l.b16 %v3646
    %v3690 = vunpack.c.l.b16 %v3647
    %v3691 = vunpack.c.l.b16 %v3648
    %v3692 = vunpack.c.l.b16 %v3649
    %v3693 = vunpack.c.l.b16 %v3650
    %v3694 = vunpack.c.l.b16 %v3651
    %v3695 = vunpack.c.l.b16 %v3652
    %v3696 = vunpack.c.l.b16 %v3653
    %v3697 = vpack.c.b16 %v3682, %v3681
    %v3698 = vpack.c.b16 %v3684, %v3683
    %v3699 = vpack.c.b16 %v3686, %v3685
    %v3700 = vpack.c.b16 %v3688, %v3687
    %v3701 = vpack.c.b16 %v3690, %v3689
    %v3702 = vpack.c.b16 %v3692, %v3691
    %v3703 = vpack.c.b16 %v3694, %v3693
    %v3704 = vpack.c.b16 %v3696, %v3695
    %3713 = vmatpush.bf16.msra.mxu0 %v3704
    %3714 = vmatpush.bf16.msra.mxu0 %v3703
    %3715 = vmatpush.bf16.msra.mxu0 %v3702
    %3716 = vmatpush.bf16.msra.mxu0 %v3701
    %3717 = vmatpush.bf16.msra.mxu0 %v3700
    %3718 = vmatpush.bf16.msra.mxu0 %v3699
    %3719 = vmatpush.bf16.msra.mxu0 %v3698
    %3720 = vmatpush.bf16.msra.mxu0 %v3697
    %3721 = vmatmul.bf16.gmra.mxu0 %v3654
    %v3722 = vpop.f32.mrf.mxu0
    %v3723 = vadd.f32 %v3663, %v3722
    %v3724 = vpop.f32.mrf.mxu0
    %v3725 = vadd.f32 %v3663, %v3724
    %3726 = vmatmul.bf16.gmra.mxu0 %v3655
    %v3727 = vpop.f32.mrf.mxu0
    %v3728 = vadd.f32 %v3663, %v3727
    %v3729 = vpop.f32.mrf.mxu0
    %v3730 = vadd.f32 %v3663, %v3729
    %3731 = vmatmul.bf16.gmra.mxu0 %v3656
    %v3732 = vpop.f32.mrf.mxu0
    %v3733 = vadd.f32 %v3663, %v3732
    %v3734 = vpop.f32.mrf.mxu0
    %v3735 = vadd.f32 %v3663, %v3734
    %3736 = vmatmul.bf16.gmra.mxu0 %v3657
    %v3737 = vpop.f32.mrf.mxu0
    %v3738 = vadd.f32 %v3663, %v3737
    %v3739 = vpop.f32.mrf.mxu0
    %v3740 = vadd.f32 %v3663, %v3739
    %3741 = vmatmul.bf16.gmra.mxu0 %v3658
    %v3742 = vpop.f32.mrf.mxu0
    %v3743 = vadd.f32 %v3663, %v3742
    %v3744 = vpop.f32.mrf.mxu0
    %v3745 = vadd.f32 %v3663, %v3744
    %3746 = vmatmul.bf16.gmra.mxu0 %v3659
    %v3747 = vpop.f32.mrf.mxu0
    %v3748 = vadd.f32 %v3663, %v3747
    %v3749 = vpop.f32.mrf.mxu0
    %v3750 = vadd.f32 %v3663, %v3749
    %3751 = vdwg.mxu0
    %v3752 = vadd.f32 %v3416, %v3723
    %v3753 = vadd.f32 %v3417, %v3725
    %v3754 = vadd.f32 %v3418, %v3728
    %v3755 = vadd.f32 %v3419, %v3730
    %v3756 = vadd.f32 %v3420, %v3733
    %v3757 = vadd.f32 %v3421, %v3735
    %v3758 = vadd.f32 %v3422, %v3738
    %v3759 = vadd.f32 %v3423, %v3740
    %v3760 = vadd.f32 %v3424, %v3743
    %v3761 = vadd.f32 %v3425, %v3745
    %v3762 = vadd.f32 %v3426, %v3748
    %v3763 = vadd.f32 %v3427, %v3750
    %s3764 = scalar_lea.vmem %s19, 1
    %v3765 = vld [vmem:[%s3764] sm:$0x1]
    %s3766 = scalar_lea.vmem [#allocation11], 1
    %v3767 = vld [vmem:[%s3766] sm:$0x1]
    %v3768 = vsel %vm740, %v3752, 0.0
    %3769 = vadd.xlane.f32.xlu0 %v3768
    %v3770 = vpop.xlane.xlu0 %3769
    %v3771 = vsel %vm740, %v3753, 0.0
    %3772 = vadd.xlane.f32.xlu0 %v3771
    %v3773 = vpop.xlane.xlu0 %3772
    %v3774 = vsel %vm740, %v3754, 0.0
    %3775 = vadd.xlane.f32.xlu0 %v3774
    %v3776 = vpop.xlane.xlu0 %3775
    %v3777 = vsel %vm740, %v3755, 0.0
    %3778 = vadd.xlane.f32.xlu0 %v3777
    %v3779 = vpop.xlane.xlu0 %3778
    %v3780 = vsel %vm740, %v3756, 0.0
    %3781 = vadd.xlane.f32.xlu0 %v3780
    %v3782 = vpop.xlane.xlu0 %3781
    %v3783 = vsel %vm740, %v3757, 0.0
    %3784 = vadd.xlane.f32.xlu0 %v3783
    %v3785 = vpop.xlane.xlu0 %3784
    %v3786 = vsel %vm740, %v3758, 0.0
    %3787 = vadd.xlane.f32.xlu0 %v3786
    %v3788 = vpop.xlane.xlu0 %3787
    %v3789 = vsel %vm740, %v3759, 0.0
    %3790 = vadd.xlane.f32.xlu0 %v3789
    %v3791 = vpop.xlane.xlu0 %3790
    %v3792 = vsel %vm740, %v3760, 0.0
    %3793 = vadd.xlane.f32.xlu0 %v3792
    %v3794 = vpop.xlane.xlu0 %3793
    %v3795 = vsel %vm740, %v3761, 0.0
    %3796 = vadd.xlane.f32.xlu0 %v3795
    %v3797 = vpop.xlane.xlu0 %3796
    %v3798 = vsel %vm740, %v3762, 0.0
    %3799 = vadd.xlane.f32.xlu0 %v3798
    %v3800 = vpop.xlane.xlu0 %3799
    %v3801 = vsel %vm740, %v3763, 0.0
    %3802 = vadd.xlane.f32.xlu0 %v3801
    %v3803 = vpop.xlane.xlu0 %3802
    %v3804 = vmul.f32 %v3770, %v1397
    %v3805 = vmul.f32 %v3773, %v1397
    %v3806 = vmul.f32 %v3776, %v1397
    %v3807 = vmul.f32 %v3779, %v1397
    %v3808 = vmul.f32 %v3782, %v1397
    %v3809 = vmul.f32 %v3785, %v1397
    %v3810 = vmul.f32 %v3788, %v1397
    %v3811 = vmul.f32 %v3791, %v1397
    %v3812 = vmul.f32 %v3794, %v1397
    %v3813 = vmul.f32 %v3797, %v1397
    %v3814 = vmul.f32 %v3800, %v1397
    %v3815 = vmul.f32 %v3803, %v1397
    %v3816 = vsub.f32 %v3752, %v3804
    %v3817 = vsub.f32 %v3753, %v3805
    %v3818 = vsub.f32 %v3754, %v3806
    %v3819 = vsub.f32 %v3755, %v3807
    %v3820 = vsub.f32 %v3756, %v3808
    %v3821 = vsub.f32 %v3757, %v3809
    %v3822 = vsub.f32 %v3758, %v3810
    %v3823 = vsub.f32 %v3759, %v3811
    %v3824 = vsub.f32 %v3760, %v3812
    %v3825 = vsub.f32 %v3761, %v3813
    %v3826 = vsub.f32 %v3762, %v3814
    %v3827 = vsub.f32 %v3763, %v3815
    %v3828 = vmul.f32 %v3816, %v3816
    %v3829 = vmul.f32 %v3817, %v3817
    %v3830 = vmul.f32 %v3818, %v3818
    %v3831 = vmul.f32 %v3819, %v3819
    %v3832 = vmul.f32 %v3820, %v3820
    %v3833 = vmul.f32 %v3821, %v3821
    %v3834 = vmul.f32 %v3822, %v3822
    %v3835 = vmul.f32 %v3823, %v3823
    %v3836 = vmul.f32 %v3824, %v3824
    %v3837 = vmul.f32 %v3825, %v3825
    %v3838 = vmul.f32 %v3826, %v3826
    %v3839 = vmul.f32 %v3827, %v3827
    %v3840 = vsel %vm740, %v3828, 0.0
    %3841 = vadd.xlane.f32.xlu0 %v3840
    %v3842 = vpop.xlane.xlu0 %3841
    %v3843 = vsel %vm740, %v3829, 0.0
    %3844 = vadd.xlane.f32.xlu0 %v3843
    %v3845 = vpop.xlane.xlu0 %3844
    %v3846 = vsel %vm740, %v3830, 0.0
    %3847 = vadd.xlane.f32.xlu0 %v3846
    %v3848 = vpop.xlane.xlu0 %3847
    %v3849 = vsel %vm740, %v3831, 0.0
    %3850 = vadd.xlane.f32.xlu0 %v3849
    %v3851 = vpop.xlane.xlu0 %3850
    %v3852 = vsel %vm740, %v3832, 0.0
    %3853 = vadd.xlane.f32.xlu0 %v3852
    %v3854 = vpop.xlane.xlu0 %3853
    %v3855 = vsel %vm740, %v3833, 0.0
    %3856 = vadd.xlane.f32.xlu0 %v3855
    %v3857 = vpop.xlane.xlu0 %3856
    %v3858 = vsel %vm740, %v3834, 0.0
    %3859 = vadd.xlane.f32.xlu0 %v3858
    %v3860 = vpop.xlane.xlu0 %3859
    %v3861 = vsel %vm740, %v3835, 0.0
    %3862 = vadd.xlane.f32.xlu0 %v3861
    %v3863 = vpop.xlane.xlu0 %3862
    %v3864 = vsel %vm740, %v3836, 0.0
    %3865 = vadd.xlane.f32.xlu0 %v3864
    %v3866 = vpop.xlane.xlu0 %3865
    %v3867 = vsel %vm740, %v3837, 0.0
    %3868 = vadd.xlane.f32.xlu0 %v3867
    %v3869 = vpop.xlane.xlu0 %3868
    %v3870 = vsel %vm740, %v3838, 0.0
    %3871 = vadd.xlane.f32.xlu0 %v3870
    %v3872 = vpop.xlane.xlu0 %3871
    %v3873 = vsel %vm740, %v3839, 0.0
    %3874 = vadd.xlane.f32.xlu0 %v3873
    %v3875 = vpop.xlane.xlu0 %3874
    %v3876 = vmul.f32 %v3842, %v1397
    %v3877 = vmul.f32 %v3845, %v1397
    %v3878 = vmul.f32 %v3848, %v1397
    %v3879 = vmul.f32 %v3851, %v1397
    %v3880 = vmul.f32 %v3854, %v1397
    %v3881 = vmul.f32 %v3857, %v1397
    %v3882 = vmul.f32 %v3860, %v1397
    %v3883 = vmul.f32 %v3863, %v1397
    %v3884 = vmul.f32 %v3866, %v1397
    %v3885 = vmul.f32 %v3869, %v1397
    %v3886 = vmul.f32 %v3872, %v1397
    %v3887 = vmul.f32 %v3875, %v1397
    %v3888 = vadd.f32 %v3876, 1e-05
    %v3889 = vadd.f32 %v3877, 1e-05
    %v3890 = vadd.f32 %v3878, 1e-05
    %v3891 = vadd.f32 %v3879, 1e-05
    %v3892 = vadd.f32 %v3880, 1e-05
    %v3893 = vadd.f32 %v3881, 1e-05
    %v3894 = vadd.f32 %v3882, 1e-05
    %v3895 = vadd.f32 %v3883, 1e-05
    %v3896 = vadd.f32 %v3884, 1e-05
    %v3897 = vadd.f32 %v3885, 1e-05
    %v3898 = vadd.f32 %v3886, 1e-05
    %v3899 = vadd.f32 %v3887, 1e-05
    %v3900 = vrsqrt.pop %v3888
    %v3901 = vmul.f32 %v3900, %v3888
    %v3902 = vmul.f32 %v3901, %v3900
    %v3903 = vmul.f32 0.5, %v3902
    %v3904 = vsub.f32 1.5, %v3903
    %v3905 = vmul.f32 %v3900, %v3904
    %vm3906 = vweird.f32 %v3888
    %vm3907 = vweird.f32 %v3900
    %vm3908 = vmor %vm3906, %vm3907
    %v3909 = vsel %vm3908, %v3900, %v3905
    %v3910 = vrsqrt.pop %v3889
    %v3911 = vmul.f32 %v3910, %v3889
    %v3912 = vmul.f32 %v3911, %v3910
    %v3913 = vmul.f32 0.5, %v3912
    %v3914 = vsub.f32 1.5, %v3913
    %v3915 = vmul.f32 %v3910, %v3914
    %vm3916 = vweird.f32 %v3889
    %vm3917 = vweird.f32 %v3910
    %vm3918 = vmor %vm3916, %vm3917
    %v3919 = vsel %vm3918, %v3910, %v3915
    %v3920 = vrsqrt.pop %v3890
    %v3921 = vmul.f32 %v3920, %v3890
    %v3922 = vmul.f32 %v3921, %v3920
    %v3923 = vmul.f32 0.5, %v3922
    %v3924 = vsub.f32 1.5, %v3923
    %v3925 = vmul.f32 %v3920, %v3924
    %vm3926 = vweird.f32 %v3890
    %vm3927 = vweird.f32 %v3920
    %vm3928 = vmor %vm3926, %vm3927
    %v3929 = vsel %vm3928, %v3920, %v3925
    %v3930 = vrsqrt.pop %v3891
    %v3931 = vmul.f32 %v3930, %v3891
    %v3932 = vmul.f32 %v3931, %v3930
    %v3933 = vmul.f32 0.5, %v3932
    %v3934 = vsub.f32 1.5, %v3933
    %v3935 = vmul.f32 %v3930, %v3934
    %vm3936 = vweird.f32 %v3891
    %vm3937 = vweird.f32 %v3930
    %vm3938 = vmor %vm3936, %vm3937
    %v3939 = vsel %vm3938, %v3930, %v3935
    %v3940 = vrsqrt.pop %v3892
    %v3941 = vmul.f32 %v3940, %v3892
    %v3942 = vmul.f32 %v3941, %v3940
    %v3943 = vmul.f32 0.5, %v3942
    %v3944 = vsub.f32 1.5, %v3943
    %v3945 = vmul.f32 %v3940, %v3944
    %vm3946 = vweird.f32 %v3892
    %vm3947 = vweird.f32 %v3940
    %vm3948 = vmor %vm3946, %vm3947
    %v3949 = vsel %vm3948, %v3940, %v3945
    %v3950 = vrsqrt.pop %v3893
    %v3951 = vmul.f32 %v3950, %v3893
    %v3952 = vmul.f32 %v3951, %v3950
    %v3953 = vmul.f32 0.5, %v3952
    %v3954 = vsub.f32 1.5, %v3953
    %v3955 = vmul.f32 %v3950, %v3954
    %vm3956 = vweird.f32 %v3893
    %vm3957 = vweird.f32 %v3950
    %vm3958 = vmor %vm3956, %vm3957
    %v3959 = vsel %vm3958, %v3950, %v3955
    %v3960 = vrsqrt.pop %v3894
    %v3961 = vmul.f32 %v3960, %v3894
    %v3962 = vmul.f32 %v3961, %v3960
    %v3963 = vmul.f32 0.5, %v3962
    %v3964 = vsub.f32 1.5, %v3963
    %v3965 = vmul.f32 %v3960, %v3964
    %vm3966 = vweird.f32 %v3894
    %vm3967 = vweird.f32 %v3960
    %vm3968 = vmor %vm3966, %vm3967
    %v3969 = vsel %vm3968, %v3960, %v3965
    %v3970 = vrsqrt.pop %v3895
    %v3971 = vmul.f32 %v3970, %v3895
    %v3972 = vmul.f32 %v3971, %v3970
    %v3973 = vmul.f32 0.5, %v3972
    %v3974 = vsub.f32 1.5, %v3973
    %v3975 = vmul.f32 %v3970, %v3974
    %vm3976 = vweird.f32 %v3895
    %vm3977 = vweird.f32 %v3970
    %vm3978 = vmor %vm3976, %vm3977
    %v3979 = vsel %vm3978, %v3970, %v3975
    %v3980 = vrsqrt.pop %v3896
    %v3981 = vmul.f32 %v3980, %v3896
    %v3982 = vmul.f32 %v3981, %v3980
    %v3983 = vmul.f32 0.5, %v3982
    %v3984 = vsub.f32 1.5, %v3983
    %v3985 = vmul.f32 %v3980, %v3984
    %vm3986 = vweird.f32 %v3896
    %vm3987 = vweird.f32 %v3980
    %vm3988 = vmor %vm3986, %vm3987
    %v3989 = vsel %vm3988, %v3980, %v3985
    %v3990 = vrsqrt.pop %v3897
    %v3991 = vmul.f32 %v3990, %v3897
    %v3992 = vmul.f32 %v3991, %v3990
    %v3993 = vmul.f32 0.5, %v3992
    %v3994 = vsub.f32 1.5, %v3993
    %v3995 = vmul.f32 %v3990, %v3994
    %vm3996 = vweird.f32 %v3897
    %vm3997 = vweird.f32 %v3990
    %vm3998 = vmor %vm3996, %vm3997
    %v3999 = vsel %vm3998, %v3990, %v3995
    %v4000 = vrsqrt.pop %v3898
    %v4001 = vmul.f32 %v4000, %v3898
    %v4002 = vmul.f32 %v4001, %v4000
    %v4003 = vmul.f32 0.5, %v4002
    %v4004 = vsub.f32 1.5, %v4003
    %v4005 = vmul.f32 %v4000, %v4004
    %vm4006 = vweird.f32 %v3898
    %vm4007 = vweird.f32 %v4000
    %vm4008 = vmor %vm4006, %vm4007
    %v4009 = vsel %vm4008, %v4000, %v4005
    %v4010 = vrsqrt.pop %v3899
    %v4011 = vmul.f32 %v4010, %v3899
    %v4012 = vmul.f32 %v4011, %v4010
    %v4013 = vmul.f32 0.5, %v4012
    %v4014 = vsub.f32 1.5, %v4013
    %v4015 = vmul.f32 %v4010, %v4014
    %vm4016 = vweird.f32 %v3899
    %vm4017 = vweird.f32 %v4010
    %vm4018 = vmor %vm4016, %vm4017
    %v4019 = vsel %vm4018, %v4010, %v4015
    %v4020 = vmul.f32 %v3816, %v3909
    %v4021 = vmul.f32 %v3817, %v3919
    %v4022 = vmul.f32 %v3818, %v3929
    %v4023 = vmul.f32 %v3819, %v3939
    %v4024 = vmul.f32 %v3820, %v3949
    %v4025 = vmul.f32 %v3821, %v3959
    %v4026 = vmul.f32 %v3822, %v3969
    %v4027 = vmul.f32 %v3823, %v3979
    %v4028 = vmul.f32 %v3824, %v3989
    %v4029 = vmul.f32 %v3825, %v3999
    %v4030 = vmul.f32 %v3826, %v4009
    %v4031 = vmul.f32 %v3827, %v4019
    %v4033 = vperm.slane %v3765, 0
    %v4035 = vmul.f32 %v4020, %v4033
    %v4036 = vmul.f32 %v4021, %v4033
    %v4037 = vmul.f32 %v4022, %v4033
    %v4038 = vmul.f32 %v4023, %v4033
    %v4039 = vmul.f32 %v4024, %v4033
    %v4040 = vmul.f32 %v4025, %v4033
    %v4041 = vmul.f32 %v4026, %v4033
    %v4042 = vmul.f32 %v4027, %v4033
    %v4043 = vmul.f32 %v4028, %v4033
    %v4044 = vmul.f32 %v4029, %v4033
    %v4045 = vmul.f32 %v4030, %v4033
    %v4046 = vmul.f32 %v4031, %v4033
    %v4048 = vperm.slane %v3767, 0
    %v4050 = vadd.f32 %v4035, %v4048
    %v4051 = vadd.f32 %v4036, %v4048
    %v4052 = vadd.f32 %v4037, %v4048
    %v4053 = vadd.f32 %v4038, %v4048
    %v4054 = vadd.f32 %v4039, %v4048
    %v4055 = vadd.f32 %v4040, %v4048
    %v4056 = vadd.f32 %v4041, %v4048
    %v4057 = vadd.f32 %v4042, %v4048
    %v4058 = vadd.f32 %v4043, %v4048
    %v4059 = vadd.f32 %v4044, %v4048
    %v4060 = vadd.f32 %v4045, %v4048
    %v4061 = vadd.f32 %v4046, %v4048
    %s4062 = scalar_lea.vmem [#allocation3], 96
    %v4063 = vld [vmem:[%s4062] sm:$0xf]
    %v4064 = vld [vmem:[%s4062 + $0x4] sm:$0xf]
    %v4065 = vld [vmem:[%s4062 + $0x8] sm:$0xf]
    %v4066 = vld [vmem:[%s4062 + $0xc] sm:$0xf]
    %v4067 = vld [vmem:[%s4062 + $0x10] sm:$0xf]
    %v4068 = vld [vmem:[%s4062 + $0x14] sm:$0xf]
    %v4069 = vld [vmem:[%s4062 + $0x18] sm:$0xf]
    %v4070 = vld [vmem:[%s4062 + $0x1c] sm:$0xf]
    %v4071 = vld [vmem:[%s4062 + $0x20] sm:$0xf]
    %v4072 = vld [vmem:[%s4062 + $0x24] sm:$0xf]
    %v4073 = vld [vmem:[%s4062 + $0x28] sm:$0xf]
    %v4074 = vld [vmem:[%s4062 + $0x2c] sm:$0xf]
    %s4075 = scalar_lea.vmem %s3, 128
    %v4076 = vld [vmem:[%s4075] sm:$0xf]
    %v4077 = vld [vmem:[%s4075 + $0x4] sm:$0xf]
    %v4078 = vld [vmem:[%s4075 + $0x8] sm:$0xf]
    %v4079 = vld [vmem:[%s4075 + $0xc] sm:$0xf]
    %v4080 = vld [vmem:[%s4075 + $0x10] sm:$0xf]
    %v4081 = vld [vmem:[%s4075 + $0x14] sm:$0xf]
    %v4082 = vld [vmem:[%s4075 + $0x18] sm:$0xf]
    %v4083 = vld [vmem:[%s4075 + $0x1c] sm:$0xf]
    %v4084 = vld [vmem:[%s4075 + $0x20] sm:$0xf]
    %v4085 = vld [vmem:[%s4075 + $0x24] sm:$0xf]
    %v4086 = vld [vmem:[%s4075 + $0x28] sm:$0xf]
    %v4087 = vld [vmem:[%s4075 + $0x2c] sm:$0xf]
    %v4088 = vld [vmem:[%s4075 + $0x30] sm:$0xf]
    %v4089 = vld [vmem:[%s4075 + $0x34] sm:$0xf]
    %v4090 = vld [vmem:[%s4075 + $0x38] sm:$0xf]
    %v4091 = vld [vmem:[%s4075 + $0x3c] sm:$0xf]
    %s4092 = scalar_lea.vmem %s4, 2
    %v4093 = vld [vmem:[%s4092] sm:$0x1]
    %v4095 = vperm.slane %v4093, 0
    %v4109 = vunpack.c.l.b16 %v4063
    %v4110 = vunpack.c.l.b16 %v4064
    %v4111 = vunpack.c.l.b16 %v4065
    %v4112 = vunpack.c.l.b16 %v4066
    %v4113 = vunpack.c.l.b16 %v4067
    %v4114 = vunpack.c.l.b16 %v4068
    %v4115 = vunpack.c.l.b16 %v4069
    %v4116 = vunpack.c.l.b16 %v4070
    %v4117 = vunpack.c.l.b16 %v4071
    %v4118 = vunpack.c.l.b16 %v4072
    %v4119 = vunpack.c.l.b16 %v4073
    %v4120 = vunpack.c.l.b16 %v4074
    %v4121 = vpack.c.b16 %v4110, %v4109
    %v4122 = vpack.c.b16 %v4112, %v4111
    %v4123 = vpack.c.b16 %v4114, %v4113
    %v4124 = vpack.c.b16 %v4116, %v4115
    %v4125 = vpack.c.b16 %v4118, %v4117
    %v4126 = vpack.c.b16 %v4120, %v4119
    %v4149 = vunpack.c.l.b16 %v4076
    %v4150 = vunpack.c.l.b16 %v4077
    %v4151 = vunpack.c.l.b16 %v4078
    %v4152 = vunpack.c.l.b16 %v4079
    %v4153 = vunpack.c.l.b16 %v4080
    %v4154 = vunpack.c.l.b16 %v4081
    %v4155 = vunpack.c.l.b16 %v4082
    %v4156 = vunpack.c.l.b16 %v4083
    %v4157 = vunpack.c.l.b16 %v4084
    %v4158 = vunpack.c.l.b16 %v4085
    %v4159 = vunpack.c.l.b16 %v4086
    %v4160 = vunpack.c.l.b16 %v4087
    %v4161 = vunpack.c.l.b16 %v4088
    %v4162 = vunpack.c.l.b16 %v4089
    %v4163 = vunpack.c.l.b16 %v4090
    %v4164 = vunpack.c.l.b16 %v4091
    %v4165 = vpack.c.b16 %v4150, %v4149
    %v4166 = vpack.c.b16 %v4152, %v4151
    %v4167 = vpack.c.b16 %v4154, %v4153
    %v4168 = vpack.c.b16 %v4156, %v4155
    %v4169 = vpack.c.b16 %v4158, %v4157
    %v4170 = vpack.c.b16 %v4160, %v4159
    %v4171 = vpack.c.b16 %v4162, %v4161
    %v4172 = vpack.c.b16 %v4164, %v4163
    %4181 = vmatpush.bf16.msra.mxu0 %v4172
    %4182 = vmatpush.bf16.msra.mxu0 %v4171
    %4183 = vmatpush.bf16.msra.mxu0 %v4170
    %4184 = vmatpush.bf16.msra.mxu0 %v4169
    %4185 = vmatpush.bf16.msra.mxu0 %v4168
    %4186 = vmatpush.bf16.msra.mxu0 %v4167
    %4187 = vmatpush.bf16.msra.mxu0 %v4166
    %4188 = vmatpush.bf16.msra.mxu0 %v4165
    %4189 = vmatmul.bf16.gmra.mxu0 %v4121
    %v4190 = vpop.f32.mrf.mxu0
    %v4191 = vadd.f32 %v4095, %v4190
    %v4192 = vpop.f32.mrf.mxu0
    %v4193 = vadd.f32 %v4095, %v4192
    %4194 = vmatmul.bf16.gmra.mxu0 %v4122
    %v4195 = vpop.f32.mrf.mxu0
    %v4196 = vadd.f32 %v4095, %v4195
    %v4197 = vpop.f32.mrf.mxu0
    %v4198 = vadd.f32 %v4095, %v4197
    %4199 = vmatmul.bf16.gmra.mxu0 %v4123
    %v4200 = vpop.f32.mrf.mxu0
    %v4201 = vadd.f32 %v4095, %v4200
    %v4202 = vpop.f32.mrf.mxu0
    %v4203 = vadd.f32 %v4095, %v4202
    %4204 = vmatmul.bf16.gmra.mxu0 %v4124
    %v4205 = vpop.f32.mrf.mxu0
    %v4206 = vadd.f32 %v4095, %v4205
    %v4207 = vpop.f32.mrf.mxu0
    %v4208 = vadd.f32 %v4095, %v4207
    %4209 = vmatmul.bf16.gmra.mxu0 %v4125
    %v4210 = vpop.f32.mrf.mxu0
    %v4211 = vadd.f32 %v4095, %v4210
    %v4212 = vpop.f32.mrf.mxu0
    %v4213 = vadd.f32 %v4095, %v4212
    %4214 = vmatmul.bf16.gmra.mxu0 %v4126
    %v4215 = vpop.f32.mrf.mxu0
    %v4216 = vadd.f32 %v4095, %v4215
    %v4217 = vpop.f32.mrf.mxu0
    %v4218 = vadd.f32 %v4095, %v4217
    %4219 = vdwg.mxu0
    %v4220 = vadd.f32 %v4050, %v4191
    %v4221 = vadd.f32 %v4051, %v4193
    %v4222 = vadd.f32 %v4052, %v4196
    %v4223 = vadd.f32 %v4053, %v4198
    %v4224 = vadd.f32 %v4054, %v4201
    %v4225 = vadd.f32 %v4055, %v4203
    %v4226 = vadd.f32 %v4056, %v4206
    %v4227 = vadd.f32 %v4057, %v4208
    %v4228 = vadd.f32 %v4058, %v4211
    %v4229 = vadd.f32 %v4059, %v4213
    %v4230 = vadd.f32 %v4060, %v4216
    %v4231 = vadd.f32 %v4061, %v4218
    %v4232 = vmul.f32 %v4220, %v357
    %v4233 = vmul.f32 %v4221, %v359
    %v4234 = vmul.f32 %v4222, %v362
    %v4235 = vmul.f32 %v4223, %v364
    %v4236 = vmul.f32 %v4224, %v367
    %v4237 = vmul.f32 %v4225, %v369
    %v4238 = vmul.f32 %v4226, %v372
    %v4239 = vmul.f32 %v4227, %v374
    %v4240 = vmul.f32 %v4228, %v377
    %v4241 = vmul.f32 %v4229, %v379
    %v4242 = vmul.f32 %v4230, %v382
    %v4243 = vmul.f32 %v4231, %v384
    %v4244 = vadd.f32 %v4232, %v464
    %v4245 = vadd.f32 %v4233, %v466
    %v4246 = vadd.f32 %v4234, %v469
    %v4247 = vadd.f32 %v4235, %v471
    %v4248 = vadd.f32 %v4236, %v474
    %v4249 = vadd.f32 %v4237, %v476
    %v4250 = vadd.f32 %v4238, %v479
    %v4251 = vadd.f32 %v4239, %v481
    %v4252 = vadd.f32 %v4240, %v484
    %v4253 = vadd.f32 %v4241, %v486
    %v4254 = vadd.f32 %v4242, %v489
    %v4255 = vadd.f32 %v4243, %v491
    %s4256 = scalar_lea.vmem %s9, 128
    %v4257 = vld [vmem:[%s4256] sm:$0xff]
    %v4258 = vld [vmem:[%s4256 + $0x8] sm:$0xff]
    %v4259 = vld [vmem:[%s4256 + $0x10] sm:$0xff]
    %v4260 = vld [vmem:[%s4256 + $0x18] sm:$0xff]
    %v4261 = vld [vmem:[%s4256 + $0x20] sm:$0xff]
    %v4262 = vld [vmem:[%s4256 + $0x28] sm:$0xff]
    %v4263 = vld [vmem:[%s4256 + $0x30] sm:$0xff]
    %v4264 = vld [vmem:[%s4256 + $0x38] sm:$0xff]
    %v4265 = vpack.c.bf16 %v4245, %v4244
    %v4266 = vpack.c.bf16 %v4247, %v4246
    %v4267 = vpack.c.bf16 %v4249, %v4248
    %v4268 = vpack.c.bf16 %v4251, %v4250
    %v4269 = vpack.c.bf16 %v4253, %v4252
    %v4270 = vpack.c.bf16 %v4255, %v4254
    %s4271 = scalar_lea.vmem %s10, 4
    %v4272 = vld [vmem:[%s4271] sm:$0x3]
    %v4274 = vperm.slane %v4272, 0
    %v4275 = vperm.slane %v4272, 1
    %v4286 = vunpack.c.l.b16 %v4257
    %v4287 = vunpack.c.h.b16 %v4257
    %v4288 = vunpack.c.l.b16 %v4258
    %v4289 = vunpack.c.h.b16 %v4258
    %v4290 = vunpack.c.l.b16 %v4259
    %v4291 = vunpack.c.h.b16 %v4259
    %v4292 = vunpack.c.l.b16 %v4260
    %v4293 = vunpack.c.h.b16 %v4260
    %v4294 = vunpack.c.l.b16 %v4261
    %v4295 = vunpack.c.h.b16 %v4261
    %v4296 = vunpack.c.l.b16 %v4262
    %v4297 = vunpack.c.h.b16 %v4262
    %v4298 = vunpack.c.l.b16 %v4263
    %v4299 = vunpack.c.h.b16 %v4263
    %v4300 = vunpack.c.l.b16 %v4264
    %v4301 = vunpack.c.h.b16 %v4264
    %v4302 = vpack.c.b16 %v4288, %v4286
    %v4303 = vpack.c.b16 %v4289, %v4287
    %v4304 = vpack.c.b16 %v4292, %v4290
    %v4305 = vpack.c.b16 %v4293, %v4291
    %v4306 = vpack.c.b16 %v4296, %v4294
    %v4307 = vpack.c.b16 %v4297, %v4295
    %v4308 = vpack.c.b16 %v4300, %v4298
    %v4309 = vpack.c.b16 %v4301, %v4299
    %v4319 = vsel %vm740, %v4265, 0
    %v4322 = vsel %vm740, %v4266, 0
    %v4325 = vsel %vm740, %v4267, 0
    %v4328 = vsel %vm740, %v4268, 0
    %v4331 = vsel %vm740, %v4269, 0
    %v4334 = vsel %vm740, %v4270, 0
    %4336 = vmatpush.bf16.msra.mxu0 0
    %4337 = vmatpush.bf16.msra.mxu0 0
    %4338 = vmatpush.bf16.msra.mxu0 0
    %4339 = vmatpush.bf16.msra.mxu0 0
    %4340 = vmatpush.bf16.msra.mxu0 %v4308
    %4341 = vmatpush.bf16.msra.mxu0 %v4306
    %4342 = vmatpush.bf16.msra.mxu0 %v4304
    %4343 = vmatpush.bf16.msra.mxu0 %v4302
    %4344 = vmatmul.bf16.gmra.mxu0 %v4319
    %v4345 = vpop.f32.mrf.mxu0
    %v4346 = vadd.f32 %v4274, %v4345
    %v4347 = vpop.f32.mrf.mxu0
    %v4348 = vadd.f32 %v4274, %v4347
    %4349 = vmatmul.bf16.gmra.mxu0 %v4322
    %v4350 = vpop.f32.mrf.mxu0
    %v4351 = vadd.f32 %v4274, %v4350
    %v4352 = vpop.f32.mrf.mxu0
    %v4353 = vadd.f32 %v4274, %v4352
    %4354 = vmatmul.bf16.gmra.mxu0 %v4325
    %v4355 = vpop.f32.mrf.mxu0
    %v4356 = vadd.f32 %v4274, %v4355
    %v4357 = vpop.f32.mrf.mxu0
    %v4358 = vadd.f32 %v4274, %v4357
    %4359 = vmatmul.bf16.gmra.mxu0 %v4328
    %v4360 = vpop.f32.mrf.mxu0
    %v4361 = vadd.f32 %v4274, %v4360
    %v4362 = vpop.f32.mrf.mxu0
    %v4363 = vadd.f32 %v4274, %v4362
    %4364 = vmatmul.bf16.gmra.mxu0 %v4331
    %v4365 = vpop.f32.mrf.mxu0
    %v4366 = vadd.f32 %v4274, %v4365
    %v4367 = vpop.f32.mrf.mxu0
    %v4368 = vadd.f32 %v4274, %v4367
    %4369 = vmatmul.bf16.gmra.mxu0 %v4334
    %v4370 = vpop.f32.mrf.mxu0
    %v4371 = vadd.f32 %v4274, %v4370
    %v4372 = vpop.f32.mrf.mxu0
    %v4373 = vadd.f32 %v4274, %v4372
    %4374 = vdwg.mxu0
    %4375 = vmatpush.bf16.msra.mxu0 0
    %4376 = vmatpush.bf16.msra.mxu0 0
    %4377 = vmatpush.bf16.msra.mxu0 0
    %4378 = vmatpush.bf16.msra.mxu0 0
    %4379 = vmatpush.bf16.msra.mxu0 %v4309
    %4380 = vmatpush.bf16.msra.mxu0 %v4307
    %4381 = vmatpush.bf16.msra.mxu0 %v4305
    %4382 = vmatpush.bf16.msra.mxu0 %v4303
    %4383 = vmatmul.bf16.gmra.mxu0 %v4319
    %v4384 = vpop.f32.mrf.mxu0
    %v4385 = vadd.f32 %v4275, %v4384
    %v4386 = vpop.f32.mrf.mxu0
    %v4387 = vadd.f32 %v4275, %v4386
    %4388 = vmatmul.bf16.gmra.mxu0 %v4322
    %v4389 = vpop.f32.mrf.mxu0
    %v4390 = vadd.f32 %v4275, %v4389
    %v4391 = vpop.f32.mrf.mxu0
    %v4392 = vadd.f32 %v4275, %v4391
    %4393 = vmatmul.bf16.gmra.mxu0 %v4325
    %v4394 = vpop.f32.mrf.mxu0
    %v4395 = vadd.f32 %v4275, %v4394
    %v4396 = vpop.f32.mrf.mxu0
    %v4397 = vadd.f32 %v4275, %v4396
    %4398 = vmatmul.bf16.gmra.mxu0 %v4328
    %v4399 = vpop.f32.mrf.mxu0
    %v4400 = vadd.f32 %v4275, %v4399
    %v4401 = vpop.f32.mrf.mxu0
    %v4402 = vadd.f32 %v4275, %v4401
    %4403 = vmatmul.bf16.gmra.mxu0 %v4331
    %v4404 = vpop.f32.mrf.mxu0
    %v4405 = vadd.f32 %v4275, %v4404
    %v4406 = vpop.f32.mrf.mxu0
    %v4407 = vadd.f32 %v4275, %v4406
    %4408 = vmatmul.bf16.gmra.mxu0 %v4334
    %v4409 = vpop.f32.mrf.mxu0
    %v4410 = vadd.f32 %v4275, %v4409
    %v4411 = vpop.f32.mrf.mxu0
    %v4412 = vadd.f32 %v4275, %v4411
    %4413 = vdwg.mxu0
    %4417 = vrot.lane.b32.xlu0 %v4346, 64
    %v4418 = vpop.permute.xlu0 %4417
    %4419 = vrot.lane.b32.xlu0 %v4348, 64
    %v4420 = vpop.permute.xlu0 %4419
    %4421 = vrot.lane.b32.xlu0 %v4351, 64
    %v4422 = vpop.permute.xlu0 %4421
    %v4426 = vmul.f32 %v4346, %v4418
    %v4427 = vmul.f32 %v4348, %v4420
    %v4428 = vmul.f32 %v4351, %v4422
    %4432 = vrot.lane.b32.xlu0 %v4353, 64
    %v4433 = vpop.permute.xlu0 %4432
    %4434 = vrot.lane.b32.xlu0 %v4356, 64
    %v4435 = vpop.permute.xlu0 %4434
    %4436 = vrot.lane.b32.xlu0 %v4358, 64
    %v4437 = vpop.permute.xlu0 %4436
    %v4441 = vmul.f32 %v4346, %v4433
    %v4442 = vmul.f32 %v4348, %v4435
    %v4443 = vmul.f32 %v4351, %v4437
    %v4444 = vmul.f32 %v4353, %v4418
    %v4445 = vmul.f32 %v4356, %v4420
    %v4446 = vmul.f32 %v4358, %v4422
    %v4447 = vmul.f32 %v4353, %v4433
    %v4448 = vmul.f32 %v4356, %v4435
    %v4449 = vmul.f32 %v4358, %v4437
    %4453 = vrot.lane.b32.xlu0 %v4361, 64
    %v4454 = vpop.permute.xlu0 %4453
    %4455 = vrot.lane.b32.xlu0 %v4363, 64
    %v4456 = vpop.permute.xlu0 %4455
    %4457 = vrot.lane.b32.xlu0 %v4366, 64
    %v4458 = vpop.permute.xlu0 %4457
    %v4462 = vmul.f32 %v4361, %v4454
    %v4463 = vmul.f32 %v4363, %v4456
    %v4464 = vmul.f32 %v4366, %v4458
    %4468 = vrot.lane.b32.xlu0 %v4368, 64
    %v4469 = vpop.permute.xlu0 %4468
    %4470 = vrot.lane.b32.xlu0 %v4371, 64
    %v4471 = vpop.permute.xlu0 %4470
    %4472 = vrot.lane.b32.xlu0 %v4373, 64
    %v4473 = vpop.permute.xlu0 %4472
    %v4477 = vmul.f32 %v4361, %v4469
    %v4478 = vmul.f32 %v4363, %v4471
    %v4479 = vmul.f32 %v4366, %v4473
    %v4480 = vmul.f32 %v4368, %v4454
    %v4481 = vmul.f32 %v4371, %v4456
    %v4482 = vmul.f32 %v4373, %v4458
    %v4483 = vmul.f32 %v4368, %v4469
    %v4484 = vmul.f32 %v4371, %v4471
    %v4485 = vmul.f32 %v4373, %v4473
    %v4486 = vpack.c.bf16 %v4427, %v4426
    %v4487 = vpack.c.bf16 %v4441, %v4428
    %v4488 = vpack.c.bf16 %v4443, %v4442
    %v4489 = vpack.c.bf16 %v4445, %v4444
    %v4490 = vpack.c.bf16 %v4447, %v4446
    %v4491 = vpack.c.bf16 %v4449, %v4448
    %v4492 = vpack.c.bf16 %v4463, %v4462
    %v4493 = vpack.c.bf16 %v4477, %v4464
    %v4494 = vpack.c.bf16 %v4479, %v4478
    %v4495 = vpack.c.bf16 %v4481, %v4480
    %v4496 = vpack.c.bf16 %v4483, %v4482
    %v4497 = vpack.c.bf16 %v4485, %v4484
    %v4499 = vsel %vm740, %v4486, 0
    %v4502 = vsel %vm740, %v4487, 0
    %v4505 = vsel %vm740, %v4488, 0
    %v4508 = vsel %vm740, %v4489, 0
    %v4511 = vsel %vm740, %v4490, 0
    %v4514 = vsel %vm740, %v4491, 0
    %v4517 = vsel %vm740, %v4492, 0
    %v4520 = vsel %vm740, %v4493, 0
    %v4523 = vsel %vm740, %v4494, 0
    %v4526 = vsel %vm740, %v4495, 0
    %v4529 = vsel %vm740, %v4496, 0
    %v4532 = vsel %vm740, %v4497, 0
    %4534 = vmatpush.bf16.msra.mxu0 0
    %4535 = vmatpush.bf16.msra.mxu0 0
    %4536 = vmatpush.bf16.msra.mxu0 0
    %4537 = vmatpush.bf16.msra.mxu0 0
    %4538 = vmatpush.bf16.msra.mxu0 %v940
    %4539 = vmatpush.bf16.msra.mxu0 %v939
    %4540 = vmatpush.bf16.msra.mxu0 %v938
    %4541 = vmatpush.bf16.msra.mxu0 %v937
    %4542 = vmatmul.bf16.gmra.mxu0 %v4499
    %v4543 = vpop.f32.mrf.mxu0
    %v4544 = vadd.f32 0.0, %v4543
    %v4545 = vpop.f32.mrf.mxu0
    %v4546 = vadd.f32 0.0, %v4545
    %4547 = vmatmul.bf16.gmra.mxu0 %v4502
    %v4548 = vpop.f32.mrf.mxu0
    %v4549 = vadd.f32 0.0, %v4548
    %v4550 = vpop.f32.mrf.mxu0
    %v4551 = vadd.f32 0.0, %v4550
    %4552 = vmatmul.bf16.gmra.mxu0 %v4505
    %v4553 = vpop.f32.mrf.mxu0
    %v4554 = vadd.f32 0.0, %v4553
    %v4555 = vpop.f32.mrf.mxu0
    %v4556 = vadd.f32 0.0, %v4555
    %4557 = vmatmul.bf16.gmra.mxu0 %v4508
    %v4558 = vpop.f32.mrf.mxu0
    %v4559 = vadd.f32 0.0, %v4558
    %v4560 = vpop.f32.mrf.mxu0
    %v4561 = vadd.f32 0.0, %v4560
    %4562 = vmatmul.bf16.gmra.mxu0 %v4511
    %v4563 = vpop.f32.mrf.mxu0
    %v4564 = vadd.f32 0.0, %v4563
    %v4565 = vpop.f32.mrf.mxu0
    %v4566 = vadd.f32 0.0, %v4565
    %4567 = vmatmul.bf16.gmra.mxu0 %v4514
    %v4568 = vpop.f32.mrf.mxu0
    %v4569 = vadd.f32 0.0, %v4568
    %v4570 = vpop.f32.mrf.mxu0
    %v4571 = vadd.f32 0.0, %v4570
    %4572 = vmatmul.bf16.gmra.mxu0 %v4517
    %v4573 = vpop.f32.mrf.mxu0
    %v4574 = vadd.f32 0.0, %v4573
    %v4575 = vpop.f32.mrf.mxu0
    %v4576 = vadd.f32 0.0, %v4575
    %4577 = vmatmul.bf16.gmra.mxu0 %v4520
    %v4578 = vpop.f32.mrf.mxu0
    %v4579 = vadd.f32 0.0, %v4578
    %v4580 = vpop.f32.mrf.mxu0
    %v4581 = vadd.f32 0.0, %v4580
    %4582 = vmatmul.bf16.gmra.mxu0 %v4523
    %v4583 = vpop.f32.mrf.mxu0
    %v4584 = vadd.f32 0.0, %v4583
    %v4585 = vpop.f32.mrf.mxu0
    %v4586 = vadd.f32 0.0, %v4585
    %4587 = vmatmul.bf16.gmra.mxu0 %v4526
    %v4588 = vpop.f32.mrf.mxu0
    %v4589 = vadd.f32 0.0, %v4588
    %v4590 = vpop.f32.mrf.mxu0
    %v4591 = vadd.f32 0.0, %v4590
    %4592 = vmatmul.bf16.gmra.mxu0 %v4529
    %v4593 = vpop.f32.mrf.mxu0
    %v4594 = vadd.f32 0.0, %v4593
    %v4595 = vpop.f32.mrf.mxu0
    %v4596 = vadd.f32 0.0, %v4595
    %4597 = vmatmul.bf16.gmra.mxu0 %v4532
    %v4598 = vpop.f32.mrf.mxu0
    %v4599 = vadd.f32 0.0, %v4598
    %v4600 = vpop.f32.mrf.mxu0
    %v4601 = vadd.f32 0.0, %v4600
    %4602 = vdwg.mxu0
    %v4603 = vmul.f32 %v4544, 0.25
    %v4604 = vmul.f32 %v4546, 0.25
    %v4605 = vmul.f32 %v4549, 0.25
    %v4606 = vmul.f32 %v4551, 0.25
    %v4607 = vmul.f32 %v4554, 0.25
    %v4608 = vmul.f32 %v4556, 0.25
    %v4609 = vmul.f32 %v4559, 0.25
    %v4610 = vmul.f32 %v4561, 0.25
    %v4611 = vmul.f32 %v4564, 0.25
    %v4612 = vmul.f32 %v4566, 0.25
    %v4613 = vmul.f32 %v4569, 0.25
    %v4614 = vmul.f32 %v4571, 0.25
    %v4615 = vmul.f32 %v4574, 0.25
    %v4616 = vmul.f32 %v4576, 0.25
    %v4617 = vmul.f32 %v4579, 0.25
    %v4618 = vmul.f32 %v4581, 0.25
    %v4619 = vmul.f32 %v4584, 0.25
    %v4620 = vmul.f32 %v4586, 0.25
    %v4621 = vmul.f32 %v4589, 0.25
    %v4622 = vmul.f32 %v4591, 0.25
    %v4623 = vmul.f32 %v4594, 0.25
    %v4624 = vmul.f32 %v4596, 0.25
    %v4625 = vmul.f32 %v4599, 0.25
    %v4626 = vmul.f32 %v4601, 0.25
    %v4627 = vmax.f32 %v4603, %v4606
    %v4628 = vmax.f32 %v4604, %v4607
    %v4629 = vmax.f32 %v4605, %v4608
    %v4630 = vsub.f32 %v4603, %v4627
    %v4631 = vsub.f32 %v4604, %v4628
    %v4632 = vsub.f32 %v4605, %v4629
    %v4633 = vmul.f32 %v4630, 1.442695
    %v4634 = vpow.pop %v4633
    %v4635 = vmul.f32 %v4631, 1.442695
    %v4636 = vpow.pop %v4635
    %v4637 = vmul.f32 %v4632, 1.442695
    %v4638 = vpow.pop %v4637
    %v4639 = vsub.f32 %v4606, %v4627
    %v4640 = vsub.f32 %v4607, %v4628
    %v4641 = vsub.f32 %v4608, %v4629
    %v4642 = vmul.f32 %v4639, 1.442695
    %v4643 = vpow.pop %v4642
    %v4644 = vmul.f32 %v4640, 1.442695
    %v4645 = vpow.pop %v4644
    %v4646 = vmul.f32 %v4641, 1.442695
    %v4647 = vpow.pop %v4646
    %v4648 = vadd.f32 %v4634, %v4643
    %v4649 = vadd.f32 %v4636, %v4645
    %v4650 = vadd.f32 %v4638, %v4647
    %v4651 = vrcp.pop %v4648
    %v4652 = vrcp.pop %v4649
    %v4653 = vrcp.pop %v4650
    %v4654 = vmul.f32 %v4634, %v4651
    %v4655 = vmul.f32 %v4636, %v4652
    %v4656 = vmul.f32 %v4638, %v4653
    %v4657 = vmul.f32 %v4654, %v4385
    %v4658 = vmul.f32 %v4655, %v4387
    %v4659 = vmul.f32 %v4656, %v4390
    %v4660 = vmul.f32 %v4643, %v4651
    %v4661 = vmul.f32 %v4645, %v4652
    %v4662 = vmul.f32 %v4647, %v4653
    %v4663 = vmul.f32 %v4660, %v4392
    %v4664 = vmul.f32 %v4661, %v4395
    %v4665 = vmul.f32 %v4662, %v4397
    %v4666 = vadd.f32 %v4657, %v4663
    %v4667 = vadd.f32 %v4658, %v4664
    %v4668 = vadd.f32 %v4659, %v4665
    %v4669 = vmax.f32 %v4609, %v4612
    %v4670 = vmax.f32 %v4610, %v4613
    %v4671 = vmax.f32 %v4611, %v4614
    %v4672 = vsub.f32 %v4609, %v4669
    %v4673 = vsub.f32 %v4610, %v4670
    %v4674 = vsub.f32 %v4611, %v4671
    %v4675 = vmul.f32 %v4672, 1.442695
    %v4676 = vpow.pop %v4675
    %v4677 = vmul.f32 %v4673, 1.442695
    %v4678 = vpow.pop %v4677
    %v4679 = vmul.f32 %v4674, 1.442695
    %v4680 = vpow.pop %v4679
    %v4681 = vsub.f32 %v4612, %v4669
    %v4682 = vsub.f32 %v4613, %v4670
    %v4683 = vsub.f32 %v4614, %v4671
    %v4684 = vmul.f32 %v4681, 1.442695
    %v4685 = vpow.pop %v4684
    %v4686 = vmul.f32 %v4682, 1.442695
    %v4687 = vpow.pop %v4686
    %v4688 = vmul.f32 %v4683, 1.442695
    %v4689 = vpow.pop %v4688
    %v4690 = vadd.f32 %v4676, %v4685
    %v4691 = vadd.f32 %v4678, %v4687
    %v4692 = vadd.f32 %v4680, %v4689
    %v4693 = vrcp.pop %v4690
    %v4694 = vrcp.pop %v4691
    %v4695 = vrcp.pop %v4692
    %v4696 = vmul.f32 %v4676, %v4693
    %v4697 = vmul.f32 %v4678, %v4694
    %v4698 = vmul.f32 %v4680, %v4695
    %v4699 = vmul.f32 %v4696, %v4385
    %v4700 = vmul.f32 %v4697, %v4387
    %v4701 = vmul.f32 %v4698, %v4390
    %v4702 = vmul.f32 %v4685, %v4693
    %v4703 = vmul.f32 %v4687, %v4694
    %v4704 = vmul.f32 %v4689, %v4695
    %v4705 = vmul.f32 %v4702, %v4392
    %v4706 = vmul.f32 %v4703, %v4395
    %v4707 = vmul.f32 %v4704, %v4397
    %v4708 = vadd.f32 %v4699, %v4705
    %v4709 = vadd.f32 %v4700, %v4706
    %v4710 = vadd.f32 %v4701, %v4707
    %v4711 = vmax.f32 %v4615, %v4618
    %v4712 = vmax.f32 %v4616, %v4619
    %v4713 = vmax.f32 %v4617, %v4620
    %v4714 = vsub.f32 %v4615, %v4711
    %v4715 = vsub.f32 %v4616, %v4712
    %v4716 = vsub.f32 %v4617, %v4713
    %v4717 = vmul.f32 %v4714, 1.442695
    %v4718 = vpow.pop %v4717
    %v4719 = vmul.f32 %v4715, 1.442695
    %v4720 = vpow.pop %v4719
    %v4721 = vmul.f32 %v4716, 1.442695
    %v4722 = vpow.pop %v4721
    %v4723 = vsub.f32 %v4618, %v4711
    %v4724 = vsub.f32 %v4619, %v4712
    %v4725 = vsub.f32 %v4620, %v4713
    %v4726 = vmul.f32 %v4723, 1.442695
    %v4727 = vpow.pop %v4726
    %v4728 = vmul.f32 %v4724, 1.442695
    %v4729 = vpow.pop %v4728
    %v4730 = vmul.f32 %v4725, 1.442695
    %v4731 = vpow.pop %v4730
    %v4732 = vadd.f32 %v4718, %v4727
    %v4733 = vadd.f32 %v4720, %v4729
    %v4734 = vadd.f32 %v4722, %v4731
    %v4735 = vrcp.pop %v4732
    %v4736 = vrcp.pop %v4733
    %v4737 = vrcp.pop %v4734
    %v4738 = vmul.f32 %v4718, %v4735
    %v4739 = vmul.f32 %v4720, %v4736
    %v4740 = vmul.f32 %v4722, %v4737
    %v4741 = vmul.f32 %v4738, %v4400
    %v4742 = vmul.f32 %v4739, %v4402
    %v4743 = vmul.f32 %v4740, %v4405
    %v4744 = vmul.f32 %v4727, %v4735
    %v4745 = vmul.f32 %v4729, %v4736
    %v4746 = vmul.f32 %v4731, %v4737
    %v4747 = vmul.f32 %v4744, %v4407
    %v4748 = vmul.f32 %v4745, %v4410
    %v4749 = vmul.f32 %v4746, %v4412
    %v4750 = vadd.f32 %v4741, %v4747
    %v4751 = vadd.f32 %v4742, %v4748
    %v4752 = vadd.f32 %v4743, %v4749
    %v4753 = vmax.f32 %v4621, %v4624
    %v4754 = vmax.f32 %v4622, %v4625
    %v4755 = vmax.f32 %v4623, %v4626
    %v4756 = vsub.f32 %v4621, %v4753
    %v4757 = vsub.f32 %v4622, %v4754
    %v4758 = vsub.f32 %v4623, %v4755
    %v4759 = vmul.f32 %v4756, 1.442695
    %v4760 = vpow.pop %v4759
    %v4761 = vmul.f32 %v4757, 1.442695
    %v4762 = vpow.pop %v4761
    %v4763 = vmul.f32 %v4758, 1.442695
    %v4764 = vpow.pop %v4763
    %v4765 = vsub.f32 %v4624, %v4753
    %v4766 = vsub.f32 %v4625, %v4754
    %v4767 = vsub.f32 %v4626, %v4755
    %v4768 = vmul.f32 %v4765, 1.442695
    %v4769 = vpow.pop %v4768
    %v4770 = vmul.f32 %v4766, 1.442695
    %v4771 = vpow.pop %v4770
    %v4772 = vmul.f32 %v4767, 1.442695
    %v4773 = vpow.pop %v4772
    %v4774 = vadd.f32 %v4760, %v4769
    %v4775 = vadd.f32 %v4762, %v4771
    %v4776 = vadd.f32 %v4764, %v4773
    %v4777 = vrcp.pop %v4774
    %v4778 = vrcp.pop %v4775
    %v4779 = vrcp.pop %v4776
    %v4780 = vmul.f32 %v4760, %v4777
    %v4781 = vmul.f32 %v4762, %v4778
    %v4782 = vmul.f32 %v4764, %v4779
    %v4783 = vmul.f32 %v4780, %v4400
    %v4784 = vmul.f32 %v4781, %v4402
    %v4785 = vmul.f32 %v4782, %v4405
    %v4786 = vmul.f32 %v4769, %v4777
    %v4787 = vmul.f32 %v4771, %v4778
    %v4788 = vmul.f32 %v4773, %v4779
    %v4789 = vmul.f32 %v4786, %v4407
    %v4790 = vmul.f32 %v4787, %v4410
    %v4791 = vmul.f32 %v4788, %v4412
    %v4792 = vadd.f32 %v4783, %v4789
    %v4793 = vadd.f32 %v4784, %v4790
    %v4794 = vadd.f32 %v4785, %v4791
    %s4795 = scalar_lea.vmem [#allocation8], 64
    %v4796 = vld [vmem:[%s4795] sm:$0xf]
    %v4797 = vld [vmem:[%s4795 + $0x4] sm:$0xf]
    %v4798 = vld [vmem:[%s4795 + $0x8] sm:$0xf]
    %v4799 = vld [vmem:[%s4795 + $0xc] sm:$0xf]
    %v4800 = vld [vmem:[%s4795 + $0x10] sm:$0xf]
    %v4801 = vld [vmem:[%s4795 + $0x14] sm:$0xf]
    %v4802 = vld [vmem:[%s4795 + $0x18] sm:$0xf]
    %v4803 = vld [vmem:[%s4795 + $0x1c] sm:$0xf]
    %v4804 = vpack.c.bf16 %v4667, %v4666
    %v4805 = vpack.c.bf16 %v4708, %v4668
    %v4806 = vpack.c.bf16 %v4710, %v4709
    %v4807 = vpack.c.bf16 %v4751, %v4750
    %v4808 = vpack.c.bf16 %v4792, %v4752
    %v4809 = vpack.c.bf16 %v4794, %v4793
    %s4810 = scalar_lea.vmem %s12, 2
    %v4811 = vld [vmem:[%s4810] sm:$0x1]
    %v4813 = vperm.slane %v4811, 0
    %v4823 = vunpack.c.l.b16 %v4796
    %v4824 = vunpack.c.l.b16 %v4797
    %v4825 = vunpack.c.l.b16 %v4798
    %v4826 = vunpack.c.l.b16 %v4799
    %v4827 = vunpack.c.l.b16 %v4800
    %v4828 = vunpack.c.l.b16 %v4801
    %v4829 = vunpack.c.l.b16 %v4802
    %v4830 = vunpack.c.l.b16 %v4803
    %v4831 = vpack.c.b16 %v4824, %v4823
    %v4832 = vpack.c.b16 %v4826, %v4825
    %v4833 = vpack.c.b16 %v4828, %v4827
    %v4834 = vpack.c.b16 %v4830, %v4829
    %v4840 = vsel %vm740, %v4804, 0
    %v4843 = vsel %vm740, %v4805, 0
    %v4846 = vsel %vm740, %v4806, 0
    %v4849 = vsel %vm740, %v4807, 0
    %v4852 = vsel %vm740, %v4808, 0
    %v4855 = vsel %vm740, %v4809, 0
    %4857 = vmatpush.bf16.msra.mxu0 0
    %4858 = vmatpush.bf16.msra.mxu0 0
    %4859 = vmatpush.bf16.msra.mxu0 0
    %4860 = vmatpush.bf16.msra.mxu0 0
    %4861 = vmatpush.bf16.msra.mxu0 %v4834
    %4862 = vmatpush.bf16.msra.mxu0 %v4833
    %4863 = vmatpush.bf16.msra.mxu0 %v4832
    %4864 = vmatpush.bf16.msra.mxu0 %v4831
    %4865 = vmatmul.bf16.gmra.mxu0 %v4840
    %v4866 = vpop.f32.mrf.mxu0
    %v4867 = vadd.f32 %v4813, %v4866
    %v4868 = vpop.f32.mrf.mxu0
    %v4869 = vadd.f32 %v4813, %v4868
    %4870 = vmatmul.bf16.gmra.mxu0 %v4843
    %v4871 = vpop.f32.mrf.mxu0
    %v4872 = vadd.f32 %v4813, %v4871
    %v4873 = vpop.f32.mrf.mxu0
    %v4874 = vadd.f32 %v4813, %v4873
    %4875 = vmatmul.bf16.gmra.mxu0 %v4846
    %v4876 = vpop.f32.mrf.mxu0
    %v4877 = vadd.f32 %v4813, %v4876
    %v4878 = vpop.f32.mrf.mxu0
    %v4879 = vadd.f32 %v4813, %v4878
    %4880 = vmatmul.bf16.gmra.mxu0 %v4849
    %v4881 = vpop.f32.mrf.mxu0
    %v4882 = vadd.f32 %v4813, %v4881
    %v4883 = vpop.f32.mrf.mxu0
    %v4884 = vadd.f32 %v4813, %v4883
    %4885 = vmatmul.bf16.gmra.mxu0 %v4852
    %v4886 = vpop.f32.mrf.mxu0
    %v4887 = vadd.f32 %v4813, %v4886
    %v4888 = vpop.f32.mrf.mxu0
    %v4889 = vadd.f32 %v4813, %v4888
    %4890 = vmatmul.bf16.gmra.mxu0 %v4855
    %v4891 = vpop.f32.mrf.mxu0
    %v4892 = vadd.f32 %v4813, %v4891
    %v4893 = vpop.f32.mrf.mxu0
    %v4894 = vadd.f32 %v4813, %v4893
    %4895 = vdwg.mxu0
    %v4896 = vadd.f32 %v4244, %v4867
    %v4897 = vadd.f32 %v4245, %v4869
    %v4898 = vadd.f32 %v4246, %v4872
    %v4899 = vadd.f32 %v4247, %v4874
    %v4900 = vadd.f32 %v4248, %v4877
    %v4901 = vadd.f32 %v4249, %v4879
    %v4902 = vadd.f32 %v4250, %v4882
    %v4903 = vadd.f32 %v4251, %v4884
    %v4904 = vadd.f32 %v4252, %v4887
    %v4905 = vadd.f32 %v4253, %v4889
    %v4906 = vadd.f32 %v4254, %v4892
    %v4907 = vadd.f32 %v4255, %v4894
    %s4908 = scalar_lea.vmem %s13, 2
    %v4909 = vld [vmem:[%s4908] sm:$0x1]
    %s4910 = scalar_lea.vmem %s14, 2
    %v4911 = vld [vmem:[%s4910] sm:$0x1]
    %v4912 = vsel %vm740, %v4896, 0.0
    %4913 = vadd.xlane.f32.xlu0 %v4912
    %v4914 = vpop.xlane.xlu0 %4913
    %v4915 = vsel %vm740, %v4897, 0.0
    %4916 = vadd.xlane.f32.xlu0 %v4915
    %v4917 = vpop.xlane.xlu0 %4916
    %v4918 = vsel %vm740, %v4898, 0.0
    %4919 = vadd.xlane.f32.xlu0 %v4918
    %v4920 = vpop.xlane.xlu0 %4919
    %v4921 = vsel %vm740, %v4899, 0.0
    %4922 = vadd.xlane.f32.xlu0 %v4921
    %v4923 = vpop.xlane.xlu0 %4922
    %v4924 = vsel %vm740, %v4900, 0.0
    %4925 = vadd.xlane.f32.xlu0 %v4924
    %v4926 = vpop.xlane.xlu0 %4925
    %v4927 = vsel %vm740, %v4901, 0.0
    %4928 = vadd.xlane.f32.xlu0 %v4927
    %v4929 = vpop.xlane.xlu0 %4928
    %v4930 = vsel %vm740, %v4902, 0.0
    %4931 = vadd.xlane.f32.xlu0 %v4930
    %v4932 = vpop.xlane.xlu0 %4931
    %v4933 = vsel %vm740, %v4903, 0.0
    %4934 = vadd.xlane.f32.xlu0 %v4933
    %v4935 = vpop.xlane.xlu0 %4934
    %v4936 = vsel %vm740, %v4904, 0.0
    %4937 = vadd.xlane.f32.xlu0 %v4936
    %v4938 = vpop.xlane.xlu0 %4937
    %v4939 = vsel %vm740, %v4905, 0.0
    %4940 = vadd.xlane.f32.xlu0 %v4939
    %v4941 = vpop.xlane.xlu0 %4940
    %v4942 = vsel %vm740, %v4906, 0.0
    %4943 = vadd.xlane.f32.xlu0 %v4942
    %v4944 = vpop.xlane.xlu0 %4943
    %v4945 = vsel %vm740, %v4907, 0.0
    %4946 = vadd.xlane.f32.xlu0 %v4945
    %v4947 = vpop.xlane.xlu0 %4946
    %v4948 = vmul.f32 %v4914, %v1397
    %v4949 = vmul.f32 %v4917, %v1397
    %v4950 = vmul.f32 %v4920, %v1397
    %v4951 = vmul.f32 %v4923, %v1397
    %v4952 = vmul.f32 %v4926, %v1397
    %v4953 = vmul.f32 %v4929, %v1397
    %v4954 = vmul.f32 %v4932, %v1397
    %v4955 = vmul.f32 %v4935, %v1397
    %v4956 = vmul.f32 %v4938, %v1397
    %v4957 = vmul.f32 %v4941, %v1397
    %v4958 = vmul.f32 %v4944, %v1397
    %v4959 = vmul.f32 %v4947, %v1397
    %v4960 = vsub.f32 %v4896, %v4948
    %v4961 = vsub.f32 %v4897, %v4949
    %v4962 = vsub.f32 %v4898, %v4950
    %v4963 = vsub.f32 %v4899, %v4951
    %v4964 = vsub.f32 %v4900, %v4952
    %v4965 = vsub.f32 %v4901, %v4953
    %v4966 = vsub.f32 %v4902, %v4954
    %v4967 = vsub.f32 %v4903, %v4955
    %v4968 = vsub.f32 %v4904, %v4956
    %v4969 = vsub.f32 %v4905, %v4957
    %v4970 = vsub.f32 %v4906, %v4958
    %v4971 = vsub.f32 %v4907, %v4959
    %v4972 = vmul.f32 %v4960, %v4960
    %v4973 = vmul.f32 %v4961, %v4961
    %v4974 = vmul.f32 %v4962, %v4962
    %v4975 = vmul.f32 %v4963, %v4963
    %v4976 = vmul.f32 %v4964, %v4964
    %v4977 = vmul.f32 %v4965, %v4965
    %v4978 = vmul.f32 %v4966, %v4966
    %v4979 = vmul.f32 %v4967, %v4967
    %v4980 = vmul.f32 %v4968, %v4968
    %v4981 = vmul.f32 %v4969, %v4969
    %v4982 = vmul.f32 %v4970, %v4970
    %v4983 = vmul.f32 %v4971, %v4971
    %v4984 = vsel %vm740, %v4972, 0.0
    %4985 = vadd.xlane.f32.xlu0 %v4984
    %v4986 = vpop.xlane.xlu0 %4985
    %v4987 = vsel %vm740, %v4973, 0.0
    %4988 = vadd.xlane.f32.xlu0 %v4987
    %v4989 = vpop.xlane.xlu0 %4988
    %v4990 = vsel %vm740, %v4974, 0.0
    %4991 = vadd.xlane.f32.xlu0 %v4990
    %v4992 = vpop.xlane.xlu0 %4991
    %v4993 = vsel %vm740, %v4975, 0.0
    %4994 = vadd.xlane.f32.xlu0 %v4993
    %v4995 = vpop.xlane.xlu0 %4994
    %v4996 = vsel %vm740, %v4976, 0.0
    %4997 = vadd.xlane.f32.xlu0 %v4996
    %v4998 = vpop.xlane.xlu0 %4997
    %v4999 = vsel %vm740, %v4977, 0.0
    %5000 = vadd.xlane.f32.xlu0 %v4999
    %v5001 = vpop.xlane.xlu0 %5000
    %v5002 = vsel %vm740, %v4978, 0.0
    %5003 = vadd.xlane.f32.xlu0 %v5002
    %v5004 = vpop.xlane.xlu0 %5003
    %v5005 = vsel %vm740, %v4979, 0.0
    %5006 = vadd.xlane.f32.xlu0 %v5005
    %v5007 = vpop.xlane.xlu0 %5006
    %v5008 = vsel %vm740, %v4980, 0.0
    %5009 = vadd.xlane.f32.xlu0 %v5008
    %v5010 = vpop.xlane.xlu0 %5009
    %v5011 = vsel %vm740, %v4981, 0.0
    %5012 = vadd.xlane.f32.xlu0 %v5011
    %v5013 = vpop.xlane.xlu0 %5012
    %v5014 = vsel %vm740, %v4982, 0.0
    %5015 = vadd.xlane.f32.xlu0 %v5014
    %v5016 = vpop.xlane.xlu0 %5015
    %v5017 = vsel %vm740, %v4983, 0.0
    %5018 = vadd.xlane.f32.xlu0 %v5017
    %v5019 = vpop.xlane.xlu0 %5018
    %v5020 = vmul.f32 %v4986, %v1397
    %v5021 = vmul.f32 %v4989, %v1397
    %v5022 = vmul.f32 %v4992, %v1397
    %v5023 = vmul.f32 %v4995, %v1397
    %v5024 = vmul.f32 %v4998, %v1397
    %v5025 = vmul.f32 %v5001, %v1397
    %v5026 = vmul.f32 %v5004, %v1397
    %v5027 = vmul.f32 %v5007, %v1397
    %v5028 = vmul.f32 %v5010, %v1397
    %v5029 = vmul.f32 %v5013, %v1397
    %v5030 = vmul.f32 %v5016, %v1397
    %v5031 = vmul.f32 %v5019, %v1397
    %v5032 = vadd.f32 %v5020, 1e-05
    %v5033 = vadd.f32 %v5021, 1e-05
    %v5034 = vadd.f32 %v5022, 1e-05
    %v5035 = vadd.f32 %v5023, 1e-05
    %v5036 = vadd.f32 %v5024, 1e-05
    %v5037 = vadd.f32 %v5025, 1e-05
    %v5038 = vadd.f32 %v5026, 1e-05
    %v5039 = vadd.f32 %v5027, 1e-05
    %v5040 = vadd.f32 %v5028, 1e-05
    %v5041 = vadd.f32 %v5029, 1e-05
    %v5042 = vadd.f32 %v5030, 1e-05
    %v5043 = vadd.f32 %v5031, 1e-05
    %v5044 = vrsqrt.pop %v5032
    %v5045 = vmul.f32 %v5044, %v5032
    %v5046 = vmul.f32 %v5045, %v5044
    %v5047 = vmul.f32 0.5, %v5046
    %v5048 = vsub.f32 1.5, %v5047
    %v5049 = vmul.f32 %v5044, %v5048
    %vm5050 = vweird.f32 %v5032
    %vm5051 = vweird.f32 %v5044
    %vm5052 = vmor %vm5050, %vm5051
    %v5053 = vsel %vm5052, %v5044, %v5049
    %v5054 = vrsqrt.pop %v5033
    %v5055 = vmul.f32 %v5054, %v5033
    %v5056 = vmul.f32 %v5055, %v5054
    %v5057 = vmul.f32 0.5, %v5056
    %v5058 = vsub.f32 1.5, %v5057
    %v5059 = vmul.f32 %v5054, %v5058
    %vm5060 = vweird.f32 %v5033
    %vm5061 = vweird.f32 %v5054
    %vm5062 = vmor %vm5060, %vm5061
    %v5063 = vsel %vm5062, %v5054, %v5059
    %v5064 = vrsqrt.pop %v5034
    %v5065 = vmul.f32 %v5064, %v5034
    %v5066 = vmul.f32 %v5065, %v5064
    %v5067 = vmul.f32 0.5, %v5066
    %v5068 = vsub.f32 1.5, %v5067
    %v5069 = vmul.f32 %v5064, %v5068
    %vm5070 = vweird.f32 %v5034
    %vm5071 = vweird.f32 %v5064
    %vm5072 = vmor %vm5070, %vm5071
    %v5073 = vsel %vm5072, %v5064, %v5069
    %v5074 = vrsqrt.pop %v5035
    %v5075 = vmul.f32 %v5074, %v5035
    %v5076 = vmul.f32 %v5075, %v5074
    %v5077 = vmul.f32 0.5, %v5076
    %v5078 = vsub.f32 1.5, %v5077
    %v5079 = vmul.f32 %v5074, %v5078
    %vm5080 = vweird.f32 %v5035
    %vm5081 = vweird.f32 %v5074
    %vm5082 = vmor %vm5080, %vm5081
    %v5083 = vsel %vm5082, %v5074, %v5079
    %v5084 = vrsqrt.pop %v5036
    %v5085 = vmul.f32 %v5084, %v5036
    %v5086 = vmul.f32 %v5085, %v5084
    %v5087 = vmul.f32 0.5, %v5086
    %v5088 = vsub.f32 1.5, %v5087
    %v5089 = vmul.f32 %v5084, %v5088
    %vm5090 = vweird.f32 %v5036
    %vm5091 = vweird.f32 %v5084
    %vm5092 = vmor %vm5090, %vm5091
    %v5093 = vsel %vm5092, %v5084, %v5089
    %v5094 = vrsqrt.pop %v5037
    %v5095 = vmul.f32 %v5094, %v5037
    %v5096 = vmul.f32 %v5095, %v5094
    %v5097 = vmul.f32 0.5, %v5096
    %v5098 = vsub.f32 1.5, %v5097
    %v5099 = vmul.f32 %v5094, %v5098
    %vm5100 = vweird.f32 %v5037
    %vm5101 = vweird.f32 %v5094
    %vm5102 = vmor %vm5100, %vm5101
    %v5103 = vsel %vm5102, %v5094, %v5099
    %v5104 = vrsqrt.pop %v5038
    %v5105 = vmul.f32 %v5104, %v5038
    %v5106 = vmul.f32 %v5105, %v5104
    %v5107 = vmul.f32 0.5, %v5106
    %v5108 = vsub.f32 1.5, %v5107
    %v5109 = vmul.f32 %v5104, %v5108
    %vm5110 = vweird.f32 %v5038
    %vm5111 = vweird.f32 %v5104
    %vm5112 = vmor %vm5110, %vm5111
    %v5113 = vsel %vm5112, %v5104, %v5109
    %v5114 = vrsqrt.pop %v5039
    %v5115 = vmul.f32 %v5114, %v5039
    %v5116 = vmul.f32 %v5115, %v5114
    %v5117 = vmul.f32 0.5, %v5116
    %v5118 = vsub.f32 1.5, %v5117
    %v5119 = vmul.f32 %v5114, %v5118
    %vm5120 = vweird.f32 %v5039
    %vm5121 = vweird.f32 %v5114
    %vm5122 = vmor %vm5120, %vm5121
    %v5123 = vsel %vm5122, %v5114, %v5119
    %v5124 = vrsqrt.pop %v5040
    %v5125 = vmul.f32 %v5124, %v5040
    %v5126 = vmul.f32 %v5125, %v5124
    %v5127 = vmul.f32 0.5, %v5126
    %v5128 = vsub.f32 1.5, %v5127
    %v5129 = vmul.f32 %v5124, %v5128
    %vm5130 = vweird.f32 %v5040
    %vm5131 = vweird.f32 %v5124
    %vm5132 = vmor %vm5130, %vm5131
    %v5133 = vsel %vm5132, %v5124, %v5129
    %v5134 = vrsqrt.pop %v5041
    %v5135 = vmul.f32 %v5134, %v5041
    %v5136 = vmul.f32 %v5135, %v5134
    %v5137 = vmul.f32 0.5, %v5136
    %v5138 = vsub.f32 1.5, %v5137
    %v5139 = vmul.f32 %v5134, %v5138
    %vm5140 = vweird.f32 %v5041
    %vm5141 = vweird.f32 %v5134
    %vm5142 = vmor %vm5140, %vm5141
    %v5143 = vsel %vm5142, %v5134, %v5139
    %v5144 = vrsqrt.pop %v5042
    %v5145 = vmul.f32 %v5144, %v5042
    %v5146 = vmul.f32 %v5145, %v5144
    %v5147 = vmul.f32 0.5, %v5146
    %v5148 = vsub.f32 1.5, %v5147
    %v5149 = vmul.f32 %v5144, %v5148
    %vm5150 = vweird.f32 %v5042
    %vm5151 = vweird.f32 %v5144
    %vm5152 = vmor %vm5150, %vm5151
    %v5153 = vsel %vm5152, %v5144, %v5149
    %v5154 = vrsqrt.pop %v5043
    %v5155 = vmul.f32 %v5154, %v5043
    %v5156 = vmul.f32 %v5155, %v5154
    %v5157 = vmul.f32 0.5, %v5156
    %v5158 = vsub.f32 1.5, %v5157
    %v5159 = vmul.f32 %v5154, %v5158
    %vm5160 = vweird.f32 %v5043
    %vm5161 = vweird.f32 %v5154
    %vm5162 = vmor %vm5160, %vm5161
    %v5163 = vsel %vm5162, %v5154, %v5159
    %v5164 = vmul.f32 %v4960, %v5053
    %v5165 = vmul.f32 %v4961, %v5063
    %v5166 = vmul.f32 %v4962, %v5073
    %v5167 = vmul.f32 %v4963, %v5083
    %v5168 = vmul.f32 %v4964, %v5093
    %v5169 = vmul.f32 %v4965, %v5103
    %v5170 = vmul.f32 %v4966, %v5113
    %v5171 = vmul.f32 %v4967, %v5123
    %v5172 = vmul.f32 %v4968, %v5133
    %v5173 = vmul.f32 %v4969, %v5143
    %v5174 = vmul.f32 %v4970, %v5153
    %v5175 = vmul.f32 %v4971, %v5163
    %v5177 = vperm.slane %v4909, 0
    %v5179 = vmul.f32 %v5164, %v5177
    %v5180 = vmul.f32 %v5165, %v5177
    %v5181 = vmul.f32 %v5166, %v5177
    %v5182 = vmul.f32 %v5167, %v5177
    %v5183 = vmul.f32 %v5168, %v5177
    %v5184 = vmul.f32 %v5169, %v5177
    %v5185 = vmul.f32 %v5170, %v5177
    %v5186 = vmul.f32 %v5171, %v5177
    %v5187 = vmul.f32 %v5172, %v5177
    %v5188 = vmul.f32 %v5173, %v5177
    %v5189 = vmul.f32 %v5174, %v5177
    %v5190 = vmul.f32 %v5175, %v5177
    %v5192 = vperm.slane %v4911, 0
    %v5194 = vadd.f32 %v5179, %v5192
    %v5195 = vadd.f32 %v5180, %v5192
    %v5196 = vadd.f32 %v5181, %v5192
    %v5197 = vadd.f32 %v5182, %v5192
    %v5198 = vadd.f32 %v5183, %v5192
    %v5199 = vadd.f32 %v5184, %v5192
    %v5200 = vadd.f32 %v5185, %v5192
    %v5201 = vadd.f32 %v5186, %v5192
    %v5202 = vadd.f32 %v5187, %v5192
    %v5203 = vadd.f32 %v5188, %v5192
    %v5204 = vadd.f32 %v5189, %v5192
    %v5205 = vadd.f32 %v5190, %v5192
    %s5206 = scalar_lea.vmem [#allocation9], 64
    %v5207 = vld [vmem:[%s5206] sm:$0xf]
    %v5208 = vld [vmem:[%s5206 + $0x4] sm:$0xf]
    %v5209 = vld [vmem:[%s5206 + $0x8] sm:$0xf]
    %v5210 = vld [vmem:[%s5206 + $0xc] sm:$0xf]
    %v5211 = vld [vmem:[%s5206 + $0x10] sm:$0xf]
    %v5212 = vld [vmem:[%s5206 + $0x14] sm:$0xf]
    %v5213 = vld [vmem:[%s5206 + $0x18] sm:$0xf]
    %v5214 = vld [vmem:[%s5206 + $0x1c] sm:$0xf]
    %v5215 = vpack.c.bf16 %v5195, %v5194
    %v5216 = vpack.c.bf16 %v5197, %v5196
    %v5217 = vpack.c.bf16 %v5199, %v5198
    %v5218 = vpack.c.bf16 %v5201, %v5200
    %v5219 = vpack.c.bf16 %v5203, %v5202
    %v5220 = vpack.c.bf16 %v5205, %v5204
    %s5221 = scalar_lea.vmem %s16, 2
    %v5222 = vld [vmem:[%s5221] sm:$0x1]
    %v5224 = vperm.slane %v5222, 0
    %v5234 = vunpack.c.l.b16 %v5207
    %v5235 = vunpack.c.l.b16 %v5208
    %v5236 = vunpack.c.l.b16 %v5209
    %v5237 = vunpack.c.l.b16 %v5210
    %v5238 = vunpack.c.l.b16 %v5211
    %v5239 = vunpack.c.l.b16 %v5212
    %v5240 = vunpack.c.l.b16 %v5213
    %v5241 = vunpack.c.l.b16 %v5214
    %v5242 = vpack.c.b16 %v5235, %v5234
    %v5243 = vpack.c.b16 %v5237, %v5236
    %v5244 = vpack.c.b16 %v5239, %v5238
    %v5245 = vpack.c.b16 %v5241, %v5240
    %v5251 = vsel %vm740, %v5215, 0
    %v5254 = vsel %vm740, %v5216, 0
    %v5257 = vsel %vm740, %v5217, 0
    %v5260 = vsel %vm740, %v5218, 0
    %v5263 = vsel %vm740, %v5219, 0
    %v5266 = vsel %vm740, %v5220, 0
    %5268 = vmatpush.bf16.msra.mxu0 0
    %5269 = vmatpush.bf16.msra.mxu0 0
    %5270 = vmatpush.bf16.msra.mxu0 0
    %5271 = vmatpush.bf16.msra.mxu0 0
    %5272 = vmatpush.bf16.msra.mxu0 %v5245
    %5273 = vmatpush.bf16.msra.mxu0 %v5244
    %5274 = vmatpush.bf16.msra.mxu0 %v5243
    %5275 = vmatpush.bf16.msra.mxu0 %v5242
    %5276 = vmatmul.bf16.gmra.mxu0 %v5251
    %v5277 = vpop.f32.mrf.mxu0
    %v5278 = vadd.f32 %v5224, %v5277
    %v5279 = vpop.f32.mrf.mxu0
    %v5280 = vadd.f32 %v5224, %v5279
    %5281 = vmatmul.bf16.gmra.mxu0 %v5254
    %v5282 = vpop.f32.mrf.mxu0
    %v5283 = vadd.f32 %v5224, %v5282
    %v5284 = vpop.f32.mrf.mxu0
    %v5285 = vadd.f32 %v5224, %v5284
    %5286 = vmatmul.bf16.gmra.mxu0 %v5257
    %v5287 = vpop.f32.mrf.mxu0
    %v5288 = vadd.f32 %v5224, %v5287
    %v5289 = vpop.f32.mrf.mxu0
    %v5290 = vadd.f32 %v5224, %v5289
    %5291 = vmatmul.bf16.gmra.mxu0 %v5260
    %v5292 = vpop.f32.mrf.mxu0
    %v5293 = vadd.f32 %v5224, %v5292
    %v5294 = vpop.f32.mrf.mxu0
    %v5295 = vadd.f32 %v5224, %v5294
    %5296 = vmatmul.bf16.gmra.mxu0 %v5263
    %v5297 = vpop.f32.mrf.mxu0
    %v5298 = vadd.f32 %v5224, %v5297
    %v5299 = vpop.f32.mrf.mxu0
    %v5300 = vadd.f32 %v5224, %v5299
    %5301 = vmatmul.bf16.gmra.mxu0 %v5266
    %v5302 = vpop.f32.mrf.mxu0
    %v5303 = vadd.f32 %v5224, %v5302
    %v5304 = vpop.f32.mrf.mxu0
    %v5305 = vadd.f32 %v5224, %v5304
    %5306 = vdwg.mxu0
    %v5307 = vmul.f32 %v5278, 0.5
    %v5308 = vmul.f32 %v5280, 0.5
    %v5309 = vmul.f32 %v5283, 0.5
    %v5310 = vmul.f32 %v5285, 0.5
    %v5311 = vmul.f32 %v5288, 0.5
    %v5312 = vmul.f32 %v5290, 0.5
    %v5313 = vmul.f32 %v5293, 0.5
    %v5314 = vmul.f32 %v5295, 0.5
    %v5315 = vmul.f32 %v5298, 0.5
    %v5316 = vmul.f32 %v5300, 0.5
    %v5317 = vmul.f32 %v5303, 0.5
    %v5318 = vmul.f32 %v5305, 0.5
    %v5319 = vmul.f32 %v5278, 0.044715
    %v5320 = vmul.f32 %v5280, 0.044715
    %v5321 = vmul.f32 %v5283, 0.044715
    %v5322 = vmul.f32 %v5285, 0.044715
    %v5323 = vmul.f32 %v5288, 0.044715
    %v5324 = vmul.f32 %v5290, 0.044715
    %v5325 = vmul.f32 %v5293, 0.044715
    %v5326 = vmul.f32 %v5295, 0.044715
    %v5327 = vmul.f32 %v5298, 0.044715
    %v5328 = vmul.f32 %v5300, 0.044715
    %v5329 = vmul.f32 %v5303, 0.044715
    %v5330 = vmul.f32 %v5305, 0.044715
    %v5331 = vmul.f32 %v5319, %v5278
    %v5332 = vmul.f32 %v5320, %v5280
    %v5333 = vmul.f32 %v5321, %v5283
    %v5334 = vmul.f32 %v5322, %v5285
    %v5335 = vmul.f32 %v5323, %v5288
    %v5336 = vmul.f32 %v5324, %v5290
    %v5337 = vmul.f32 %v5325, %v5293
    %v5338 = vmul.f32 %v5326, %v5295
    %v5339 = vmul.f32 %v5327, %v5298
    %v5340 = vmul.f32 %v5328, %v5300
    %v5341 = vmul.f32 %v5329, %v5303
    %v5342 = vmul.f32 %v5330, %v5305
    %v5343 = vmul.f32 %v5331, %v5278
    %v5344 = vmul.f32 %v5332, %v5280
    %v5345 = vmul.f32 %v5333, %v5283
    %v5346 = vmul.f32 %v5334, %v5285
    %v5347 = vmul.f32 %v5335, %v5288
    %v5348 = vmul.f32 %v5336, %v5290
    %v5349 = vmul.f32 %v5337, %v5293
    %v5350 = vmul.f32 %v5338, %v5295
    %v5351 = vmul.f32 %v5339, %v5298
    %v5352 = vmul.f32 %v5340, %v5300
    %v5353 = vmul.f32 %v5341, %v5303
    %v5354 = vmul.f32 %v5342, %v5305
    %v5355 = vadd.f32 %v5278, %v5343
    %v5356 = vadd.f32 %v5280, %v5344
    %v5357 = vadd.f32 %v5283, %v5345
    %v5358 = vadd.f32 %v5285, %v5346
    %v5359 = vadd.f32 %v5288, %v5347
    %v5360 = vadd.f32 %v5290, %v5348
    %v5361 = vadd.f32 %v5293, %v5349
    %v5362 = vadd.f32 %v5295, %v5350
    %v5363 = vadd.f32 %v5298, %v5351
    %v5364 = vadd.f32 %v5300, %v5352
    %v5365 = vadd.f32 %v5303, %v5353
    %v5366 = vadd.f32 %v5305, %v5354
    %v5367 = vmul.f32 %v5355, 0.7978846
    %v5368 = vmul.f32 %v5356, 0.7978846
    %v5369 = vmul.f32 %v5357, 0.7978846
    %v5370 = vmul.f32 %v5358, 0.7978846
    %v5371 = vmul.f32 %v5359, 0.7978846
    %v5372 = vmul.f32 %v5360, 0.7978846
    %v5373 = vmul.f32 %v5361, 0.7978846
    %v5374 = vmul.f32 %v5362, 0.7978846
    %v5375 = vmul.f32 %v5363, 0.7978846
    %v5376 = vmul.f32 %v5364, 0.7978846
    %v5377 = vmul.f32 %v5365, 0.7978846
    %v5378 = vmul.f32 %v5366, 0.7978846
    %v5379 = vtanh.pop %v5367
    %v5380 = vtanh.pop %v5368
    %v5381 = vtanh.pop %v5369
    %v5382 = vtanh.pop %v5370
    %v5383 = vtanh.pop %v5371
    %v5384 = vtanh.pop %v5372
    %v5385 = vtanh.pop %v5373
    %v5386 = vtanh.pop %v5374
    %v5387 = vtanh.pop %v5375
    %v5388 = vtanh.pop %v5376
    %v5389 = vtanh.pop %v5377
    %v5390 = vtanh.pop %v5378
    %v5391 = vadd.f32 %v5379, 1.0
    %v5392 = vadd.f32 %v5380, 1.0
    %v5393 = vadd.f32 %v5381, 1.0
    %v5394 = vadd.f32 %v5382, 1.0
    %v5395 = vadd.f32 %v5383, 1.0
    %v5396 = vadd.f32 %v5384, 1.0
    %v5397 = vadd.f32 %v5385, 1.0
    %v5398 = vadd.f32 %v5386, 1.0
    %v5399 = vadd.f32 %v5387, 1.0
    %v5400 = vadd.f32 %v5388, 1.0
    %v5401 = vadd.f32 %v5389, 1.0
    %v5402 = vadd.f32 %v5390, 1.0
    %v5403 = vmul.f32 %v5307, %v5391
    %v5404 = vmul.f32 %v5308, %v5392
    %v5405 = vmul.f32 %v5309, %v5393
    %v5406 = vmul.f32 %v5310, %v5394
    %v5407 = vmul.f32 %v5311, %v5395
    %v5408 = vmul.f32 %v5312, %v5396
    %v5409 = vmul.f32 %v5313, %v5397
    %v5410 = vmul.f32 %v5314, %v5398
    %v5411 = vmul.f32 %v5315, %v5399
    %v5412 = vmul.f32 %v5316, %v5400
    %v5413 = vmul.f32 %v5317, %v5401
    %v5414 = vmul.f32 %v5318, %v5402
    %s5415 = scalar_lea.vmem %s17, 128
    %v5416 = vld [vmem:[%s5415] sm:$0xf]
    %v5417 = vld [vmem:[%s5415 + $0x4] sm:$0xf]
    %v5418 = vld [vmem:[%s5415 + $0x8] sm:$0xf]
    %v5419 = vld [vmem:[%s5415 + $0xc] sm:$0xf]
    %v5420 = vld [vmem:[%s5415 + $0x10] sm:$0xf]
    %v5421 = vld [vmem:[%s5415 + $0x14] sm:$0xf]
    %v5422 = vld [vmem:[%s5415 + $0x18] sm:$0xf]
    %v5423 = vld [vmem:[%s5415 + $0x1c] sm:$0xf]
    %v5424 = vld [vmem:[%s5415 + $0x20] sm:$0xf]
    %v5425 = vld [vmem:[%s5415 + $0x24] sm:$0xf]
    %v5426 = vld [vmem:[%s5415 + $0x28] sm:$0xf]
    %v5427 = vld [vmem:[%s5415 + $0x2c] sm:$0xf]
    %v5428 = vld [vmem:[%s5415 + $0x30] sm:$0xf]
    %v5429 = vld [vmem:[%s5415 + $0x34] sm:$0xf]
    %v5430 = vld [vmem:[%s5415 + $0x38] sm:$0xf]
    %v5431 = vld [vmem:[%s5415 + $0x3c] sm:$0xf]
    %v5432 = vpack.c.bf16 %v5404, %v5403
    %v5433 = vpack.c.bf16 %v5406, %v5405
    %v5434 = vpack.c.bf16 %v5408, %v5407
    %v5435 = vpack.c.bf16 %v5410, %v5409
    %v5436 = vpack.c.bf16 %v5412, %v5411
    %v5437 = vpack.c.bf16 %v5414, %v5413
    %s5438 = scalar_lea.vmem %s18, 2
    %v5439 = vld [vmem:[%s5438] sm:$0x1]
    %v5441 = vperm.slane %v5439, 0
    %v5459 = vunpack.c.l.b16 %v5416
    %v5460 = vunpack.c.l.b16 %v5417
    %v5461 = vunpack.c.l.b16 %v5418
    %v5462 = vunpack.c.l.b16 %v5419
    %v5463 = vunpack.c.l.b16 %v5420
    %v5464 = vunpack.c.l.b16 %v5421
    %v5465 = vunpack.c.l.b16 %v5422
    %v5466 = vunpack.c.l.b16 %v5423
    %v5467 = vunpack.c.l.b16 %v5424
    %v5468 = vunpack.c.l.b16 %v5425
    %v5469 = vunpack.c.l.b16 %v5426
    %v5470 = vunpack.c.l.b16 %v5427
    %v5471 = vunpack.c.l.b16 %v5428
    %v5472 = vunpack.c.l.b16 %v5429
    %v5473 = vunpack.c.l.b16 %v5430
    %v5474 = vunpack.c.l.b16 %v5431
    %v5475 = vpack.c.b16 %v5460, %v5459
    %v5476 = vpack.c.b16 %v5462, %v5461
    %v5477 = vpack.c.b16 %v5464, %v5463
    %v5478 = vpack.c.b16 %v5466, %v5465
    %v5479 = vpack.c.b16 %v5468, %v5467
    %v5480 = vpack.c.b16 %v5470, %v5469
    %v5481 = vpack.c.b16 %v5472, %v5471
    %v5482 = vpack.c.b16 %v5474, %v5473
    %5491 = vmatpush.bf16.msra.mxu0 %v5482
    %5492 = vmatpush.bf16.msra.mxu0 %v5481
    %5493 = vmatpush.bf16.msra.mxu0 %v5480
    %5494 = vmatpush.bf16.msra.mxu0 %v5479
    %5495 = vmatpush.bf16.msra.mxu0 %v5478
    %5496 = vmatpush.bf16.msra.mxu0 %v5477
    %5497 = vmatpush.bf16.msra.mxu0 %v5476
    %5498 = vmatpush.bf16.msra.mxu0 %v5475
    %5499 = vmatmul.bf16.gmra.mxu0 %v5432
    %v5500 = vpop.f32.mrf.mxu0
    %v5501 = vadd.f32 %v5441, %v5500
    %v5502 = vpop.f32.mrf.mxu0
    %v5503 = vadd.f32 %v5441, %v5502
    %5504 = vmatmul.bf16.gmra.mxu0 %v5433
    %v5505 = vpop.f32.mrf.mxu0
    %v5506 = vpop.f32.mrf.mxu0
    %v5507 = vadd.f32 %v5441, %v5506
    %5508 = vmatmul.bf16.gmra.mxu0 %v5434
    %v5509 = vpop.f32.mrf.mxu0
    %v5510 = vadd.f32 %v5441, %v5509
    %v5511 = vpop.f32.mrf.mxu0
    %5512 = vmatmul.bf16.gmra.mxu0 %v5435
    %v5513 = vpop.f32.mrf.mxu0
    %v5514 = vadd.f32 %v5441, %v5513
    %v5515 = vpop.f32.mrf.mxu0
    %v5516 = vadd.f32 %v5441, %v5515
    %5517 = vmatmul.bf16.gmra.mxu0 %v5436
    %v5518 = vpop.f32.mrf.mxu0
    %v5519 = vpop.f32.mrf.mxu0
    %v5520 = vadd.f32 %v5441, %v5519
    %5521 = vmatmul.bf16.gmra.mxu0 %v5437
    %v5522 = vpop.f32.mrf.mxu0
    %v5523 = vadd.f32 %v5441, %v5522
    %v5524 = vpop.f32.mrf.mxu0
    %5525 = vdwg.mxu0
    %v5526 = vadd.f32 %v5194, %v5501
    %v5527 = vadd.f32 %v5195, %v5503
    %v5528 = vadd.f32 %v5197, %v5507
    %v5529 = vadd.f32 %v5198, %v5510
    %v5530 = vadd.f32 %v5200, %v5514
    %v5531 = vadd.f32 %v5201, %v5516
    %v5532 = vadd.f32 %v5203, %v5520
    %v5533 = vadd.f32 %v5204, %v5523
    %s5534 = scalar_lea.vmem %s19, 2
    %v5535 = vld [vmem:[%s5534] sm:$0x1]
    %s5536 = scalar_lea.vmem [#allocation11], 2
    %v5537 = vld [vmem:[%s5536] sm:$0x1]
    %v5538 = vsel %vm740, %v5526, 0.0
    %5539 = vadd.xlane.f32.xlu0 %v5538
    %v5540 = vpop.xlane.xlu0 %5539
    %v5541 = vsel %vm740, %v5527, 0.0
    %5542 = vadd.xlane.f32.xlu0 %v5541
    %v5543 = vpop.xlane.xlu0 %5542
    %v5544 = vsel %vm740, %v5528, 0.0
    %5545 = vadd.xlane.f32.xlu0 %v5544
    %v5546 = vpop.xlane.xlu0 %5545
    %v5547 = vsel %vm740, %v5529, 0.0
    %5548 = vadd.xlane.f32.xlu0 %v5547
    %v5549 = vpop.xlane.xlu0 %5548
    %v5550 = vsel %vm740, %v5530, 0.0
    %5551 = vadd.xlane.f32.xlu0 %v5550
    %v5552 = vpop.xlane.xlu0 %5551
    %v5553 = vsel %vm740, %v5531, 0.0
    %5554 = vadd.xlane.f32.xlu0 %v5553
    %v5555 = vpop.xlane.xlu0 %5554
    %v5556 = vsel %vm740, %v5532, 0.0
    %5557 = vadd.xlane.f32.xlu0 %v5556
    %v5558 = vpop.xlane.xlu0 %5557
    %v5559 = vsel %vm740, %v5533, 0.0
    %5560 = vadd.xlane.f32.xlu0 %v5559
    %v5561 = vpop.xlane.xlu0 %5560
    %v5562 = vmul.f32 %v5540, %v1397
    %v5563 = vmul.f32 %v5543, %v1397
    %v5564 = vmul.f32 %v5546, %v1397
    %v5565 = vmul.f32 %v5549, %v1397
    %v5566 = vmul.f32 %v5552, %v1397
    %v5567 = vmul.f32 %v5555, %v1397
    %v5568 = vmul.f32 %v5558, %v1397
    %v5569 = vmul.f32 %v5561, %v1397
    %v5570 = vsub.f32 %v5526, %v5562
    %v5571 = vsub.f32 %v5527, %v5563
    %v5572 = vsub.f32 %v5528, %v5564
    %v5573 = vsub.f32 %v5529, %v5565
    %v5574 = vsub.f32 %v5530, %v5566
    %v5575 = vsub.f32 %v5531, %v5567
    %v5576 = vsub.f32 %v5532, %v5568
    %v5577 = vsub.f32 %v5533, %v5569
    %v5578 = vmul.f32 %v5570, %v5570
    %v5579 = vmul.f32 %v5571, %v5571
    %v5580 = vmul.f32 %v5572, %v5572
    %v5581 = vmul.f32 %v5573, %v5573
    %v5582 = vmul.f32 %v5574, %v5574
    %v5583 = vmul.f32 %v5575, %v5575
    %v5584 = vmul.f32 %v5576, %v5576
    %v5585 = vmul.f32 %v5577, %v5577
    %v5586 = vsel %vm740, %v5578, 0.0
    %5587 = vadd.xlane.f32.xlu0 %v5586
    %v5588 = vpop.xlane.xlu0 %5587
    %v5589 = vsel %vm740, %v5579, 0.0
    %5590 = vadd.xlane.f32.xlu0 %v5589
    %v5591 = vpop.xlane.xlu0 %5590
    %v5592 = vsel %vm740, %v5580, 0.0
    %5593 = vadd.xlane.f32.xlu0 %v5592
    %v5594 = vpop.xlane.xlu0 %5593
    %v5595 = vsel %vm740, %v5581, 0.0
    %5596 = vadd.xlane.f32.xlu0 %v5595
    %v5597 = vpop.xlane.xlu0 %5596
    %v5598 = vsel %vm740, %v5582, 0.0
    %5599 = vadd.xlane.f32.xlu0 %v5598
    %v5600 = vpop.xlane.xlu0 %5599
    %v5601 = vsel %vm740, %v5583, 0.0
    %5602 = vadd.xlane.f32.xlu0 %v5601
    %v5603 = vpop.xlane.xlu0 %5602
    %v5604 = vsel %vm740, %v5584, 0.0
    %5605 = vadd.xlane.f32.xlu0 %v5604
    %v5606 = vpop.xlane.xlu0 %5605
    %v5607 = vsel %vm740, %v5585, 0.0
    %5608 = vadd.xlane.f32.xlu0 %v5607
    %v5609 = vpop.xlane.xlu0 %5608
    %v5610 = vmul.f32 %v5588, %v1397
    %v5611 = vmul.f32 %v5591, %v1397
    %v5612 = vmul.f32 %v5594, %v1397
    %v5613 = vmul.f32 %v5597, %v1397
    %v5614 = vmul.f32 %v5600, %v1397
    %v5615 = vmul.f32 %v5603, %v1397
    %v5616 = vmul.f32 %v5606, %v1397
    %v5617 = vmul.f32 %v5609, %v1397
    %v5618 = vadd.f32 %v5610, 1e-05
    %v5619 = vadd.f32 %v5611, 1e-05
    %v5620 = vadd.f32 %v5612, 1e-05
    %v5621 = vadd.f32 %v5613, 1e-05
    %v5622 = vadd.f32 %v5614, 1e-05
    %v5623 = vadd.f32 %v5615, 1e-05
    %v5624 = vadd.f32 %v5616, 1e-05
    %v5625 = vadd.f32 %v5617, 1e-05
    %v5626 = vrsqrt.pop %v5618
    %v5627 = vmul.f32 %v5626, %v5618
    %v5628 = vmul.f32 %v5627, %v5626
    %v5629 = vmul.f32 0.5, %v5628
    %v5630 = vsub.f32 1.5, %v5629
    %v5631 = vmul.f32 %v5626, %v5630
    %vm5632 = vweird.f32 %v5618
    %vm5633 = vweird.f32 %v5626
    %vm5634 = vmor %vm5632, %vm5633
    %v5635 = vsel %vm5634, %v5626, %v5631
    %v5636 = vrsqrt.pop %v5619
    %v5637 = vmul.f32 %v5636, %v5619
    %v5638 = vmul.f32 %v5637, %v5636
    %v5639 = vmul.f32 0.5, %v5638
    %v5640 = vsub.f32 1.5, %v5639
    %v5641 = vmul.f32 %v5636, %v5640
    %vm5642 = vweird.f32 %v5619
    %vm5643 = vweird.f32 %v5636
    %vm5644 = vmor %vm5642, %vm5643
    %v5645 = vsel %vm5644, %v5636, %v5641
    %v5646 = vrsqrt.pop %v5620
    %v5647 = vmul.f32 %v5646, %v5620
    %v5648 = vmul.f32 %v5647, %v5646
    %v5649 = vmul.f32 0.5, %v5648
    %v5650 = vsub.f32 1.5, %v5649
    %v5651 = vmul.f32 %v5646, %v5650
    %vm5652 = vweird.f32 %v5620
    %vm5653 = vweird.f32 %v5646
    %vm5654 = vmor %vm5652, %vm5653
    %v5655 = vsel %vm5654, %v5646, %v5651
    %v5656 = vrsqrt.pop %v5621
    %v5657 = vmul.f32 %v5656, %v5621
    %v5658 = vmul.f32 %v5657, %v5656
    %v5659 = vmul.f32 0.5, %v5658
    %v5660 = vsub.f32 1.5, %v5659
    %v5661 = vmul.f32 %v5656, %v5660
    %vm5662 = vweird.f32 %v5621
    %vm5663 = vweird.f32 %v5656
    %vm5664 = vmor %vm5662, %vm5663
    %v5665 = vsel %vm5664, %v5656, %v5661
    %v5666 = vrsqrt.pop %v5622
    %v5667 = vmul.f32 %v5666, %v5622
    %v5668 = vmul.f32 %v5667, %v5666
    %v5669 = vmul.f32 0.5, %v5668
    %v5670 = vsub.f32 1.5, %v5669
    %v5671 = vmul.f32 %v5666, %v5670
    %vm5672 = vweird.f32 %v5622
    %vm5673 = vweird.f32 %v5666
    %vm5674 = vmor %vm5672, %vm5673
    %v5675 = vsel %vm5674, %v5666, %v5671
    %v5676 = vrsqrt.pop %v5623
    %v5677 = vmul.f32 %v5676, %v5623
    %v5678 = vmul.f32 %v5677, %v5676
    %v5679 = vmul.f32 0.5, %v5678
    %v5680 = vsub.f32 1.5, %v5679
    %v5681 = vmul.f32 %v5676, %v5680
    %vm5682 = vweird.f32 %v5623
    %vm5683 = vweird.f32 %v5676
    %vm5684 = vmor %vm5682, %vm5683
    %v5685 = vsel %vm5684, %v5676, %v5681
    %v5686 = vrsqrt.pop %v5624
    %v5687 = vmul.f32 %v5686, %v5624
    %v5688 = vmul.f32 %v5687, %v5686
    %v5689 = vmul.f32 0.5, %v5688
    %v5690 = vsub.f32 1.5, %v5689
    %v5691 = vmul.f32 %v5686, %v5690
    %vm5692 = vweird.f32 %v5624
    %vm5693 = vweird.f32 %v5686
    %vm5694 = vmor %vm5692, %vm5693
    %v5695 = vsel %vm5694, %v5686, %v5691
    %v5696 = vrsqrt.pop %v5625
    %v5697 = vmul.f32 %v5696, %v5625
    %v5698 = vmul.f32 %v5697, %v5696
    %v5699 = vmul.f32 0.5, %v5698
    %v5700 = vsub.f32 1.5, %v5699
    %v5701 = vmul.f32 %v5696, %v5700
    %vm5702 = vweird.f32 %v5625
    %vm5703 = vweird.f32 %v5696
    %vm5704 = vmor %vm5702, %vm5703
    %v5705 = vsel %vm5704, %v5696, %v5701
    %v5706 = vmul.f32 %v5570, %v5635
    %v5707 = vmul.f32 %v5571, %v5645
    %v5708 = vmul.f32 %v5572, %v5655
    %v5709 = vmul.f32 %v5573, %v5665
    %v5710 = vmul.f32 %v5574, %v5675
    %v5711 = vmul.f32 %v5575, %v5685
    %v5712 = vmul.f32 %v5576, %v5695
    %v5713 = vmul.f32 %v5577, %v5705
    %v5715 = vperm.slane %v5535, 0
    %v5717 = vmul.f32 %v5706, %v5715
    %v5718 = vmul.f32 %v5707, %v5715
    %v5719 = vmul.f32 %v5708, %v5715
    %v5720 = vmul.f32 %v5709, %v5715
    %v5721 = vmul.f32 %v5710, %v5715
    %v5722 = vmul.f32 %v5711, %v5715
    %v5723 = vmul.f32 %v5712, %v5715
    %v5724 = vmul.f32 %v5713, %v5715
    %v5726 = vperm.slane %v5537, 0
    %v5728 = vadd.f32 %v5717, %v5726
    %v5729 = vadd.f32 %v5718, %v5726
    %v5730 = vadd.f32 %v5719, %v5726
    %v5731 = vadd.f32 %v5720, %v5726
    %v5732 = vadd.f32 %v5721, %v5726
    %v5733 = vadd.f32 %v5722, %v5726
    %v5734 = vadd.f32 %v5723, %v5726
    %v5735 = vadd.f32 %v5724, %v5726
    %v5736 = vld [vmem:[#allocation12] sm:$0xff]
    %v5737 = vld [vmem:[#allocation12 + $0x8] sm:$0xff]
    %v5738 = vld [vmem:[#allocation12 + $0x10] sm:$0xf]
    %v5739 = vld [vmem:[#allocation12 + $0x14] sm:$0xff]
    %v5740 = vld [vmem:[#allocation12 + $0x1c] sm:$0xff]
    %v5741 = vld [vmem:[#allocation12 + $0x24] sm:$0xf]
    %v5742 = vld [vmem:[#allocation12 + $0x28] sm:$0xff]
    %v5743 = vld [vmem:[#allocation12 + $0x30] sm:$0xff]
    %v5744 = vld [vmem:[#allocation12 + $0x38] sm:$0xf]
    %v5745 = vld [vmem:[#allocation12 + $0x3c] sm:$0xff]
    %v5746 = vld [vmem:[#allocation12 + $0x44] sm:$0xff]
    %v5747 = vld [vmem:[#allocation12 + $0x4c] sm:$0xf]
    %v5748 = vld [vmem:[#allocation12 + $0x50] sm:$0xff]
    %v5749 = vld [vmem:[#allocation12 + $0x58] sm:$0xff]
    %v5750 = vld [vmem:[#allocation12 + $0x60] sm:$0xf]
    %v5751 = vld [vmem:[#allocation12 + $0x64] sm:$0xff]
    %v5752 = vld [vmem:[#allocation12 + $0x6c] sm:$0xff]
    %v5753 = vld [vmem:[#allocation12 + $0x74] sm:$0xf]
    %v5754 = vld [vmem:[#allocation12 + $0x78] sm:$0xff]
    %v5755 = vld [vmem:[#allocation12 + $0x80] sm:$0xff]
    %v5756 = vld [vmem:[#allocation12 + $0x88] sm:$0xf]
    %v5757 = vld [vmem:[#allocation12 + $0x8c] sm:$0xff]
    %v5758 = vld [vmem:[#allocation12 + $0x94] sm:$0xff]
    %v5759 = vld [vmem:[#allocation12 + $0x9c] sm:$0xf]
    %v5760 = vpack.c.bf16 %v5729, %v5728
    %v5761 = vpack.c.bf16 %v5731, %v5730
    %v5762 = vpack.c.bf16 %v5733, %v5732
    %v5763 = vpack.c.bf16 %v5735, %v5734
    %v5788 = vunpack.c.l.b16 %v5736
    %v5789 = vunpack.c.h.b16 %v5736
    %v5790 = vunpack.c.l.b16 %v5737
    %v5791 = vunpack.c.h.b16 %v5737
    %v5792 = vunpack.c.l.b16 %v5738
    %v5793 = vunpack.c.l.b16 %v5739
    %v5794 = vunpack.c.h.b16 %v5739
    %v5795 = vunpack.c.l.b16 %v5740
    %v5796 = vunpack.c.h.b16 %v5740
    %v5797 = vunpack.c.l.b16 %v5741
    %v5798 = vunpack.c.l.b16 %v5742
    %v5799 = vunpack.c.h.b16 %v5742
    %v5800 = vunpack.c.l.b16 %v5743
    %v5801 = vunpack.c.h.b16 %v5743
    %v5802 = vunpack.c.l.b16 %v5744
    %v5803 = vunpack.c.l.b16 %v5745
    %v5804 = vunpack.c.h.b16 %v5745
    %v5805 = vunpack.c.l.b16 %v5746
    %v5806 = vunpack.c.h.b16 %v5746
    %v5807 = vunpack.c.l.b16 %v5747
    %v5808 = vunpack.c.l.b16 %v5748
    %v5809 = vunpack.c.h.b16 %v5748
    %v5810 = vunpack.c.l.b16 %v5749
    %v5811 = vunpack.c.h.b16 %v5749
    %v5812 = vunpack.c.l.b16 %v5750
    %v5813 = vunpack.c.l.b16 %v5751
    %v5814 = vunpack.c.h.b16 %v5751
    %v5815 = vunpack.c.l.b16 %v5752
    %v5816 = vunpack.c.h.b16 %v5752
    %v5817 = vunpack.c.l.b16 %v5753
    %v5818 = vunpack.c.l.b16 %v5754
    %v5819 = vunpack.c.h.b16 %v5754
    %v5820 = vunpack.c.l.b16 %v5755
    %v5821 = vunpack.c.h.b16 %v5755
    %v5822 = vunpack.c.l.b16 %v5756
    %v5823 = vunpack.c.l.b16 %v5757
    %v5824 = vunpack.c.h.b16 %v5757
    %v5825 = vunpack.c.l.b16 %v5758
    %v5826 = vunpack.c.h.b16 %v5758
    %v5827 = vunpack.c.l.b16 %v5759
    %v5828 = vpack.c.b16 %v5793, %v5788
    %v5829 = vpack.c.b16 %v5794, %v5789
    %v5830 = vpack.c.b16 %v5795, %v5790
    %v5831 = vpack.c.b16 %v5796, %v5791
    %v5832 = vpack.c.b16 %v5797, %v5792
    %v5833 = vpack.c.b16 %v5803, %v5798
    %v5834 = vpack.c.b16 %v5804, %v5799
    %v5835 = vpack.c.b16 %v5805, %v5800
    %v5836 = vpack.c.b16 %v5806, %v5801
    %v5837 = vpack.c.b16 %v5807, %v5802
    %v5838 = vpack.c.b16 %v5813, %v5808
    %v5839 = vpack.c.b16 %v5814, %v5809
    %v5840 = vpack.c.b16 %v5815, %v5810
    %v5841 = vpack.c.b16 %v5816, %v5811
    %v5842 = vpack.c.b16 %v5817, %v5812
    %v5843 = vpack.c.b16 %v5823, %v5818
    %v5844 = vpack.c.b16 %v5824, %v5819
    %v5845 = vpack.c.b16 %v5825, %v5820
    %v5846 = vpack.c.b16 %v5826, %v5821
    %v5847 = vpack.c.b16 %v5827, %v5822
    %v5869 = vsel %vm740, %v5760, 0
    %v5872 = vsel %vm740, %v5761, 0
    %v5875 = vsel %vm740, %v5762, 0
    %v5878 = vsel %vm740, %v5763, 0
    %5880 = vmatpush.bf16.msra.mxu0 0
    %5881 = vmatpush.bf16.msra.mxu0 0
    %5882 = vmatpush.bf16.msra.mxu0 0
    %5883 = vmatpush.bf16.msra.mxu0 0
    %5884 = vmatpush.bf16.msra.mxu0 %v5843
    %5885 = vmatpush.bf16.msra.mxu0 %v5838
    %5886 = vmatpush.bf16.msra.mxu0 %v5833
    %5887 = vmatpush.bf16.msra.mxu0 %v5828
    %5888 = vmatmul.bf16.gmra.mxu0 %v5869
    %v5889 = vpop.f32.mrf.mxu0
    %v5890 = vadd.f32 0.0, %v5889
    %v5891 = vpop.f32.mrf.mxu0
    %v5892 = vadd.f32 0.0, %v5891
    %5893 = vmatmul.bf16.gmra.mxu0 %v5872
    %v5894 = vpop.f32.mrf.mxu0
    %v5895 = vadd.f32 0.0, %v5894
    %v5896 = vpop.f32.mrf.mxu0
    %v5897 = vadd.f32 0.0, %v5896
    %5898 = vmatmul.bf16.gmra.mxu0 %v5875
    %v5899 = vpop.f32.mrf.mxu0
    %v5900 = vadd.f32 0.0, %v5899
    %v5901 = vpop.f32.mrf.mxu0
    %v5902 = vadd.f32 0.0, %v5901
    %5903 = vmatmul.bf16.gmra.mxu0 %v5878
    %v5904 = vpop.f32.mrf.mxu0
    %v5905 = vadd.f32 0.0, %v5904
    %v5906 = vpop.f32.mrf.mxu0
    %v5907 = vadd.f32 0.0, %v5906
    %5908 = vdwg.mxu0
    %5909 = vmatpush.bf16.msra.mxu0 0
    %5910 = vmatpush.bf16.msra.mxu0 0
    %5911 = vmatpush.bf16.msra.mxu0 0
    %5912 = vmatpush.bf16.msra.mxu0 0
    %5913 = vmatpush.bf16.msra.mxu0 %v5844
    %5914 = vmatpush.bf16.msra.mxu0 %v5839
    %5915 = vmatpush.bf16.msra.mxu0 %v5834
    %5916 = vmatpush.bf16.msra.mxu0 %v5829
    %5917 = vmatmul.bf16.gmra.mxu0 %v5869
    %v5918 = vpop.f32.mrf.mxu0
    %v5919 = vadd.f32 0.0, %v5918
    %v5920 = vpop.f32.mrf.mxu0
    %v5921 = vadd.f32 0.0, %v5920
    %5922 = vmatmul.bf16.gmra.mxu0 %v5872
    %v5923 = vpop.f32.mrf.mxu0
    %v5924 = vadd.f32 0.0, %v5923
    %v5925 = vpop.f32.mrf.mxu0
    %v5926 = vadd.f32 0.0, %v5925
    %5927 = vmatmul.bf16.gmra.mxu0 %v5875
    %v5928 = vpop.f32.mrf.mxu0
    %v5929 = vadd.f32 0.0, %v5928
    %v5930 = vpop.f32.mrf.mxu0
    %v5931 = vadd.f32 0.0, %v5930
    %5932 = vmatmul.bf16.gmra.mxu0 %v5878
    %v5933 = vpop.f32.mrf.mxu0
    %v5934 = vadd.f32 0.0, %v5933
    %v5935 = vpop.f32.mrf.mxu0
    %v5936 = vadd.f32 0.0, %v5935
    %5937 = vdwg.mxu0
    %5938 = vmatpush.bf16.msra.mxu0 0
    %5939 = vmatpush.bf16.msra.mxu0 0
    %5940 = vmatpush.bf16.msra.mxu0 0
    %5941 = vmatpush.bf16.msra.mxu0 0
    %5942 = vmatpush.bf16.msra.mxu0 %v5845
    %5943 = vmatpush.bf16.msra.mxu0 %v5840
    %5944 = vmatpush.bf16.msra.mxu0 %v5835
    %5945 = vmatpush.bf16.msra.mxu0 %v5830
    %5946 = vmatmul.bf16.gmra.mxu0 %v5869
    %v5947 = vpop.f32.mrf.mxu0
    %v5948 = vadd.f32 0.0, %v5947
    %v5949 = vpop.f32.mrf.mxu0
    %v5950 = vadd.f32 0.0, %v5949
    %5951 = vmatmul.bf16.gmra.mxu0 %v5872
    %v5952 = vpop.f32.mrf.mxu0
    %v5953 = vadd.f32 0.0, %v5952
    %v5954 = vpop.f32.mrf.mxu0
    %v5955 = vadd.f32 0.0, %v5954
    %5956 = vmatmul.bf16.gmra.mxu0 %v5875
    %v5957 = vpop.f32.mrf.mxu0
    %v5958 = vadd.f32 0.0, %v5957
    %v5959 = vpop.f32.mrf.mxu0
    %v5960 = vadd.f32 0.0, %v5959
    %5961 = vmatmul.bf16.gmra.mxu0 %v5878
    %v5962 = vpop.f32.mrf.mxu0
    %v5963 = vadd.f32 0.0, %v5962
    %v5964 = vpop.f32.mrf.mxu0
    %v5965 = vadd.f32 0.0, %v5964
    %5966 = vdwg.mxu0
    %5967 = vmatpush.bf16.msra.mxu0 0
    %5968 = vmatpush.bf16.msra.mxu0 0
    %5969 = vmatpush.bf16.msra.mxu0 0
    %5970 = vmatpush.bf16.msra.mxu0 0
    %5971 = vmatpush.bf16.msra.mxu0 %v5846
    %5972 = vmatpush.bf16.msra.mxu0 %v5841
    %5973 = vmatpush.bf16.msra.mxu0 %v5836
    %5974 = vmatpush.bf16.msra.mxu0 %v5831
    %5975 = vmatmul.bf16.gmra.mxu0 %v5869
    %v5976 = vpop.f32.mrf.mxu0
    %v5977 = vadd.f32 0.0, %v5976
    %v5978 = vpop.f32.mrf.mxu0
    %v5979 = vadd.f32 0.0, %v5978
    %5980 = vmatmul.bf16.gmra.mxu0 %v5872
    %v5981 = vpop.f32.mrf.mxu0
    %v5982 = vadd.f32 0.0, %v5981
    %v5983 = vpop.f32.mrf.mxu0
    %v5984 = vadd.f32 0.0, %v5983
    %5985 = vmatmul.bf16.gmra.mxu0 %v5875
    %v5986 = vpop.f32.mrf.mxu0
    %v5987 = vadd.f32 0.0, %v5986
    %v5988 = vpop.f32.mrf.mxu0
    %v5989 = vadd.f32 0.0, %v5988
    %5990 = vmatmul.bf16.gmra.mxu0 %v5878
    %v5991 = vpop.f32.mrf.mxu0
    %v5992 = vadd.f32 0.0, %v5991
    %v5993 = vpop.f32.mrf.mxu0
    %v5994 = vadd.f32 0.0, %v5993
    %5995 = vdwg.mxu0
    %5996 = vmatpush.bf16.msra.mxu0 0
    %5997 = vmatpush.bf16.msra.mxu0 0
    %5998 = vmatpush.bf16.msra.mxu0 0
    %5999 = vmatpush.bf16.msra.mxu0 0
    %6000 = vmatpush.bf16.msra.mxu0 %v5847
    %6001 = vmatpush.bf16.msra.mxu0 %v5842
    %6002 = vmatpush.bf16.msra.mxu0 %v5837
    %6003 = vmatpush.bf16.msra.mxu0 %v5832
    %6004 = vmatmul.bf16.gmra.mxu0 %v5869
    %v6005 = vpop.f32.mrf.mxu0
    %v6006 = vadd.f32 0.0, %v6005
    %v6007 = vpop.f32.mrf.mxu0
    %v6008 = vadd.f32 0.0, %v6007
    %6009 = vmatmul.bf16.gmra.mxu0 %v5872
    %v6010 = vpop.f32.mrf.mxu0
    %v6011 = vadd.f32 0.0, %v6010
    %v6012 = vpop.f32.mrf.mxu0
    %v6013 = vadd.f32 0.0, %v6012
    %6014 = vmatmul.bf16.gmra.mxu0 %v5875
    %v6015 = vpop.f32.mrf.mxu0
    %v6016 = vadd.f32 0.0, %v6015
    %v6017 = vpop.f32.mrf.mxu0
    %v6018 = vadd.f32 0.0, %v6017
    %6019 = vmatmul.bf16.gmra.mxu0 %v5878
    %v6020 = vpop.f32.mrf.mxu0
    %v6021 = vadd.f32 0.0, %v6020
    %v6022 = vpop.f32.mrf.mxu0
    %v6023 = vadd.f32 0.0, %v6022
    %6024 = vdwg.mxu0
    %v6025 = vld [vmem:[%s21] sm:$0xf]
    %v6026 = vld [vmem:[%s21 + $0x4] sm:$0xf]
    %v6027 = vld [vmem:[%s21 + $0x8] sm:$0xf]
    %v6028 = vld [vmem:[%s21 + $0xc] sm:$0xf]
    %v6029 = vld [vmem:[%s21 + $0x10] sm:$0xf]
    %v6030 = vld [vmem:[%s21 + $0x14] sm:$0xf]
    %v6031 = vld [vmem:[%s21 + $0x18] sm:$0xf]
    %v6032 = vld [vmem:[%s21 + $0x1c] sm:$0xf]
    %v6033 = vpack.c.bf16 %v5892, %v5890
    %v6034 = vpack.c.bf16 %v5897, %v5895
    %v6035 = vpack.c.bf16 %v5902, %v5900
    %v6036 = vpack.c.bf16 %v5907, %v5905
    %s6037 = scalar_lea.vmem %s21, 32
    %v6038 = vld [vmem:[%s6037] sm:$0xf]
    %v6039 = vld [vmem:[%s6037 + $0x4] sm:$0xf]
    %v6040 = vld [vmem:[%s6037 + $0x8] sm:$0xf]
    %v6041 = vld [vmem:[%s6037 + $0xc] sm:$0xf]
    %v6042 = vld [vmem:[%s6037 + $0x10] sm:$0xf]
    %v6043 = vld [vmem:[%s6037 + $0x14] sm:$0xf]
    %v6044 = vld [vmem:[%s6037 + $0x18] sm:$0xf]
    %v6045 = vld [vmem:[%s6037 + $0x1c] sm:$0xf]
    %v6054 = vunpack.c.l.b16 %v6038
    %v6055 = vunpack.c.l.b16 %v6039
    %v6056 = vunpack.c.l.b16 %v6040
    %v6057 = vunpack.c.l.b16 %v6041
    %v6058 = vunpack.c.l.b16 %v6042
    %v6059 = vunpack.c.l.b16 %v6043
    %v6060 = vunpack.c.l.b16 %v6044
    %v6061 = vunpack.c.l.b16 %v6045
    %v6062 = vpack.c.b16 %v6055, %v6054
    %v6063 = vpack.c.b16 %v6057, %v6056
    %v6064 = vpack.c.b16 %v6059, %v6058
    %v6065 = vpack.c.b16 %v6061, %v6060
    %6070 = vrot.lane.b32.xlu0 %v6033, 64
    %v6071 = vpop.permute.xlu0 %6070
    %6072 = vrot.lane.b32.xlu0 %v6034, 64
    %v6073 = vpop.permute.xlu0 %6072
    %6074 = vrot.lane.b32.xlu0 %v6035, 64
    %v6075 = vpop.permute.xlu0 %6074
    %6076 = vrot.lane.b32.xlu0 %v6036, 64
    %v6077 = vpop.permute.xlu0 %6076
    %v6083 = vsel %vm740, %v6062, 0
    %v6086 = vsel %vm740, %v6063, 0
    %v6089 = vsel %vm740, %v6064, 0
    %v6092 = vsel %vm740, %v6065, 0
    %6094 = vmatpush.bf16.msra.mxu0 0
    %6095 = vmatpush.bf16.msra.mxu0 0
    %6096 = vmatpush.bf16.msra.mxu0 0
    %6097 = vmatpush.bf16.msra.mxu0 0
    %6098 = vmatpush.bf16.msra.mxu0 %v6077
    %6099 = vmatpush.bf16.msra.mxu0 %v6075
    %6100 = vmatpush.bf16.msra.mxu0 %v6073
    %6101 = vmatpush.bf16.msra.mxu0 %v6071
    %6102 = vmatmul.bf16.gmra.mxu0 %v6083
    %v6103 = vpop.f32.mrf.mxu0
    %v6104 = vadd.f32 0.0, %v6103
    %v6105 = vpop.f32.mrf.mxu0
    %v6106 = vadd.f32 0.0, %v6105
    %6107 = vmatmul.bf16.gmra.mxu0 %v6086
    %v6108 = vpop.f32.mrf.mxu0
    %v6109 = vadd.f32 0.0, %v6108
    %v6110 = vpop.f32.mrf.mxu0
    %v6111 = vadd.f32 0.0, %v6110
    %6112 = vmatmul.bf16.gmra.mxu0 %v6089
    %v6113 = vpop.f32.mrf.mxu0
    %v6114 = vadd.f32 0.0, %v6113
    %v6115 = vpop.f32.mrf.mxu0
    %v6116 = vadd.f32 0.0, %v6115
    %6117 = vmatmul.bf16.gmra.mxu0 %v6092
    %v6118 = vpop.f32.mrf.mxu0
    %v6119 = vadd.f32 0.0, %v6118
    %v6120 = vpop.f32.mrf.mxu0
    %v6121 = vadd.f32 0.0, %v6120
    %6122 = vdwg.mxu0
    %s6123 = scalar_lea.vmem %s21, 64
    %v6124 = vld [vmem:[%s6123] sm:$0xf]
    %v6125 = vld [vmem:[%s6123 + $0x4] sm:$0xf]
    %v6126 = vld [vmem:[%s6123 + $0x8] sm:$0xf]
    %v6127 = vld [vmem:[%s6123 + $0xc] sm:$0xf]
    %v6128 = vld [vmem:[%s6123 + $0x10] sm:$0xf]
    %v6129 = vld [vmem:[%s6123 + $0x14] sm:$0xf]
    %v6130 = vld [vmem:[%s6123 + $0x18] sm:$0xf]
    %v6131 = vld [vmem:[%s6123 + $0x1c] sm:$0xf]
    %v6132 = vpack.c.bf16 %v5921, %v5919
    %v6133 = vpack.c.bf16 %v5926, %v5924
    %v6134 = vpack.c.bf16 %v5931, %v5929
    %v6135 = vpack.c.bf16 %v5936, %v5934
    %s6136 = scalar_lea.vmem %s21, 96
    %v6137 = vld [vmem:[%s6136] sm:$0xf]
    %v6138 = vld [vmem:[%s6136 + $0x4] sm:$0xf]
    %v6139 = vld [vmem:[%s6136 + $0x8] sm:$0xf]
    %v6140 = vld [vmem:[%s6136 + $0xc] sm:$0xf]
    %v6141 = vld [vmem:[%s6136 + $0x10] sm:$0xf]
    %v6142 = vld [vmem:[%s6136 + $0x14] sm:$0xf]
    %v6143 = vld [vmem:[%s6136 + $0x18] sm:$0xf]
    %v6144 = vld [vmem:[%s6136 + $0x1c] sm:$0xf]
    %v6153 = vunpack.c.l.b16 %v6137
    %v6154 = vunpack.c.l.b16 %v6138
    %v6155 = vunpack.c.l.b16 %v6139
    %v6156 = vunpack.c.l.b16 %v6140
    %v6157 = vunpack.c.l.b16 %v6141
    %v6158 = vunpack.c.l.b16 %v6142
    %v6159 = vunpack.c.l.b16 %v6143
    %v6160 = vunpack.c.l.b16 %v6144
    %v6161 = vpack.c.b16 %v6154, %v6153
    %v6162 = vpack.c.b16 %v6156, %v6155
    %v6163 = vpack.c.b16 %v6158, %v6157
    %v6164 = vpack.c.b16 %v6160, %v6159
    %6169 = vrot.lane.b32.xlu0 %v6132, 64
    %v6170 = vpop.permute.xlu0 %6169
    %6171 = vrot.lane.b32.xlu0 %v6133, 64
    %v6172 = vpop.permute.xlu0 %6171
    %6173 = vrot.lane.b32.xlu0 %v6134, 64
    %v6174 = vpop.permute.xlu0 %6173
    %6175 = vrot.lane.b32.xlu0 %v6135, 64
    %v6176 = vpop.permute.xlu0 %6175
    %v6182 = vsel %vm740, %v6161, 0
    %v6185 = vsel %vm740, %v6162, 0
    %v6188 = vsel %vm740, %v6163, 0
    %v6191 = vsel %vm740, %v6164, 0
    %6193 = vmatpush.bf16.msra.mxu0 0
    %6194 = vmatpush.bf16.msra.mxu0 0
    %6195 = vmatpush.bf16.msra.mxu0 0
    %6196 = vmatpush.bf16.msra.mxu0 0
    %6197 = vmatpush.bf16.msra.mxu0 %v6176
    %6198 = vmatpush.bf16.msra.mxu0 %v6174
    %6199 = vmatpush.bf16.msra.mxu0 %v6172
    %6200 = vmatpush.bf16.msra.mxu0 %v6170
    %6201 = vmatmul.bf16.gmra.mxu0 %v6182
    %v6202 = vpop.f32.mrf.mxu0
    %v6203 = vadd.f32 0.0, %v6202
    %v6204 = vpop.f32.mrf.mxu0
    %v6205 = vadd.f32 0.0, %v6204
    %6206 = vmatmul.bf16.gmra.mxu0 %v6185
    %v6207 = vpop.f32.mrf.mxu0
    %v6208 = vadd.f32 0.0, %v6207
    %v6209 = vpop.f32.mrf.mxu0
    %v6210 = vadd.f32 0.0, %v6209
    %6211 = vmatmul.bf16.gmra.mxu0 %v6188
    %v6212 = vpop.f32.mrf.mxu0
    %v6213 = vadd.f32 0.0, %v6212
    %v6214 = vpop.f32.mrf.mxu0
    %v6215 = vadd.f32 0.0, %v6214
    %6216 = vmatmul.bf16.gmra.mxu0 %v6191
    %v6217 = vpop.f32.mrf.mxu0
    %v6218 = vadd.f32 0.0, %v6217
    %v6219 = vpop.f32.mrf.mxu0
    %v6220 = vadd.f32 0.0, %v6219
    %6221 = vdwg.mxu0
    %s6222 = scalar_lea.vmem %s21, 128
    %v6223 = vld [vmem:[%s6222] sm:$0xf]
    %v6224 = vld [vmem:[%s6222 + $0x4] sm:$0xf]
    %v6225 = vld [vmem:[%s6222 + $0x8] sm:$0xf]
    %v6226 = vld [vmem:[%s6222 + $0xc] sm:$0xf]
    %v6227 = vld [vmem:[%s6222 + $0x10] sm:$0xf]
    %v6228 = vld [vmem:[%s6222 + $0x14] sm:$0xf]
    %v6229 = vld [vmem:[%s6222 + $0x18] sm:$0xf]
    %v6230 = vld [vmem:[%s6222 + $0x1c] sm:$0xf]
    %v6231 = vpack.c.bf16 %v5950, %v5948
    %v6232 = vpack.c.bf16 %v5955, %v5953
    %v6233 = vpack.c.bf16 %v5960, %v5958
    %v6234 = vpack.c.bf16 %v5965, %v5963
    %s6235 = scalar_lea.vmem %s21, 160
    %v6236 = vld [vmem:[%s6235] sm:$0xf]
    %v6237 = vld [vmem:[%s6235 + $0x4] sm:$0xf]
    %v6238 = vld [vmem:[%s6235 + $0x8] sm:$0xf]
    %v6239 = vld [vmem:[%s6235 + $0xc] sm:$0xf]
    %v6240 = vld [vmem:[%s6235 + $0x10] sm:$0xf]
    %v6241 = vld [vmem:[%s6235 + $0x14] sm:$0xf]
    %v6242 = vld [vmem:[%s6235 + $0x18] sm:$0xf]
    %v6243 = vld [vmem:[%s6235 + $0x1c] sm:$0xf]
    %v6252 = vunpack.c.l.b16 %v6236
    %v6253 = vunpack.c.l.b16 %v6237
    %v6254 = vunpack.c.l.b16 %v6238
    %v6255 = vunpack.c.l.b16 %v6239
    %v6256 = vunpack.c.l.b16 %v6240
    %v6257 = vunpack.c.l.b16 %v6241
    %v6258 = vunpack.c.l.b16 %v6242
    %v6259 = vunpack.c.l.b16 %v6243
    %v6260 = vpack.c.b16 %v6253, %v6252
    %v6261 = vpack.c.b16 %v6255, %v6254
    %v6262 = vpack.c.b16 %v6257, %v6256
    %v6263 = vpack.c.b16 %v6259, %v6258
    %6268 = vrot.lane.b32.xlu0 %v6231, 64
    %v6269 = vpop.permute.xlu0 %6268
    %6270 = vrot.lane.b32.xlu0 %v6232, 64
    %v6271 = vpop.permute.xlu0 %6270
    %6272 = vrot.lane.b32.xlu0 %v6233, 64
    %v6273 = vpop.permute.xlu0 %6272
    %6274 = vrot.lane.b32.xlu0 %v6234, 64
    %v6275 = vpop.permute.xlu0 %6274
    %v6281 = vsel %vm740, %v6260, 0
    %v6284 = vsel %vm740, %v6261, 0
    %v6287 = vsel %vm740, %v6262, 0
    %v6290 = vsel %vm740, %v6263, 0
    %6292 = vmatpush.bf16.msra.mxu0 0
    %6293 = vmatpush.bf16.msra.mxu0 0
    %6294 = vmatpush.bf16.msra.mxu0 0
    %6295 = vmatpush.bf16.msra.mxu0 0
    %6296 = vmatpush.bf16.msra.mxu0 %v6275
    %6297 = vmatpush.bf16.msra.mxu0 %v6273
    %6298 = vmatpush.bf16.msra.mxu0 %v6271
    %6299 = vmatpush.bf16.msra.mxu0 %v6269
    %6300 = vmatmul.bf16.gmra.mxu0 %v6281
    %v6301 = vpop.f32.mrf.mxu0
    %v6302 = vadd.f32 0.0, %v6301
    %v6303 = vpop.f32.mrf.mxu0
    %v6304 = vadd.f32 0.0, %v6303
    %6305 = vmatmul.bf16.gmra.mxu0 %v6284
    %v6306 = vpop.f32.mrf.mxu0
    %v6307 = vadd.f32 0.0, %v6306
    %v6308 = vpop.f32.mrf.mxu0
    %v6309 = vadd.f32 0.0, %v6308
    %6310 = vmatmul.bf16.gmra.mxu0 %v6287
    %v6311 = vpop.f32.mrf.mxu0
    %v6312 = vadd.f32 0.0, %v6311
    %v6313 = vpop.f32.mrf.mxu0
    %v6314 = vadd.f32 0.0, %v6313
    %6315 = vmatmul.bf16.gmra.mxu0 %v6290
    %v6316 = vpop.f32.mrf.mxu0
    %v6317 = vadd.f32 0.0, %v6316
    %v6318 = vpop.f32.mrf.mxu0
    %v6319 = vadd.f32 0.0, %v6318
    %6320 = vdwg.mxu0
    %s6321 = scalar_lea.vmem %s21, 192
    %v6322 = vld [vmem:[%s6321] sm:$0xf]
    %v6323 = vld [vmem:[%s6321 + $0x4] sm:$0xf]
    %v6324 = vld [vmem:[%s6321 + $0x8] sm:$0xf]
    %v6325 = vld [vmem:[%s6321 + $0xc] sm:$0xf]
    %v6326 = vld [vmem:[%s6321 + $0x10] sm:$0xf]
    %v6327 = vld [vmem:[%s6321 + $0x14] sm:$0xf]
    %v6328 = vld [vmem:[%s6321 + $0x18] sm:$0xf]
    %v6329 = vld [vmem:[%s6321 + $0x1c] sm:$0xf]
    %v6330 = vpack.c.bf16 %v5979, %v5977
    %v6331 = vpack.c.bf16 %v5984, %v5982
    %v6332 = vpack.c.bf16 %v5989, %v5987
    %v6333 = vpack.c.bf16 %v5994, %v5992
    %s6334 = scalar_lea.vmem %s21, 224
    %v6335 = vld [vmem:[%s6334] sm:$0xf]
    %v6336 = vld [vmem:[%s6334 + $0x4] sm:$0xf]
    %v6337 = vld [vmem:[%s6334 + $0x8] sm:$0xf]
    %v6338 = vld [vmem:[%s6334 + $0xc] sm:$0xf]
    %v6339 = vld [vmem:[%s6334 + $0x10] sm:$0xf]
    %v6340 = vld [vmem:[%s6334 + $0x14] sm:$0xf]
    %v6341 = vld [vmem:[%s6334 + $0x18] sm:$0xf]
    %v6342 = vld [vmem:[%s6334 + $0x1c] sm:$0xf]
    %v6351 = vunpack.c.l.b16 %v6335
    %v6352 = vunpack.c.l.b16 %v6336
    %v6353 = vunpack.c.l.b16 %v6337
    %v6354 = vunpack.c.l.b16 %v6338
    %v6355 = vunpack.c.l.b16 %v6339
    %v6356 = vunpack.c.l.b16 %v6340
    %v6357 = vunpack.c.l.b16 %v6341
    %v6358 = vunpack.c.l.b16 %v6342
    %v6359 = vpack.c.b16 %v6352, %v6351
    %v6360 = vpack.c.b16 %v6354, %v6353
    %v6361 = vpack.c.b16 %v6356, %v6355
    %v6362 = vpack.c.b16 %v6358, %v6357
    %6367 = vrot.lane.b32.xlu0 %v6330, 64
    %v6368 = vpop.permute.xlu0 %6367
    %6369 = vrot.lane.b32.xlu0 %v6331, 64
    %v6370 = vpop.permute.xlu0 %6369
    %6371 = vrot.lane.b32.xlu0 %v6332, 64
    %v6372 = vpop.permute.xlu0 %6371
    %6373 = vrot.lane.b32.xlu0 %v6333, 64
    %v6374 = vpop.permute.xlu0 %6373
    %v6380 = vsel %vm740, %v6359, 0
    %v6383 = vsel %vm740, %v6360, 0
    %v6386 = vsel %vm740, %v6361, 0
    %v6389 = vsel %vm740, %v6362, 0
    %6391 = vmatpush.bf16.msra.mxu0 0
    %6392 = vmatpush.bf16.msra.mxu0 0
    %6393 = vmatpush.bf16.msra.mxu0 0
    %6394 = vmatpush.bf16.msra.mxu0 0
    %6395 = vmatpush.bf16.msra.mxu0 %v6374
    %6396 = vmatpush.bf16.msra.mxu0 %v6372
    %6397 = vmatpush.bf16.msra.mxu0 %v6370
    %6398 = vmatpush.bf16.msra.mxu0 %v6368
    %6399 = vmatmul.bf16.gmra.mxu0 %v6380
    %v6400 = vpop.f32.mrf.mxu0
    %v6401 = vadd.f32 0.0, %v6400
    %v6402 = vpop.f32.mrf.mxu0
    %v6403 = vadd.f32 0.0, %v6402
    %6404 = vmatmul.bf16.gmra.mxu0 %v6383
    %v6405 = vpop.f32.mrf.mxu0
    %v6406 = vadd.f32 0.0, %v6405
    %v6407 = vpop.f32.mrf.mxu0
    %v6408 = vadd.f32 0.0, %v6407
    %6409 = vmatmul.bf16.gmra.mxu0 %v6386
    %v6410 = vpop.f32.mrf.mxu0
    %v6411 = vadd.f32 0.0, %v6410
    %v6412 = vpop.f32.mrf.mxu0
    %v6413 = vadd.f32 0.0, %v6412
    %6414 = vmatmul.bf16.gmra.mxu0 %v6389
    %v6415 = vpop.f32.mrf.mxu0
    %v6416 = vadd.f32 0.0, %v6415
    %v6417 = vpop.f32.mrf.mxu0
    %v6418 = vadd.f32 0.0, %v6417
    %6419 = vdwg.mxu0
    %s6420 = scalar_lea.vmem %s21, 256
    %v6421 = vld [vmem:[%s6420] sm:$0xf]
    %v6422 = vld [vmem:[%s6420 + $0x4] sm:$0xf]
    %v6423 = vld [vmem:[%s6420 + $0x8] sm:$0xf]
    %v6424 = vld [vmem:[%s6420 + $0xc] sm:$0xf]
    %v6425 = vld [vmem:[%s6420 + $0x10] sm:$0xf]
    %v6426 = vld [vmem:[%s6420 + $0x14] sm:$0xf]
    %v6427 = vld [vmem:[%s6420 + $0x18] sm:$0xf]
    %v6428 = vld [vmem:[%s6420 + $0x1c] sm:$0xf]
    %v6429 = vpack.c.bf16 %v6008, %v6006
    %v6430 = vpack.c.bf16 %v6013, %v6011
    %v6431 = vpack.c.bf16 %v6018, %v6016
    %v6432 = vpack.c.bf16 %v6023, %v6021
    %v6441 = vunpack.c.l.b16 %v6421
    %v6442 = vunpack.c.l.b16 %v6422
    %v6443 = vunpack.c.l.b16 %v6423
    %v6444 = vunpack.c.l.b16 %v6424
    %v6445 = vunpack.c.l.b16 %v6425
    %v6446 = vunpack.c.l.b16 %v6426
    %v6447 = vunpack.c.l.b16 %v6427
    %v6448 = vunpack.c.l.b16 %v6428
    %v6449 = vpack.c.b16 %v6442, %v6441
    %v6450 = vpack.c.b16 %v6444, %v6443
    %v6451 = vpack.c.b16 %v6446, %v6445
    %v6452 = vpack.c.b16 %v6448, %v6447
    %v6454 = vsel %vm740, %v6449, 0
    %v6457 = vsel %vm740, %v6450, 0
    %v6460 = vsel %vm740, %v6451, 0
    %v6463 = vsel %vm740, %v6452, 0
    %6465 = vmatpush.bf16.msra.mxu0 0
    %6466 = vmatpush.bf16.msra.mxu0 0
    %6467 = vmatpush.bf16.msra.mxu0 0
    %6468 = vmatpush.bf16.msra.mxu0 0
    %6469 = vmatpush.bf16.msra.mxu0 %v6432
    %6470 = vmatpush.bf16.msra.mxu0 %v6431
    %6471 = vmatpush.bf16.msra.mxu0 %v6430
    %6472 = vmatpush.bf16.msra.mxu0 %v6429
    %6473 = vmatmul.bf16.gmra.mxu0 %v6454
    %v6474 = vpop.f32.mrf.mxu0
    %v6475 = vadd.f32 0.0, %v6474
    %v6476 = vpop.f32.mrf.mxu0
    %v6477 = vadd.f32 0.0, %v6476
    %6478 = vmatmul.bf16.gmra.mxu0 %v6457
    %v6479 = vpop.f32.mrf.mxu0
    %v6480 = vadd.f32 0.0, %v6479
    %v6481 = vpop.f32.mrf.mxu0
    %v6482 = vadd.f32 0.0, %v6481
    %6483 = vmatmul.bf16.gmra.mxu0 %v6460
    %v6484 = vpop.f32.mrf.mxu0
    %v6485 = vadd.f32 0.0, %v6484
    %v6486 = vpop.f32.mrf.mxu0
    %v6487 = vadd.f32 0.0, %v6486
    %6488 = vmatmul.bf16.gmra.mxu0 %v6463
    %v6489 = vpop.f32.mrf.mxu0
    %v6490 = vadd.f32 0.0, %v6489
    %v6491 = vpop.f32.mrf.mxu0
    %v6492 = vadd.f32 0.0, %v6491
    %6493 = vdwg.mxu0
    %v6502 = vunpack.c.l.b16 %v6025
    %v6503 = vunpack.c.l.b16 %v6026
    %v6504 = vunpack.c.l.b16 %v6027
    %v6505 = vunpack.c.l.b16 %v6028
    %v6506 = vunpack.c.l.b16 %v6029
    %v6507 = vunpack.c.l.b16 %v6030
    %v6508 = vunpack.c.l.b16 %v6031
    %v6509 = vunpack.c.l.b16 %v6032
    %v6510 = vpack.c.b16 %v6503, %v6502
    %v6511 = vpack.c.b16 %v6505, %v6504
    %v6512 = vpack.c.b16 %v6507, %v6506
    %v6513 = vpack.c.b16 %v6509, %v6508
    %v6515 = vsel %vm740, %v6510, 0
    %v6518 = vsel %vm740, %v6511, 0
    %v6521 = vsel %vm740, %v6512, 0
    %v6524 = vsel %vm740, %v6513, 0
    %6526 = vmatpush.bf16.msra.mxu0 0
    %6527 = vmatpush.bf16.msra.mxu0 0
    %6528 = vmatpush.bf16.msra.mxu0 0
    %6529 = vmatpush.bf16.msra.mxu0 0
    %6530 = vmatpush.bf16.msra.mxu0 %v6036
    %6531 = vmatpush.bf16.msra.mxu0 %v6035
    %6532 = vmatpush.bf16.msra.mxu0 %v6034
    %6533 = vmatpush.bf16.msra.mxu0 %v6033
    %6534 = vmatmul.bf16.gmra.mxu0 %v6515
    %v6535 = vpop.f32.mrf.mxu0
    %v6536 = vadd.f32 %v6104, %v6535
    %v6537 = vpop.f32.mrf.mxu0
    %v6538 = vadd.f32 %v6106, %v6537
    %6539 = vmatmul.bf16.gmra.mxu0 %v6518
    %v6540 = vpop.f32.mrf.mxu0
    %v6541 = vadd.f32 %v6109, %v6540
    %v6542 = vpop.f32.mrf.mxu0
    %v6543 = vadd.f32 %v6111, %v6542
    %6544 = vmatmul.bf16.gmra.mxu0 %v6521
    %v6545 = vpop.f32.mrf.mxu0
    %v6546 = vadd.f32 %v6114, %v6545
    %v6547 = vpop.f32.mrf.mxu0
    %v6548 = vadd.f32 %v6116, %v6547
    %6549 = vmatmul.bf16.gmra.mxu0 %v6524
    %v6550 = vpop.f32.mrf.mxu0
    %v6551 = vadd.f32 %v6119, %v6550
    %v6552 = vpop.f32.mrf.mxu0
    %v6553 = vadd.f32 %v6121, %v6552
    %6554 = vdwg.mxu0
    %v6563 = vunpack.c.l.b16 %v6124
    %v6564 = vunpack.c.l.b16 %v6125
    %v6565 = vunpack.c.l.b16 %v6126
    %v6566 = vunpack.c.l.b16 %v6127
    %v6567 = vunpack.c.l.b16 %v6128
    %v6568 = vunpack.c.l.b16 %v6129
    %v6569 = vunpack.c.l.b16 %v6130
    %v6570 = vunpack.c.l.b16 %v6131
    %v6571 = vpack.c.b16 %v6564, %v6563
    %v6572 = vpack.c.b16 %v6566, %v6565
    %v6573 = vpack.c.b16 %v6568, %v6567
    %v6574 = vpack.c.b16 %v6570, %v6569
    %v6576 = vsel %vm740, %v6571, 0
    %v6579 = vsel %vm740, %v6572, 0
    %v6582 = vsel %vm740, %v6573, 0
    %v6585 = vsel %vm740, %v6574, 0
    %6587 = vmatpush.bf16.msra.mxu0 0
    %6588 = vmatpush.bf16.msra.mxu0 0
    %6589 = vmatpush.bf16.msra.mxu0 0
    %6590 = vmatpush.bf16.msra.mxu0 0
    %6591 = vmatpush.bf16.msra.mxu0 %v6135
    %6592 = vmatpush.bf16.msra.mxu0 %v6134
    %6593 = vmatpush.bf16.msra.mxu0 %v6133
    %6594 = vmatpush.bf16.msra.mxu0 %v6132
    %6595 = vmatmul.bf16.gmra.mxu0 %v6576
    %v6596 = vpop.f32.mrf.mxu0
    %v6597 = vadd.f32 %v6203, %v6596
    %v6598 = vpop.f32.mrf.mxu0
    %v6599 = vadd.f32 %v6205, %v6598
    %6600 = vmatmul.bf16.gmra.mxu0 %v6579
    %v6601 = vpop.f32.mrf.mxu0
    %v6602 = vadd.f32 %v6208, %v6601
    %v6603 = vpop.f32.mrf.mxu0
    %v6604 = vadd.f32 %v6210, %v6603
    %6605 = vmatmul.bf16.gmra.mxu0 %v6582
    %v6606 = vpop.f32.mrf.mxu0
    %v6607 = vadd.f32 %v6213, %v6606
    %v6608 = vpop.f32.mrf.mxu0
    %v6609 = vadd.f32 %v6215, %v6608
    %6610 = vmatmul.bf16.gmra.mxu0 %v6585
    %v6611 = vpop.f32.mrf.mxu0
    %v6612 = vadd.f32 %v6218, %v6611
    %v6613 = vpop.f32.mrf.mxu0
    %v6614 = vadd.f32 %v6220, %v6613
    %6615 = vdwg.mxu0
    %v6624 = vunpack.c.l.b16 %v6223
    %v6625 = vunpack.c.l.b16 %v6224
    %v6626 = vunpack.c.l.b16 %v6225
    %v6627 = vunpack.c.l.b16 %v6226
    %v6628 = vunpack.c.l.b16 %v6227
    %v6629 = vunpack.c.l.b16 %v6228
    %v6630 = vunpack.c.l.b16 %v6229
    %v6631 = vunpack.c.l.b16 %v6230
    %v6632 = vpack.c.b16 %v6625, %v6624
    %v6633 = vpack.c.b16 %v6627, %v6626
    %v6634 = vpack.c.b16 %v6629, %v6628
    %v6635 = vpack.c.b16 %v6631, %v6630
    %v6637 = vsel %vm740, %v6632, 0
    %v6640 = vsel %vm740, %v6633, 0
    %v6643 = vsel %vm740, %v6634, 0
    %v6646 = vsel %vm740, %v6635, 0
    %6648 = vmatpush.bf16.msra.mxu0 0
    %6649 = vmatpush.bf16.msra.mxu0 0
    %6650 = vmatpush.bf16.msra.mxu0 0
    %6651 = vmatpush.bf16.msra.mxu0 0
    %6652 = vmatpush.bf16.msra.mxu0 %v6234
    %6653 = vmatpush.bf16.msra.mxu0 %v6233
    %6654 = vmatpush.bf16.msra.mxu0 %v6232
    %6655 = vmatpush.bf16.msra.mxu0 %v6231
    %6656 = vmatmul.bf16.gmra.mxu0 %v6637
    %v6657 = vpop.f32.mrf.mxu0
    %v6658 = vadd.f32 %v6302, %v6657
    %v6659 = vpop.f32.mrf.mxu0
    %v6660 = vadd.f32 %v6304, %v6659
    %6661 = vmatmul.bf16.gmra.mxu0 %v6640
    %v6662 = vpop.f32.mrf.mxu0
    %v6663 = vadd.f32 %v6307, %v6662
    %v6664 = vpop.f32.mrf.mxu0
    %v6665 = vadd.f32 %v6309, %v6664
    %6666 = vmatmul.bf16.gmra.mxu0 %v6643
    %v6667 = vpop.f32.mrf.mxu0
    %v6668 = vadd.f32 %v6312, %v6667
    %v6669 = vpop.f32.mrf.mxu0
    %v6670 = vadd.f32 %v6314, %v6669
    %6671 = vmatmul.bf16.gmra.mxu0 %v6646
    %v6672 = vpop.f32.mrf.mxu0
    %v6673 = vadd.f32 %v6317, %v6672
    %v6674 = vpop.f32.mrf.mxu0
    %v6675 = vadd.f32 %v6319, %v6674
    %6676 = vdwg.mxu0
    %v6685 = vunpack.c.l.b16 %v6322
    %v6686 = vunpack.c.l.b16 %v6323
    %v6687 = vunpack.c.l.b16 %v6324
    %v6688 = vunpack.c.l.b16 %v6325
    %v6689 = vunpack.c.l.b16 %v6326
    %v6690 = vunpack.c.l.b16 %v6327
    %v6691 = vunpack.c.l.b16 %v6328
    %v6692 = vunpack.c.l.b16 %v6329
    %v6693 = vpack.c.b16 %v6686, %v6685
    %v6694 = vpack.c.b16 %v6688, %v6687
    %v6695 = vpack.c.b16 %v6690, %v6689
    %v6696 = vpack.c.b16 %v6692, %v6691
    %v6698 = vsel %vm740, %v6693, 0
    %v6701 = vsel %vm740, %v6694, 0
    %v6704 = vsel %vm740, %v6695, 0
    %v6707 = vsel %vm740, %v6696, 0
    %6709 = vmatpush.bf16.msra.mxu0 0
    %6710 = vmatpush.bf16.msra.mxu0 0
    %6711 = vmatpush.bf16.msra.mxu0 0
    %6712 = vmatpush.bf16.msra.mxu0 0
    %6713 = vmatpush.bf16.msra.mxu0 %v6333
    %6714 = vmatpush.bf16.msra.mxu0 %v6332
    %6715 = vmatpush.bf16.msra.mxu0 %v6331
    %6716 = vmatpush.bf16.msra.mxu0 %v6330
    %6717 = vmatmul.bf16.gmra.mxu0 %v6698
    %v6718 = vpop.f32.mrf.mxu0
    %v6719 = vadd.f32 %v6401, %v6718
    %v6720 = vpop.f32.mrf.mxu0
    %v6721 = vadd.f32 %v6403, %v6720
    %6722 = vmatmul.bf16.gmra.mxu0 %v6701
    %v6723 = vpop.f32.mrf.mxu0
    %v6724 = vadd.f32 %v6406, %v6723
    %v6725 = vpop.f32.mrf.mxu0
    %v6726 = vadd.f32 %v6408, %v6725
    %6727 = vmatmul.bf16.gmra.mxu0 %v6704
    %v6728 = vpop.f32.mrf.mxu0
    %v6729 = vadd.f32 %v6411, %v6728
    %v6730 = vpop.f32.mrf.mxu0
    %v6731 = vadd.f32 %v6413, %v6730
    %6732 = vmatmul.bf16.gmra.mxu0 %v6707
    %v6733 = vpop.f32.mrf.mxu0
    %v6734 = vadd.f32 %v6416, %v6733
    %v6735 = vpop.f32.mrf.mxu0
    %v6736 = vadd.f32 %v6418, %v6735
    %6737 = vdwg.mxu0
    %v6738 = vadd.f32 %v6536, %v6597
    %v6739 = vadd.f32 %v6538, %v6599
    %v6740 = vadd.f32 %v6541, %v6602
    %v6741 = vadd.f32 %v6543, %v6604
    %v6742 = vadd.f32 %v6546, %v6607
    %v6743 = vadd.f32 %v6548, %v6609
    %v6744 = vadd.f32 %v6551, %v6612
    %v6745 = vadd.f32 %v6553, %v6614
    %v6746 = vadd.f32 %v6658, %v6719
    %v6747 = vadd.f32 %v6660, %v6721
    %v6748 = vadd.f32 %v6663, %v6724
    %v6749 = vadd.f32 %v6665, %v6726
    %v6750 = vadd.f32 %v6668, %v6729
    %v6751 = vadd.f32 %v6670, %v6731
    %v6752 = vadd.f32 %v6673, %v6734
    %v6753 = vadd.f32 %v6675, %v6736
    %v6754 = vadd.f32 %v6738, %v6746
    %v6755 = vadd.f32 %v6739, %v6747
    %v6756 = vadd.f32 %v6740, %v6748
    %v6757 = vadd.f32 %v6741, %v6749
    %v6758 = vadd.f32 %v6742, %v6750
    %v6759 = vadd.f32 %v6743, %v6751
    %v6760 = vadd.f32 %v6744, %v6752
    %v6761 = vadd.f32 %v6745, %v6753
    %v6762 = vadd.f32 %v6754, %v6475
    %v6763 = vadd.f32 %v6755, %v6477
    %v6764 = vadd.f32 %v6756, %v6480
    %v6765 = vadd.f32 %v6757, %v6482
    %v6766 = vadd.f32 %v6758, %v6485
    %v6767 = vadd.f32 %v6759, %v6487
    %v6768 = vadd.f32 %v6760, %v6490
    %v6769 = vadd.f32 %v6761, %v6492
    %v6770 = vld [vmem:[#allocation14] sm:$0x1]
    %v6772 = vperm.slane %v6770, 0
    %v6774 = vadd.f32 %v6762, %v6772
    %v6775 = vadd.f32 %v6763, %v6772
    %v6776 = vadd.f32 %v6764, %v6772
    %v6777 = vadd.f32 %v6765, %v6772
    %v6778 = vadd.f32 %v6766, %v6772
    %v6779 = vadd.f32 %v6767, %v6772
    %v6780 = vadd.f32 %v6768, %v6772
    %v6781 = vadd.f32 %v6769, %v6772
    %v6782 = vmul.f32 %v6774, 0.5
    %v6783 = vmul.f32 %v6775, 0.5
    %v6784 = vmul.f32 %v6776, 0.5
    %v6785 = vmul.f32 %v6777, 0.5
    %v6786 = vmul.f32 %v6778, 0.5
    %v6787 = vmul.f32 %v6779, 0.5
    %v6788 = vmul.f32 %v6780, 0.5
    %v6789 = vmul.f32 %v6781, 0.5
    %v6790 = vmul.f32 %v6774, 0.044715
    %v6791 = vmul.f32 %v6775, 0.044715
    %v6792 = vmul.f32 %v6776, 0.044715
    %v6793 = vmul.f32 %v6777, 0.044715
    %v6794 = vmul.f32 %v6778, 0.044715
    %v6795 = vmul.f32 %v6779, 0.044715
    %v6796 = vmul.f32 %v6780, 0.044715
    %v6797 = vmul.f32 %v6781, 0.044715
    %v6798 = vmul.f32 %v6790, %v6774
    %v6799 = vmul.f32 %v6791, %v6775
    %v6800 = vmul.f32 %v6792, %v6776
    %v6801 = vmul.f32 %v6793, %v6777
    %v6802 = vmul.f32 %v6794, %v6778
    %v6803 = vmul.f32 %v6795, %v6779
    %v6804 = vmul.f32 %v6796, %v6780
    %v6805 = vmul.f32 %v6797, %v6781
    %v6806 = vmul.f32 %v6798, %v6774
    %v6807 = vmul.f32 %v6799, %v6775
    %v6808 = vmul.f32 %v6800, %v6776
    %v6809 = vmul.f32 %v6801, %v6777
    %v6810 = vmul.f32 %v6802, %v6778
    %v6811 = vmul.f32 %v6803, %v6779
    %v6812 = vmul.f32 %v6804, %v6780
    %v6813 = vmul.f32 %v6805, %v6781
    %v6814 = vadd.f32 %v6774, %v6806
    %v6815 = vadd.f32 %v6775, %v6807
    %v6816 = vadd.f32 %v6776, %v6808
    %v6817 = vadd.f32 %v6777, %v6809
    %v6818 = vadd.f32 %v6778, %v6810
    %v6819 = vadd.f32 %v6779, %v6811
    %v6820 = vadd.f32 %v6780, %v6812
    %v6821 = vadd.f32 %v6781, %v6813
    %v6822 = vmul.f32 %v6814, 0.7978846
    %v6823 = vmul.f32 %v6815, 0.7978846
    %v6824 = vmul.f32 %v6816, 0.7978846
    %v6825 = vmul.f32 %v6817, 0.7978846
    %v6826 = vmul.f32 %v6818, 0.7978846
    %v6827 = vmul.f32 %v6819, 0.7978846
    %v6828 = vmul.f32 %v6820, 0.7978846
    %v6829 = vmul.f32 %v6821, 0.7978846
    %v6830 = vtanh.pop %v6822
    %v6831 = vtanh.pop %v6823
    %v6832 = vtanh.pop %v6824
    %v6833 = vtanh.pop %v6825
    %v6834 = vtanh.pop %v6826
    %v6835 = vtanh.pop %v6827
    %v6836 = vtanh.pop %v6828
    %v6837 = vtanh.pop %v6829
    %v6838 = vadd.f32 %v6830, 1.0
    %v6839 = vadd.f32 %v6831, 1.0
    %v6840 = vadd.f32 %v6832, 1.0
    %v6841 = vadd.f32 %v6833, 1.0
    %v6842 = vadd.f32 %v6834, 1.0
    %v6843 = vadd.f32 %v6835, 1.0
    %v6844 = vadd.f32 %v6836, 1.0
    %v6845 = vadd.f32 %v6837, 1.0
    %v6846 = vmul.f32 %v6782, %v6838
    %v6847 = vmul.f32 %v6783, %v6839
    %v6848 = vmul.f32 %v6784, %v6840
    %v6849 = vmul.f32 %v6785, %v6841
    %v6850 = vmul.f32 %v6786, %v6842
    %v6851 = vmul.f32 %v6787, %v6843
    %v6852 = vmul.f32 %v6788, %v6844
    %v6853 = vmul.f32 %v6789, %v6845
    %v6854 = vld [vmem:[#allocation15] sm:$0xff]
    %v6855 = vld [vmem:[#allocation15 + $0x8] sm:$0xff]
    %v6856 = vld [vmem:[#allocation15 + $0x10] sm:$0xff]
    %v6857 = vld [vmem:[#allocation15 + $0x18] sm:$0xff]
    %v6858 = vld [vmem:[#allocation15 + $0x20] sm:$0xff]
    %v6859 = vld [vmem:[#allocation15 + $0x28] sm:$0xff]
    %v6860 = vld [vmem:[#allocation15 + $0x30] sm:$0xff]
    %v6861 = vld [vmem:[#allocation15 + $0x38] sm:$0xff]
    %v6862 = vld [vmem:[#allocation15 + $0x40] sm:$0xff]
    %v6863 = vld [vmem:[#allocation15 + $0x48] sm:$0xff]
    %v6864 = vld [vmem:[#allocation15 + $0x50] sm:$0xff]
    %v6865 = vld [vmem:[#allocation15 + $0x58] sm:$0xff]
    %v6866 = vld [vmem:[#allocation15 + $0x60] sm:$0xff]
    %v6867 = vld [vmem:[#allocation15 + $0x68] sm:$0xff]
    %v6868 = vld [vmem:[#allocation15 + $0x70] sm:$0xff]
    %v6869 = vld [vmem:[#allocation15 + $0x78] sm:$0xff]
    %v6870 = vpack.c.bf16 %v6847, %v6846
    %v6871 = vpack.c.bf16 %v6849, %v6848
    %v6872 = vpack.c.bf16 %v6851, %v6850
    %v6873 = vpack.c.bf16 %v6853, %v6852
    %v6874 = vld [vmem:[%s25] sm:$0xf]
    %v6876 = vperm.slane %v6874, 0
    %v6877 = vperm.slane %v6874, 1
    %v6878 = vperm.slane %v6874, 2
    %v6879 = vperm.slane %v6874, 3
    %v6900 = vunpack.c.l.b16 %v6854
    %v6901 = vunpack.c.h.b16 %v6854
    %v6902 = vunpack.c.l.b16 %v6855
    %v6903 = vunpack.c.h.b16 %v6855
    %v6904 = vunpack.c.l.b16 %v6856
    %v6905 = vunpack.c.h.b16 %v6856
    %v6906 = vunpack.c.l.b16 %v6857
    %v6907 = vunpack.c.h.b16 %v6857
    %v6908 = vunpack.c.l.b16 %v6858
    %v6909 = vunpack.c.h.b16 %v6858
    %v6910 = vunpack.c.l.b16 %v6859
    %v6911 = vunpack.c.h.b16 %v6859
    %v6912 = vunpack.c.l.b16 %v6860
    %v6913 = vunpack.c.h.b16 %v6860
    %v6914 = vunpack.c.l.b16 %v6861
    %v6915 = vunpack.c.h.b16 %v6861
    %v6916 = vunpack.c.l.b16 %v6862
    %v6917 = vunpack.c.h.b16 %v6862
    %v6918 = vunpack.c.l.b16 %v6863
    %v6919 = vunpack.c.h.b16 %v6863
    %v6920 = vunpack.c.l.b16 %v6864
    %v6921 = vunpack.c.h.b16 %v6864
    %v6922 = vunpack.c.l.b16 %v6865
    %v6923 = vunpack.c.h.b16 %v6865
    %v6924 = vunpack.c.l.b16 %v6866
    %v6925 = vunpack.c.h.b16 %v6866
    %v6926 = vunpack.c.l.b16 %v6867
    %v6927 = vunpack.c.h.b16 %v6867
    %v6928 = vunpack.c.l.b16 %v6868
    %v6929 = vunpack.c.h.b16 %v6868
    %v6930 = vunpack.c.l.b16 %v6869
    %v6931 = vunpack.c.h.b16 %v6869
    %v6932 = vpack.c.b16 %v6904, %v6900
    %v6933 = vpack.c.b16 %v6905, %v6901
    %v6934 = vpack.c.b16 %v6906, %v6902
    %v6935 = vpack.c.b16 %v6907, %v6903
    %v6936 = vpack.c.b16 %v6912, %v6908
    %v6937 = vpack.c.b16 %v6913, %v6909
    %v6938 = vpack.c.b16 %v6914, %v6910
    %v6939 = vpack.c.b16 %v6915, %v6911
    %v6940 = vpack.c.b16 %v6920, %v6916
    %v6941 = vpack.c.b16 %v6921, %v6917
    %v6942 = vpack.c.b16 %v6922, %v6918
    %v6943 = vpack.c.b16 %v6923, %v6919
    %v6944 = vpack.c.b16 %v6928, %v6924
    %v6945 = vpack.c.b16 %v6929, %v6925
    %v6946 = vpack.c.b16 %v6930, %v6926
    %v6947 = vpack.c.b16 %v6931, %v6927
    %v6965 = vsel %vm740, %v6870, 0
    %v6968 = vsel %vm740, %v6871, 0
    %v6971 = vsel %vm740, %v6872, 0
    %v6974 = vsel %vm740, %v6873, 0
    %6976 = vmatpush.bf16.msra.mxu0 0
    %6977 = vmatpush.bf16.msra.mxu0 0
    %6978 = vmatpush.bf16.msra.mxu0 0
    %6979 = vmatpush.bf16.msra.mxu0 0
    %6980 = vmatpush.bf16.msra.mxu0 %v6944
    %6981 = vmatpush.bf16.msra.mxu0 %v6940
    %6982 = vmatpush.bf16.msra.mxu0 %v6936
    %6983 = vmatpush.bf16.msra.mxu0 %v6932
    %6984 = vmatmul.bf16.gmra.mxu0 %v6965
    %v6985 = vpop.f32.mrf.mxu0
    %v6986 = vadd.f32 %v6876, %v6985
    %v6987 = vpop.f32.mrf.mxu0
    %v6988 = vadd.f32 %v6876, %v6987
    %6989 = vmatmul.bf16.gmra.mxu0 %v6968
    %v6990 = vpop.f32.mrf.mxu0
    %v6991 = vadd.f32 %v6876, %v6990
    %v6992 = vpop.f32.mrf.mxu0
    %v6993 = vadd.f32 %v6876, %v6992
    %6994 = vmatmul.bf16.gmra.mxu0 %v6971
    %v6995 = vpop.f32.mrf.mxu0
    %v6996 = vadd.f32 %v6876, %v6995
    %v6997 = vpop.f32.mrf.mxu0
    %v6998 = vadd.f32 %v6876, %v6997
    %6999 = vmatmul.bf16.gmra.mxu0 %v6974
    %v7000 = vpop.f32.mrf.mxu0
    %v7001 = vadd.f32 %v6876, %v7000
    %v7002 = vpop.f32.mrf.mxu0
    %v7003 = vadd.f32 %v6876, %v7002
    %7004 = vdwg.mxu0
    %7005 = vmatpush.bf16.msra.mxu0 0
    %7006 = vmatpush.bf16.msra.mxu0 0
    %7007 = vmatpush.bf16.msra.mxu0 0
    %7008 = vmatpush.bf16.msra.mxu0 0
    %7009 = vmatpush.bf16.msra.mxu0 %v6945
    %7010 = vmatpush.bf16.msra.mxu0 %v6941
    %7011 = vmatpush.bf16.msra.mxu0 %v6937
    %7012 = vmatpush.bf16.msra.mxu0 %v6933
    %7013 = vmatmul.bf16.gmra.mxu0 %v6965
    %v7014 = vpop.f32.mrf.mxu0
    %v7015 = vadd.f32 %v6877, %v7014
    %v7016 = vpop.f32.mrf.mxu0
    %v7017 = vadd.f32 %v6877, %v7016
    %7018 = vmatmul.bf16.gmra.mxu0 %v6968
    %v7019 = vpop.f32.mrf.mxu0
    %v7020 = vadd.f32 %v6877, %v7019
    %v7021 = vpop.f32.mrf.mxu0
    %v7022 = vadd.f32 %v6877, %v7021
    %7023 = vmatmul.bf16.gmra.mxu0 %v6971
    %v7024 = vpop.f32.mrf.mxu0
    %v7025 = vadd.f32 %v6877, %v7024
    %v7026 = vpop.f32.mrf.mxu0
    %v7027 = vadd.f32 %v6877, %v7026
    %7028 = vmatmul.bf16.gmra.mxu0 %v6974
    %v7029 = vpop.f32.mrf.mxu0
    %v7030 = vadd.f32 %v6877, %v7029
    %v7031 = vpop.f32.mrf.mxu0
    %v7032 = vadd.f32 %v6877, %v7031
    %7033 = vdwg.mxu0
    %7034 = vmatpush.bf16.msra.mxu0 0
    %7035 = vmatpush.bf16.msra.mxu0 0
    %7036 = vmatpush.bf16.msra.mxu0 0
    %7037 = vmatpush.bf16.msra.mxu0 0
    %7038 = vmatpush.bf16.msra.mxu0 %v6946
    %7039 = vmatpush.bf16.msra.mxu0 %v6942
    %7040 = vmatpush.bf16.msra.mxu0 %v6938
    %7041 = vmatpush.bf16.msra.mxu0 %v6934
    %7042 = vmatmul.bf16.gmra.mxu0 %v6965
    %v7043 = vpop.f32.mrf.mxu0
    %v7044 = vadd.f32 %v6878, %v7043
    %v7045 = vpop.f32.mrf.mxu0
    %v7046 = vadd.f32 %v6878, %v7045
    %7047 = vmatmul.bf16.gmra.mxu0 %v6968
    %v7048 = vpop.f32.mrf.mxu0
    %v7049 = vadd.f32 %v6878, %v7048
    %v7050 = vpop.f32.mrf.mxu0
    %v7051 = vadd.f32 %v6878, %v7050
    %7052 = vmatmul.bf16.gmra.mxu0 %v6971
    %v7053 = vpop.f32.mrf.mxu0
    %v7054 = vadd.f32 %v6878, %v7053
    %v7055 = vpop.f32.mrf.mxu0
    %v7056 = vadd.f32 %v6878, %v7055
    %7057 = vmatmul.bf16.gmra.mxu0 %v6974
    %v7058 = vpop.f32.mrf.mxu0
    %v7059 = vadd.f32 %v6878, %v7058
    %v7060 = vpop.f32.mrf.mxu0
    %v7061 = vadd.f32 %v6878, %v7060
    %7062 = vdwg.mxu0
    %7063 = vmatpush.bf16.msra.mxu0 0
    %7064 = vmatpush.bf16.msra.mxu0 0
    %7065 = vmatpush.bf16.msra.mxu0 0
    %7066 = vmatpush.bf16.msra.mxu0 0
    %7067 = vmatpush.bf16.msra.mxu0 %v6947
    %7068 = vmatpush.bf16.msra.mxu0 %v6943
    %7069 = vmatpush.bf16.msra.mxu0 %v6939
    %7070 = vmatpush.bf16.msra.mxu0 %v6935
    %7071 = vmatmul.bf16.gmra.mxu0 %v6965
    %v7072 = vpop.f32.mrf.mxu0
    %v7073 = vadd.f32 %v6879, %v7072
    %v7074 = vpop.f32.mrf.mxu0
    %v7075 = vadd.f32 %v6879, %v7074
    %7076 = vmatmul.bf16.gmra.mxu0 %v6968
    %v7077 = vpop.f32.mrf.mxu0
    %v7078 = vadd.f32 %v6879, %v7077
    %v7079 = vpop.f32.mrf.mxu0
    %v7080 = vadd.f32 %v6879, %v7079
    %7081 = vmatmul.bf16.gmra.mxu0 %v6971
    %v7082 = vpop.f32.mrf.mxu0
    %v7083 = vadd.f32 %v6879, %v7082
    %v7084 = vpop.f32.mrf.mxu0
    %v7085 = vadd.f32 %v6879, %v7084
    %7086 = vmatmul.bf16.gmra.mxu0 %v6974
    %v7087 = vpop.f32.mrf.mxu0
    %v7088 = vadd.f32 %v6879, %v7087
    %v7089 = vpop.f32.mrf.mxu0
    %v7090 = vadd.f32 %v6879, %v7089
    %7091 = vdwg.mxu0
    %v7092 = vmul.f32 %v6986, 0.5
    %v7093 = vmul.f32 %v7015, 0.5
    %v7094 = vmul.f32 %v7044, 0.5
    %v7095 = vmul.f32 %v7073, 0.5
    %v7096 = vmul.f32 %v6988, 0.5
    %v7097 = vmul.f32 %v7017, 0.5
    %v7098 = vmul.f32 %v7046, 0.5
    %v7099 = vmul.f32 %v7075, 0.5
    %v7100 = vmul.f32 %v6991, 0.5
    %v7101 = vmul.f32 %v7020, 0.5
    %v7102 = vmul.f32 %v7049, 0.5
    %v7103 = vmul.f32 %v7078, 0.5
    %v7104 = vmul.f32 %v6993, 0.5
    %v7105 = vmul.f32 %v7022, 0.5
    %v7106 = vmul.f32 %v7051, 0.5
    %v7107 = vmul.f32 %v7080, 0.5
    %v7108 = vmul.f32 %v6996, 0.5
    %v7109 = vmul.f32 %v7025, 0.5
    %v7110 = vmul.f32 %v7054, 0.5
    %v7111 = vmul.f32 %v7083, 0.5
    %v7112 = vmul.f32 %v6998, 0.5
    %v7113 = vmul.f32 %v7027, 0.5
    %v7114 = vmul.f32 %v7056, 0.5
    %v7115 = vmul.f32 %v7085, 0.5
    %v7116 = vmul.f32 %v7001, 0.5
    %v7117 = vmul.f32 %v7030, 0.5
    %v7118 = vmul.f32 %v7059, 0.5
    %v7119 = vmul.f32 %v7088, 0.5
    %v7120 = vmul.f32 %v7003, 0.5
    %v7121 = vmul.f32 %v7032, 0.5
    %v7122 = vmul.f32 %v7061, 0.5
    %v7123 = vmul.f32 %v7090, 0.5
    %v7124 = vmul.f32 %v6986, 0.044715
    %v7125 = vmul.f32 %v7015, 0.044715
    %v7126 = vmul.f32 %v7044, 0.044715
    %v7127 = vmul.f32 %v7073, 0.044715
    %v7128 = vmul.f32 %v6988, 0.044715
    %v7129 = vmul.f32 %v7017, 0.044715
    %v7130 = vmul.f32 %v7046, 0.044715
    %v7131 = vmul.f32 %v7075, 0.044715
    %v7132 = vmul.f32 %v6991, 0.044715
    %v7133 = vmul.f32 %v7020, 0.044715
    %v7134 = vmul.f32 %v7049, 0.044715
    %v7135 = vmul.f32 %v7078, 0.044715
    %v7136 = vmul.f32 %v6993, 0.044715
    %v7137 = vmul.f32 %v7022, 0.044715
    %v7138 = vmul.f32 %v7051, 0.044715
    %v7139 = vmul.f32 %v7080, 0.044715
    %v7140 = vmul.f32 %v6996, 0.044715
    %v7141 = vmul.f32 %v7025, 0.044715
    %v7142 = vmul.f32 %v7054, 0.044715
    %v7143 = vmul.f32 %v7083, 0.044715
    %v7144 = vmul.f32 %v6998, 0.044715
    %v7145 = vmul.f32 %v7027, 0.044715
    %v7146 = vmul.f32 %v7056, 0.044715
    %v7147 = vmul.f32 %v7085, 0.044715
    %v7148 = vmul.f32 %v7001, 0.044715
    %v7149 = vmul.f32 %v7030, 0.044715
    %v7150 = vmul.f32 %v7059, 0.044715
    %v7151 = vmul.f32 %v7088, 0.044715
    %v7152 = vmul.f32 %v7003, 0.044715
    %v7153 = vmul.f32 %v7032, 0.044715
    %v7154 = vmul.f32 %v7061, 0.044715
    %v7155 = vmul.f32 %v7090, 0.044715
    %v7156 = vmul.f32 %v7124, %v6986
    %v7157 = vmul.f32 %v7125, %v7015
    %v7158 = vmul.f32 %v7126, %v7044
    %v7159 = vmul.f32 %v7127, %v7073
    %v7160 = vmul.f32 %v7128, %v6988
    %v7161 = vmul.f32 %v7129, %v7017
    %v7162 = vmul.f32 %v7130, %v7046
    %v7163 = vmul.f32 %v7131, %v7075
    %v7164 = vmul.f32 %v7132, %v6991
    %v7165 = vmul.f32 %v7133, %v7020
    %v7166 = vmul.f32 %v7134, %v7049
    %v7167 = vmul.f32 %v7135, %v7078
    %v7168 = vmul.f32 %v7136, %v6993
    %v7169 = vmul.f32 %v7137, %v7022
    %v7170 = vmul.f32 %v7138, %v7051
    %v7171 = vmul.f32 %v7139, %v7080
    %v7172 = vmul.f32 %v7140, %v6996
    %v7173 = vmul.f32 %v7141, %v7025
    %v7174 = vmul.f32 %v7142, %v7054
    %v7175 = vmul.f32 %v7143, %v7083
    %v7176 = vmul.f32 %v7144, %v6998
    %v7177 = vmul.f32 %v7145, %v7027
    %v7178 = vmul.f32 %v7146, %v7056
    %v7179 = vmul.f32 %v7147, %v7085
    %v7180 = vmul.f32 %v7148, %v7001
    %v7181 = vmul.f32 %v7149, %v7030
    %v7182 = vmul.f32 %v7150, %v7059
    %v7183 = vmul.f32 %v7151, %v7088
    %v7184 = vmul.f32 %v7152, %v7003
    %v7185 = vmul.f32 %v7153, %v7032
    %v7186 = vmul.f32 %v7154, %v7061
    %v7187 = vmul.f32 %v7155, %v7090
    %v7188 = vmul.f32 %v7156, %v6986
    %v7189 = vmul.f32 %v7157, %v7015
    %v7190 = vmul.f32 %v7158, %v7044
    %v7191 = vmul.f32 %v7159, %v7073
    %v7192 = vmul.f32 %v7160, %v6988
    %v7193 = vmul.f32 %v7161, %v7017
    %v7194 = vmul.f32 %v7162, %v7046
    %v7195 = vmul.f32 %v7163, %v7075
    %v7196 = vmul.f32 %v7164, %v6991
    %v7197 = vmul.f32 %v7165, %v7020
    %v7198 = vmul.f32 %v7166, %v7049
    %v7199 = vmul.f32 %v7167, %v7078
    %v7200 = vmul.f32 %v7168, %v6993
    %v7201 = vmul.f32 %v7169, %v7022
    %v7202 = vmul.f32 %v7170, %v7051
    %v7203 = vmul.f32 %v7171, %v7080
    %v7204 = vmul.f32 %v7172, %v6996
    %v7205 = vmul.f32 %v7173, %v7025
    %v7206 = vmul.f32 %v7174, %v7054
    %v7207 = vmul.f32 %v7175, %v7083
    %v7208 = vmul.f32 %v7176, %v6998
    %v7209 = vmul.f32 %v7177, %v7027
    %v7210 = vmul.f32 %v7178, %v7056
    %v7211 = vmul.f32 %v7179, %v7085
    %v7212 = vmul.f32 %v7180, %v7001
    %v7213 = vmul.f32 %v7181, %v7030
    %v7214 = vmul.f32 %v7182, %v7059
    %v7215 = vmul.f32 %v7183, %v7088
    %v7216 = vmul.f32 %v7184, %v7003
    %v7217 = vmul.f32 %v7185, %v7032
    %v7218 = vmul.f32 %v7186, %v7061
    %v7219 = vmul.f32 %v7187, %v7090
    %v7220 = vadd.f32 %v6986, %v7188
    %v7221 = vadd.f32 %v7015, %v7189
    %v7222 = vadd.f32 %v7044, %v7190
    %v7223 = vadd.f32 %v7073, %v7191
    %v7224 = vadd.f32 %v6988, %v7192
    %v7225 = vadd.f32 %v7017, %v7193
    %v7226 = vadd.f32 %v7046, %v7194
    %v7227 = vadd.f32 %v7075, %v7195
    %v7228 = vadd.f32 %v6991, %v7196
    %v7229 = vadd.f32 %v7020, %v7197
    %v7230 = vadd.f32 %v7049, %v7198
    %v7231 = vadd.f32 %v7078, %v7199
    %v7232 = vadd.f32 %v6993, %v7200
    %v7233 = vadd.f32 %v7022, %v7201
    %v7234 = vadd.f32 %v7051, %v7202
    %v7235 = vadd.f32 %v7080, %v7203
    %v7236 = vadd.f32 %v6996, %v7204
    %v7237 = vadd.f32 %v7025, %v7205
    %v7238 = vadd.f32 %v7054, %v7206
    %v7239 = vadd.f32 %v7083, %v7207
    %v7240 = vadd.f32 %v6998, %v7208
    %v7241 = vadd.f32 %v7027, %v7209
    %v7242 = vadd.f32 %v7056, %v7210
    %v7243 = vadd.f32 %v7085, %v7211
    %v7244 = vadd.f32 %v7001, %v7212
    %v7245 = vadd.f32 %v7030, %v7213
    %v7246 = vadd.f32 %v7059, %v7214
    %v7247 = vadd.f32 %v7088, %v7215
    %v7248 = vadd.f32 %v7003, %v7216
    %v7249 = vadd.f32 %v7032, %v7217
    %v7250 = vadd.f32 %v7061, %v7218
    %v7251 = vadd.f32 %v7090, %v7219
    %v7252 = vmul.f32 %v7220, 0.7978846
    %v7253 = vmul.f32 %v7221, 0.7978846
    %v7254 = vmul.f32 %v7222, 0.7978846
    %v7255 = vmul.f32 %v7223, 0.7978846
    %v7256 = vmul.f32 %v7224, 0.7978846
    %v7257 = vmul.f32 %v7225, 0.7978846
    %v7258 = vmul.f32 %v7226, 0.7978846
    %v7259 = vmul.f32 %v7227, 0.7978846
    %v7260 = vmul.f32 %v7228, 0.7978846
    %v7261 = vmul.f32 %v7229, 0.7978846
    %v7262 = vmul.f32 %v7230, 0.7978846
    %v7263 = vmul.f32 %v7231, 0.7978846
    %v7264 = vmul.f32 %v7232, 0.7978846
    %v7265 = vmul.f32 %v7233, 0.7978846
    %v7266 = vmul.f32 %v7234, 0.7978846
    %v7267 = vmul.f32 %v7235, 0.7978846
    %v7268 = vmul.f32 %v7236, 0.7978846
    %v7269 = vmul.f32 %v7237, 0.7978846
    %v7270 = vmul.f32 %v7238, 0.7978846
    %v7271 = vmul.f32 %v7239, 0.7978846
    %v7272 = vmul.f32 %v7240, 0.7978846
    %v7273 = vmul.f32 %v7241, 0.7978846
    %v7274 = vmul.f32 %v7242, 0.7978846
    %v7275 = vmul.f32 %v7243, 0.7978846
    %v7276 = vmul.f32 %v7244, 0.7978846
    %v7277 = vmul.f32 %v7245, 0.7978846
    %v7278 = vmul.f32 %v7246, 0.7978846
    %v7279 = vmul.f32 %v7247, 0.7978846
    %v7280 = vmul.f32 %v7248, 0.7978846
    %v7281 = vmul.f32 %v7249, 0.7978846
    %v7282 = vmul.f32 %v7250, 0.7978846
    %v7283 = vmul.f32 %v7251, 0.7978846
    %v7284 = vtanh.pop %v7252
    %v7285 = vtanh.pop %v7253
    %v7286 = vtanh.pop %v7254
    %v7287 = vtanh.pop %v7255
    %v7288 = vtanh.pop %v7256
    %v7289 = vtanh.pop %v7257
    %v7290 = vtanh.pop %v7258
    %v7291 = vtanh.pop %v7259
    %v7292 = vtanh.pop %v7260
    %v7293 = vtanh.pop %v7261
    %v7294 = vtanh.pop %v7262
    %v7295 = vtanh.pop %v7263
    %v7296 = vtanh.pop %v7264
    %v7297 = vtanh.pop %v7265
    %v7298 = vtanh.pop %v7266
    %v7299 = vtanh.pop %v7267
    %v7300 = vtanh.pop %v7268
    %v7301 = vtanh.pop %v7269
    %v7302 = vtanh.pop %v7270
    %v7303 = vtanh.pop %v7271
    %v7304 = vtanh.pop %v7272
    %v7305 = vtanh.pop %v7273
    %v7306 = vtanh.pop %v7274
    %v7307 = vtanh.pop %v7275
    %v7308 = vtanh.pop %v7276
    %v7309 = vtanh.pop %v7277
    %v7310 = vtanh.pop %v7278
    %v7311 = vtanh.pop %v7279
    %v7312 = vtanh.pop %v7280
    %v7313 = vtanh.pop %v7281
    %v7314 = vtanh.pop %v7282
    %v7315 = vtanh.pop %v7283
    %v7316 = vadd.f32 %v7284, 1.0
    %v7317 = vadd.f32 %v7285, 1.0
    %v7318 = vadd.f32 %v7286, 1.0
    %v7319 = vadd.f32 %v7287, 1.0
    %v7320 = vadd.f32 %v7288, 1.0
    %v7321 = vadd.f32 %v7289, 1.0
    %v7322 = vadd.f32 %v7290, 1.0
    %v7323 = vadd.f32 %v7291, 1.0
    %v7324 = vadd.f32 %v7292, 1.0
    %v7325 = vadd.f32 %v7293, 1.0
    %v7326 = vadd.f32 %v7294, 1.0
    %v7327 = vadd.f32 %v7295, 1.0
    %v7328 = vadd.f32 %v7296, 1.0
    %v7329 = vadd.f32 %v7297, 1.0
    %v7330 = vadd.f32 %v7298, 1.0
    %v7331 = vadd.f32 %v7299, 1.0
    %v7332 = vadd.f32 %v7300, 1.0
    %v7333 = vadd.f32 %v7301, 1.0
    %v7334 = vadd.f32 %v7302, 1.0
    %v7335 = vadd.f32 %v7303, 1.0
    %v7336 = vadd.f32 %v7304, 1.0
    %v7337 = vadd.f32 %v7305, 1.0
    %v7338 = vadd.f32 %v7306, 1.0
    %v7339 = vadd.f32 %v7307, 1.0
    %v7340 = vadd.f32 %v7308, 1.0
    %v7341 = vadd.f32 %v7309, 1.0
    %v7342 = vadd.f32 %v7310, 1.0
    %v7343 = vadd.f32 %v7311, 1.0
    %v7344 = vadd.f32 %v7312, 1.0
    %v7345 = vadd.f32 %v7313, 1.0
    %v7346 = vadd.f32 %v7314, 1.0
    %v7347 = vadd.f32 %v7315, 1.0
    %v7348 = vmul.f32 %v7092, %v7316
    %v7349 = vmul.f32 %v7093, %v7317
    %v7350 = vmul.f32 %v7094, %v7318
    %v7351 = vmul.f32 %v7095, %v7319
    %v7352 = vmul.f32 %v7096, %v7320
    %v7353 = vmul.f32 %v7097, %v7321
    %v7354 = vmul.f32 %v7098, %v7322
    %v7355 = vmul.f32 %v7099, %v7323
    %v7356 = vmul.f32 %v7100, %v7324
    %v7357 = vmul.f32 %v7101, %v7325
    %v7358 = vmul.f32 %v7102, %v7326
    %v7359 = vmul.f32 %v7103, %v7327
    %v7360 = vmul.f32 %v7104, %v7328
    %v7361 = vmul.f32 %v7105, %v7329
    %v7362 = vmul.f32 %v7106, %v7330
    %v7363 = vmul.f32 %v7107, %v7331
    %v7364 = vmul.f32 %v7108, %v7332
    %v7365 = vmul.f32 %v7109, %v7333
    %v7366 = vmul.f32 %v7110, %v7334
    %v7367 = vmul.f32 %v7111, %v7335
    %v7368 = vmul.f32 %v7112, %v7336
    %v7369 = vmul.f32 %v7113, %v7337
    %v7370 = vmul.f32 %v7114, %v7338
    %v7371 = vmul.f32 %v7115, %v7339
    %v7372 = vmul.f32 %v7116, %v7340
    %v7373 = vmul.f32 %v7117, %v7341
    %v7374 = vmul.f32 %v7118, %v7342
    %v7375 = vmul.f32 %v7119, %v7343
    %v7376 = vmul.f32 %v7120, %v7344
    %v7377 = vmul.f32 %v7121, %v7345
    %v7378 = vmul.f32 %v7122, %v7346
    %v7379 = vmul.f32 %v7123, %v7347
    %v7380 = vld [vmem:[#allocation17] sm:$0xff]
    %v7381 = vld [vmem:[#allocation17 + $0x8] sm:$0xff]
    %v7382 = vld [vmem:[#allocation17 + $0x10] sm:$0xff]
    %v7383 = vld [vmem:[#allocation17 + $0x18] sm:$0xff]
    %v7384 = vld [vmem:[#allocation17 + $0x20] sm:$0xff]
    %v7385 = vld [vmem:[#allocation17 + $0x28] sm:$0xff]
    %v7386 = vld [vmem:[#allocation17 + $0x30] sm:$0xff]
    %v7387 = vld [vmem:[#allocation17 + $0x38] sm:$0xff]
    %v7388 = vld [vmem:[#allocation17 + $0x40] sm:$0xff]
    %v7389 = vld [vmem:[#allocation17 + $0x48] sm:$0xff]
    %v7390 = vld [vmem:[#allocation17 + $0x50] sm:$0xff]
    %v7391 = vld [vmem:[#allocation17 + $0x58] sm:$0xff]
    %v7392 = vld [vmem:[#allocation17 + $0x60] sm:$0xff]
    %v7393 = vld [vmem:[#allocation17 + $0x68] sm:$0xff]
    %v7394 = vld [vmem:[#allocation17 + $0x70] sm:$0xff]
    %v7395 = vld [vmem:[#allocation17 + $0x78] sm:$0xff]
    %v7396 = vld [vmem:[#allocation17 + $0x80] sm:$0xff]
    %v7397 = vld [vmem:[#allocation17 + $0x88] sm:$0xff]
    %v7398 = vld [vmem:[#allocation17 + $0x90] sm:$0xff]
    %v7399 = vld [vmem:[#allocation17 + $0x98] sm:$0xff]
    %v7400 = vld [vmem:[#allocation17 + $0xa0] sm:$0xff]
    %v7401 = vld [vmem:[#allocation17 + $0xa8] sm:$0xff]
    %v7402 = vld [vmem:[#allocation17 + $0xb0] sm:$0xff]
    %v7403 = vld [vmem:[#allocation17 + $0xb8] sm:$0xff]
    %v7404 = vld [vmem:[#allocation17 + $0xc0] sm:$0xff]
    %v7405 = vld [vmem:[#allocation17 + $0xc8] sm:$0xff]
    %v7406 = vld [vmem:[#allocation17 + $0xd0] sm:$0xff]
    %v7407 = vld [vmem:[#allocation17 + $0xd8] sm:$0xff]
    %v7408 = vld [vmem:[#allocation17 + $0xe0] sm:$0xff]
    %v7409 = vld [vmem:[#allocation17 + $0xe8] sm:$0xff]
    %v7410 = vld [vmem:[#allocation17 + $0xf0] sm:$0xff]
    %v7411 = vld [vmem:[#allocation17 + $0xf8] sm:$0xff]
    %v7412 = vld [vmem:[#allocation17 + $0x100] sm:$0xff]
    %v7413 = vld [vmem:[#allocation17 + $0x108] sm:$0xff]
    %v7414 = vld [vmem:[#allocation17 + $0x110] sm:$0xff]
    %v7415 = vld [vmem:[#allocation17 + $0x118] sm:$0xff]
    %v7416 = vld [vmem:[#allocation17 + $0x120] sm:$0xff]
    %v7417 = vld [vmem:[#allocation17 + $0x128] sm:$0xff]
    %v7418 = vld [vmem:[#allocation17 + $0x130] sm:$0xff]
    %v7419 = vld [vmem:[#allocation17 + $0x138] sm:$0xff]
    %v7420 = vld [vmem:[#allocation17 + $0x140] sm:$0xff]
    %v7421 = vld [vmem:[#allocation17 + $0x148] sm:$0xff]
    %v7422 = vld [vmem:[#allocation17 + $0x150] sm:$0xff]
    %v7423 = vld [vmem:[#allocation17 + $0x158] sm:$0xff]
    %v7424 = vld [vmem:[#allocation17 + $0x160] sm:$0xff]
    %v7425 = vld [vmem:[#allocation17 + $0x168] sm:$0xff]
    %v7426 = vld [vmem:[#allocation17 + $0x170] sm:$0xff]
    %v7427 = vld [vmem:[#allocation17 + $0x178] sm:$0xff]
    %v7428 = vld [vmem:[#allocation17 + $0x180] sm:$0xff]
    %v7429 = vld [vmem:[#allocation17 + $0x188] sm:$0xff]
    %v7430 = vld [vmem:[#allocation17 + $0x190] sm:$0xff]
    %v7431 = vld [vmem:[#allocation17 + $0x198] sm:$0xff]
    %v7432 = vld [vmem:[#allocation17 + $0x1a0] sm:$0xff]
    %v7433 = vld [vmem:[#allocation17 + $0x1a8] sm:$0xff]
    %v7434 = vld [vmem:[#allocation17 + $0x1b0] sm:$0xff]
    %v7435 = vld [vmem:[#allocation17 + $0x1b8] sm:$0xff]
    %v7436 = vld [vmem:[#allocation17 + $0x1c0] sm:$0xff]
    %v7437 = vld [vmem:[#allocation17 + $0x1c8] sm:$0xff]
    %v7438 = vld [vmem:[#allocation17 + $0x1d0] sm:$0xff]
    %v7439 = vld [vmem:[#allocation17 + $0x1d8] sm:$0xff]
    %v7440 = vld [vmem:[#allocation17 + $0x1e0] sm:$0xff]
    %v7441 = vld [vmem:[#allocation17 + $0x1e8] sm:$0xff]
    %v7442 = vld [vmem:[#allocation17 + $0x1f0] sm:$0xff]
    %v7443 = vld [vmem:[#allocation17 + $0x1f8] sm:$0xff]
    %v7444 = vpack.c.bf16 %v7352, %v7348
    %v7445 = vpack.c.bf16 %v7353, %v7349
    %v7446 = vpack.c.bf16 %v7354, %v7350
    %v7447 = vpack.c.bf16 %v7355, %v7351
    %v7448 = vpack.c.bf16 %v7360, %v7356
    %v7449 = vpack.c.bf16 %v7361, %v7357
    %v7450 = vpack.c.bf16 %v7362, %v7358
    %v7451 = vpack.c.bf16 %v7363, %v7359
    %v7452 = vpack.c.bf16 %v7368, %v7364
    %v7453 = vpack.c.bf16 %v7369, %v7365
    %v7454 = vpack.c.bf16 %v7370, %v7366
    %v7455 = vpack.c.bf16 %v7371, %v7367
    %v7456 = vpack.c.bf16 %v7376, %v7372
    %v7457 = vpack.c.bf16 %v7377, %v7373
    %v7458 = vpack.c.bf16 %v7378, %v7374
    %v7459 = vpack.c.bf16 %v7379, %v7375
    %v7460 = vld [vmem:[#allocation2] sm:$0x1]
    %v7462 = vperm.slane %v7460, 0
    %7463 = vset.pattern.permute.xlu0 0
    %7464 = vperm.xlu0 %7463, %v7462
    %v7465 = vpop.permute.xlu0 %7464
    %v7531 = vunpack.c.l.b16 %v7380
    %v7532 = vunpack.c.h.b16 %v7380
    %v7533 = vunpack.c.l.b16 %v7381
    %v7534 = vunpack.c.h.b16 %v7381
    %v7535 = vunpack.c.l.b16 %v7382
    %v7536 = vunpack.c.h.b16 %v7382
    %v7537 = vunpack.c.l.b16 %v7383
    %v7538 = vunpack.c.h.b16 %v7383
    %v7539 = vunpack.c.l.b16 %v7384
    %v7540 = vunpack.c.h.b16 %v7384
    %v7541 = vunpack.c.l.b16 %v7385
    %v7542 = vunpack.c.h.b16 %v7385
    %v7543 = vunpack.c.l.b16 %v7386
    %v7544 = vunpack.c.h.b16 %v7386
    %v7545 = vunpack.c.l.b16 %v7387
    %v7546 = vunpack.c.h.b16 %v7387
    %v7547 = vunpack.c.l.b16 %v7388
    %v7548 = vunpack.c.h.b16 %v7388
    %v7549 = vunpack.c.l.b16 %v7389
    %v7550 = vunpack.c.h.b16 %v7389
    %v7551 = vunpack.c.l.b16 %v7390
    %v7552 = vunpack.c.h.b16 %v7390
    %v7553 = vunpack.c.l.b16 %v7391
    %v7554 = vunpack.c.h.b16 %v7391
    %v7555 = vunpack.c.l.b16 %v7392
    %v7556 = vunpack.c.h.b16 %v7392
    %v7557 = vunpack.c.l.b16 %v7393
    %v7558 = vunpack.c.h.b16 %v7393
    %v7559 = vunpack.c.l.b16 %v7394
    %v7560 = vunpack.c.h.b16 %v7394
    %v7561 = vunpack.c.l.b16 %v7395
    %v7562 = vunpack.c.h.b16 %v7395
    %v7563 = vunpack.c.l.b16 %v7396
    %v7564 = vunpack.c.h.b16 %v7396
    %v7565 = vunpack.c.l.b16 %v7397
    %v7566 = vunpack.c.h.b16 %v7397
    %v7567 = vunpack.c.l.b16 %v7398
    %v7568 = vunpack.c.h.b16 %v7398
    %v7569 = vunpack.c.l.b16 %v7399
    %v7570 = vunpack.c.h.b16 %v7399
    %v7571 = vunpack.c.l.b16 %v7400
    %v7572 = vunpack.c.h.b16 %v7400
    %v7573 = vunpack.c.l.b16 %v7401
    %v7574 = vunpack.c.h.b16 %v7401
    %v7575 = vunpack.c.l.b16 %v7402
    %v7576 = vunpack.c.h.b16 %v7402
    %v7577 = vunpack.c.l.b16 %v7403
    %v7578 = vunpack.c.h.b16 %v7403
    %v7579 = vunpack.c.l.b16 %v7404
    %v7580 = vunpack.c.h.b16 %v7404
    %v7581 = vunpack.c.l.b16 %v7405
    %v7582 = vunpack.c.h.b16 %v7405
    %v7583 = vunpack.c.l.b16 %v7406
    %v7584 = vunpack.c.h.b16 %v7406
    %v7585 = vunpack.c.l.b16 %v7407
    %v7586 = vunpack.c.h.b16 %v7407
    %v7587 = vunpack.c.l.b16 %v7408
    %v7588 = vunpack.c.h.b16 %v7408
    %v7589 = vunpack.c.l.b16 %v7409
    %v7590 = vunpack.c.h.b16 %v7409
    %v7591 = vunpack.c.l.b16 %v7410
    %v7592 = vunpack.c.h.b16 %v7410
    %v7593 = vunpack.c.l.b16 %v7411
    %v7594 = vunpack.c.h.b16 %v7411
    %v7595 = vunpack.c.l.b16 %v7412
    %v7596 = vunpack.c.h.b16 %v7412
    %v7597 = vunpack.c.l.b16 %v7413
    %v7598 = vunpack.c.h.b16 %v7413
    %v7599 = vunpack.c.l.b16 %v7414
    %v7600 = vunpack.c.h.b16 %v7414
    %v7601 = vunpack.c.l.b16 %v7415
    %v7602 = vunpack.c.h.b16 %v7415
    %v7603 = vunpack.c.l.b16 %v7416
    %v7604 = vunpack.c.h.b16 %v7416
    %v7605 = vunpack.c.l.b16 %v7417
    %v7606 = vunpack.c.h.b16 %v7417
    %v7607 = vunpack.c.l.b16 %v7418
    %v7608 = vunpack.c.h.b16 %v7418
    %v7609 = vunpack.c.l.b16 %v7419
    %v7610 = vunpack.c.h.b16 %v7419
    %v7611 = vunpack.c.l.b16 %v7420
    %v7612 = vunpack.c.h.b16 %v7420
    %v7613 = vunpack.c.l.b16 %v7421
    %v7614 = vunpack.c.h.b16 %v7421
    %v7615 = vunpack.c.l.b16 %v7422
    %v7616 = vunpack.c.h.b16 %v7422
    %v7617 = vunpack.c.l.b16 %v7423
    %v7618 = vunpack.c.h.b16 %v7423
    %v7619 = vunpack.c.l.b16 %v7424
    %v7620 = vunpack.c.h.b16 %v7424
    %v7621 = vunpack.c.l.b16 %v7425
    %v7622 = vunpack.c.h.b16 %v7425
    %v7623 = vunpack.c.l.b16 %v7426
    %v7624 = vunpack.c.h.b16 %v7426
    %v7625 = vunpack.c.l.b16 %v7427
    %v7626 = vunpack.c.h.b16 %v7427
    %v7627 = vunpack.c.l.b16 %v7428
    %v7628 = vunpack.c.h.b16 %v7428
    %v7629 = vunpack.c.l.b16 %v7429
    %v7630 = vunpack.c.h.b16 %v7429
    %v7631 = vunpack.c.l.b16 %v7430
    %v7632 = vunpack.c.h.b16 %v7430
    %v7633 = vunpack.c.l.b16 %v7431
    %v7634 = vunpack.c.h.b16 %v7431
    %v7635 = vunpack.c.l.b16 %v7432
    %v7636 = vunpack.c.h.b16 %v7432
    %v7637 = vunpack.c.l.b16 %v7433
    %v7638 = vunpack.c.h.b16 %v7433
    %v7639 = vunpack.c.l.b16 %v7434
    %v7640 = vunpack.c.h.b16 %v7434
    %v7641 = vunpack.c.l.b16 %v7435
    %v7642 = vunpack.c.h.b16 %v7435
    %v7643 = vunpack.c.l.b16 %v7436
    %v7644 = vunpack.c.h.b16 %v7436
    %v7645 = vunpack.c.l.b16 %v7437
    %v7646 = vunpack.c.h.b16 %v7437
    %v7647 = vunpack.c.l.b16 %v7438
    %v7648 = vunpack.c.h.b16 %v7438
    %v7649 = vunpack.c.l.b16 %v7439
    %v7650 = vunpack.c.h.b16 %v7439
    %v7651 = vunpack.c.l.b16 %v7440
    %v7652 = vunpack.c.h.b16 %v7440
    %v7653 = vunpack.c.l.b16 %v7441
    %v7654 = vunpack.c.h.b16 %v7441
    %v7655 = vunpack.c.l.b16 %v7442
    %v7656 = vunpack.c.h.b16 %v7442
    %v7657 = vunpack.c.l.b16 %v7443
    %v7658 = vunpack.c.h.b16 %v7443
    %v7659 = vpack.c.b16 %v7533, %v7531
    %v7660 = vpack.c.b16 %v7534, %v7532
    %v7661 = vpack.c.b16 %v7537, %v7535
    %v7662 = vpack.c.b16 %v7538, %v7536
    %v7663 = vpack.c.b16 %v7541, %v7539
    %v7664 = vpack.c.b16 %v7542, %v7540
    %v7665 = vpack.c.b16 %v7545, %v7543
    %v7666 = vpack.c.b16 %v7546, %v7544
    %v7667 = vpack.c.b16 %v7549, %v7547
    %v7668 = vpack.c.b16 %v7550, %v7548
    %v7669 = vpack.c.b16 %v7553, %v7551
    %v7670 = vpack.c.b16 %v7554, %v7552
    %v7671 = vpack.c.b16 %v7557, %v7555
    %v7672 = vpack.c.b16 %v7558, %v7556
    %v7673 = vpack.c.b16 %v7561, %v7559
    %v7674 = vpack.c.b16 %v7562, %v7560
    %v7675 = vpack.c.b16 %v7565, %v7563
    %v7676 = vpack.c.b16 %v7566, %v7564
    %v7677 = vpack.c.b16 %v7569, %v7567
    %v7678 = vpack.c.b16 %v7570, %v7568
    %v7679 = vpack.c.b16 %v7573, %v7571
    %v7680 = vpack.c.b16 %v7574, %v7572
    %v7681 = vpack.c.b16 %v7577, %v7575
    %v7682 = vpack.c.b16 %v7578, %v7576
    %v7683 = vpack.c.b16 %v7581, %v7579
    %v7684 = vpack.c.b16 %v7582, %v7580
    %v7685 = vpack.c.b16 %v7585, %v7583
    %v7686 = vpack.c.b16 %v7586, %v7584
    %v7687 = vpack.c.b16 %v7589, %v7587
    %v7688 = vpack.c.b16 %v7590, %v7588
    %v7689 = vpack.c.b16 %v7593, %v7591
    %v7690 = vpack.c.b16 %v7594, %v7592
    %v7691 = vpack.c.b16 %v7597, %v7595
    %v7692 = vpack.c.b16 %v7598, %v7596
    %v7693 = vpack.c.b16 %v7601, %v7599
    %v7694 = vpack.c.b16 %v7602, %v7600
    %v7695 = vpack.c.b16 %v7605, %v7603
    %v7696 = vpack.c.b16 %v7606, %v7604
    %v7697 = vpack.c.b16 %v7609, %v7607
    %v7698 = vpack.c.b16 %v7610, %v7608
    %v7699 = vpack.c.b16 %v7613, %v7611
    %v7700 = vpack.c.b16 %v7614, %v7612
    %v7701 = vpack.c.b16 %v7617, %v7615
    %v7702 = vpack.c.b16 %v7618, %v7616
    %v7703 = vpack.c.b16 %v7621, %v7619
    %v7704 = vpack.c.b16 %v7622, %v7620
    %v7705 = vpack.c.b16 %v7625, %v7623
    %v7706 = vpack.c.b16 %v7626, %v7624
    %v7707 = vpack.c.b16 %v7629, %v7627
    %v7708 = vpack.c.b16 %v7630, %v7628
    %v7709 = vpack.c.b16 %v7633, %v7631
    %v7710 = vpack.c.b16 %v7634, %v7632
    %v7711 = vpack.c.b16 %v7637, %v7635
    %v7712 = vpack.c.b16 %v7638, %v7636
    %v7713 = vpack.c.b16 %v7641, %v7639
    %v7714 = vpack.c.b16 %v7642, %v7640
    %v7715 = vpack.c.b16 %v7645, %v7643
    %v7716 = vpack.c.b16 %v7646, %v7644
    %v7717 = vpack.c.b16 %v7649, %v7647
    %v7718 = vpack.c.b16 %v7650, %v7648
    %v7719 = vpack.c.b16 %v7653, %v7651
    %v7720 = vpack.c.b16 %v7654, %v7652
    %v7721 = vpack.c.b16 %v7657, %v7655
    %v7722 = vpack.c.b16 %v7658, %v7656
    %7787 = vmatpush.bf16.msra.mxu0 %v7673
    %7788 = vmatpush.bf16.msra.mxu0 %v7671
    %7789 = vmatpush.bf16.msra.mxu0 %v7669
    %7790 = vmatpush.bf16.msra.mxu0 %v7667
    %7791 = vmatpush.bf16.msra.mxu0 %v7665
    %7792 = vmatpush.bf16.msra.mxu0 %v7663
    %7793 = vmatpush.bf16.msra.mxu0 %v7661
    %7794 = vmatpush.bf16.msra.mxu0 %v7659
    %7795 = vmatmul.bf16.gmra.mxu0 %v7444
    %v7796 = vpop.f32.mrf.mxu0
    %v7797 = vadd.f32 %v7465, %v7796
    %v7798 = vpop.f32.mrf.mxu0
    %v7799 = vadd.f32 %v7465, %v7798
    %7800 = vmatmul.bf16.gmra.mxu0 %v7448
    %v7801 = vpop.f32.mrf.mxu0
    %v7802 = vadd.f32 %v7465, %v7801
    %v7803 = vpop.f32.mrf.mxu0
    %v7804 = vadd.f32 %v7465, %v7803
    %7805 = vmatmul.bf16.gmra.mxu0 %v7452
    %v7806 = vpop.f32.mrf.mxu0
    %v7807 = vadd.f32 %v7465, %v7806
    %v7808 = vpop.f32.mrf.mxu0
    %v7809 = vadd.f32 %v7465, %v7808
    %7810 = vmatmul.bf16.gmra.mxu0 %v7456
    %v7811 = vpop.f32.mrf.mxu0
    %v7812 = vadd.f32 %v7465, %v7811
    %v7813 = vpop.f32.mrf.mxu0
    %v7814 = vadd.f32 %v7465, %v7813
    %7815 = vdwg.mxu0
    %7816 = vmatpush.bf16.msra.mxu0 %v7689
    %7817 = vmatpush.bf16.msra.mxu0 %v7687
    %7818 = vmatpush.bf16.msra.mxu0 %v7685
    %7819 = vmatpush.bf16.msra.mxu0 %v7683
    %7820 = vmatpush.bf16.msra.mxu0 %v7681
    %7821 = vmatpush.bf16.msra.mxu0 %v7679
    %7822 = vmatpush.bf16.msra.mxu0 %v7677
    %7823 = vmatpush.bf16.msra.mxu0 %v7675
    %7824 = vmatmul.bf16.gmra.mxu0 %v7445
    %v7825 = vpop.f32.mrf.mxu0
    %v7826 = vadd.f32 %v7797, %v7825
    %v7827 = vpop.f32.mrf.mxu0
    %v7828 = vadd.f32 %v7799, %v7827
    %7829 = vmatmul.bf16.gmra.mxu0 %v7449
    %v7830 = vpop.f32.mrf.mxu0
    %v7831 = vadd.f32 %v7802, %v7830
    %v7832 = vpop.f32.mrf.mxu0
    %v7833 = vadd.f32 %v7804, %v7832
    %7834 = vmatmul.bf16.gmra.mxu0 %v7453
    %v7835 = vpop.f32.mrf.mxu0
    %v7836 = vadd.f32 %v7807, %v7835
    %v7837 = vpop.f32.mrf.mxu0
    %v7838 = vadd.f32 %v7809, %v7837
    %7839 = vmatmul.bf16.gmra.mxu0 %v7457
    %v7840 = vpop.f32.mrf.mxu0
    %v7841 = vadd.f32 %v7812, %v7840
    %v7842 = vpop.f32.mrf.mxu0
    %v7843 = vadd.f32 %v7814, %v7842
    %7844 = vdwg.mxu0
    %7845 = vmatpush.bf16.msra.mxu0 %v7705
    %7846 = vmatpush.bf16.msra.mxu0 %v7703
    %7847 = vmatpush.bf16.msra.mxu0 %v7701
    %7848 = vmatpush.bf16.msra.mxu0 %v7699
    %7849 = vmatpush.bf16.msra.mxu0 %v7697
    %7850 = vmatpush.bf16.msra.mxu0 %v7695
    %7851 = vmatpush.bf16.msra.mxu0 %v7693
    %7852 = vmatpush.bf16.msra.mxu0 %v7691
    %7853 = vmatmul.bf16.gmra.mxu0 %v7446
    %v7854 = vpop.f32.mrf.mxu0
    %v7855 = vadd.f32 %v7826, %v7854
    %v7856 = vpop.f32.mrf.mxu0
    %v7857 = vadd.f32 %v7828, %v7856
    %7858 = vmatmul.bf16.gmra.mxu0 %v7450
    %v7859 = vpop.f32.mrf.mxu0
    %v7860 = vadd.f32 %v7831, %v7859
    %v7861 = vpop.f32.mrf.mxu0
    %v7862 = vadd.f32 %v7833, %v7861
    %7863 = vmatmul.bf16.gmra.mxu0 %v7454
    %v7864 = vpop.f32.mrf.mxu0
    %v7865 = vadd.f32 %v7836, %v7864
    %v7866 = vpop.f32.mrf.mxu0
    %v7867 = vadd.f32 %v7838, %v7866
    %7868 = vmatmul.bf16.gmra.mxu0 %v7458
    %v7869 = vpop.f32.mrf.mxu0
    %v7870 = vadd.f32 %v7841, %v7869
    %v7871 = vpop.f32.mrf.mxu0
    %v7872 = vadd.f32 %v7843, %v7871
    %7873 = vdwg.mxu0
    %7874 = vmatpush.bf16.msra.mxu0 %v7721
    %7875 = vmatpush.bf16.msra.mxu0 %v7719
    %7876 = vmatpush.bf16.msra.mxu0 %v7717
    %7877 = vmatpush.bf16.msra.mxu0 %v7715
    %7878 = vmatpush.bf16.msra.mxu0 %v7713
    %7879 = vmatpush.bf16.msra.mxu0 %v7711
    %7880 = vmatpush.bf16.msra.mxu0 %v7709
    %7881 = vmatpush.bf16.msra.mxu0 %v7707
    %7882 = vmatmul.bf16.gmra.mxu0 %v7447
    %v7883 = vpop.f32.mrf.mxu0
    %v7884 = vadd.f32 %v7855, %v7883
    %v7885 = vpop.f32.mrf.mxu0
    %v7886 = vadd.f32 %v7857, %v7885
    %7887 = vmatmul.bf16.gmra.mxu0 %v7451
    %v7888 = vpop.f32.mrf.mxu0
    %v7889 = vadd.f32 %v7860, %v7888
    %v7890 = vpop.f32.mrf.mxu0
    %v7891 = vadd.f32 %v7862, %v7890
    %7892 = vmatmul.bf16.gmra.mxu0 %v7455
    %v7893 = vpop.f32.mrf.mxu0
    %v7894 = vadd.f32 %v7865, %v7893
    %v7895 = vpop.f32.mrf.mxu0
    %v7896 = vadd.f32 %v7867, %v7895
    %7897 = vmatmul.bf16.gmra.mxu0 %v7459
    %v7898 = vpop.f32.mrf.mxu0
    %v7899 = vadd.f32 %v7870, %v7898
    %v7900 = vpop.f32.mrf.mxu0
    %v7901 = vadd.f32 %v7872, %v7900
    %7902 = vdwg.mxu0
    %7903 = vmatpush.bf16.msra.mxu0 %v7674
    %7904 = vmatpush.bf16.msra.mxu0 %v7672
    %7905 = vmatpush.bf16.msra.mxu0 %v7670
    %7906 = vmatpush.bf16.msra.mxu0 %v7668
    %7907 = vmatpush.bf16.msra.mxu0 %v7666
    %7908 = vmatpush.bf16.msra.mxu0 %v7664
    %7909 = vmatpush.bf16.msra.mxu0 %v7662
    %7910 = vmatpush.bf16.msra.mxu0 %v7660
    %7911 = vmatmul.bf16.gmra.mxu0 %v7444
    %v7912 = vpop.f32.mrf.mxu0
    %v7913 = vadd.f32 %v7465, %v7912
    %v7914 = vpop.f32.mrf.mxu0
    %v7915 = vadd.f32 %v7465, %v7914
    %7916 = vmatmul.bf16.gmra.mxu0 %v7448
    %v7917 = vpop.f32.mrf.mxu0
    %v7918 = vadd.f32 %v7465, %v7917
    %v7919 = vpop.f32.mrf.mxu0
    %v7920 = vadd.f32 %v7465, %v7919
    %7921 = vmatmul.bf16.gmra.mxu0 %v7452
    %v7922 = vpop.f32.mrf.mxu0
    %v7923 = vadd.f32 %v7465, %v7922
    %v7924 = vpop.f32.mrf.mxu0
    %v7925 = vadd.f32 %v7465, %v7924
    %7926 = vmatmul.bf16.gmra.mxu0 %v7456
    %v7927 = vpop.f32.mrf.mxu0
    %v7928 = vadd.f32 %v7465, %v7927
    %v7929 = vpop.f32.mrf.mxu0
    %v7930 = vadd.f32 %v7465, %v7929
    %7931 = vdwg.mxu0
    %7932 = vmatpush.bf16.msra.mxu0 %v7690
    %7933 = vmatpush.bf16.msra.mxu0 %v7688
    %7934 = vmatpush.bf16.msra.mxu0 %v7686
    %7935 = vmatpush.bf16.msra.mxu0 %v7684
    %7936 = vmatpush.bf16.msra.mxu0 %v7682
    %7937 = vmatpush.bf16.msra.mxu0 %v7680
    %7938 = vmatpush.bf16.msra.mxu0 %v7678
    %7939 = vmatpush.bf16.msra.mxu0 %v7676
    %7940 = vmatmul.bf16.gmra.mxu0 %v7445
    %v7941 = vpop.f32.mrf.mxu0
    %v7942 = vadd.f32 %v7913, %v7941
    %v7943 = vpop.f32.mrf.mxu0
    %v7944 = vadd.f32 %v7915, %v7943
    %7945 = vmatmul.bf16.gmra.mxu0 %v7449
    %v7946 = vpop.f32.mrf.mxu0
    %v7947 = vadd.f32 %v7918, %v7946
    %v7948 = vpop.f32.mrf.mxu0
    %v7949 = vadd.f32 %v7920, %v7948
    %7950 = vmatmul.bf16.gmra.mxu0 %v7453
    %v7951 = vpop.f32.mrf.mxu0
    %v7952 = vadd.f32 %v7923, %v7951
    %v7953 = vpop.f32.mrf.mxu0
    %v7954 = vadd.f32 %v7925, %v7953
    %7955 = vmatmul.bf16.gmra.mxu0 %v7457
    %v7956 = vpop.f32.mrf.mxu0
    %v7957 = vadd.f32 %v7928, %v7956
    %v7958 = vpop.f32.mrf.mxu0
    %v7959 = vadd.f32 %v7930, %v7958
    %7960 = vdwg.mxu0
    %7961 = vmatpush.bf16.msra.mxu0 %v7706
    %7962 = vmatpush.bf16.msra.mxu0 %v7704
    %7963 = vmatpush.bf16.msra.mxu0 %v7702
    %7964 = vmatpush.bf16.msra.mxu0 %v7700
    %7965 = vmatpush.bf16.msra.mxu0 %v7698
    %7966 = vmatpush.bf16.msra.mxu0 %v7696
    %7967 = vmatpush.bf16.msra.mxu0 %v7694
    %7968 = vmatpush.bf16.msra.mxu0 %v7692
    %7969 = vmatmul.bf16.gmra.mxu0 %v7446
    %v7970 = vpop.f32.mrf.mxu0
    %v7971 = vadd.f32 %v7942, %v7970
    %v7972 = vpop.f32.mrf.mxu0
    %v7973 = vadd.f32 %v7944, %v7972
    %7974 = vmatmul.bf16.gmra.mxu0 %v7450
    %v7975 = vpop.f32.mrf.mxu0
    %v7976 = vadd.f32 %v7947, %v7975
    %v7977 = vpop.f32.mrf.mxu0
    %v7978 = vadd.f32 %v7949, %v7977
    %7979 = vmatmul.bf16.gmra.mxu0 %v7454
    %v7980 = vpop.f32.mrf.mxu0
    %v7981 = vadd.f32 %v7952, %v7980
    %v7982 = vpop.f32.mrf.mxu0
    %v7983 = vadd.f32 %v7954, %v7982
    %7984 = vmatmul.bf16.gmra.mxu0 %v7458
    %v7985 = vpop.f32.mrf.mxu0
    %v7986 = vadd.f32 %v7957, %v7985
    %v7987 = vpop.f32.mrf.mxu0
    %v7988 = vadd.f32 %v7959, %v7987
    %7989 = vdwg.mxu0
    %7990 = vmatpush.bf16.msra.mxu0 %v7722
    %7991 = vmatpush.bf16.msra.mxu0 %v7720
    %7992 = vmatpush.bf16.msra.mxu0 %v7718
    %7993 = vmatpush.bf16.msra.mxu0 %v7716
    %7994 = vmatpush.bf16.msra.mxu0 %v7714
    %7995 = vmatpush.bf16.msra.mxu0 %v7712
    %7996 = vmatpush.bf16.msra.mxu0 %v7710
    %7997 = vmatpush.bf16.msra.mxu0 %v7708
    %7998 = vmatmul.bf16.gmra.mxu0 %v7447
    %v7999 = vpop.f32.mrf.mxu0
    %v8000 = vadd.f32 %v7971, %v7999
    %v8001 = vpop.f32.mrf.mxu0
    %v8002 = vadd.f32 %v7973, %v8001
    %8003 = vmatmul.bf16.gmra.mxu0 %v7451
    %v8004 = vpop.f32.mrf.mxu0
    %v8005 = vadd.f32 %v7976, %v8004
    %v8006 = vpop.f32.mrf.mxu0
    %v8007 = vadd.f32 %v7978, %v8006
    %8008 = vmatmul.bf16.gmra.mxu0 %v7455
    %v8009 = vpop.f32.mrf.mxu0
    %v8010 = vadd.f32 %v7981, %v8009
    %v8011 = vpop.f32.mrf.mxu0
    %v8012 = vadd.f32 %v7983, %v8011
    %8013 = vmatmul.bf16.gmra.mxu0 %v7459
    %v8014 = vpop.f32.mrf.mxu0
    %v8015 = vadd.f32 %v7986, %v8014
    %v8016 = vpop.f32.mrf.mxu0
    %v8017 = vadd.f32 %v7988, %v8016
    %8018 = vdwg.mxu0
    %8019 = vst [vmem:[#allocation18] sm:$0xff] %v7884
    %8020 = vst [vmem:[#allocation18 + $0x8] sm:$0xff] %v8000
    %8021 = vst [vmem:[#allocation18 + $0x10] sm:$0xff] %v7886
    %8022 = vst [vmem:[#allocation18 + $0x18] sm:$0xff] %v8002
    %8023 = vst [vmem:[#allocation18 + $0x20] sm:$0xff] %v7889
    %8024 = vst [vmem:[#allocation18 + $0x28] sm:$0xff] %v8005
    %8025 = vst [vmem:[#allocation18 + $0x30] sm:$0xff] %v7891
    %8026 = vst [vmem:[#allocation18 + $0x38] sm:$0xff] %v8007
    %8027 = vst [vmem:[#allocation18 + $0x40] sm:$0xff] %v7894
    %8028 = vst [vmem:[#allocation18 + $0x48] sm:$0xff] %v8010
    %8029 = vst [vmem:[#allocation18 + $0x50] sm:$0xff] %v7896
    %8030 = vst [vmem:[#allocation18 + $0x58] sm:$0xff] %v8012
    %8031 = vst [vmem:[#allocation18 + $0x60] sm:$0xff] %v7899
    %8032 = vst [vmem:[#allocation18 + $0x68] sm:$0xff] %v8015
    %8033 = vst [vmem:[#allocation18 + $0x70] sm:$0xff] %v7901
    %8034 = vst [vmem:[#allocation18 + $0x78] sm:$0xff] %v8017
    // Predicated region
    $region150: #{tpu_custom_call.1} parent=1 // pred_check
      _
    $region151: #{tpu_custom_call.1} parent=1 // pred_check_branch
      %8036 = sbr.rel (0) target = $region153
    $region152: #{tpu_custom_call.1} parent=1 // pred_region
      %8038 = vsyncadd [#allocation5], 0
      %s8039 = sshll.u32 [#allocation18], 4
      %s8040 = int_to_ptr.vmem [resolvable:$true] %s8039
      %s8041 = sshll.u32 %s28, 4
      %s8042 = int_to_ptr.hbm [resolvable:$true] %s8041
      %8047 = dma.vmem_to_hbm [thread:$0]  %s8040, 2048, %s8042, [#allocation5], 256, 256, 16
    $region153: #{tpu_custom_call.1} parent=1 // pred_fallthru
      _
    // Predicated region
    $region154: #{tpu_custom_call.1} parent=1 // pred_check
      _
    $region155: #{tpu_custom_call.1} parent=1 // pred_check_branch
      %8049 = sbr.rel (0) target = $region157
    $region156: #{tpu_custom_call.1} parent=1 // pred_region
      %8051 = dma.done [#allocation5], 2048
    $region157: #{tpu_custom_call.1} parent=1 // pred_fallthru
      _
    %8052 = vsyncpa [#allocation4], 1
    %8053 = vsyncpa [#allocation7], 1
    %8054 = vsyncpa [#allocation10], 1
    %8055 = vsyncpa [#allocation13], 1
    %8056 = vsyncpa [#allocation16], 1
    %8057 = vsyncpa [#allocation5], 1

</llo_original>
